<compile_context>
chip_gen: v5e
topology: v5e:2x2
jax: 0.10.0
libtpu: 0.0.40
codegen_flags: <defaults>
</compile_context>

<pallas_src>
import jax
import jax.numpy as jnp
from jax import lax
from jax import image as jimage
from jax.experimental import pallas as pl
from jax.experimental.pallas import tpu as pltpu


def _upsample2x_axis(v, axis):
    """Exact 2x linear upsample along `axis` (align_corners=False, edge clamp)."""
    n = v.shape[axis]
    head = lax.slice_in_dim(v, 0, 1, axis=axis)
    tail = lax.slice_in_dim(v, n - 1, n, axis=axis)
    prev = jnp.concatenate([head, lax.slice_in_dim(v, 0, n - 1, axis=axis)], axis=axis)
    nxt = jnp.concatenate([lax.slice_in_dim(v, 1, n, axis=axis), tail], axis=axis)
    even = 0.75 * v + 0.25 * prev      # output index 2i
    odd = 0.75 * v + 0.25 * nxt        # output index 2i + 1
    out = jnp.stack([even, odd], axis=axis + 1)
    new_shape = v.shape[:axis] + (2 * n,) + v.shape[axis + 1:]
    return out.reshape(new_shape)


def upsampling_forward(x, weight, bias):
    """x: (N, C_in, D, H, W) f32; weight: (C_out, C_in, 3, 3, 3); bias: (C_out,)."""
    N, C_in, D, H, W = x.shape
    C_out = weight.shape[0]
    Do, Ho, Wo = 2 * D, 2 * H, 2 * W
    HoWo = Ho * Wo
    Dp, Hp = Do + 2, Ho + 2
    L = Hp * Wo            # flattened, H-padded plane length
    Lp = L + 2             # +1 guard element on each side (values are masked)

    assert HoWo % 128 == 0, "Ho*Wo must be a multiple of 128 for lane-dense stores"

    # ---- wrapper-side prep (transpose the SMALL input, then upsample) ----
    xt = jnp.transpose(x, (0, 2, 1, 3, 4))        # (N, D, C, H, W)
    xu = _upsample2x_axis(xt, 1)                  # D  -> (N, Do, C, H,  W)
    xu = _upsample2x_axis(xu, 3)                  # H  -> (N, Do, C, Ho, W)
    xu = _upsample2x_axis(xu, 4)                  # W  -> (N, Do, C, Ho, Wo)
    # zero-pad D and H for the conv; W padding is handled in-kernel with masks.
    xu = jnp.pad(xu, ((0, 0), (1, 1), (0, 0), (1, 1), (0, 0)))
    # flatten each (Hp, Wo) plane + 1-element guard so every tap is a
    # contiguous in-bounds lane slice.
    xf = xu.reshape(N, Dp, C_in, L)
    xf = jnp.pad(xf, ((0, 0), (0, 0), (0, 0), (1, 1)))         # (N, Dp, C_in, Lp)

    # per-tap weight matrices, tap order (kd, kh, kw)
    w_taps = jnp.transpose(weight, (2, 3, 4, 0, 1)).reshape(27, C_out, C_in)
    b2 = bias.reshape(C_out, 1).astype(jnp.float32)

    # lane masks implementing the conv's zero padding along W
    col = jnp.arange(HoWo, dtype=jnp.int32) % Wo
    mask_l = (col != 0).astype(x.dtype).reshape(1, HoWo)        # kills w-1 wrap
    mask_r = (col != Wo - 1).astype(x.dtype).reshape(1, HoWo)   # kills w+1 wrap

    def kernel(x_ref, w_ref, b_ref, ml_ref, mr_ref, o_ref):
        # x_ref: (Dp, C_in, Lp) resident padded volume for this batch element
        # w_ref: (27, C_out, C_in); b_ref: (C_out, 1)
        # ml_ref/mr_ref: (1, HoWo); o_ref: (C_out, HoWo)
        z = pl.program_id(1)
        ml = ml_ref[...]
        mr = mr_ref[...]
        acc = jnp.zeros((C_out, HoWo), dtype=jnp.float32)
        for kd in range(3):
            for kh in range(3):
                for kw in range(3):
                    start = kh * Wo + kw          # = 1 (guard) + kh*Wo + (kw-1)
                    rhs = x_ref[z + kd, :, pl.ds(start, HoWo)]   # (C_in, HoWo)
                    if kw == 0:
                        rhs = rhs * ml
                    elif kw == 2:
                        rhs = rhs * mr
                    wt = w_ref[kd * 9 + kh * 3 + kw]             # (C_out, C_in)
                    acc = acc + jnp.dot(wt, rhs,
                                        preferred_element_type=jnp.float32)
        acc = acc + b_ref[...]
        o_ref[...] = jnp.maximum(acc, 0.0).astype(o_ref.dtype)

    out_flat = pl.pallas_call(
        kernel,
        out_shape=jax.ShapeDtypeStruct((N, C_out, Do * HoWo), x.dtype),
        grid_spec=pltpu.PrefetchScalarGridSpec(
            num_scalar_prefetch=0,
            grid=(N, Do),
            in_specs=[
                # Full padded volume of one batch element; constant block index
                # along z => Pallas keeps it resident (HBM read once per n).
                # TODO(synk): for very large volumes, tile the depth axis of this
                # resident block (it must fit VMEM: Dp*C_in*Hp*Wo*4 bytes).
                pl.BlockSpec((None, Dp, C_in, Lp), lambda n, z: (n, 0, 0, 0)),
                pl.BlockSpec((27, C_out, C_in), lambda n, z: (0, 0, 0)),
                pl.BlockSpec((C_out, 1), lambda n, z: (0, 0)),
                pl.BlockSpec((1, HoWo), lambda n, z: (0, 0)),
                pl.BlockSpec((1, HoWo), lambda n, z: (0, 0)),
            ],
            out_specs=pl.BlockSpec((None, C_out, HoWo), lambda n, z: (n, 0, z)),
        ),
        compiler_params=pltpu.CompilerParams(
            dimension_semantics=("parallel", "arbitrary")),
    )(xf, w_taps, b2, mask_l, mask_r)

    # free metadata reshape: (N, C_out, Do*Ho*Wo) is already NCDHW-contiguous.
    return out_flat.reshape(N, C_out, Do, Ho, Wo)


def _reference_forward(x, weight, bias):
    """Pure-JAX reference: trilinear x2 (align_corners=False) -> conv3(p=1) -> ReLU."""
    N, C, D, H, W = x.shape
    xu = jimage.resize(x, (N, C, 2 * D, 2 * H, 2 * W), method="trilinear")
    y = lax.conv_general_dilated(
        xu, weight,
        window_strides=(1, 1, 1),
        padding=((1, 1), (1, 1), (1, 1)),
        dimension_numbers=("NCDHW", "OIDHW", "NCDHW"),
        precision=lax.Precision.HIGHEST)
    y = y + bias.reshape(1, -1, 1, 1, 1)
    return jnp.maximum(y, 0.0)


if __name__ == "__main__":
    key = jax.random.PRNGKey(0)
    k_x, k_w, k_b = jax.random.split(key, 3)

    N, C_in, C_out = 2, 4, 8
    D = H = W = 16

    x = jax.random.normal(k_x, (N, C_in, D, H, W), dtype=jnp.float32)
    # Deterministic "init": mimic PyTorch kaiming-uniform-ish scale, fixed seed.
    fan_in = C_in * 3 * 3 * 3
    bound = 1.0 / (fan_in ** 0.5)
    weight = jax.random.uniform(k_w, (C_out, C_in, 3, 3, 3),
                                minval=-bound, maxval=bound, dtype=jnp.float32)
    bias = jax.random.uniform(k_b, (C_out,), minval=-bound, maxval=bound,
                              dtype=jnp.float32)

    fwd = jax.jit(upsampling_forward)
    out = jax.block_until_ready(fwd(x, weight, bias))

    ref = jax.block_until_ready(_reference_forward(x, weight, bias))
    assert out.shape == (N, C_out, 2 * D, 2 * H, 2 * W), out.shape
    max_err = float(jnp.max(jnp.abs(out - ref)))
    # Tolerance accounts for possible reduced-precision (bf16-pass) f32 matmuls
    # on the MXU vs the HIGHEST-precision XLA reference; structural bugs would
    # produce errors >= ~0.1.
    assert max_err < 2e-2, max_err
    print("KERNEL_OK")
</pallas_src>

<mosaic_0001>
module attributes {stable_mosaic.version = 11 : i64} {
  func.func @kernel(%arg0: i32, %arg1: i32, %arg2: memref<1x34x4x1090xf32, #tpu.memory_space<vmem>>, %arg3: memref<27x8x4xf32, #tpu.memory_space<vmem>>, %arg4: memref<8x1xf32, #tpu.memory_space<vmem>>, %arg5: memref<1x1024xf32, #tpu.memory_space<vmem>>, %arg6: memref<1x1024xf32, #tpu.memory_space<vmem>>, %arg7: memref<1x8x1024xf32, #tpu.memory_space<vmem>>) attributes {dimension_semantics = [#tpu.dimension_semantics<parallel>, #tpu.dimension_semantics<arbitrary>], iteration_bounds = array<i64: 2, 32>, scalar_prefetch = 0 : i64, scratch_operands = 0 : i64, tpu.core_type = #tpu.core_type<tc>, window_params = [{transform_indices = @transform_0, window_bounds = array<i64: 1, 34, 4, 1090>}, {pipeline_mode = #tpu.pipeline_mode<synchronous>, transform_indices = @transform_1, window_bounds = array<i64: 27, 8, 4>}, {pipeline_mode = #tpu.pipeline_mode<synchronous>, transform_indices = @transform_2, window_bounds = array<i64: 8, 1>}, {pipeline_mode = #tpu.pipeline_mode<synchronous>, transform_indices = @transform_3, window_bounds = array<i64: 1, 1024>}, {pipeline_mode = #tpu.pipeline_mode<synchronous>, transform_indices = @transform_4, window_bounds = array<i64: 1, 1024>}, {transform_indices = @transform_5, window_bounds = array<i64: 1, 8, 1024>}]} {
    %c0 = arith.constant 0 : index
    %c0_0 = arith.constant 0 : index
    %0 = vector.load %arg5[%c0, %c0_0] : memref<1x1024xf32, #tpu.memory_space<vmem>>, vector<1x1024xf32>
    %c0_1 = arith.constant 0 : index
    %c0_2 = arith.constant 0 : index
    %1 = vector.load %arg6[%c0_1, %c0_2] : memref<1x1024xf32, #tpu.memory_space<vmem>>, vector<1x1024xf32>
    %cst = arith.constant 0.000000e+00 : f32
    %2 = vector.broadcast %cst : f32 to vector<8x1024xf32>
    %c0_i32 = arith.constant 0 : i32
    %3 = arith.addi %arg1, %c0_i32 : i32
    %c0_3 = arith.constant 0 : index
    %4 = arith.index_cast %3 : i32 to index
    %c0_4 = arith.constant 0 : index
    %c0_5 = arith.constant 0 : index
    %5 = vector.load %arg2[%c0_3, %4, %c0_4, %c0_5] : memref<1x34x4x1090xf32, #tpu.memory_space<vmem>>, vector<1x1x4x1024xf32>
    %6 = vector.shape_cast %5 : vector<1x1x4x1024xf32> to vector<4x1024xf32>
    %7 = vector.broadcast %0 : vector<1x1024xf32> to vector<4x1024xf32>
    %8 = arith.mulf %6, %7 : vector<4x1024xf32>
    %c0_6 = arith.constant 0 : index
    %c0_7 = arith.constant 0 : index
    %c0_8 = arith.constant 0 : index
    %9 = vector.load %arg3[%c0_6, %c0_7, %c0_8] : memref<27x8x4xf32, #tpu.memory_space<vmem>>, vector<1x8x4xf32>
    %10 = vector.shape_cast %9 : vector<1x8x4xf32> to vector<8x4xf32>
    %cst_9 = arith.constant dense<0.000000e+00> : vector<8x1024xf32>
    %11 = tpu.matmul %10, %8, %cst_9 {dimension_numbers = #tpu.dot_dimension_numbers<[1], [0], [0], [1], [0, 0, 1, 1], [], []>} : vector<8x4xf32>, vector<4x1024xf32>, vector<8x1024xf32> -> vector<8x1024xf32>
    %12 = arith.addf %2, %11 : vector<8x1024xf32>
    %c0_i32_10 = arith.constant 0 : i32
    %13 = arith.addi %arg1, %c0_i32_10 : i32
    %c0_11 = arith.constant 0 : index
    %14 = arith.index_cast %13 : i32 to index
    %c0_12 = arith.constant 0 : index
    %c1 = arith.constant 1 : index
    %15 = vector.load %arg2[%c0_11, %14, %c0_12, %c1] : memref<1x34x4x1090xf32, #tpu.memory_space<vmem>>, vector<1x1x4x1024xf32>
    %16 = vector.shape_cast %15 : vector<1x1x4x1024xf32> to vector<4x1024xf32>
    %c1_13 = arith.constant 1 : index
    %c0_14 = arith.constant 0 : index
    %c0_15 = arith.constant 0 : index
    %17 = vector.load %arg3[%c1_13, %c0_14, %c0_15] : memref<27x8x4xf32, #tpu.memory_space<vmem>>, vector<1x8x4xf32>
    %18 = vector.shape_cast %17 : vector<1x8x4xf32> to vector<8x4xf32>
    %cst_16 = arith.constant dense<0.000000e+00> : vector<8x1024xf32>
    %19 = tpu.matmul %18, %16, %cst_16 {dimension_numbers = #tpu.dot_dimension_numbers<[1], [0], [0], [1], [0, 0, 1, 1], [], []>} : vector<8x4xf32>, vector<4x1024xf32>, vector<8x1024xf32> -> vector<8x1024xf32>
    %20 = arith.addf %12, %19 : vector<8x1024xf32>
    %c0_i32_17 = arith.constant 0 : i32
    %21 = arith.addi %arg1, %c0_i32_17 : i32
    %c0_18 = arith.constant 0 : index
    %22 = arith.index_cast %21 : i32 to index
    %c0_19 = arith.constant 0 : index
    %c2 = arith.constant 2 : index
    %23 = vector.load %arg2[%c0_18, %22, %c0_19, %c2] : memref<1x34x4x1090xf32, #tpu.memory_space<vmem>>, vector<1x1x4x1024xf32>
    %24 = vector.shape_cast %23 : vector<1x1x4x1024xf32> to vector<4x1024xf32>
    %25 = vector.broadcast %1 : vector<1x1024xf32> to vector<4x1024xf32>
    %26 = arith.mulf %24, %25 : vector<4x1024xf32>
    %c2_20 = arith.constant 2 : index
    %c0_21 = arith.constant 0 : index
    %c0_22 = arith.constant 0 : index
    %27 = vector.load %arg3[%c2_20, %c0_21, %c0_22] : memref<27x8x4xf32, #tpu.memory_space<vmem>>, vector<1x8x4xf32>
    %28 = vector.shape_cast %27 : vector<1x8x4xf32> to vector<8x4xf32>
    %cst_23 = arith.constant dense<0.000000e+00> : vector<8x1024xf32>
    %29 = tpu.matmul %28, %26, %cst_23 {dimension_numbers = #tpu.dot_dimension_numbers<[1], [0], [0], [1], [0, 0, 1, 1], [], []>} : vector<8x4xf32>, vector<4x1024xf32>, vector<8x1024xf32> -> vector<8x1024xf32>
    %30 = arith.addf %20, %29 : vector<8x1024xf32>
    %c0_i32_24 = arith.constant 0 : i32
    %31 = arith.addi %arg1, %c0_i32_24 : i32
    %c0_25 = arith.constant 0 : index
    %32 = arith.index_cast %31 : i32 to index
    %c0_26 = arith.constant 0 : index
    %c32 = arith.constant 32 : index
    %33 = vector.load %arg2[%c0_25, %32, %c0_26, %c32] : memref<1x34x4x1090xf32, #tpu.memory_space<vmem>>, vector<1x1x4x1024xf32>
    %34 = vector.shape_cast %33 : vector<1x1x4x1024xf32> to vector<4x1024xf32>
    %35 = vector.broadcast %0 : vector<1x1024xf32> to vector<4x1024xf32>
    %36 = arith.mulf %34, %35 : vector<4x1024xf32>
    %c3 = arith.constant 3 : index
    %c0_27 = arith.constant 0 : index
    %c0_28 = arith.constant 0 : index
    %37 = vector.load %arg3[%c3, %c0_27, %c0_28] : memref<27x8x4xf32, #tpu.memory_space<vmem>>, vector<1x8x4xf32>
    %38 = vector.shape_cast %37 : vector<1x8x4xf32> to vector<8x4xf32>
    %cst_29 = arith.constant dense<0.000000e+00> : vector<8x1024xf32>
    %39 = tpu.matmul %38, %36, %cst_29 {dimension_numbers = #tpu.dot_dimension_numbers<[1], [0], [0], [1], [0, 0, 1, 1], [], []>} : vector<8x4xf32>, vector<4x1024xf32>, vector<8x1024xf32> -> vector<8x1024xf32>
    %40 = arith.addf %30, %39 : vector<8x1024xf32>
    %c0_i32_30 = arith.constant 0 : i32
    %41 = arith.addi %arg1, %c0_i32_30 : i32
    %c0_31 = arith.constant 0 : index
    %42 = arith.index_cast %41 : i32 to index
    %c0_32 = arith.constant 0 : index
    %c33 = arith.constant 33 : index
    %43 = vector.load %arg2[%c0_31, %42, %c0_32, %c33] : memref<1x34x4x1090xf32, #tpu.memory_space<vmem>>, vector<1x1x4x1024xf32>
    %44 = vector.shape_cast %43 : vector<1x1x4x1024xf32> to vector<4x1024xf32>
    %c4 = arith.constant 4 : index
    %c0_33 = arith.constant 0 : index
    %c0_34 = arith.constant 0 : index
    %45 = vector.load %arg3[%c4, %c0_33, %c0_34] : memref<27x8x4xf32, #tpu.memory_space<vmem>>, vector<1x8x4xf32>
    %46 = vector.shape_cast %45 : vector<1x8x4xf32> to vector<8x4xf32>
    %cst_35 = arith.constant dense<0.000000e+00> : vector<8x1024xf32>
    %47 = tpu.matmul %46, %44, %cst_35 {dimension_numbers = #tpu.dot_dimension_numbers<[1], [0], [0], [1], [0, 0, 1, 1], [], []>} : vector<8x4xf32>, vector<4x1024xf32>, vector<8x1024xf32> -> vector<8x1024xf32>
    %48 = arith.addf %40, %47 : vector<8x1024xf32>
    %c0_i32_36 = arith.constant 0 : i32
    %49 = arith.addi %arg1, %c0_i32_36 : i32
    %c0_37 = arith.constant 0 : index
    %50 = arith.index_cast %49 : i32 to index
    %c0_38 = arith.constant 0 : index
    %c34 = arith.constant 34 : index
    %51 = vector.load %arg2[%c0_37, %50, %c0_38, %c34] : memref<1x34x4x1090xf32, #tpu.memory_space<vmem>>, vector<1x1x4x1024xf32>
    %52 = vector.shape_cast %51 : vector<1x1x4x1024xf32> to vector<4x1024xf32>
    %53 = vector.broadcast %1 : vector<1x1024xf32> to vector<4x1024xf32>
    %54 = arith.mulf %52, %53 : vector<4x1024xf32>
    %c5 = arith.constant 5 : index
    %c0_39 = arith.constant 0 : index
    %c0_40 = arith.constant 0 : index
    %55 = vector.load %arg3[%c5, %c0_39, %c0_40] : memref<27x8x4xf32, #tpu.memory_space<vmem>>, vector<1x8x4xf32>
    %56 = vector.shape_cast %55 : vector<1x8x4xf32> to vector<8x4xf32>
    %cst_41 = arith.constant dense<0.000000e+00> : vector<8x1024xf32>
    %57 = tpu.matmul %56, %54, %cst_41 {dimension_numbers = #tpu.dot_dimension_numbers<[1], [0], [0], [1], [0, 0, 1, 1], [], []>} : vector<8x4xf32>, vector<4x1024xf32>, vector<8x1024xf32> -> vector<8x1024xf32>
    %58 = arith.addf %48, %57 : vector<8x1024xf32>
    %c0_i32_42 = arith.constant 0 : i32
    %59 = arith.addi %arg1, %c0_i32_42 : i32
    %c0_43 = arith.constant 0 : index
    %60 = arith.index_cast %59 : i32 to index
    %c0_44 = arith.constant 0 : index
    %c64 = arith.constant 64 : index
    %61 = vector.load %arg2[%c0_43, %60, %c0_44, %c64] : memref<1x34x4x1090xf32, #tpu.memory_space<vmem>>, vector<1x1x4x1024xf32>
    %62 = vector.shape_cast %61 : vector<1x1x4x1024xf32> to vector<4x1024xf32>
    %63 = vector.broadcast %0 : vector<1x1024xf32> to vector<4x1024xf32>
    %64 = arith.mulf %62, %63 : vector<4x1024xf32>
    %c6 = arith.constant 6 : index
    %c0_45 = arith.constant 0 : index
    %c0_46 = arith.constant 0 : index
    %65 = vector.load %arg3[%c6, %c0_45, %c0_46] : memref<27x8x4xf32, #tpu.memory_space<vmem>>, vector<1x8x4xf32>
    %66 = vector.shape_cast %65 : vector<1x8x4xf32> to vector<8x4xf32>
    %cst_47 = arith.constant dense<0.000000e+00> : vector<8x1024xf32>
    %67 = tpu.matmul %66, %64, %cst_47 {dimension_numbers = #tpu.dot_dimension_numbers<[1], [0], [0], [1], [0, 0, 1, 1], [], []>} : vector<8x4xf32>, vector<4x1024xf32>, vector<8x1024xf32> -> vector<8x1024xf32>
    %68 = arith.addf %58, %67 : vector<8x1024xf32>
    %c0_i32_48 = arith.constant 0 : i32
    %69 = arith.addi %arg1, %c0_i32_48 : i32
    %c0_49 = arith.constant 0 : index
    %70 = arith.index_cast %69 : i32 to index
    %c0_50 = arith.constant 0 : index
    %c65 = arith.constant 65 : index
    %71 = vector.load %arg2[%c0_49, %70, %c0_50, %c65] : memref<1x34x4x1090xf32, #tpu.memory_space<vmem>>, vector<1x1x4x1024xf32>
    %72 = vector.shape_cast %71 : vector<1x1x4x1024xf32> to vector<4x1024xf32>
    %c7 = arith.constant 7 : index
    %c0_51 = arith.constant 0 : index
    %c0_52 = arith.constant 0 : index
    %73 = vector.load %arg3[%c7, %c0_51, %c0_52] : memref<27x8x4xf32, #tpu.memory_space<vmem>>, vector<1x8x4xf32>
    %74 = vector.shape_cast %73 : vector<1x8x4xf32> to vector<8x4xf32>
    %cst_53 = arith.constant dense<0.000000e+00> : vector<8x1024xf32>
    %75 = tpu.matmul %74, %72, %cst_53 {dimension_numbers = #tpu.dot_dimension_numbers<[1], [0], [0], [1], [0, 0, 1, 1], [], []>} : vector<8x4xf32>, vector<4x1024xf32>, vector<8x1024xf32> -> vector<8x1024xf32>
    %76 = arith.addf %68, %75 : vector<8x1024xf32>
    %c0_i32_54 = arith.constant 0 : i32
    %77 = arith.addi %arg1, %c0_i32_54 : i32
    %c0_55 = arith.constant 0 : index
    %78 = arith.index_cast %77 : i32 to index
    %c0_56 = arith.constant 0 : index
    %c66 = arith.constant 66 : index
    %79 = vector.load %arg2[%c0_55, %78, %c0_56, %c66] : memref<1x34x4x1090xf32, #tpu.memory_space<vmem>>, vector<1x1x4x1024xf32>
    %80 = vector.shape_cast %79 : vector<1x1x4x1024xf32> to vector<4x1024xf32>
    %81 = vector.broadcast %1 : vector<1x1024xf32> to vector<4x1024xf32>
    %82 = arith.mulf %80, %81 : vector<4x1024xf32>
    %c8 = arith.constant 8 : index
    %c0_57 = arith.constant 0 : index
    %c0_58 = arith.constant 0 : index
    %83 = vector.load %arg3[%c8, %c0_57, %c0_58] : memref<27x8x4xf32, #tpu.memory_space<vmem>>, vector<1x8x4xf32>
    %84 = vector.shape_cast %83 : vector<1x8x4xf32> to vector<8x4xf32>
    %cst_59 = arith.constant dense<0.000000e+00> : vector<8x1024xf32>
    %85 = tpu.matmul %84, %82, %cst_59 {dimension_numbers = #tpu.dot_dimension_numbers<[1], [0], [0], [1], [0, 0, 1, 1], [], []>} : vector<8x4xf32>, vector<4x1024xf32>, vector<8x1024xf32> -> vector<8x1024xf32>
    %86 = arith.addf %76, %85 : vector<8x1024xf32>
    %c1_i32 = arith.constant 1 : i32
    %87 = arith.addi %arg1, %c1_i32 : i32
    %c0_60 = arith.constant 0 : index
    %88 = arith.index_cast %87 : i32 to index
    %c0_61 = arith.constant 0 : index
    %c0_62 = arith.constant 0 : index
    %89 = vector.load %arg2[%c0_60, %88, %c0_61, %c0_62] : memref<1x34x4x1090xf32, #tpu.memory_space<vmem>>, vector<1x1x4x1024xf32>
    %90 = vector.shape_cast %89 : vector<1x1x4x1024xf32> to vector<4x1024xf32>
    %91 = vector.broadcast %0 : vector<1x1024xf32> to vector<4x1024xf32>
    %92 = arith.mulf %90, %91 : vector<4x1024xf32>
    %c9 = arith.constant 9 : index
    %c0_63 = arith.constant 0 : index
    %c0_64 = arith.constant 0 : index
    %93 = vector.load %arg3[%c9, %c0_63, %c0_64] : memref<27x8x4xf32, #tpu.memory_space<vmem>>, vector<1x8x4xf32>
    %94 = vector.shape_cast %93 : vector<1x8x4xf32> to vector<8x4xf32>
    %cst_65 = arith.constant dense<0.000000e+00> : vector<8x1024xf32>
    %95 = tpu.matmul %94, %92, %cst_65 {dimension_numbers = #tpu.dot_dimension_numbers<[1], [0], [0], [1], [0, 0, 1, 1], [], []>} : vector<8x4xf32>, vector<4x1024xf32>, vector<8x1024xf32> -> vector<8x1024xf32>
    %96 = arith.addf %86, %95 : vector<8x1024xf32>
    %c1_i32_66 = arith.constant 1 : i32
    %97 = arith.addi %arg1, %c1_i32_66 : i32
    %c0_67 = arith.constant 0 : index
    %98 = arith.index_cast %97 : i32 to index
    %c0_68 = arith.constant 0 : index
    %c1_69 = arith.constant 1 : index
    %99 = vector.load %arg2[%c0_67, %98, %c0_68, %c1_69] : memref<1x34x4x1090xf32, #tpu.memory_space<vmem>>, vector<1x1x4x1024xf32>
    %100 = vector.shape_cast %99 : vector<1x1x4x1024xf32> to vector<4x1024xf32>
    %c10 = arith.constant 10 : index
    %c0_70 = arith.constant 0 : index
    %c0_71 = arith.constant 0 : index
    %101 = vector.load %arg3[%c10, %c0_70, %c0_71] : memref<27x8x4xf32, #tpu.memory_space<vmem>>, vector<1x8x4xf32>
    %102 = vector.shape_cast %101 : vector<1x8x4xf32> to vector<8x4xf32>
    %cst_72 = arith.constant dense<0.000000e+00> : vector<8x1024xf32>
    %103 = tpu.matmul %102, %100, %cst_72 {dimension_numbers = #tpu.dot_dimension_numbers<[1], [0], [0], [1], [0, 0, 1, 1], [], []>} : vector<8x4xf32>, vector<4x1024xf32>, vector<8x1024xf32> -> vector<8x1024xf32>
    %104 = arith.addf %96, %103 : vector<8x1024xf32>
    %c1_i32_73 = arith.constant 1 : i32
    %105 = arith.addi %arg1, %c1_i32_73 : i32
    %c0_74 = arith.constant 0 : index
    %106 = arith.index_cast %105 : i32 to index
    %c0_75 = arith.constant 0 : index
    %c2_76 = arith.constant 2 : index
    %107 = vector.load %arg2[%c0_74, %106, %c0_75, %c2_76] : memref<1x34x4x1090xf32, #tpu.memory_space<vmem>>, vector<1x1x4x1024xf32>
    %108 = vector.shape_cast %107 : vector<1x1x4x1024xf32> to vector<4x1024xf32>
    %109 = vector.broadcast %1 : vector<1x1024xf32> to vector<4x1024xf32>
    %110 = arith.mulf %108, %109 : vector<4x1024xf32>
    %c11 = arith.constant 11 : index
    %c0_77 = arith.constant 0 : index
    %c0_78 = arith.constant 0 : index
    %111 = vector.load %arg3[%c11, %c0_77, %c0_78] : memref<27x8x4xf32, #tpu.memory_space<vmem>>, vector<1x8x4xf32>
    %112 = vector.shape_cast %111 : vector<1x8x4xf32> to vector<8x4xf32>
    %cst_79 = arith.constant dense<0.000000e+00> : vector<8x1024xf32>
    %113 = tpu.matmul %112, %110, %cst_79 {dimension_numbers = #tpu.dot_dimension_numbers<[1], [0], [0], [1], [0, 0, 1, 1], [], []>} : vector<8x4xf32>, vector<4x1024xf32>, vector<8x1024xf32> -> vector<8x1024xf32>
    %114 = arith.addf %104, %113 : vector<8x1024xf32>
    %c1_i32_80 = arith.constant 1 : i32
    %115 = arith.addi %arg1, %c1_i32_80 : i32
    %c0_81 = arith.constant 0 : index
    %116 = arith.index_cast %115 : i32 to index
    %c0_82 = arith.constant 0 : index
    %c32_83 = arith.constant 32 : index
    %117 = vector.load %arg2[%c0_81, %116, %c0_82, %c32_83] : memref<1x34x4x1090xf32, #tpu.memory_space<vmem>>, vector<1x1x4x1024xf32>
    %118 = vector.shape_cast %117 : vector<1x1x4x1024xf32> to vector<4x1024xf32>
    %119 = vector.broadcast %0 : vector<1x1024xf32> to vector<4x1024xf32>
    %120 = arith.mulf %118, %119 : vector<4x1024xf32>
    %c12 = arith.constant 12 : index
    %c0_84 = arith.constant 0 : index
    %c0_85 = arith.constant 0 : index
    %121 = vector.load %arg3[%c12, %c0_84, %c0_85] : memref<27x8x4xf32, #tpu.memory_space<vmem>>, vector<1x8x4xf32>
    %122 = vector.shape_cast %121 : vector<1x8x4xf32> to vector<8x4xf32>
    %cst_86 = arith.constant dense<0.000000e+00> : vector<8x1024xf32>
    %123 = tpu.matmul %122, %120, %cst_86 {dimension_numbers = #tpu.dot_dimension_numbers<[1], [0], [0], [1], [0, 0, 1, 1], [], []>} : vector<8x4xf32>, vector<4x1024xf32>, vector<8x1024xf32> -> vector<8x1024xf32>
    %124 = arith.addf %114, %123 : vector<8x1024xf32>
    %c1_i32_87 = arith.constant 1 : i32
    %125 = arith.addi %arg1, %c1_i32_87 : i32
    %c0_88 = arith.constant 0 : index
    %126 = arith.index_cast %125 : i32 to index
    %c0_89 = arith.constant 0 : index
    %c33_90 = arith.constant 33 : index
    %127 = vector.load %arg2[%c0_88, %126, %c0_89, %c33_90] : memref<1x34x4x1090xf32, #tpu.memory_space<vmem>>, vector<1x1x4x1024xf32>
    %128 = vector.shape_cast %127 : vector<1x1x4x1024xf32> to vector<4x1024xf32>
    %c13 = arith.constant 13 : index
    %c0_91 = arith.constant 0 : index
    %c0_92 = arith.constant 0 : index
    %129 = vector.load %arg3[%c13, %c0_91, %c0_92] : memref<27x8x4xf32, #tpu.memory_space<vmem>>, vector<1x8x4xf32>
    %130 = vector.shape_cast %129 : vector<1x8x4xf32> to vector<8x4xf32>
    %cst_93 = arith.constant dense<0.000000e+00> : vector<8x1024xf32>
    %131 = tpu.matmul %130, %128, %cst_93 {dimension_numbers = #tpu.dot_dimension_numbers<[1], [0], [0], [1], [0, 0, 1, 1], [], []>} : vector<8x4xf32>, vector<4x1024xf32>, vector<8x1024xf32> -> vector<8x1024xf32>
    %132 = arith.addf %124, %131 : vector<8x1024xf32>
    %c1_i32_94 = arith.constant 1 : i32
    %133 = arith.addi %arg1, %c1_i32_94 : i32
    %c0_95 = arith.constant 0 : index
    %134 = arith.index_cast %133 : i32 to index
    %c0_96 = arith.constant 0 : index
    %c34_97 = arith.constant 34 : index
    %135 = vector.load %arg2[%c0_95, %134, %c0_96, %c34_97] : memref<1x34x4x1090xf32, #tpu.memory_space<vmem>>, vector<1x1x4x1024xf32>
    %136 = vector.shape_cast %135 : vector<1x1x4x1024xf32> to vector<4x1024xf32>
    %137 = vector.broadcast %1 : vector<1x1024xf32> to vector<4x1024xf32>
    %138 = arith.mulf %136, %137 : vector<4x1024xf32>
    %c14 = arith.constant 14 : index
    %c0_98 = arith.constant 0 : index
    %c0_99 = arith.constant 0 : index
    %139 = vector.load %arg3[%c14, %c0_98, %c0_99] : memref<27x8x4xf32, #tpu.memory_space<vmem>>, vector<1x8x4xf32>
    %140 = vector.shape_cast %139 : vector<1x8x4xf32> to vector<8x4xf32>
    %cst_100 = arith.constant dense<0.000000e+00> : vector<8x1024xf32>
    %141 = tpu.matmul %140, %138, %cst_100 {dimension_numbers = #tpu.dot_dimension_numbers<[1], [0], [0], [1], [0, 0, 1, 1], [], []>} : vector<8x4xf32>, vector<4x1024xf32>, vector<8x1024xf32> -> vector<8x1024xf32>
    %142 = arith.addf %132, %141 : vector<8x1024xf32>
    %c1_i32_101 = arith.constant 1 : i32
    %143 = arith.addi %arg1, %c1_i32_101 : i32
    %c0_102 = arith.constant 0 : index
    %144 = arith.index_cast %143 : i32 to index
    %c0_103 = arith.constant 0 : index
    %c64_104 = arith.constant 64 : index
    %145 = vector.load %arg2[%c0_102, %144, %c0_103, %c64_104] : memref<1x34x4x1090xf32, #tpu.memory_space<vmem>>, vector<1x1x4x1024xf32>
    %146 = vector.shape_cast %145 : vector<1x1x4x1024xf32> to vector<4x1024xf32>
    %147 = vector.broadcast %0 : vector<1x1024xf32> to vector<4x1024xf32>
    %148 = arith.mulf %146, %147 : vector<4x1024xf32>
    %c15 = arith.constant 15 : index
    %c0_105 = arith.constant 0 : index
    %c0_106 = arith.constant 0 : index
    %149 = vector.load %arg3[%c15, %c0_105, %c0_106] : memref<27x8x4xf32, #tpu.memory_space<vmem>>, vector<1x8x4xf32>
    %150 = vector.shape_cast %149 : vector<1x8x4xf32> to vector<8x4xf32>
    %cst_107 = arith.constant dense<0.000000e+00> : vector<8x1024xf32>
    %151 = tpu.matmul %150, %148, %cst_107 {dimension_numbers = #tpu.dot_dimension_numbers<[1], [0], [0], [1], [0, 0, 1, 1], [], []>} : vector<8x4xf32>, vector<4x1024xf32>, vector<8x1024xf32> -> vector<8x1024xf32>
    %152 = arith.addf %142, %151 : vector<8x1024xf32>
    %c1_i32_108 = arith.constant 1 : i32
    %153 = arith.addi %arg1, %c1_i32_108 : i32
    %c0_109 = arith.constant 0 : index
    %154 = arith.index_cast %153 : i32 to index
    %c0_110 = arith.constant 0 : index
    %c65_111 = arith.constant 65 : index
    %155 = vector.load %arg2[%c0_109, %154, %c0_110, %c65_111] : memref<1x34x4x1090xf32, #tpu.memory_space<vmem>>, vector<1x1x4x1024xf32>
    %156 = vector.shape_cast %155 : vector<1x1x4x1024xf32> to vector<4x1024xf32>
    %c16 = arith.constant 16 : index
    %c0_112 = arith.constant 0 : index
    %c0_113 = arith.constant 0 : index
    %157 = vector.load %arg3[%c16, %c0_112, %c0_113] : memref<27x8x4xf32, #tpu.memory_space<vmem>>, vector<1x8x4xf32>
    %158 = vector.shape_cast %157 : vector<1x8x4xf32> to vector<8x4xf32>
    %cst_114 = arith.constant dense<0.000000e+00> : vector<8x1024xf32>
    %159 = tpu.matmul %158, %156, %cst_114 {dimension_numbers = #tpu.dot_dimension_numbers<[1], [0], [0], [1], [0, 0, 1, 1], [], []>} : vector<8x4xf32>, vector<4x1024xf32>, vector<8x1024xf32> -> vector<8x1024xf32>
    %160 = arith.addf %152, %159 : vector<8x1024xf32>
    %c1_i32_115 = arith.constant 1 : i32
    %161 = arith.addi %arg1, %c1_i32_115 : i32
    %c0_116 = arith.constant 0 : index
    %162 = arith.index_cast %161 : i32 to index
    %c0_117 = arith.constant 0 : index
    %c66_118 = arith.constant 66 : index
    %163 = vector.load %arg2[%c0_116, %162, %c0_117, %c66_118] : memref<1x34x4x1090xf32, #tpu.memory_space<vmem>>, vector<1x1x4x1024xf32>
    %164 = vector.shape_cast %163 : vector<1x1x4x1024xf32> to vector<4x1024xf32>
    %165 = vector.broadcast %1 : vector<1x1024xf32> to vector<4x1024xf32>
    %166 = arith.mulf %164, %165 : vector<4x1024xf32>
    %c17 = arith.constant 17 : index
    %c0_119 = arith.constant 0 : index
    %c0_120 = arith.constant 0 : index
    %167 = vector.load %arg3[%c17, %c0_119, %c0_120] : memref<27x8x4xf32, #tpu.memory_space<vmem>>, vector<1x8x4xf32>
    %168 = vector.shape_cast %167 : vector<1x8x4xf32> to vector<8x4xf32>
    %cst_121 = arith.constant dense<0.000000e+00> : vector<8x1024xf32>
    %169 = tpu.matmul %168, %166, %cst_121 {dimension_numbers = #tpu.dot_dimension_numbers<[1], [0], [0], [1], [0, 0, 1, 1], [], []>} : vector<8x4xf32>, vector<4x1024xf32>, vector<8x1024xf32> -> vector<8x1024xf32>
    %170 = arith.addf %160, %169 : vector<8x1024xf32>
    %c2_i32 = arith.constant 2 : i32
    %171 = arith.addi %arg1, %c2_i32 : i32
    %c0_122 = arith.constant 0 : index
    %172 = arith.index_cast %171 : i32 to index
    %c0_123 = arith.constant 0 : index
    %c0_124 = arith.constant 0 : index
    %173 = vector.load %arg2[%c0_122, %172, %c0_123, %c0_124] : memref<1x34x4x1090xf32, #tpu.memory_space<vmem>>, vector<1x1x4x1024xf32>
    %174 = vector.shape_cast %173 : vector<1x1x4x1024xf32> to vector<4x1024xf32>
    %175 = vector.broadcast %0 : vector<1x1024xf32> to vector<4x1024xf32>
    %176 = arith.mulf %174, %175 : vector<4x1024xf32>
    %c18 = arith.constant 18 : index
    %c0_125 = arith.constant 0 : index
    %c0_126 = arith.constant 0 : index
    %177 = vector.load %arg3[%c18, %c0_125, %c0_126] : memref<27x8x4xf32, #tpu.memory_space<vmem>>, vector<1x8x4xf32>
    %178 = vector.shape_cast %177 : vector<1x8x4xf32> to vector<8x4xf32>
    %cst_127 = arith.constant dense<0.000000e+00> : vector<8x1024xf32>
    %179 = tpu.matmul %178, %176, %cst_127 {dimension_numbers = #tpu.dot_dimension_numbers<[1], [0], [0], [1], [0, 0, 1, 1], [], []>} : vector<8x4xf32>, vector<4x1024xf32>, vector<8x1024xf32> -> vector<8x1024xf32>
    %180 = arith.addf %170, %179 : vector<8x1024xf32>
    %c2_i32_128 = arith.constant 2 : i32
    %181 = arith.addi %arg1, %c2_i32_128 : i32
    %c0_129 = arith.constant 0 : index
    %182 = arith.index_cast %181 : i32 to index
    %c0_130 = arith.constant 0 : index
    %c1_131 = arith.constant 1 : index
    %183 = vector.load %arg2[%c0_129, %182, %c0_130, %c1_131] : memref<1x34x4x1090xf32, #tpu.memory_space<vmem>>, vector<1x1x4x1024xf32>
    %184 = vector.shape_cast %183 : vector<1x1x4x1024xf32> to vector<4x1024xf32>
    %c19 = arith.constant 19 : index
    %c0_132 = arith.constant 0 : index
    %c0_133 = arith.constant 0 : index
    %185 = vector.load %arg3[%c19, %c0_132, %c0_133] : memref<27x8x4xf32, #tpu.memory_space<vmem>>, vector<1x8x4xf32>
    %186 = vector.shape_cast %185 : vector<1x8x4xf32> to vector<8x4xf32>
    %cst_134 = arith.constant dense<0.000000e+00> : vector<8x1024xf32>
    %187 = tpu.matmul %186, %184, %cst_134 {dimension_numbers = #tpu.dot_dimension_numbers<[1], [0], [0], [1], [0, 0, 1, 1], [], []>} : vector<8x4xf32>, vector<4x1024xf32>, vector<8x1024xf32> -> vector<8x1024xf32>
    %188 = arith.addf %180, %187 : vector<8x1024xf32>
    %c2_i32_135 = arith.constant 2 : i32
    %189 = arith.addi %arg1, %c2_i32_135 : i32
    %c0_136 = arith.constant 0 : index
    %190 = arith.index_cast %189 : i32 to index
    %c0_137 = arith.constant 0 : index
    %c2_138 = arith.constant 2 : index
    %191 = vector.load %arg2[%c0_136, %190, %c0_137, %c2_138] : memref<1x34x4x1090xf32, #tpu.memory_space<vmem>>, vector<1x1x4x1024xf32>
    %192 = vector.shape_cast %191 : vector<1x1x4x1024xf32> to vector<4x1024xf32>
    %193 = vector.broadcast %1 : vector<1x1024xf32> to vector<4x1024xf32>
    %194 = arith.mulf %192, %193 : vector<4x1024xf32>
    %c20 = arith.constant 20 : index
    %c0_139 = arith.constant 0 : index
    %c0_140 = arith.constant 0 : index
    %195 = vector.load %arg3[%c20, %c0_139, %c0_140] : memref<27x8x4xf32, #tpu.memory_space<vmem>>, vector<1x8x4xf32>
    %196 = vector.shape_cast %195 : vector<1x8x4xf32> to vector<8x4xf32>
    %cst_141 = arith.constant dense<0.000000e+00> : vector<8x1024xf32>
    %197 = tpu.matmul %196, %194, %cst_141 {dimension_numbers = #tpu.dot_dimension_numbers<[1], [0], [0], [1], [0, 0, 1, 1], [], []>} : vector<8x4xf32>, vector<4x1024xf32>, vector<8x1024xf32> -> vector<8x1024xf32>
    %198 = arith.addf %188, %197 : vector<8x1024xf32>
    %c2_i32_142 = arith.constant 2 : i32
    %199 = arith.addi %arg1, %c2_i32_142 : i32
    %c0_143 = arith.constant 0 : index
    %200 = arith.index_cast %199 : i32 to index
    %c0_144 = arith.constant 0 : index
    %c32_145 = arith.constant 32 : index
    %201 = vector.load %arg2[%c0_143, %200, %c0_144, %c32_145] : memref<1x34x4x1090xf32, #tpu.memory_space<vmem>>, vector<1x1x4x1024xf32>
    %202 = vector.shape_cast %201 : vector<1x1x4x1024xf32> to vector<4x1024xf32>
    %203 = vector.broadcast %0 : vector<1x1024xf32> to vector<4x1024xf32>
    %204 = arith.mulf %202, %203 : vector<4x1024xf32>
    %c21 = arith.constant 21 : index
    %c0_146 = arith.constant 0 : index
    %c0_147 = arith.constant 0 : index
    %205 = vector.load %arg3[%c21, %c0_146, %c0_147] : memref<27x8x4xf32, #tpu.memory_space<vmem>>, vector<1x8x4xf32>
    %206 = vector.shape_cast %205 : vector<1x8x4xf32> to vector<8x4xf32>
    %cst_148 = arith.constant dense<0.000000e+00> : vector<8x1024xf32>
    %207 = tpu.matmul %206, %204, %cst_148 {dimension_numbers = #tpu.dot_dimension_numbers<[1], [0], [0], [1], [0, 0, 1, 1], [], []>} : vector<8x4xf32>, vector<4x1024xf32>, vector<8x1024xf32> -> vector<8x1024xf32>
    %208 = arith.addf %198, %207 : vector<8x1024xf32>
    %c2_i32_149 = arith.constant 2 : i32
    %209 = arith.addi %arg1, %c2_i32_149 : i32
    %c0_150 = arith.constant 0 : index
    %210 = arith.index_cast %209 : i32 to index
    %c0_151 = arith.constant 0 : index
    %c33_152 = arith.constant 33 : index
    %211 = vector.load %arg2[%c0_150, %210, %c0_151, %c33_152] : memref<1x34x4x1090xf32, #tpu.memory_space<vmem>>, vector<1x1x4x1024xf32>
    %212 = vector.shape_cast %211 : vector<1x1x4x1024xf32> to vector<4x1024xf32>
    %c22 = arith.constant 22 : index
    %c0_153 = arith.constant 0 : index
    %c0_154 = arith.constant 0 : index
    %213 = vector.load %arg3[%c22, %c0_153, %c0_154] : memref<27x8x4xf32, #tpu.memory_space<vmem>>, vector<1x8x4xf32>
    %214 = vector.shape_cast %213 : vector<1x8x4xf32> to vector<8x4xf32>
    %cst_155 = arith.constant dense<0.000000e+00> : vector<8x1024xf32>
    %215 = tpu.matmul %214, %212, %cst_155 {dimension_numbers = #tpu.dot_dimension_numbers<[1], [0], [0], [1], [0, 0, 1, 1], [], []>} : vector<8x4xf32>, vector<4x1024xf32>, vector<8x1024xf32> -> vector<8x1024xf32>
    %216 = arith.addf %208, %215 : vector<8x1024xf32>
    %c2_i32_156 = arith.constant 2 : i32
    %217 = arith.addi %arg1, %c2_i32_156 : i32
    %c0_157 = arith.constant 0 : index
    %218 = arith.index_cast %217 : i32 to index
    %c0_158 = arith.constant 0 : index
    %c34_159 = arith.constant 34 : index
    %219 = vector.load %arg2[%c0_157, %218, %c0_158, %c34_159] : memref<1x34x4x1090xf32, #tpu.memory_space<vmem>>, vector<1x1x4x1024xf32>
    %220 = vector.shape_cast %219 : vector<1x1x4x1024xf32> to vector<4x1024xf32>
    %221 = vector.broadcast %1 : vector<1x1024xf32> to vector<4x1024xf32>
    %222 = arith.mulf %220, %221 : vector<4x1024xf32>
    %c23 = arith.constant 23 : index
    %c0_160 = arith.constant 0 : index
    %c0_161 = arith.constant 0 : index
    %223 = vector.load %arg3[%c23, %c0_160, %c0_161] : memref<27x8x4xf32, #tpu.memory_space<vmem>>, vector<1x8x4xf32>
    %224 = vector.shape_cast %223 : vector<1x8x4xf32> to vector<8x4xf32>
    %cst_162 = arith.constant dense<0.000000e+00> : vector<8x1024xf32>
    %225 = tpu.matmul %224, %222, %cst_162 {dimension_numbers = #tpu.dot_dimension_numbers<[1], [0], [0], [1], [0, 0, 1, 1], [], []>} : vector<8x4xf32>, vector<4x1024xf32>, vector<8x1024xf32> -> vector<8x1024xf32>
    %226 = arith.addf %216, %225 : vector<8x1024xf32>
    %c2_i32_163 = arith.constant 2 : i32
    %227 = arith.addi %arg1, %c2_i32_163 : i32
    %c0_164 = arith.constant 0 : index
    %228 = arith.index_cast %227 : i32 to index
    %c0_165 = arith.constant 0 : index
    %c64_166 = arith.constant 64 : index
    %229 = vector.load %arg2[%c0_164, %228, %c0_165, %c64_166] : memref<1x34x4x1090xf32, #tpu.memory_space<vmem>>, vector<1x1x4x1024xf32>
    %230 = vector.shape_cast %229 : vector<1x1x4x1024xf32> to vector<4x1024xf32>
    %231 = vector.broadcast %0 : vector<1x1024xf32> to vector<4x1024xf32>
    %232 = arith.mulf %230, %231 : vector<4x1024xf32>
    %c24 = arith.constant 24 : index
    %c0_167 = arith.constant 0 : index
    %c0_168 = arith.constant 0 : index
    %233 = vector.load %arg3[%c24, %c0_167, %c0_168] : memref<27x8x4xf32, #tpu.memory_space<vmem>>, vector<1x8x4xf32>
    %234 = vector.shape_cast %233 : vector<1x8x4xf32> to vector<8x4xf32>
    %cst_169 = arith.constant dense<0.000000e+00> : vector<8x1024xf32>
    %235 = tpu.matmul %234, %232, %cst_169 {dimension_numbers = #tpu.dot_dimension_numbers<[1], [0], [0], [1], [0, 0, 1, 1], [], []>} : vector<8x4xf32>, vector<4x1024xf32>, vector<8x1024xf32> -> vector<8x1024xf32>
    %236 = arith.addf %226, %235 : vector<8x1024xf32>
    %c2_i32_170 = arith.constant 2 : i32
    %237 = arith.addi %arg1, %c2_i32_170 : i32
    %c0_171 = arith.constant 0 : index
    %238 = arith.index_cast %237 : i32 to index
    %c0_172 = arith.constant 0 : index
    %c65_173 = arith.constant 65 : index
    %239 = vector.load %arg2[%c0_171, %238, %c0_172, %c65_173] : memref<1x34x4x1090xf32, #tpu.memory_space<vmem>>, vector<1x1x4x1024xf32>
    %240 = vector.shape_cast %239 : vector<1x1x4x1024xf32> to vector<4x1024xf32>
    %c25 = arith.constant 25 : index
    %c0_174 = arith.constant 0 : index
    %c0_175 = arith.constant 0 : index
    %241 = vector.load %arg3[%c25, %c0_174, %c0_175] : memref<27x8x4xf32, #tpu.memory_space<vmem>>, vector<1x8x4xf32>
    %242 = vector.shape_cast %241 : vector<1x8x4xf32> to vector<8x4xf32>
    %cst_176 = arith.constant dense<0.000000e+00> : vector<8x1024xf32>
    %243 = tpu.matmul %242, %240, %cst_176 {dimension_numbers = #tpu.dot_dimension_numbers<[1], [0], [0], [1], [0, 0, 1, 1], [], []>} : vector<8x4xf32>, vector<4x1024xf32>, vector<8x1024xf32> -> vector<8x1024xf32>
    %244 = arith.addf %236, %243 : vector<8x1024xf32>
    %c2_i32_177 = arith.constant 2 : i32
    %245 = arith.addi %arg1, %c2_i32_177 : i32
    %c0_178 = arith.constant 0 : index
    %246 = arith.index_cast %245 : i32 to index
    %c0_179 = arith.constant 0 : index
    %c66_180 = arith.constant 66 : index
    %247 = vector.load %arg2[%c0_178, %246, %c0_179, %c66_180] : memref<1x34x4x1090xf32, #tpu.memory_space<vmem>>, vector<1x1x4x1024xf32>
    %248 = vector.shape_cast %247 : vector<1x1x4x1024xf32> to vector<4x1024xf32>
    %249 = vector.broadcast %1 : vector<1x1024xf32> to vector<4x1024xf32>
    %250 = arith.mulf %248, %249 : vector<4x1024xf32>
    %c26 = arith.constant 26 : index
    %c0_181 = arith.constant 0 : index
    %c0_182 = arith.constant 0 : index
    %251 = vector.load %arg3[%c26, %c0_181, %c0_182] : memref<27x8x4xf32, #tpu.memory_space<vmem>>, vector<1x8x4xf32>
    %252 = vector.shape_cast %251 : vector<1x8x4xf32> to vector<8x4xf32>
    %cst_183 = arith.constant dense<0.000000e+00> : vector<8x1024xf32>
    %253 = tpu.matmul %252, %250, %cst_183 {dimension_numbers = #tpu.dot_dimension_numbers<[1], [0], [0], [1], [0, 0, 1, 1], [], []>} : vector<8x4xf32>, vector<4x1024xf32>, vector<8x1024xf32> -> vector<8x1024xf32>
    %254 = arith.addf %244, %253 : vector<8x1024xf32>
    %c0_184 = arith.constant 0 : index
    %c0_185 = arith.constant 0 : index
    %255 = vector.load %arg4[%c0_184, %c0_185] : memref<8x1xf32, #tpu.memory_space<vmem>>, vector<8x1xf32>
    %256 = vector.broadcast %255 : vector<8x1xf32> to vector<8x1024xf32>
    %257 = arith.addf %254, %256 : vector<8x1024xf32>
    %cst_186 = arith.constant 0.000000e+00 : f32
    %258 = vector.broadcast %cst_186 : f32 to vector<8x1024xf32>
    %259 = arith.maximumf %257, %258 : vector<8x1024xf32>
    %c0_187 = arith.constant 0 : index
    %c0_188 = arith.constant 0 : index
    %c0_189 = arith.constant 0 : index
    %260 = vector.load %arg7[%c0_187, %c0_188, %c0_189] : memref<1x8x1024xf32, #tpu.memory_space<vmem>>, vector<1x8x1024xf32>
    %261 = vector.shape_cast %260 : vector<1x8x1024xf32> to vector<8x1024xf32>
    %262 = vector.shape_cast %259 : vector<8x1024xf32> to vector<1x8x1024xf32>
    tpu.vector_store %arg7[%c0_187, %c0_188, %c0_189], %262 {strides = array<i32>} : memref<1x8x1024xf32, #tpu.memory_space<vmem>>, vector<1x8x1024xf32>,
    return
  }
  func.func @transform_0(%arg0: i32, %arg1: i32) -> (i32, i32, i32, i32) {
    %c0_i32 = arith.constant 0 : i32
    %c0_i32_0 = arith.constant 0 : i32
    %c0_i32_1 = arith.constant 0 : i32
    %c0_i32_2 = arith.constant 0 : i32
    return %arg0, %c0_i32, %c0_i32_0, %c0_i32_1 : i32, i32, i32, i32
  }
  func.func @transform_1(%arg0: i32, %arg1: i32) -> (i32, i32, i32) {
    %c0_i32 = arith.constant 0 : i32
    %c0_i32_0 = arith.constant 0 : i32
    %c0_i32_1 = arith.constant 0 : i32
    %c0_i32_2 = arith.constant 0 : i32
    return %c0_i32, %c0_i32_0, %c0_i32_1 : i32, i32, i32
  }
  func.func @transform_2(%arg0: i32, %arg1: i32) -> (i32, i32) {
    %c0_i32 = arith.constant 0 : i32
    %c0_i32_0 = arith.constant 0 : i32
    %c0_i32_1 = arith.constant 0 : i32
    return %c0_i32, %c0_i32_0 : i32, i32
  }
  func.func @transform_3(%arg0: i32, %arg1: i32) -> (i32, i32) {
    %c0_i32 = arith.constant 0 : i32
    %c0_i32_0 = arith.constant 0 : i32
    %c0_i32_1 = arith.constant 0 : i32
    return %c0_i32, %c0_i32_0 : i32, i32
  }
  func.func @transform_4(%arg0: i32, %arg1: i32) -> (i32, i32) {
    %c0_i32 = arith.constant 0 : i32
    %c0_i32_0 = arith.constant 0 : i32
    %c0_i32_1 = arith.constant 0 : i32
    return %c0_i32, %c0_i32_0 : i32, i32
  }
  func.func @transform_5(%arg0: i32, %arg1: i32) -> (i32, i32, i32) {
    %c0_i32 = arith.constant 0 : i32
    %c0_i32_0 = arith.constant 0 : i32
    return %arg0, %c0_i32, %arg1 : i32, i32, i32
  }
}

</mosaic_0001>

<llo_original>
// kernel: upsampling_forward.1
$region0: #{upsampling_forward.1}
  #allocation0 [shape = 'u32[]', space=smem, size = 0x4, offset = 0x4, fixed_abs, tag = 'smem constant byte address 0x4 - core index']
  #allocation1 [shape = 'u32[72,128]{1,0:T(1,128)}', space=vmem, size = 0x9000, scoped, tag = 'internal scratch']
  %s0 = inlined_call_operand.vmem [shape: f32[2,34,4,1090], index: 0, kind: input, shape index: {}]
  %s1 = inlined_call_operand.vmem [shape: f32[27,8,4], index: 1, kind: input, shape index: {}]
  %s2 = inlined_call_operand.vmem [shape: f32[8,1], index: 2, kind: input, shape index: {}]
  %s3 = inlined_call_operand.vmem [shape: f32[1,1024], index: 3, kind: input, shape index: {}]
  %s4 = inlined_call_operand.vmem [shape: f32[1,1024], index: 4, kind: input, shape index: {}]
  %s5 = inlined_call_operand.vmem [shape: f32[2,8,32768], index: 5, kind: output, shape index: {}]
  %s6 = sld [smem:[#allocation0]]
  $region53: #{upsampling_forward.1} parent=0
    _
  %s8 = ssub.s32 1, %s6
  %s9 = scalar_select 0, %s8, %s6
  loop: start=0, step=1, limit=66
  $region2: #{upsampling_forward.1} parent=0 // loop_pre_header
    _
  $region3: #{upsampling_forward.1} parent=0 // loop_header
    %s11 = sphi 0, %s15
    %p12 = scmp.ge.s32.totalorder %s11, 66
    %s18 = sphi 0, %s30
    %s19 = sphi 0, %s26
    %s20 = sphi 0, %s18
    %s21 = sphi 0, %s19
    %s22 = sphi 0, %s20
    %s23 = sphi 0, %s21
    %s33 = sphi 0, %s35
    %s36 = sphi 0, %s33
    %s37 = sphi 0, %s36
    %s53 = sphi 0, %s37
    %s57 = sphi 0, %s57
    %s59 = sphi 0, %s57
    %s60 = sphi 0, %s59
    %s74 = sphi 0, %s60
    %s78 = sphi 0, %s78
    %s80 = sphi 0, %s78
    %s81 = sphi 0, %s80
    %s95 = sphi 0, %s81
    %s99 = sphi 0, %s99
    %s101 = sphi 0, %s99
    %s102 = sphi 0, %s101
    %s116 = sphi 0, %s102
    %s120 = sphi 0, %s120
    %s122 = sphi 0, %s120
    %s123 = sphi 0, %s122
    %s137 = sphi 0, %s123
    %s145 = sphi 0, %s147
    %s148 = sphi 0, %s145
    %s149 = sphi 0, %s148
    %s165 = sphi 0, %s149
  $region4: #{upsampling_forward.1} parent=0 // loop_header_branch
    %14 = sbr.rel (%p12) target = $region8
  $region5: #{upsampling_forward.1} parent=0 // loop_body
    %s16 = ssub.s32 %s11, 1
    %s17 = ssub.s32 %s11, 2
    %s24 = sadd.s32 1, %s19
    %p25 = scmp.ge.s32.totalorder %s24, 32
    %s26 = scalar_select %p25, 0, %s24
    %s27 = sadd.s32 1, %s18
    %s28 = scalar_select %p25, %s27, %s18
    %p29 = scmp.ge.s32.totalorder %s28, 2
    %s30 = scalar_select %p29, 0, %s28
    %s31 = ssub.s32 %s18, %s30
    %p32 = scmp.eq.s32.totalorder %s31, 0
    %s34 = sadd.s32 %s33, 1
    %s35 = scalar_select %p32, %s33, %s34
    %p38 = pneg %p32
    %p39 = scmp.eq.s32.totalorder %s11, 63
    %p40 = por %p38, %p39
    %p41 = scmp.ne.s32.totalorder %s33, %s36
    %p42 = scmp.eq.s32.totalorder %s11, 0
    %p43 = por %p41, %p42
    %p44 = scmp.ne.s32.totalorder %s33, %s36
    %p45 = scmp.eq.s32.totalorder %s16, 63
    %p46 = por %p44, %p45
    %p47 = scmp.ne.s32.totalorder %s36, %s37
    %p48 = scmp.eq.s32.totalorder %s16, 0
    %p49 = por %p47, %p48
    %p50 = scmp.ne.s32.totalorder %s36, %s37
    %p51 = scmp.eq.s32.totalorder %s17, 63
    %p52 = por %p50, %p51
    %p54 = scmp.ne.s32.totalorder %s37, %s53
    %p55 = scmp.eq.s32.totalorder %s17, 0
    %p56 = por %p54, %p55
    %s58 = sadd.s32 %s57, 1
    %p61 = scmp.eq.s32.totalorder %s11, 63
    %p62 = scmp.ne.s32.totalorder %s57, %s59
    %p63 = scmp.eq.s32.totalorder %s11, 0
    %p64 = por %p62, %p63
    %p65 = scmp.ne.s32.totalorder %s57, %s59
    %p66 = scmp.eq.s32.totalorder %s16, 63
    %p67 = por %p65, %p66
    %p68 = scmp.ne.s32.totalorder %s59, %s60
    %p69 = scmp.eq.s32.totalorder %s16, 0
    %p70 = por %p68, %p69
    %p71 = scmp.ne.s32.totalorder %s59, %s60
    %p72 = scmp.eq.s32.totalorder %s17, 63
    %p73 = por %p71, %p72
    %p75 = scmp.ne.s32.totalorder %s60, %s74
    %p76 = scmp.eq.s32.totalorder %s17, 0
    %p77 = por %p75, %p76
    %s79 = sadd.s32 %s78, 1
    %p82 = scmp.eq.s32.totalorder %s11, 63
    %p83 = scmp.ne.s32.totalorder %s78, %s80
    %p84 = scmp.eq.s32.totalorder %s11, 0
    %p85 = por %p83, %p84
    %p86 = scmp.ne.s32.totalorder %s78, %s80
    %p87 = scmp.eq.s32.totalorder %s16, 63
    %p88 = por %p86, %p87
    %p89 = scmp.ne.s32.totalorder %s80, %s81
    %p90 = scmp.eq.s32.totalorder %s16, 0
    %p91 = por %p89, %p90
    %p92 = scmp.ne.s32.totalorder %s80, %s81
    %p93 = scmp.eq.s32.totalorder %s17, 63
    %p94 = por %p92, %p93
    %p96 = scmp.ne.s32.totalorder %s81, %s95
    %p97 = scmp.eq.s32.totalorder %s17, 0
    %p98 = por %p96, %p97
    %s100 = sadd.s32 %s99, 1
    %p103 = scmp.eq.s32.totalorder %s11, 63
    %p104 = scmp.ne.s32.totalorder %s99, %s101
    %p105 = scmp.eq.s32.totalorder %s11, 0
    %p106 = por %p104, %p105
    %p107 = scmp.ne.s32.totalorder %s99, %s101
    %p108 = scmp.eq.s32.totalorder %s16, 63
    %p109 = por %p107, %p108
    %p110 = scmp.ne.s32.totalorder %s101, %s102
    %p111 = scmp.eq.s32.totalorder %s16, 0
    %p112 = por %p110, %p111
    %p113 = scmp.ne.s32.totalorder %s101, %s102
    %p114 = scmp.eq.s32.totalorder %s17, 63
    %p115 = por %p113, %p114
    %p117 = scmp.ne.s32.totalorder %s102, %s116
    %p118 = scmp.eq.s32.totalorder %s17, 0
    %p119 = por %p117, %p118
    %s121 = sadd.s32 %s120, 1
    %p124 = scmp.eq.s32.totalorder %s11, 63
    %p125 = scmp.ne.s32.totalorder %s120, %s122
    %p126 = scmp.eq.s32.totalorder %s11, 0
    %p127 = por %p125, %p126
    %p128 = scmp.ne.s32.totalorder %s120, %s122
    %p129 = scmp.eq.s32.totalorder %s16, 63
    %p130 = por %p128, %p129
    %p131 = scmp.ne.s32.totalorder %s122, %s123
    %p132 = scmp.eq.s32.totalorder %s16, 0
    %p133 = por %p131, %p132
    %p134 = scmp.ne.s32.totalorder %s122, %s123
    %p135 = scmp.eq.s32.totalorder %s17, 63
    %p136 = por %p134, %p135
    %p138 = scmp.ne.s32.totalorder %s123, %s137
    %p139 = scmp.eq.s32.totalorder %s17, 0
    %p140 = por %p138, %p139
    %s141 = ssub.s32 %s18, %s30
    %s142 = ssub.s32 %s19, %s26
    %s143 = sor.u32 %s141, %s142
    %p144 = scmp.eq.s32.totalorder %s143, 0
    %s146 = sadd.s32 %s145, 1
    %s147 = scalar_select %p144, %s145, %s146
    %p150 = pneg %p144
    %p151 = scmp.eq.s32.totalorder %s11, 63
    %p152 = por %p150, %p151
    %p153 = scmp.ne.s32.totalorder %s145, %s148
    %p154 = scmp.eq.s32.totalorder %s11, 0
    %p155 = por %p153, %p154
    %p156 = scmp.ne.s32.totalorder %s145, %s148
    %p157 = scmp.eq.s32.totalorder %s16, 63
    %p158 = por %p156, %p157
    %p159 = scmp.ne.s32.totalorder %s148, %s149
    %p160 = scmp.eq.s32.totalorder %s16, 0
    %p161 = por %p159, %p160
    %p162 = scmp.ne.s32.totalorder %s148, %s149
    %p163 = scmp.eq.s32.totalorder %s17, 63
    %p164 = por %p162, %p163
    %p166 = scmp.ne.s32.totalorder %s149, %s165
    %p167 = scmp.eq.s32.totalorder %s17, 0
    %p168 = por %p166, %p167
    %p169 = scmp.le.s32.totalorder 1, %s11
    %p170 = scmp.lt.s32.totalorder %s11, 65
    %p171 = pnand %p169, %p170
    %p172 = pneg %p171
    // Predicated region
    $region9: #{upsampling_forward.1} parent=5 // pred_check
      _
    $region10: #{upsampling_forward.1} parent=5 // pred_check_branch
      %174 = sbr.rel (%p171) target = $region12
    $region11: #{upsampling_forward.1} parent=5 // pred_region
      %s175 = ssub.s32 %s11, 1
      // Predicated region
      $region13: #{upsampling_forward.1} parent=11 // pred_check
        %p176 = pneg %p70
      $region14: #{upsampling_forward.1} parent=11 // pred_check_branch
        %178 = sbr.rel (%p176) target = $region16
      $region15: #{upsampling_forward.1} parent=11 // pred_region
        _
      $region16: #{upsampling_forward.1} parent=11 // pred_fallthru
        _
      // Predicated region
      $region17: #{upsampling_forward.1} parent=11 // pred_check
        %p179 = pneg %p91
      $region18: #{upsampling_forward.1} parent=11 // pred_check_branch
        %181 = sbr.rel (%p179) target = $region20
      $region19: #{upsampling_forward.1} parent=11 // pred_region
        _
      $region20: #{upsampling_forward.1} parent=11 // pred_fallthru
        _
      // Predicated region
      $region21: #{upsampling_forward.1} parent=11 // pred_check
        %p182 = pneg %p112
      $region22: #{upsampling_forward.1} parent=11 // pred_check_branch
        %184 = sbr.rel (%p182) target = $region24
      $region23: #{upsampling_forward.1} parent=11 // pred_region
        _
      $region24: #{upsampling_forward.1} parent=11 // pred_fallthru
        _
      // Predicated region
      $region25: #{upsampling_forward.1} parent=11 // pred_check
        %p185 = pneg %p133
      $region26: #{upsampling_forward.1} parent=11 // pred_check_branch
        %187 = sbr.rel (%p185) target = $region28
      $region27: #{upsampling_forward.1} parent=11 // pred_region
        _
      $region28: #{upsampling_forward.1} parent=11 // pred_fallthru
        _
    $region12: #{upsampling_forward.1} parent=5 // pred_fallthru
      _
    %p188 = scmp.lt.s32.totalorder %s11, 64
    // Predicated region
    $region29: #{upsampling_forward.1} parent=5 // pred_check
      %p189 = pneg %p188
    $region30: #{upsampling_forward.1} parent=5 // pred_check_branch
      %191 = sbr.rel (%p189) target = $region32
    $region31: #{upsampling_forward.1} parent=5 // pred_region
      // Predicated region
      $region33: #{upsampling_forward.1} parent=31 // pred_check
        %p192 = pneg %p43
      $region34: #{upsampling_forward.1} parent=31 // pred_check_branch
        %194 = sbr.rel (%p192) target = $region36
      $region35: #{upsampling_forward.1} parent=31 // pred_region
        %p195 = scmp.lt.s32.totalorder %s18, 1
        %s196 = scalar_select %p195, %s18, 1
        %s197 = smul.addr %s196, 306
        %s198 = smul.addr %s197, 4
        %s199 = scalar_lea.vmem %s0, %s198
      $region36: #{upsampling_forward.1} parent=31 // pred_fallthru
        _
    $region32: #{upsampling_forward.1} parent=5 // pred_fallthru
      _
    %p200 = scmp.le.s32.totalorder 1, %s11
    %p201 = scmp.lt.s32.totalorder %s11, 65
    %p202 = pnand %p200, %p201
    %p203 = pneg %p202
    // Predicated region
    $region37: #{upsampling_forward.1} parent=5 // pred_check
      _
    $region38: #{upsampling_forward.1} parent=5 // pred_check_branch
      %205 = sbr.rel (%p202) target = $region40
    $region39: #{upsampling_forward.1} parent=5 // pred_region
      %s206 = ssub.s32 %s11, 1
      %p207 = scmp.lt.s32.totalorder %s20, 1
      %s208 = scalar_select %p207, %s20, 1
      %s209 = smul.addr %s208, 306
      %s210 = smul.addr %s209, 4
      %s211 = scalar_lea.vmem %s0, %s210
      %p212 = pneg %p49
      %p213 = pneg %p46
      %p214 = pneg %p70
      %p215 = pneg %p67
      %p216 = pneg %p91
      %p217 = pneg %p88
      %p218 = pneg %p112
      %p219 = pneg %p109
      %p220 = pneg %p133
      %p221 = pneg %p130
      %p222 = pneg %p161
      %p223 = pneg %p158
      %s224 = smul.u32 8, %s21
      %p225 = scmp.lt.s32.totalorder %s20, 1
      %s226 = scalar_select %p225, %s20, 1
      %p227 = scmp.lt.s32.totalorder %s224, 255
      %s228 = scalar_select %p227, %s224, 255
      %s229 = smul.addr %s226, 256
      %s230 = sadd.s32 %s228, %s229
      %s231 = smul.addr %s230, 8
      %s232 = scalar_lea.vmem %s5, %s231
      %p233 = scmp.lt.s32.totalorder %s20, 1
      %s234 = scalar_select %p233, %s20, 1
      %s235 = smul.addr %s234, 306
      %s236 = smul.addr %s235, 4
      %s237 = scalar_lea.vmem %s0, %s236
      %s238 = smul.u32 8, %s21
      %p239 = scmp.lt.s32.totalorder %s20, 1
      %s240 = scalar_select %p239, %s20, 1
      %p241 = scmp.lt.s32.totalorder %s238, 255
      %s242 = scalar_select %p241, %s238, 255
      %s243 = smul.addr %s240, 256
      %s244 = sadd.s32 %s242, %s243
      %s245 = smul.addr %s244, 8
      %s246 = scalar_lea.vmem %s5, %s245
      %s247 = smul.u32 8, %s21
      %v248 = vld [vmem:[%s3] sm:$0xff]
      %v249 = vld [vmem:[%s4] sm:$0xff]
      %s250 = smul.u32 %s21, 9
      %s251 = smul.addr %s250, 4
      %s252 = scalar_lea.vmem %s237, %s251
      %v253 = vld [vmem:[%s252] sm:$0xff]
      %v254 = vld [vmem:[%s252 + $0x8] sm:$0xff]
      %v255 = vld [vmem:[%s252 + $0x10] sm:$0xff]
      %v256 = vld [vmem:[%s252 + $0x18] sm:$0xff]
      %v258 = vperm.slane %v248, 0
      %v259 = vperm.slane %v248, 1
      %v260 = vperm.slane %v248, 2
      %v261 = vperm.slane %v248, 3
      %v262 = vperm.slane %v248, 4
      %v263 = vperm.slane %v248, 5
      %v264 = vperm.slane %v248, 6
      %v265 = vperm.slane %v248, 7
      %v266 = vrot.slane %v259, 4
      %v267 = vrot.slane %v261, 4
      %v268 = vrot.slane %v263, 4
      %v269 = vrot.slane %v265, 4
      %vm270 = vcmask 1043456
      %v271 = vsel %vm270, %v258, %v266
      %v272 = vsel %vm270, %v260, %v267
      %v273 = vsel %vm270, %v262, %v268
      %v274 = vsel %vm270, %v264, %v269
      %v279 = vmul.f32 %v253, %v271
      %v280 = vmul.f32 %v254, %v272
      %v281 = vmul.f32 %v255, %v273
      %v282 = vmul.f32 %v256, %v274
      %v283 = vld [vmem:[%s1] sm:$0xff]
      %v284 = vld [vmem:[%s252 + $0x20] sm:$0xf]
      %s285 = scalar_lea.vmem %s1, 8
      %v286 = vld [vmem:[%s285] sm:$0xff]
      %292 = vst [vmem:[#allocation1] ss:$2 sm:$0xff] %v253
      %s293 = scalar_lea.vmem [#allocation1], 16
      %294 = vst [vmem:[%s293] ss:$2 sm:$0xff] %v254
      %s295 = scalar_lea.vmem [#allocation1], 32
      %296 = vst [vmem:[%s295] ss:$2 sm:$0xff] %v255
      %s297 = scalar_lea.vmem [#allocation1], 48
      %298 = vst [vmem:[%s297] ss:$2 sm:$0xff] %v256
      %v299 = vld.sshfl [vmem:[#allocation1] sm:$0xff pattern:$0x75316420]
      %v300 = vld.sshfl [vmem:[#allocation1 + $0x8] sm:$0xff pattern:$0x75316420]
      %v301 = vld.sshfl [vmem:[#allocation1 + $0x10] sm:$0xff pattern:$0x75316420]
      %v302 = vld.sshfl [vmem:[#allocation1 + $0x18] sm:$0xff pattern:$0x75316420]
      %v303 = vld.sshfl [vmem:[#allocation1 + $0x20] sm:$0xff pattern:$0x75316420]
      %v304 = vld.sshfl [vmem:[#allocation1 + $0x28] sm:$0xff pattern:$0x75316420]
      %v305 = vld.sshfl [vmem:[#allocation1 + $0x30] sm:$0xff pattern:$0x75316420]
      %v306 = vld.sshfl [vmem:[#allocation1 + $0x38] sm:$0xff pattern:$0x75316420]
      %307 = vst [vmem:[#allocation1] ss:$2 sm:$0xff] %v284
      %v308 = vld.sshfl [vmem:[#allocation1] sm:$0xff pattern:$0x75316420]
      %309 = vrot.lane.b32.xlu0 %v299, 127
      %v310 = vpop.permute.xlu0 %309
      %311 = vrot.lane.b32.xlu0 %v300, 127
      %v312 = vpop.permute.xlu0 %311
      %313 = vrot.lane.b32.xlu0 %v301, 127
      %v314 = vpop.permute.xlu0 %313
      %315 = vrot.lane.b32.xlu0 %v302, 127
      %v316 = vpop.permute.xlu0 %315
      %317 = vrot.lane.b32.xlu0 %v303, 127
      %v318 = vpop.permute.xlu0 %317
      %319 = vrot.lane.b32.xlu0 %v304, 127
      %v320 = vpop.permute.xlu0 %319
      %321 = vrot.lane.b32.xlu0 %v305, 127
      %v322 = vpop.permute.xlu0 %321
      %323 = vrot.lane.b32.xlu0 %v306, 127
      %v324 = vpop.permute.xlu0 %323
      %325 = vrot.lane.b32.xlu0 %v308, 127
      %v326 = vpop.permute.xlu0 %325
      %vm327 = vcmask 1039360
      %v328 = vsel %vm327, %v310, %v312
      %v329 = vsel %vm327, %v312, %v314
      %v330 = vsel %vm327, %v314, %v316
      %v331 = vsel %vm327, %v316, %v318
      %v332 = vsel %vm327, %v318, %v320
      %v333 = vsel %vm327, %v320, %v322
      %v334 = vsel %vm327, %v322, %v324
      %v335 = vsel %vm327, %v324, %v326
      %vm336 = vcmask 31744
      %v338 = vsel %vm336, %v286, 0
      %v340 = vsel %vm270, %v328, 0
      %v342 = vsel %vm270, %v329, 0
      %v344 = vsel %vm270, %v330, 0
      %v346 = vsel %vm270, %v331, 0
      %v348 = vsel %vm270, %v332, 0
      %v350 = vsel %vm270, %v333, 0
      %v352 = vsel %vm270, %v334, 0
      %v354 = vsel %vm270, %v335, 0
      %356 = vmatpush.msra.mxu0 0.0
      %357 = vmatpush.msra.mxu0 0.0
      %358 = vmatpush.msra.mxu0 0.0
      %359 = vmatpush.msra.mxu0 0.0
      %360 = vmatpush.msra.mxu0 0.0
      %361 = vmatpush.msra.mxu0 0.0
      %362 = vmatpush.msra.mxu0 0.0
      %363 = vmatpush.msra.mxu0 0.0
      %364 = vmatpush.msra.mxu0 0.0
      %365 = vmatpush.msra.mxu0 0.0
      %366 = vmatpush.msra.mxu0 0.0
      %367 = vmatpush.msra.mxu0 0.0
      %368 = vmatpush.msra.mxu0 0.0
      %369 = vmatpush.msra.mxu0 0.0
      %370 = vmatpush.msra.mxu0 0.0
      %371 = vmatpush.msra.mxu0 %v340
      %372 = vmatmul.f32.gmra.mxu0 %v338
      %v373 = vpop.f32.mrf.mxu0
      %v374 = vadd.f32 0.0, %v373
      %375 = vdwg.mxu0
      %376 = vmatpush.msra.mxu0 0.0
      %377 = vmatpush.msra.mxu0 0.0
      %378 = vmatpush.msra.mxu0 0.0
      %379 = vmatpush.msra.mxu0 0.0
      %380 = vmatpush.msra.mxu0 0.0
      %381 = vmatpush.msra.mxu0 0.0
      %382 = vmatpush.msra.mxu0 0.0
      %383 = vmatpush.msra.mxu0 0.0
      %384 = vmatpush.msra.mxu0 0.0
      %385 = vmatpush.msra.mxu0 0.0
      %386 = vmatpush.msra.mxu0 0.0
      %387 = vmatpush.msra.mxu0 0.0
      %388 = vmatpush.msra.mxu0 0.0
      %389 = vmatpush.msra.mxu0 0.0
      %390 = vmatpush.msra.mxu0 0.0
      %391 = vmatpush.msra.mxu0 %v342
      %392 = vmatmul.f32.gmra.mxu0 %v338
      %v393 = vpop.f32.mrf.mxu0
      %v394 = vadd.f32 0.0, %v393
      %395 = vdwg.mxu0
      %396 = vmatpush.msra.mxu0 0.0
      %397 = vmatpush.msra.mxu0 0.0
      %398 = vmatpush.msra.mxu0 0.0
      %399 = vmatpush.msra.mxu0 0.0
      %400 = vmatpush.msra.mxu0 0.0
      %401 = vmatpush.msra.mxu0 0.0
      %402 = vmatpush.msra.mxu0 0.0
      %403 = vmatpush.msra.mxu0 0.0
      %404 = vmatpush.msra.mxu0 0.0
      %405 = vmatpush.msra.mxu0 0.0
      %406 = vmatpush.msra.mxu0 0.0
      %407 = vmatpush.msra.mxu0 0.0
      %408 = vmatpush.msra.mxu0 0.0
      %409 = vmatpush.msra.mxu0 0.0
      %410 = vmatpush.msra.mxu0 0.0
      %411 = vmatpush.msra.mxu0 %v344
      %412 = vmatmul.f32.gmra.mxu0 %v338
      %v413 = vpop.f32.mrf.mxu0
      %v414 = vadd.f32 0.0, %v413
      %415 = vdwg.mxu0
      %416 = vmatpush.msra.mxu0 0.0
      %417 = vmatpush.msra.mxu0 0.0
      %418 = vmatpush.msra.mxu0 0.0
      %419 = vmatpush.msra.mxu0 0.0
      %420 = vmatpush.msra.mxu0 0.0
      %421 = vmatpush.msra.mxu0 0.0
      %422 = vmatpush.msra.mxu0 0.0
      %423 = vmatpush.msra.mxu0 0.0
      %424 = vmatpush.msra.mxu0 0.0
      %425 = vmatpush.msra.mxu0 0.0
      %426 = vmatpush.msra.mxu0 0.0
      %427 = vmatpush.msra.mxu0 0.0
      %428 = vmatpush.msra.mxu0 0.0
      %429 = vmatpush.msra.mxu0 0.0
      %430 = vmatpush.msra.mxu0 0.0
      %431 = vmatpush.msra.mxu0 %v346
      %432 = vmatmul.f32.gmra.mxu0 %v338
      %v433 = vpop.f32.mrf.mxu0
      %v434 = vadd.f32 0.0, %v433
      %435 = vdwg.mxu0
      %436 = vmatpush.msra.mxu0 0.0
      %437 = vmatpush.msra.mxu0 0.0
      %438 = vmatpush.msra.mxu0 0.0
      %439 = vmatpush.msra.mxu0 0.0
      %440 = vmatpush.msra.mxu0 0.0
      %441 = vmatpush.msra.mxu0 0.0
      %442 = vmatpush.msra.mxu0 0.0
      %443 = vmatpush.msra.mxu0 0.0
      %444 = vmatpush.msra.mxu0 0.0
      %445 = vmatpush.msra.mxu0 0.0
      %446 = vmatpush.msra.mxu0 0.0
      %447 = vmatpush.msra.mxu0 0.0
      %448 = vmatpush.msra.mxu0 0.0
      %449 = vmatpush.msra.mxu0 0.0
      %450 = vmatpush.msra.mxu0 0.0
      %451 = vmatpush.msra.mxu0 %v348
      %452 = vmatmul.f32.gmra.mxu0 %v338
      %v453 = vpop.f32.mrf.mxu0
      %v454 = vadd.f32 0.0, %v453
      %455 = vdwg.mxu0
      %456 = vmatpush.msra.mxu0 0.0
      %457 = vmatpush.msra.mxu0 0.0
      %458 = vmatpush.msra.mxu0 0.0
      %459 = vmatpush.msra.mxu0 0.0
      %460 = vmatpush.msra.mxu0 0.0
      %461 = vmatpush.msra.mxu0 0.0
      %462 = vmatpush.msra.mxu0 0.0
      %463 = vmatpush.msra.mxu0 0.0
      %464 = vmatpush.msra.mxu0 0.0
      %465 = vmatpush.msra.mxu0 0.0
      %466 = vmatpush.msra.mxu0 0.0
      %467 = vmatpush.msra.mxu0 0.0
      %468 = vmatpush.msra.mxu0 0.0
      %469 = vmatpush.msra.mxu0 0.0
      %470 = vmatpush.msra.mxu0 0.0
      %471 = vmatpush.msra.mxu0 %v350
      %472 = vmatmul.f32.gmra.mxu0 %v338
      %v473 = vpop.f32.mrf.mxu0
      %v474 = vadd.f32 0.0, %v473
      %475 = vdwg.mxu0
      %476 = vmatpush.msra.mxu0 0.0
      %477 = vmatpush.msra.mxu0 0.0
      %478 = vmatpush.msra.mxu0 0.0
      %479 = vmatpush.msra.mxu0 0.0
      %480 = vmatpush.msra.mxu0 0.0
      %481 = vmatpush.msra.mxu0 0.0
      %482 = vmatpush.msra.mxu0 0.0
      %483 = vmatpush.msra.mxu0 0.0
      %484 = vmatpush.msra.mxu0 0.0
      %485 = vmatpush.msra.mxu0 0.0
      %486 = vmatpush.msra.mxu0 0.0
      %487 = vmatpush.msra.mxu0 0.0
      %488 = vmatpush.msra.mxu0 0.0
      %489 = vmatpush.msra.mxu0 0.0
      %490 = vmatpush.msra.mxu0 0.0
      %491 = vmatpush.msra.mxu0 %v352
      %492 = vmatmul.f32.gmra.mxu0 %v338
      %v493 = vpop.f32.mrf.mxu0
      %v494 = vadd.f32 0.0, %v493
      %495 = vdwg.mxu0
      %496 = vmatpush.msra.mxu0 0.0
      %497 = vmatpush.msra.mxu0 0.0
      %498 = vmatpush.msra.mxu0 0.0
      %499 = vmatpush.msra.mxu0 0.0
      %500 = vmatpush.msra.mxu0 0.0
      %501 = vmatpush.msra.mxu0 0.0
      %502 = vmatpush.msra.mxu0 0.0
      %503 = vmatpush.msra.mxu0 0.0
      %504 = vmatpush.msra.mxu0 0.0
      %505 = vmatpush.msra.mxu0 0.0
      %506 = vmatpush.msra.mxu0 0.0
      %507 = vmatpush.msra.mxu0 0.0
      %508 = vmatpush.msra.mxu0 0.0
      %509 = vmatpush.msra.mxu0 0.0
      %510 = vmatpush.msra.mxu0 0.0
      %511 = vmatpush.msra.mxu0 %v354
      %512 = vmatmul.f32.gmra.mxu0 %v338
      %v513 = vpop.f32.mrf.mxu0
      %v514 = vadd.f32 0.0, %v513
      %515 = vdwg.mxu0
      %520 = vst [vmem:[#allocation1] ss:$2 sm:$0xff] %v279
      %s521 = scalar_lea.vmem [#allocation1], 16
      %522 = vst [vmem:[%s521] ss:$2 sm:$0xff] %v280
      %s523 = scalar_lea.vmem [#allocation1], 32
      %524 = vst [vmem:[%s523] ss:$2 sm:$0xff] %v281
      %s525 = scalar_lea.vmem [#allocation1], 48
      %526 = vst [vmem:[%s525] ss:$2 sm:$0xff] %v282
      %v527 = vld.sshfl [vmem:[#allocation1] sm:$0xff pattern:$0x75316420]
      %v528 = vld.sshfl [vmem:[#allocation1 + $0x8] sm:$0xff pattern:$0x75316420]
      %v529 = vld.sshfl [vmem:[#allocation1 + $0x10] sm:$0xff pattern:$0x75316420]
      %v530 = vld.sshfl [vmem:[#allocation1 + $0x18] sm:$0xff pattern:$0x75316420]
      %v531 = vld.sshfl [vmem:[#allocation1 + $0x20] sm:$0xff pattern:$0x75316420]
      %v532 = vld.sshfl [vmem:[#allocation1 + $0x28] sm:$0xff pattern:$0x75316420]
      %v533 = vld.sshfl [vmem:[#allocation1 + $0x30] sm:$0xff pattern:$0x75316420]
      %v534 = vld.sshfl [vmem:[#allocation1 + $0x38] sm:$0xff pattern:$0x75316420]
      %v536 = vsel %vm336, %v283, 0
      %v538 = vsel %vm270, %v527, 0
      %v540 = vsel %vm270, %v528, 0
      %v542 = vsel %vm270, %v529, 0
      %v544 = vsel %vm270, %v530, 0
      %v546 = vsel %vm270, %v531, 0
      %v548 = vsel %vm270, %v532, 0
      %v550 = vsel %vm270, %v533, 0
      %v552 = vsel %vm270, %v534, 0
      %554 = vmatpush.msra.mxu0 0.0
      %555 = vmatpush.msra.mxu0 0.0
      %556 = vmatpush.msra.mxu0 0.0
      %557 = vmatpush.msra.mxu0 0.0
      %558 = vmatpush.msra.mxu0 0.0
      %559 = vmatpush.msra.mxu0 0.0
      %560 = vmatpush.msra.mxu0 0.0
      %561 = vmatpush.msra.mxu0 0.0
      %562 = vmatpush.msra.mxu0 0.0
      %563 = vmatpush.msra.mxu0 0.0
      %564 = vmatpush.msra.mxu0 0.0
      %565 = vmatpush.msra.mxu0 0.0
      %566 = vmatpush.msra.mxu0 0.0
      %567 = vmatpush.msra.mxu0 0.0
      %568 = vmatpush.msra.mxu0 0.0
      %569 = vmatpush.msra.mxu0 %v538
      %570 = vmatmul.f32.gmra.mxu0 %v536
      %v571 = vpop.f32.mrf.mxu0
      %v572 = vadd.f32 %v374, %v571
      %573 = vdwg.mxu0
      %574 = vmatpush.msra.mxu0 0.0
      %575 = vmatpush.msra.mxu0 0.0
      %576 = vmatpush.msra.mxu0 0.0
      %577 = vmatpush.msra.mxu0 0.0
      %578 = vmatpush.msra.mxu0 0.0
      %579 = vmatpush.msra.mxu0 0.0
      %580 = vmatpush.msra.mxu0 0.0
      %581 = vmatpush.msra.mxu0 0.0
      %582 = vmatpush.msra.mxu0 0.0
      %583 = vmatpush.msra.mxu0 0.0
      %584 = vmatpush.msra.mxu0 0.0
      %585 = vmatpush.msra.mxu0 0.0
      %586 = vmatpush.msra.mxu0 0.0
      %587 = vmatpush.msra.mxu0 0.0
      %588 = vmatpush.msra.mxu0 0.0
      %589 = vmatpush.msra.mxu0 %v540
      %590 = vmatmul.f32.gmra.mxu0 %v536
      %v591 = vpop.f32.mrf.mxu0
      %v592 = vadd.f32 %v394, %v591
      %593 = vdwg.mxu0
      %594 = vmatpush.msra.mxu0 0.0
      %595 = vmatpush.msra.mxu0 0.0
      %596 = vmatpush.msra.mxu0 0.0
      %597 = vmatpush.msra.mxu0 0.0
      %598 = vmatpush.msra.mxu0 0.0
      %599 = vmatpush.msra.mxu0 0.0
      %600 = vmatpush.msra.mxu0 0.0
      %601 = vmatpush.msra.mxu0 0.0
      %602 = vmatpush.msra.mxu0 0.0
      %603 = vmatpush.msra.mxu0 0.0
      %604 = vmatpush.msra.mxu0 0.0
      %605 = vmatpush.msra.mxu0 0.0
      %606 = vmatpush.msra.mxu0 0.0
      %607 = vmatpush.msra.mxu0 0.0
      %608 = vmatpush.msra.mxu0 0.0
      %609 = vmatpush.msra.mxu0 %v542
      %610 = vmatmul.f32.gmra.mxu0 %v536
      %v611 = vpop.f32.mrf.mxu0
      %v612 = vadd.f32 %v414, %v611
      %613 = vdwg.mxu0
      %614 = vmatpush.msra.mxu0 0.0
      %615 = vmatpush.msra.mxu0 0.0
      %616 = vmatpush.msra.mxu0 0.0
      %617 = vmatpush.msra.mxu0 0.0
      %618 = vmatpush.msra.mxu0 0.0
      %619 = vmatpush.msra.mxu0 0.0
      %620 = vmatpush.msra.mxu0 0.0
      %621 = vmatpush.msra.mxu0 0.0
      %622 = vmatpush.msra.mxu0 0.0
      %623 = vmatpush.msra.mxu0 0.0
      %624 = vmatpush.msra.mxu0 0.0
      %625 = vmatpush.msra.mxu0 0.0
      %626 = vmatpush.msra.mxu0 0.0
      %627 = vmatpush.msra.mxu0 0.0
      %628 = vmatpush.msra.mxu0 0.0
      %629 = vmatpush.msra.mxu0 %v544
      %630 = vmatmul.f32.gmra.mxu0 %v536
      %v631 = vpop.f32.mrf.mxu0
      %v632 = vadd.f32 %v434, %v631
      %633 = vdwg.mxu0
      %634 = vmatpush.msra.mxu0 0.0
      %635 = vmatpush.msra.mxu0 0.0
      %636 = vmatpush.msra.mxu0 0.0
      %637 = vmatpush.msra.mxu0 0.0
      %638 = vmatpush.msra.mxu0 0.0
      %639 = vmatpush.msra.mxu0 0.0
      %640 = vmatpush.msra.mxu0 0.0
      %641 = vmatpush.msra.mxu0 0.0
      %642 = vmatpush.msra.mxu0 0.0
      %643 = vmatpush.msra.mxu0 0.0
      %644 = vmatpush.msra.mxu0 0.0
      %645 = vmatpush.msra.mxu0 0.0
      %646 = vmatpush.msra.mxu0 0.0
      %647 = vmatpush.msra.mxu0 0.0
      %648 = vmatpush.msra.mxu0 0.0
      %649 = vmatpush.msra.mxu0 %v546
      %650 = vmatmul.f32.gmra.mxu0 %v536
      %v651 = vpop.f32.mrf.mxu0
      %v652 = vadd.f32 %v454, %v651
      %653 = vdwg.mxu0
      %654 = vmatpush.msra.mxu0 0.0
      %655 = vmatpush.msra.mxu0 0.0
      %656 = vmatpush.msra.mxu0 0.0
      %657 = vmatpush.msra.mxu0 0.0
      %658 = vmatpush.msra.mxu0 0.0
      %659 = vmatpush.msra.mxu0 0.0
      %660 = vmatpush.msra.mxu0 0.0
      %661 = vmatpush.msra.mxu0 0.0
      %662 = vmatpush.msra.mxu0 0.0
      %663 = vmatpush.msra.mxu0 0.0
      %664 = vmatpush.msra.mxu0 0.0
      %665 = vmatpush.msra.mxu0 0.0
      %666 = vmatpush.msra.mxu0 0.0
      %667 = vmatpush.msra.mxu0 0.0
      %668 = vmatpush.msra.mxu0 0.0
      %669 = vmatpush.msra.mxu0 %v548
      %670 = vmatmul.f32.gmra.mxu0 %v536
      %v671 = vpop.f32.mrf.mxu0
      %v672 = vadd.f32 %v474, %v671
      %673 = vdwg.mxu0
      %674 = vmatpush.msra.mxu0 0.0
      %675 = vmatpush.msra.mxu0 0.0
      %676 = vmatpush.msra.mxu0 0.0
      %677 = vmatpush.msra.mxu0 0.0
      %678 = vmatpush.msra.mxu0 0.0
      %679 = vmatpush.msra.mxu0 0.0
      %680 = vmatpush.msra.mxu0 0.0
      %681 = vmatpush.msra.mxu0 0.0
      %682 = vmatpush.msra.mxu0 0.0
      %683 = vmatpush.msra.mxu0 0.0
      %684 = vmatpush.msra.mxu0 0.0
      %685 = vmatpush.msra.mxu0 0.0
      %686 = vmatpush.msra.mxu0 0.0
      %687 = vmatpush.msra.mxu0 0.0
      %688 = vmatpush.msra.mxu0 0.0
      %689 = vmatpush.msra.mxu0 %v550
      %690 = vmatmul.f32.gmra.mxu0 %v536
      %v691 = vpop.f32.mrf.mxu0
      %v692 = vadd.f32 %v494, %v691
      %693 = vdwg.mxu0
      %694 = vmatpush.msra.mxu0 0.0
      %695 = vmatpush.msra.mxu0 0.0
      %696 = vmatpush.msra.mxu0 0.0
      %697 = vmatpush.msra.mxu0 0.0
      %698 = vmatpush.msra.mxu0 0.0
      %699 = vmatpush.msra.mxu0 0.0
      %700 = vmatpush.msra.mxu0 0.0
      %701 = vmatpush.msra.mxu0 0.0
      %702 = vmatpush.msra.mxu0 0.0
      %703 = vmatpush.msra.mxu0 0.0
      %704 = vmatpush.msra.mxu0 0.0
      %705 = vmatpush.msra.mxu0 0.0
      %706 = vmatpush.msra.mxu0 0.0
      %707 = vmatpush.msra.mxu0 0.0
      %708 = vmatpush.msra.mxu0 0.0
      %709 = vmatpush.msra.mxu0 %v552
      %710 = vmatmul.f32.gmra.mxu0 %v536
      %v711 = vpop.f32.mrf.mxu0
      %v712 = vadd.f32 %v514, %v711
      %713 = vdwg.mxu0
      %v714 = vld [vmem:[%s252] sm:$0xff]
      %v715 = vld [vmem:[%s252 + $0x8] sm:$0xff]
      %v716 = vld [vmem:[%s252 + $0x10] sm:$0xff]
      %v717 = vld [vmem:[%s252 + $0x18] sm:$0xff]
      %v718 = vld [vmem:[%s252 + $0x20] sm:$0xf]
      %v720 = vperm.slane %v249, 0
      %v721 = vperm.slane %v249, 1
      %v722 = vperm.slane %v249, 2
      %v723 = vperm.slane %v249, 3
      %v724 = vperm.slane %v249, 4
      %v725 = vperm.slane %v249, 5
      %v726 = vperm.slane %v249, 6
      %v727 = vperm.slane %v249, 7
      %v728 = vrot.slane %v721, 4
      %v729 = vrot.slane %v723, 4
      %v730 = vrot.slane %v725, 4
      %v731 = vrot.slane %v727, 4
      %v732 = vsel %vm270, %v720, %v728
      %v733 = vsel %vm270, %v722, %v729
      %v734 = vsel %vm270, %v724, %v730
      %v735 = vsel %vm270, %v726, %v731
      %736 = vrot.lane.b32.xlu0 %v732, 2
      %v737 = vpop.permute.xlu0 %736
      %738 = vrot.lane.b32.xlu0 %v733, 2
      %v739 = vpop.permute.xlu0 %738
      %740 = vrot.lane.b32.xlu0 %v734, 2
      %v741 = vpop.permute.xlu0 %740
      %742 = vrot.lane.b32.xlu0 %v735, 2
      %v743 = vpop.permute.xlu0 %742
      %v744 = vrot.slane %v737, 4
      %v745 = vrot.slane %v739, 4
      %v746 = vrot.slane %v741, 4
      %v747 = vrot.slane %v743, 4
      %vm748 = vcmask 15360
      %v749 = vsel %vm748, %v744, %v737
      %v750 = vsel %vm270, %v744, %v745
      %v751 = vsel %vm748, %v750, %v739
      %v752 = vsel %vm270, %v745, %v746
      %v753 = vsel %vm748, %v752, %v741
      %v754 = vsel %vm270, %v746, %v747
      %v755 = vsel %vm748, %v754, %v743
      %v761 = vmul.f32 %v714, %v749
      %v762 = vmul.f32 %v715, %v751
      %v763 = vmul.f32 %v716, %v753
      %v764 = vmul.f32 %v717, %v755
      %v765 = vmul.f32 %v718, %v747
      %s766 = scalar_lea.vmem %s1, 16
      %v767 = vld [vmem:[%s766] sm:$0xff]
      %773 = vst [vmem:[#allocation1] ss:$2 sm:$0xff] %v761
      %s774 = scalar_lea.vmem [#allocation1], 16
      %775 = vst [vmem:[%s774] ss:$2 sm:$0xff] %v762
      %s776 = scalar_lea.vmem [#allocation1], 32
      %777 = vst [vmem:[%s776] ss:$2 sm:$0xff] %v763
      %s778 = scalar_lea.vmem [#allocation1], 48
      %779 = vst [vmem:[%s778] ss:$2 sm:$0xff] %v764
      %v780 = vld.sshfl [vmem:[#allocation1] sm:$0xff pattern:$0x75316420]
      %v781 = vld.sshfl [vmem:[#allocation1 + $0x8] sm:$0xff pattern:$0x75316420]
      %v782 = vld.sshfl [vmem:[#allocation1 + $0x10] sm:$0xff pattern:$0x75316420]
      %v783 = vld.sshfl [vmem:[#allocation1 + $0x18] sm:$0xff pattern:$0x75316420]
      %v784 = vld.sshfl [vmem:[#allocation1 + $0x20] sm:$0xff pattern:$0x75316420]
      %v785 = vld.sshfl [vmem:[#allocation1 + $0x28] sm:$0xff pattern:$0x75316420]
      %v786 = vld.sshfl [vmem:[#allocation1 + $0x30] sm:$0xff pattern:$0x75316420]
      %v787 = vld.sshfl [vmem:[#allocation1 + $0x38] sm:$0xff pattern:$0x75316420]
      %788 = vst [vmem:[#allocation1] ss:$2 sm:$0xff] %v765
      %v789 = vld.sshfl [vmem:[#allocation1] sm:$0xff pattern:$0x75316420]
      %790 = vrot.lane.b32.xlu0 %v780, 126
      %v791 = vpop.permute.xlu0 %790
      %792 = vrot.lane.b32.xlu0 %v781, 126
      %v793 = vpop.permute.xlu0 %792
      %794 = vrot.lane.b32.xlu0 %v782, 126
      %v795 = vpop.permute.xlu0 %794
      %796 = vrot.lane.b32.xlu0 %v783, 126
      %v797 = vpop.permute.xlu0 %796
      %798 = vrot.lane.b32.xlu0 %v784, 126
      %v799 = vpop.permute.xlu0 %798
      %800 = vrot.lane.b32.xlu0 %v785, 126
      %v801 = vpop.permute.xlu0 %800
      %802 = vrot.lane.b32.xlu0 %v786, 126
      %v803 = vpop.permute.xlu0 %802
      %804 = vrot.lane.b32.xlu0 %v787, 126
      %v805 = vpop.permute.xlu0 %804
      %806 = vrot.lane.b32.xlu0 %v789, 126
      %v807 = vpop.permute.xlu0 %806
      %vm808 = vcmask 1031168
      %v809 = vsel %vm808, %v791, %v793
      %v810 = vsel %vm808, %v793, %v795
      %v811 = vsel %vm808, %v795, %v797
      %v812 = vsel %vm808, %v797, %v799
      %v813 = vsel %vm808, %v799, %v801
      %v814 = vsel %vm808, %v801, %v803
      %v815 = vsel %vm808, %v803, %v805
      %v816 = vsel %vm808, %v805, %v807
      %v818 = vsel %vm336, %v767, 0
      %v820 = vsel %vm270, %v809, 0
      %v822 = vsel %vm270, %v810, 0
      %v824 = vsel %vm270, %v811, 0
      %v826 = vsel %vm270, %v812, 0
      %v828 = vsel %vm270, %v813, 0
      %v830 = vsel %vm270, %v814, 0
      %v832 = vsel %vm270, %v815, 0
      %v834 = vsel %vm270, %v816, 0
      %836 = vmatpush.msra.mxu0 0.0
      %837 = vmatpush.msra.mxu0 0.0
      %838 = vmatpush.msra.mxu0 0.0
      %839 = vmatpush.msra.mxu0 0.0
      %840 = vmatpush.msra.mxu0 0.0
      %841 = vmatpush.msra.mxu0 0.0
      %842 = vmatpush.msra.mxu0 0.0
      %843 = vmatpush.msra.mxu0 0.0
      %844 = vmatpush.msra.mxu0 0.0
      %845 = vmatpush.msra.mxu0 0.0
      %846 = vmatpush.msra.mxu0 0.0
      %847 = vmatpush.msra.mxu0 0.0
      %848 = vmatpush.msra.mxu0 0.0
      %849 = vmatpush.msra.mxu0 0.0
      %850 = vmatpush.msra.mxu0 0.0
      %851 = vmatpush.msra.mxu0 %v820
      %852 = vmatmul.f32.gmra.mxu0 %v818
      %v853 = vpop.f32.mrf.mxu0
      %v854 = vadd.f32 0.0, %v853
      %855 = vdwg.mxu0
      %856 = vmatpush.msra.mxu0 0.0
      %857 = vmatpush.msra.mxu0 0.0
      %858 = vmatpush.msra.mxu0 0.0
      %859 = vmatpush.msra.mxu0 0.0
      %860 = vmatpush.msra.mxu0 0.0
      %861 = vmatpush.msra.mxu0 0.0
      %862 = vmatpush.msra.mxu0 0.0
      %863 = vmatpush.msra.mxu0 0.0
      %864 = vmatpush.msra.mxu0 0.0
      %865 = vmatpush.msra.mxu0 0.0
      %866 = vmatpush.msra.mxu0 0.0
      %867 = vmatpush.msra.mxu0 0.0
      %868 = vmatpush.msra.mxu0 0.0
      %869 = vmatpush.msra.mxu0 0.0
      %870 = vmatpush.msra.mxu0 0.0
      %871 = vmatpush.msra.mxu0 %v822
      %872 = vmatmul.f32.gmra.mxu0 %v818
      %v873 = vpop.f32.mrf.mxu0
      %v874 = vadd.f32 0.0, %v873
      %875 = vdwg.mxu0
      %876 = vmatpush.msra.mxu0 0.0
      %877 = vmatpush.msra.mxu0 0.0
      %878 = vmatpush.msra.mxu0 0.0
      %879 = vmatpush.msra.mxu0 0.0
      %880 = vmatpush.msra.mxu0 0.0
      %881 = vmatpush.msra.mxu0 0.0
      %882 = vmatpush.msra.mxu0 0.0
      %883 = vmatpush.msra.mxu0 0.0
      %884 = vmatpush.msra.mxu0 0.0
      %885 = vmatpush.msra.mxu0 0.0
      %886 = vmatpush.msra.mxu0 0.0
      %887 = vmatpush.msra.mxu0 0.0
      %888 = vmatpush.msra.mxu0 0.0
      %889 = vmatpush.msra.mxu0 0.0
      %890 = vmatpush.msra.mxu0 0.0
      %891 = vmatpush.msra.mxu0 %v824
      %892 = vmatmul.f32.gmra.mxu0 %v818
      %v893 = vpop.f32.mrf.mxu0
      %v894 = vadd.f32 0.0, %v893
      %895 = vdwg.mxu0
      %896 = vmatpush.msra.mxu0 0.0
      %897 = vmatpush.msra.mxu0 0.0
      %898 = vmatpush.msra.mxu0 0.0
      %899 = vmatpush.msra.mxu0 0.0
      %900 = vmatpush.msra.mxu0 0.0
      %901 = vmatpush.msra.mxu0 0.0
      %902 = vmatpush.msra.mxu0 0.0
      %903 = vmatpush.msra.mxu0 0.0
      %904 = vmatpush.msra.mxu0 0.0
      %905 = vmatpush.msra.mxu0 0.0
      %906 = vmatpush.msra.mxu0 0.0
      %907 = vmatpush.msra.mxu0 0.0
      %908 = vmatpush.msra.mxu0 0.0
      %909 = vmatpush.msra.mxu0 0.0
      %910 = vmatpush.msra.mxu0 0.0
      %911 = vmatpush.msra.mxu0 %v826
      %912 = vmatmul.f32.gmra.mxu0 %v818
      %v913 = vpop.f32.mrf.mxu0
      %v914 = vadd.f32 0.0, %v913
      %915 = vdwg.mxu0
      %916 = vmatpush.msra.mxu0 0.0
      %917 = vmatpush.msra.mxu0 0.0
      %918 = vmatpush.msra.mxu0 0.0
      %919 = vmatpush.msra.mxu0 0.0
      %920 = vmatpush.msra.mxu0 0.0
      %921 = vmatpush.msra.mxu0 0.0
      %922 = vmatpush.msra.mxu0 0.0
      %923 = vmatpush.msra.mxu0 0.0
      %924 = vmatpush.msra.mxu0 0.0
      %925 = vmatpush.msra.mxu0 0.0
      %926 = vmatpush.msra.mxu0 0.0
      %927 = vmatpush.msra.mxu0 0.0
      %928 = vmatpush.msra.mxu0 0.0
      %929 = vmatpush.msra.mxu0 0.0
      %930 = vmatpush.msra.mxu0 0.0
      %931 = vmatpush.msra.mxu0 %v828
      %932 = vmatmul.f32.gmra.mxu0 %v818
      %v933 = vpop.f32.mrf.mxu0
      %v934 = vadd.f32 0.0, %v933
      %935 = vdwg.mxu0
      %936 = vmatpush.msra.mxu0 0.0
      %937 = vmatpush.msra.mxu0 0.0
      %938 = vmatpush.msra.mxu0 0.0
      %939 = vmatpush.msra.mxu0 0.0
      %940 = vmatpush.msra.mxu0 0.0
      %941 = vmatpush.msra.mxu0 0.0
      %942 = vmatpush.msra.mxu0 0.0
      %943 = vmatpush.msra.mxu0 0.0
      %944 = vmatpush.msra.mxu0 0.0
      %945 = vmatpush.msra.mxu0 0.0
      %946 = vmatpush.msra.mxu0 0.0
      %947 = vmatpush.msra.mxu0 0.0
      %948 = vmatpush.msra.mxu0 0.0
      %949 = vmatpush.msra.mxu0 0.0
      %950 = vmatpush.msra.mxu0 0.0
      %951 = vmatpush.msra.mxu0 %v830
      %952 = vmatmul.f32.gmra.mxu0 %v818
      %v953 = vpop.f32.mrf.mxu0
      %v954 = vadd.f32 0.0, %v953
      %955 = vdwg.mxu0
      %956 = vmatpush.msra.mxu0 0.0
      %957 = vmatpush.msra.mxu0 0.0
      %958 = vmatpush.msra.mxu0 0.0
      %959 = vmatpush.msra.mxu0 0.0
      %960 = vmatpush.msra.mxu0 0.0
      %961 = vmatpush.msra.mxu0 0.0
      %962 = vmatpush.msra.mxu0 0.0
      %963 = vmatpush.msra.mxu0 0.0
      %964 = vmatpush.msra.mxu0 0.0
      %965 = vmatpush.msra.mxu0 0.0
      %966 = vmatpush.msra.mxu0 0.0
      %967 = vmatpush.msra.mxu0 0.0
      %968 = vmatpush.msra.mxu0 0.0
      %969 = vmatpush.msra.mxu0 0.0
      %970 = vmatpush.msra.mxu0 0.0
      %971 = vmatpush.msra.mxu0 %v832
      %972 = vmatmul.f32.gmra.mxu0 %v818
      %v973 = vpop.f32.mrf.mxu0
      %v974 = vadd.f32 0.0, %v973
      %975 = vdwg.mxu0
      %976 = vmatpush.msra.mxu0 0.0
      %977 = vmatpush.msra.mxu0 0.0
      %978 = vmatpush.msra.mxu0 0.0
      %979 = vmatpush.msra.mxu0 0.0
      %980 = vmatpush.msra.mxu0 0.0
      %981 = vmatpush.msra.mxu0 0.0
      %982 = vmatpush.msra.mxu0 0.0
      %983 = vmatpush.msra.mxu0 0.0
      %984 = vmatpush.msra.mxu0 0.0
      %985 = vmatpush.msra.mxu0 0.0
      %986 = vmatpush.msra.mxu0 0.0
      %987 = vmatpush.msra.mxu0 0.0
      %988 = vmatpush.msra.mxu0 0.0
      %989 = vmatpush.msra.mxu0 0.0
      %990 = vmatpush.msra.mxu0 0.0
      %991 = vmatpush.msra.mxu0 %v834
      %992 = vmatmul.f32.gmra.mxu0 %v818
      %v993 = vpop.f32.mrf.mxu0
      %v994 = vadd.f32 0.0, %v993
      %995 = vdwg.mxu0
      %v996 = vadd.f32 %v572, %v854
      %v997 = vadd.f32 %v592, %v874
      %v998 = vadd.f32 %v612, %v894
      %v999 = vadd.f32 %v632, %v914
      %v1000 = vadd.f32 %v652, %v934
      %v1001 = vadd.f32 %v672, %v954
      %v1002 = vadd.f32 %v692, %v974
      %v1003 = vadd.f32 %v712, %v994
      %v1004 = vld [vmem:[%s252] sm:$0xff]
      %v1005 = vld [vmem:[%s252 + $0x8] sm:$0xff]
      %v1006 = vld [vmem:[%s252 + $0x10] sm:$0xff]
      %v1007 = vld [vmem:[%s252 + $0x18] sm:$0xff]
      %v1008 = vld [vmem:[%s252 + $0x20] sm:$0xf]
      %1009 = vrot.lane.b32.xlu0 %v271, 32
      %v1010 = vpop.permute.xlu0 %1009
      %1011 = vrot.lane.b32.xlu0 %v272, 32
      %v1012 = vpop.permute.xlu0 %1011
      %1013 = vrot.lane.b32.xlu0 %v273, 32
      %v1014 = vpop.permute.xlu0 %1013
      %1015 = vrot.lane.b32.xlu0 %v274, 32
      %v1016 = vpop.permute.xlu0 %1015
      %v1017 = vrot.slane %v1010, 4
      %v1018 = vrot.slane %v1012, 4
      %v1019 = vrot.slane %v1014, 4
      %v1020 = vrot.slane %v1016, 4
      %vm1021 = vcmask 261120
      %v1022 = vsel %vm1021, %v1017, %v1010
      %v1023 = vsel %vm270, %v1017, %v1018
      %v1024 = vsel %vm1021, %v1023, %v1012
      %v1025 = vsel %vm270, %v1018, %v1019
      %v1026 = vsel %vm1021, %v1025, %v1014
      %v1027 = vsel %vm270, %v1019, %v1020
      %v1028 = vsel %vm1021, %v1027, %v1016
      %v1034 = vmul.f32 %v1004, %v1022
      %v1035 = vmul.f32 %v1005, %v1024
      %v1036 = vmul.f32 %v1006, %v1026
      %v1037 = vmul.f32 %v1007, %v1028
      %v1038 = vmul.f32 %v1008, %v1020
      %s1039 = scalar_lea.vmem %s1, 24
      %v1040 = vld [vmem:[%s1039] sm:$0xff]
      %1046 = vst [vmem:[#allocation1] ss:$2 sm:$0xff] %v1034
      %s1047 = scalar_lea.vmem [#allocation1], 16
      %1048 = vst [vmem:[%s1047] ss:$2 sm:$0xff] %v1035
      %s1049 = scalar_lea.vmem [#allocation1], 32
      %1050 = vst [vmem:[%s1049] ss:$2 sm:$0xff] %v1036
      %s1051 = scalar_lea.vmem [#allocation1], 48
      %1052 = vst [vmem:[%s1051] ss:$2 sm:$0xff] %v1037
      %v1053 = vld.sshfl [vmem:[#allocation1] sm:$0xff pattern:$0x75316420]
      %v1054 = vld.sshfl [vmem:[#allocation1 + $0x8] sm:$0xff pattern:$0x75316420]
      %v1055 = vld.sshfl [vmem:[#allocation1 + $0x10] sm:$0xff pattern:$0x75316420]
      %v1056 = vld.sshfl [vmem:[#allocation1 + $0x18] sm:$0xff pattern:$0x75316420]
      %v1057 = vld.sshfl [vmem:[#allocation1 + $0x20] sm:$0xff pattern:$0x75316420]
      %v1058 = vld.sshfl [vmem:[#allocation1 + $0x28] sm:$0xff pattern:$0x75316420]
      %v1059 = vld.sshfl [vmem:[#allocation1 + $0x30] sm:$0xff pattern:$0x75316420]
      %v1060 = vld.sshfl [vmem:[#allocation1 + $0x38] sm:$0xff pattern:$0x75316420]
      %1061 = vst [vmem:[#allocation1] ss:$2 sm:$0xff] %v1038
      %v1062 = vld.sshfl [vmem:[#allocation1] sm:$0xff pattern:$0x75316420]
      %1063 = vrot.lane.b32.xlu0 %v1053, 96
      %v1064 = vpop.permute.xlu0 %1063
      %1065 = vrot.lane.b32.xlu0 %v1054, 96
      %v1066 = vpop.permute.xlu0 %1065
      %1067 = vrot.lane.b32.xlu0 %v1055, 96
      %v1068 = vpop.permute.xlu0 %1067
      %1069 = vrot.lane.b32.xlu0 %v1056, 96
      %v1070 = vpop.permute.xlu0 %1069
      %1071 = vrot.lane.b32.xlu0 %v1057, 96
      %v1072 = vpop.permute.xlu0 %1071
      %1073 = vrot.lane.b32.xlu0 %v1058, 96
      %v1074 = vpop.permute.xlu0 %1073
      %1075 = vrot.lane.b32.xlu0 %v1059, 96
      %v1076 = vpop.permute.xlu0 %1075
      %1077 = vrot.lane.b32.xlu0 %v1060, 96
      %v1078 = vpop.permute.xlu0 %1077
      %1079 = vrot.lane.b32.xlu0 %v1062, 96
      %v1080 = vpop.permute.xlu0 %1079
      %vm1081 = vcmask 785408
      %v1082 = vsel %vm1081, %v1064, %v1066
      %v1083 = vsel %vm1081, %v1066, %v1068
      %v1084 = vsel %vm1081, %v1068, %v1070
      %v1085 = vsel %vm1081, %v1070, %v1072
      %v1086 = vsel %vm1081, %v1072, %v1074
      %v1087 = vsel %vm1081, %v1074, %v1076
      %v1088 = vsel %vm1081, %v1076, %v1078
      %v1089 = vsel %vm1081, %v1078, %v1080
      %v1091 = vsel %vm336, %v1040, 0
      %v1093 = vsel %vm270, %v1082, 0
      %v1095 = vsel %vm270, %v1083, 0
      %v1097 = vsel %vm270, %v1084, 0
      %v1099 = vsel %vm270, %v1085, 0
      %v1101 = vsel %vm270, %v1086, 0
      %v1103 = vsel %vm270, %v1087, 0
      %v1105 = vsel %vm270, %v1088, 0
      %v1107 = vsel %vm270, %v1089, 0
      %1109 = vmatpush.msra.mxu0 0.0
      %1110 = vmatpush.msra.mxu0 0.0
      %1111 = vmatpush.msra.mxu0 0.0
      %1112 = vmatpush.msra.mxu0 0.0
      %1113 = vmatpush.msra.mxu0 0.0
      %1114 = vmatpush.msra.mxu0 0.0
      %1115 = vmatpush.msra.mxu0 0.0
      %1116 = vmatpush.msra.mxu0 0.0
      %1117 = vmatpush.msra.mxu0 0.0
      %1118 = vmatpush.msra.mxu0 0.0
      %1119 = vmatpush.msra.mxu0 0.0
      %1120 = vmatpush.msra.mxu0 0.0
      %1121 = vmatpush.msra.mxu0 0.0
      %1122 = vmatpush.msra.mxu0 0.0
      %1123 = vmatpush.msra.mxu0 0.0
      %1124 = vmatpush.msra.mxu0 %v1093
      %1125 = vmatmul.f32.gmra.mxu0 %v1091
      %v1126 = vpop.f32.mrf.mxu0
      %v1127 = vadd.f32 0.0, %v1126
      %1128 = vdwg.mxu0
      %1129 = vmatpush.msra.mxu0 0.0
      %1130 = vmatpush.msra.mxu0 0.0
      %1131 = vmatpush.msra.mxu0 0.0
      %1132 = vmatpush.msra.mxu0 0.0
      %1133 = vmatpush.msra.mxu0 0.0
      %1134 = vmatpush.msra.mxu0 0.0
      %1135 = vmatpush.msra.mxu0 0.0
      %1136 = vmatpush.msra.mxu0 0.0
      %1137 = vmatpush.msra.mxu0 0.0
      %1138 = vmatpush.msra.mxu0 0.0
      %1139 = vmatpush.msra.mxu0 0.0
      %1140 = vmatpush.msra.mxu0 0.0
      %1141 = vmatpush.msra.mxu0 0.0
      %1142 = vmatpush.msra.mxu0 0.0
      %1143 = vmatpush.msra.mxu0 0.0
      %1144 = vmatpush.msra.mxu0 %v1095
      %1145 = vmatmul.f32.gmra.mxu0 %v1091
      %v1146 = vpop.f32.mrf.mxu0
      %v1147 = vadd.f32 0.0, %v1146
      %1148 = vdwg.mxu0
      %1149 = vmatpush.msra.mxu0 0.0
      %1150 = vmatpush.msra.mxu0 0.0
      %1151 = vmatpush.msra.mxu0 0.0
      %1152 = vmatpush.msra.mxu0 0.0
      %1153 = vmatpush.msra.mxu0 0.0
      %1154 = vmatpush.msra.mxu0 0.0
      %1155 = vmatpush.msra.mxu0 0.0
      %1156 = vmatpush.msra.mxu0 0.0
      %1157 = vmatpush.msra.mxu0 0.0
      %1158 = vmatpush.msra.mxu0 0.0
      %1159 = vmatpush.msra.mxu0 0.0
      %1160 = vmatpush.msra.mxu0 0.0
      %1161 = vmatpush.msra.mxu0 0.0
      %1162 = vmatpush.msra.mxu0 0.0
      %1163 = vmatpush.msra.mxu0 0.0
      %1164 = vmatpush.msra.mxu0 %v1097
      %1165 = vmatmul.f32.gmra.mxu0 %v1091
      %v1166 = vpop.f32.mrf.mxu0
      %v1167 = vadd.f32 0.0, %v1166
      %1168 = vdwg.mxu0
      %1169 = vmatpush.msra.mxu0 0.0
      %1170 = vmatpush.msra.mxu0 0.0
      %1171 = vmatpush.msra.mxu0 0.0
      %1172 = vmatpush.msra.mxu0 0.0
      %1173 = vmatpush.msra.mxu0 0.0
      %1174 = vmatpush.msra.mxu0 0.0
      %1175 = vmatpush.msra.mxu0 0.0
      %1176 = vmatpush.msra.mxu0 0.0
      %1177 = vmatpush.msra.mxu0 0.0
      %1178 = vmatpush.msra.mxu0 0.0
      %1179 = vmatpush.msra.mxu0 0.0
      %1180 = vmatpush.msra.mxu0 0.0
      %1181 = vmatpush.msra.mxu0 0.0
      %1182 = vmatpush.msra.mxu0 0.0
      %1183 = vmatpush.msra.mxu0 0.0
      %1184 = vmatpush.msra.mxu0 %v1099
      %1185 = vmatmul.f32.gmra.mxu0 %v1091
      %v1186 = vpop.f32.mrf.mxu0
      %v1187 = vadd.f32 0.0, %v1186
      %1188 = vdwg.mxu0
      %1189 = vmatpush.msra.mxu0 0.0
      %1190 = vmatpush.msra.mxu0 0.0
      %1191 = vmatpush.msra.mxu0 0.0
      %1192 = vmatpush.msra.mxu0 0.0
      %1193 = vmatpush.msra.mxu0 0.0
      %1194 = vmatpush.msra.mxu0 0.0
      %1195 = vmatpush.msra.mxu0 0.0
      %1196 = vmatpush.msra.mxu0 0.0
      %1197 = vmatpush.msra.mxu0 0.0
      %1198 = vmatpush.msra.mxu0 0.0
      %1199 = vmatpush.msra.mxu0 0.0
      %1200 = vmatpush.msra.mxu0 0.0
      %1201 = vmatpush.msra.mxu0 0.0
      %1202 = vmatpush.msra.mxu0 0.0
      %1203 = vmatpush.msra.mxu0 0.0
      %1204 = vmatpush.msra.mxu0 %v1101
      %1205 = vmatmul.f32.gmra.mxu0 %v1091
      %v1206 = vpop.f32.mrf.mxu0
      %v1207 = vadd.f32 0.0, %v1206
      %1208 = vdwg.mxu0
      %1209 = vmatpush.msra.mxu0 0.0
      %1210 = vmatpush.msra.mxu0 0.0
      %1211 = vmatpush.msra.mxu0 0.0
      %1212 = vmatpush.msra.mxu0 0.0
      %1213 = vmatpush.msra.mxu0 0.0
      %1214 = vmatpush.msra.mxu0 0.0
      %1215 = vmatpush.msra.mxu0 0.0
      %1216 = vmatpush.msra.mxu0 0.0
      %1217 = vmatpush.msra.mxu0 0.0
      %1218 = vmatpush.msra.mxu0 0.0
      %1219 = vmatpush.msra.mxu0 0.0
      %1220 = vmatpush.msra.mxu0 0.0
      %1221 = vmatpush.msra.mxu0 0.0
      %1222 = vmatpush.msra.mxu0 0.0
      %1223 = vmatpush.msra.mxu0 0.0
      %1224 = vmatpush.msra.mxu0 %v1103
      %1225 = vmatmul.f32.gmra.mxu0 %v1091
      %v1226 = vpop.f32.mrf.mxu0
      %v1227 = vadd.f32 0.0, %v1226
      %1228 = vdwg.mxu0
      %1229 = vmatpush.msra.mxu0 0.0
      %1230 = vmatpush.msra.mxu0 0.0
      %1231 = vmatpush.msra.mxu0 0.0
      %1232 = vmatpush.msra.mxu0 0.0
      %1233 = vmatpush.msra.mxu0 0.0
      %1234 = vmatpush.msra.mxu0 0.0
      %1235 = vmatpush.msra.mxu0 0.0
      %1236 = vmatpush.msra.mxu0 0.0
      %1237 = vmatpush.msra.mxu0 0.0
      %1238 = vmatpush.msra.mxu0 0.0
      %1239 = vmatpush.msra.mxu0 0.0
      %1240 = vmatpush.msra.mxu0 0.0
      %1241 = vmatpush.msra.mxu0 0.0
      %1242 = vmatpush.msra.mxu0 0.0
      %1243 = vmatpush.msra.mxu0 0.0
      %1244 = vmatpush.msra.mxu0 %v1105
      %1245 = vmatmul.f32.gmra.mxu0 %v1091
      %v1246 = vpop.f32.mrf.mxu0
      %v1247 = vadd.f32 0.0, %v1246
      %1248 = vdwg.mxu0
      %1249 = vmatpush.msra.mxu0 0.0
      %1250 = vmatpush.msra.mxu0 0.0
      %1251 = vmatpush.msra.mxu0 0.0
      %1252 = vmatpush.msra.mxu0 0.0
      %1253 = vmatpush.msra.mxu0 0.0
      %1254 = vmatpush.msra.mxu0 0.0
      %1255 = vmatpush.msra.mxu0 0.0
      %1256 = vmatpush.msra.mxu0 0.0
      %1257 = vmatpush.msra.mxu0 0.0
      %1258 = vmatpush.msra.mxu0 0.0
      %1259 = vmatpush.msra.mxu0 0.0
      %1260 = vmatpush.msra.mxu0 0.0
      %1261 = vmatpush.msra.mxu0 0.0
      %1262 = vmatpush.msra.mxu0 0.0
      %1263 = vmatpush.msra.mxu0 0.0
      %1264 = vmatpush.msra.mxu0 %v1107
      %1265 = vmatmul.f32.gmra.mxu0 %v1091
      %v1266 = vpop.f32.mrf.mxu0
      %v1267 = vadd.f32 0.0, %v1266
      %1268 = vdwg.mxu0
      %v1269 = vadd.f32 %v996, %v1127
      %v1270 = vadd.f32 %v997, %v1147
      %v1271 = vadd.f32 %v998, %v1167
      %v1272 = vadd.f32 %v999, %v1187
      %v1273 = vadd.f32 %v1000, %v1207
      %v1274 = vadd.f32 %v1001, %v1227
      %v1275 = vadd.f32 %v1002, %v1247
      %v1276 = vadd.f32 %v1003, %v1267
      %v1277 = vld [vmem:[%s252] sm:$0xff]
      %v1278 = vld [vmem:[%s252 + $0x8] sm:$0xff]
      %v1279 = vld [vmem:[%s252 + $0x10] sm:$0xff]
      %v1280 = vld [vmem:[%s252 + $0x18] sm:$0xff]
      %v1281 = vld [vmem:[%s252 + $0x20] sm:$0xf]
      %s1282 = scalar_lea.vmem %s1, 32
      %v1283 = vld [vmem:[%s1282] sm:$0xff]
      %1289 = vst [vmem:[#allocation1] ss:$2 sm:$0xff] %v1277
      %s1290 = scalar_lea.vmem [#allocation1], 16
      %1291 = vst [vmem:[%s1290] ss:$2 sm:$0xff] %v1278
      %s1292 = scalar_lea.vmem [#allocation1], 32
      %1293 = vst [vmem:[%s1292] ss:$2 sm:$0xff] %v1279
      %s1294 = scalar_lea.vmem [#allocation1], 48
      %1295 = vst [vmem:[%s1294] ss:$2 sm:$0xff] %v1280
      %v1296 = vld.sshfl [vmem:[#allocation1] sm:$0xff pattern:$0x75316420]
      %v1297 = vld.sshfl [vmem:[#allocation1 + $0x8] sm:$0xff pattern:$0x75316420]
      %v1298 = vld.sshfl [vmem:[#allocation1 + $0x10] sm:$0xff pattern:$0x75316420]
      %v1299 = vld.sshfl [vmem:[#allocation1 + $0x18] sm:$0xff pattern:$0x75316420]
      %v1300 = vld.sshfl [vmem:[#allocation1 + $0x20] sm:$0xff pattern:$0x75316420]
      %v1301 = vld.sshfl [vmem:[#allocation1 + $0x28] sm:$0xff pattern:$0x75316420]
      %v1302 = vld.sshfl [vmem:[#allocation1 + $0x30] sm:$0xff pattern:$0x75316420]
      %v1303 = vld.sshfl [vmem:[#allocation1 + $0x38] sm:$0xff pattern:$0x75316420]
      %1304 = vst [vmem:[#allocation1] ss:$2 sm:$0xff] %v1281
      %v1305 = vld.sshfl [vmem:[#allocation1] sm:$0xff pattern:$0x75316420]
      %1306 = vrot.lane.b32.xlu0 %v1296, 95
      %v1307 = vpop.permute.xlu0 %1306
      %1308 = vrot.lane.b32.xlu0 %v1297, 95
      %v1309 = vpop.permute.xlu0 %1308
      %1310 = vrot.lane.b32.xlu0 %v1298, 95
      %v1311 = vpop.permute.xlu0 %1310
      %1312 = vrot.lane.b32.xlu0 %v1299, 95
      %v1313 = vpop.permute.xlu0 %1312
      %1314 = vrot.lane.b32.xlu0 %v1300, 95
      %v1315 = vpop.permute.xlu0 %1314
      %1316 = vrot.lane.b32.xlu0 %v1301, 95
      %v1317 = vpop.permute.xlu0 %1316
      %1318 = vrot.lane.b32.xlu0 %v1302, 95
      %v1319 = vpop.permute.xlu0 %1318
      %1320 = vrot.lane.b32.xlu0 %v1303, 95
      %v1321 = vpop.permute.xlu0 %1320
      %1322 = vrot.lane.b32.xlu0 %v1305, 95
      %v1323 = vpop.permute.xlu0 %1322
      %vm1324 = vcmask 777216
      %v1325 = vsel %vm1324, %v1307, %v1309
      %v1326 = vsel %vm1324, %v1309, %v1311
      %v1327 = vsel %vm1324, %v1311, %v1313
      %v1328 = vsel %vm1324, %v1313, %v1315
      %v1329 = vsel %vm1324, %v1315, %v1317
      %v1330 = vsel %vm1324, %v1317, %v1319
      %v1331 = vsel %vm1324, %v1319, %v1321
      %v1332 = vsel %vm1324, %v1321, %v1323
      %v1334 = vsel %vm336, %v1283, 0
      %v1336 = vsel %vm270, %v1325, 0
      %v1338 = vsel %vm270, %v1326, 0
      %v1340 = vsel %vm270, %v1327, 0
      %v1342 = vsel %vm270, %v1328, 0
      %v1344 = vsel %vm270, %v1329, 0
      %v1346 = vsel %vm270, %v1330, 0
      %v1348 = vsel %vm270, %v1331, 0
      %v1350 = vsel %vm270, %v1332, 0
      %1352 = vmatpush.msra.mxu0 0.0
      %1353 = vmatpush.msra.mxu0 0.0
      %1354 = vmatpush.msra.mxu0 0.0
      %1355 = vmatpush.msra.mxu0 0.0
      %1356 = vmatpush.msra.mxu0 0.0
      %1357 = vmatpush.msra.mxu0 0.0
      %1358 = vmatpush.msra.mxu0 0.0
      %1359 = vmatpush.msra.mxu0 0.0
      %1360 = vmatpush.msra.mxu0 0.0
      %1361 = vmatpush.msra.mxu0 0.0
      %1362 = vmatpush.msra.mxu0 0.0
      %1363 = vmatpush.msra.mxu0 0.0
      %1364 = vmatpush.msra.mxu0 0.0
      %1365 = vmatpush.msra.mxu0 0.0
      %1366 = vmatpush.msra.mxu0 0.0
      %1367 = vmatpush.msra.mxu0 %v1336
      %1368 = vmatmul.f32.gmra.mxu0 %v1334
      %v1369 = vpop.f32.mrf.mxu0
      %v1370 = vadd.f32 0.0, %v1369
      %1371 = vdwg.mxu0
      %1372 = vmatpush.msra.mxu0 0.0
      %1373 = vmatpush.msra.mxu0 0.0
      %1374 = vmatpush.msra.mxu0 0.0
      %1375 = vmatpush.msra.mxu0 0.0
      %1376 = vmatpush.msra.mxu0 0.0
      %1377 = vmatpush.msra.mxu0 0.0
      %1378 = vmatpush.msra.mxu0 0.0
      %1379 = vmatpush.msra.mxu0 0.0
      %1380 = vmatpush.msra.mxu0 0.0
      %1381 = vmatpush.msra.mxu0 0.0
      %1382 = vmatpush.msra.mxu0 0.0
      %1383 = vmatpush.msra.mxu0 0.0
      %1384 = vmatpush.msra.mxu0 0.0
      %1385 = vmatpush.msra.mxu0 0.0
      %1386 = vmatpush.msra.mxu0 0.0
      %1387 = vmatpush.msra.mxu0 %v1338
      %1388 = vmatmul.f32.gmra.mxu0 %v1334
      %v1389 = vpop.f32.mrf.mxu0
      %v1390 = vadd.f32 0.0, %v1389
      %1391 = vdwg.mxu0
      %1392 = vmatpush.msra.mxu0 0.0
      %1393 = vmatpush.msra.mxu0 0.0
      %1394 = vmatpush.msra.mxu0 0.0
      %1395 = vmatpush.msra.mxu0 0.0
      %1396 = vmatpush.msra.mxu0 0.0
      %1397 = vmatpush.msra.mxu0 0.0
      %1398 = vmatpush.msra.mxu0 0.0
      %1399 = vmatpush.msra.mxu0 0.0
      %1400 = vmatpush.msra.mxu0 0.0
      %1401 = vmatpush.msra.mxu0 0.0
      %1402 = vmatpush.msra.mxu0 0.0
      %1403 = vmatpush.msra.mxu0 0.0
      %1404 = vmatpush.msra.mxu0 0.0
      %1405 = vmatpush.msra.mxu0 0.0
      %1406 = vmatpush.msra.mxu0 0.0
      %1407 = vmatpush.msra.mxu0 %v1340
      %1408 = vmatmul.f32.gmra.mxu0 %v1334
      %v1409 = vpop.f32.mrf.mxu0
      %v1410 = vadd.f32 0.0, %v1409
      %1411 = vdwg.mxu0
      %1412 = vmatpush.msra.mxu0 0.0
      %1413 = vmatpush.msra.mxu0 0.0
      %1414 = vmatpush.msra.mxu0 0.0
      %1415 = vmatpush.msra.mxu0 0.0
      %1416 = vmatpush.msra.mxu0 0.0
      %1417 = vmatpush.msra.mxu0 0.0
      %1418 = vmatpush.msra.mxu0 0.0
      %1419 = vmatpush.msra.mxu0 0.0
      %1420 = vmatpush.msra.mxu0 0.0
      %1421 = vmatpush.msra.mxu0 0.0
      %1422 = vmatpush.msra.mxu0 0.0
      %1423 = vmatpush.msra.mxu0 0.0
      %1424 = vmatpush.msra.mxu0 0.0
      %1425 = vmatpush.msra.mxu0 0.0
      %1426 = vmatpush.msra.mxu0 0.0
      %1427 = vmatpush.msra.mxu0 %v1342
      %1428 = vmatmul.f32.gmra.mxu0 %v1334
      %v1429 = vpop.f32.mrf.mxu0
      %v1430 = vadd.f32 0.0, %v1429
      %1431 = vdwg.mxu0
      %1432 = vmatpush.msra.mxu0 0.0
      %1433 = vmatpush.msra.mxu0 0.0
      %1434 = vmatpush.msra.mxu0 0.0
      %1435 = vmatpush.msra.mxu0 0.0
      %1436 = vmatpush.msra.mxu0 0.0
      %1437 = vmatpush.msra.mxu0 0.0
      %1438 = vmatpush.msra.mxu0 0.0
      %1439 = vmatpush.msra.mxu0 0.0
      %1440 = vmatpush.msra.mxu0 0.0
      %1441 = vmatpush.msra.mxu0 0.0
      %1442 = vmatpush.msra.mxu0 0.0
      %1443 = vmatpush.msra.mxu0 0.0
      %1444 = vmatpush.msra.mxu0 0.0
      %1445 = vmatpush.msra.mxu0 0.0
      %1446 = vmatpush.msra.mxu0 0.0
      %1447 = vmatpush.msra.mxu0 %v1344
      %1448 = vmatmul.f32.gmra.mxu0 %v1334
      %v1449 = vpop.f32.mrf.mxu0
      %v1450 = vadd.f32 0.0, %v1449
      %1451 = vdwg.mxu0
      %1452 = vmatpush.msra.mxu0 0.0
      %1453 = vmatpush.msra.mxu0 0.0
      %1454 = vmatpush.msra.mxu0 0.0
      %1455 = vmatpush.msra.mxu0 0.0
      %1456 = vmatpush.msra.mxu0 0.0
      %1457 = vmatpush.msra.mxu0 0.0
      %1458 = vmatpush.msra.mxu0 0.0
      %1459 = vmatpush.msra.mxu0 0.0
      %1460 = vmatpush.msra.mxu0 0.0
      %1461 = vmatpush.msra.mxu0 0.0
      %1462 = vmatpush.msra.mxu0 0.0
      %1463 = vmatpush.msra.mxu0 0.0
      %1464 = vmatpush.msra.mxu0 0.0
      %1465 = vmatpush.msra.mxu0 0.0
      %1466 = vmatpush.msra.mxu0 0.0
      %1467 = vmatpush.msra.mxu0 %v1346
      %1468 = vmatmul.f32.gmra.mxu0 %v1334
      %v1469 = vpop.f32.mrf.mxu0
      %v1470 = vadd.f32 0.0, %v1469
      %1471 = vdwg.mxu0
      %1472 = vmatpush.msra.mxu0 0.0
      %1473 = vmatpush.msra.mxu0 0.0
      %1474 = vmatpush.msra.mxu0 0.0
      %1475 = vmatpush.msra.mxu0 0.0
      %1476 = vmatpush.msra.mxu0 0.0
      %1477 = vmatpush.msra.mxu0 0.0
      %1478 = vmatpush.msra.mxu0 0.0
      %1479 = vmatpush.msra.mxu0 0.0
      %1480 = vmatpush.msra.mxu0 0.0
      %1481 = vmatpush.msra.mxu0 0.0
      %1482 = vmatpush.msra.mxu0 0.0
      %1483 = vmatpush.msra.mxu0 0.0
      %1484 = vmatpush.msra.mxu0 0.0
      %1485 = vmatpush.msra.mxu0 0.0
      %1486 = vmatpush.msra.mxu0 0.0
      %1487 = vmatpush.msra.mxu0 %v1348
      %1488 = vmatmul.f32.gmra.mxu0 %v1334
      %v1489 = vpop.f32.mrf.mxu0
      %v1490 = vadd.f32 0.0, %v1489
      %1491 = vdwg.mxu0
      %1492 = vmatpush.msra.mxu0 0.0
      %1493 = vmatpush.msra.mxu0 0.0
      %1494 = vmatpush.msra.mxu0 0.0
      %1495 = vmatpush.msra.mxu0 0.0
      %1496 = vmatpush.msra.mxu0 0.0
      %1497 = vmatpush.msra.mxu0 0.0
      %1498 = vmatpush.msra.mxu0 0.0
      %1499 = vmatpush.msra.mxu0 0.0
      %1500 = vmatpush.msra.mxu0 0.0
      %1501 = vmatpush.msra.mxu0 0.0
      %1502 = vmatpush.msra.mxu0 0.0
      %1503 = vmatpush.msra.mxu0 0.0
      %1504 = vmatpush.msra.mxu0 0.0
      %1505 = vmatpush.msra.mxu0 0.0
      %1506 = vmatpush.msra.mxu0 0.0
      %1507 = vmatpush.msra.mxu0 %v1350
      %1508 = vmatmul.f32.gmra.mxu0 %v1334
      %v1509 = vpop.f32.mrf.mxu0
      %v1510 = vadd.f32 0.0, %v1509
      %1511 = vdwg.mxu0
      %v1512 = vadd.f32 %v1269, %v1370
      %v1513 = vadd.f32 %v1270, %v1390
      %v1514 = vadd.f32 %v1271, %v1410
      %v1515 = vadd.f32 %v1272, %v1430
      %v1516 = vadd.f32 %v1273, %v1450
      %v1517 = vadd.f32 %v1274, %v1470
      %v1518 = vadd.f32 %v1275, %v1490
      %v1519 = vadd.f32 %v1276, %v1510
      %v1520 = vld [vmem:[%s252] sm:$0xff]
      %v1521 = vld [vmem:[%s252 + $0x8] sm:$0xff]
      %v1522 = vld [vmem:[%s252 + $0x10] sm:$0xff]
      %v1523 = vld [vmem:[%s252 + $0x18] sm:$0xff]
      %v1524 = vld [vmem:[%s252 + $0x20] sm:$0xf]
      %1525 = vrot.lane.b32.xlu0 %v732, 34
      %v1526 = vpop.permute.xlu0 %1525
      %1527 = vrot.lane.b32.xlu0 %v733, 34
      %v1528 = vpop.permute.xlu0 %1527
      %1529 = vrot.lane.b32.xlu0 %v734, 34
      %v1530 = vpop.permute.xlu0 %1529
      %1531 = vrot.lane.b32.xlu0 %v735, 34
      %v1532 = vpop.permute.xlu0 %1531
      %v1533 = vrot.slane %v1526, 4
      %v1534 = vrot.slane %v1528, 4
      %v1535 = vrot.slane %v1530, 4
      %v1536 = vrot.slane %v1532, 4
      %vm1537 = vcmask 277504
      %v1538 = vsel %vm1537, %v1533, %v1526
      %v1539 = vsel %vm270, %v1533, %v1534
      %v1540 = vsel %vm1537, %v1539, %v1528
      %v1541 = vsel %vm270, %v1534, %v1535
      %v1542 = vsel %vm1537, %v1541, %v1530
      %v1543 = vsel %vm270, %v1535, %v1536
      %v1544 = vsel %vm1537, %v1543, %v1532
      %v1550 = vmul.f32 %v1520, %v1538
      %v1551 = vmul.f32 %v1521, %v1540
      %v1552 = vmul.f32 %v1522, %v1542
      %v1553 = vmul.f32 %v1523, %v1544
      %v1554 = vmul.f32 %v1524, %v1536
      %s1555 = scalar_lea.vmem %s1, 40
      %v1556 = vld [vmem:[%s1555] sm:$0xff]
      %1562 = vst [vmem:[#allocation1] ss:$2 sm:$0xff] %v1550
      %s1563 = scalar_lea.vmem [#allocation1], 16
      %1564 = vst [vmem:[%s1563] ss:$2 sm:$0xff] %v1551
      %s1565 = scalar_lea.vmem [#allocation1], 32
      %1566 = vst [vmem:[%s1565] ss:$2 sm:$0xff] %v1552
      %s1567 = scalar_lea.vmem [#allocation1], 48
      %1568 = vst [vmem:[%s1567] ss:$2 sm:$0xff] %v1553
      %v1569 = vld.sshfl [vmem:[#allocation1] sm:$0xff pattern:$0x75316420]
      %v1570 = vld.sshfl [vmem:[#allocation1 + $0x8] sm:$0xff pattern:$0x75316420]
      %v1571 = vld.sshfl [vmem:[#allocation1 + $0x10] sm:$0xff pattern:$0x75316420]
      %v1572 = vld.sshfl [vmem:[#allocation1 + $0x18] sm:$0xff pattern:$0x75316420]
      %v1573 = vld.sshfl [vmem:[#allocation1 + $0x20] sm:$0xff pattern:$0x75316420]
      %v1574 = vld.sshfl [vmem:[#allocation1 + $0x28] sm:$0xff pattern:$0x75316420]
      %v1575 = vld.sshfl [vmem:[#allocation1 + $0x30] sm:$0xff pattern:$0x75316420]
      %v1576 = vld.sshfl [vmem:[#allocation1 + $0x38] sm:$0xff pattern:$0x75316420]
      %1577 = vst [vmem:[#allocation1] ss:$2 sm:$0xff] %v1554
      %v1578 = vld.sshfl [vmem:[#allocation1] sm:$0xff pattern:$0x75316420]
      %1579 = vrot.lane.b32.xlu0 %v1569, 94
      %v1580 = vpop.permute.xlu0 %1579
      %1581 = vrot.lane.b32.xlu0 %v1570, 94
      %v1582 = vpop.permute.xlu0 %1581
      %1583 = vrot.lane.b32.xlu0 %v1571, 94
      %v1584 = vpop.permute.xlu0 %1583
      %1585 = vrot.lane.b32.xlu0 %v1572, 94
      %v1586 = vpop.permute.xlu0 %1585
      %1587 = vrot.lane.b32.xlu0 %v1573, 94
      %v1588 = vpop.permute.xlu0 %1587
      %1589 = vrot.lane.b32.xlu0 %v1574, 94
      %v1590 = vpop.permute.xlu0 %1589
      %1591 = vrot.lane.b32.xlu0 %v1575, 94
      %v1592 = vpop.permute.xlu0 %1591
      %1593 = vrot.lane.b32.xlu0 %v1576, 94
      %v1594 = vpop.permute.xlu0 %1593
      %1595 = vrot.lane.b32.xlu0 %v1578, 94
      %v1596 = vpop.permute.xlu0 %1595
      %vm1597 = vcmask 769024
      %v1598 = vsel %vm1597, %v1580, %v1582
      %v1599 = vsel %vm1597, %v1582, %v1584
      %v1600 = vsel %vm1597, %v1584, %v1586
      %v1601 = vsel %vm1597, %v1586, %v1588
      %v1602 = vsel %vm1597, %v1588, %v1590
      %v1603 = vsel %vm1597, %v1590, %v1592
      %v1604 = vsel %vm1597, %v1592, %v1594
      %v1605 = vsel %vm1597, %v1594, %v1596
      %v1607 = vsel %vm336, %v1556, 0
      %v1609 = vsel %vm270, %v1598, 0
      %v1611 = vsel %vm270, %v1599, 0
      %v1613 = vsel %vm270, %v1600, 0
      %v1615 = vsel %vm270, %v1601, 0
      %v1617 = vsel %vm270, %v1602, 0
      %v1619 = vsel %vm270, %v1603, 0
      %v1621 = vsel %vm270, %v1604, 0
      %v1623 = vsel %vm270, %v1605, 0
      %1625 = vmatpush.msra.mxu0 0.0
      %1626 = vmatpush.msra.mxu0 0.0
      %1627 = vmatpush.msra.mxu0 0.0
      %1628 = vmatpush.msra.mxu0 0.0
      %1629 = vmatpush.msra.mxu0 0.0
      %1630 = vmatpush.msra.mxu0 0.0
      %1631 = vmatpush.msra.mxu0 0.0
      %1632 = vmatpush.msra.mxu0 0.0
      %1633 = vmatpush.msra.mxu0 0.0
      %1634 = vmatpush.msra.mxu0 0.0
      %1635 = vmatpush.msra.mxu0 0.0
      %1636 = vmatpush.msra.mxu0 0.0
      %1637 = vmatpush.msra.mxu0 0.0
      %1638 = vmatpush.msra.mxu0 0.0
      %1639 = vmatpush.msra.mxu0 0.0
      %1640 = vmatpush.msra.mxu0 %v1609
      %1641 = vmatmul.f32.gmra.mxu0 %v1607
      %v1642 = vpop.f32.mrf.mxu0
      %v1643 = vadd.f32 0.0, %v1642
      %1644 = vdwg.mxu0
      %1645 = vmatpush.msra.mxu0 0.0
      %1646 = vmatpush.msra.mxu0 0.0
      %1647 = vmatpush.msra.mxu0 0.0
      %1648 = vmatpush.msra.mxu0 0.0
      %1649 = vmatpush.msra.mxu0 0.0
      %1650 = vmatpush.msra.mxu0 0.0
      %1651 = vmatpush.msra.mxu0 0.0
      %1652 = vmatpush.msra.mxu0 0.0
      %1653 = vmatpush.msra.mxu0 0.0
      %1654 = vmatpush.msra.mxu0 0.0
      %1655 = vmatpush.msra.mxu0 0.0
      %1656 = vmatpush.msra.mxu0 0.0
      %1657 = vmatpush.msra.mxu0 0.0
      %1658 = vmatpush.msra.mxu0 0.0
      %1659 = vmatpush.msra.mxu0 0.0
      %1660 = vmatpush.msra.mxu0 %v1611
      %1661 = vmatmul.f32.gmra.mxu0 %v1607
      %v1662 = vpop.f32.mrf.mxu0
      %v1663 = vadd.f32 0.0, %v1662
      %1664 = vdwg.mxu0
      %1665 = vmatpush.msra.mxu0 0.0
      %1666 = vmatpush.msra.mxu0 0.0
      %1667 = vmatpush.msra.mxu0 0.0
      %1668 = vmatpush.msra.mxu0 0.0
      %1669 = vmatpush.msra.mxu0 0.0
      %1670 = vmatpush.msra.mxu0 0.0
      %1671 = vmatpush.msra.mxu0 0.0
      %1672 = vmatpush.msra.mxu0 0.0
      %1673 = vmatpush.msra.mxu0 0.0
      %1674 = vmatpush.msra.mxu0 0.0
      %1675 = vmatpush.msra.mxu0 0.0
      %1676 = vmatpush.msra.mxu0 0.0
      %1677 = vmatpush.msra.mxu0 0.0
      %1678 = vmatpush.msra.mxu0 0.0
      %1679 = vmatpush.msra.mxu0 0.0
      %1680 = vmatpush.msra.mxu0 %v1613
      %1681 = vmatmul.f32.gmra.mxu0 %v1607
      %v1682 = vpop.f32.mrf.mxu0
      %v1683 = vadd.f32 0.0, %v1682
      %1684 = vdwg.mxu0
      %1685 = vmatpush.msra.mxu0 0.0
      %1686 = vmatpush.msra.mxu0 0.0
      %1687 = vmatpush.msra.mxu0 0.0
      %1688 = vmatpush.msra.mxu0 0.0
      %1689 = vmatpush.msra.mxu0 0.0
      %1690 = vmatpush.msra.mxu0 0.0
      %1691 = vmatpush.msra.mxu0 0.0
      %1692 = vmatpush.msra.mxu0 0.0
      %1693 = vmatpush.msra.mxu0 0.0
      %1694 = vmatpush.msra.mxu0 0.0
      %1695 = vmatpush.msra.mxu0 0.0
      %1696 = vmatpush.msra.mxu0 0.0
      %1697 = vmatpush.msra.mxu0 0.0
      %1698 = vmatpush.msra.mxu0 0.0
      %1699 = vmatpush.msra.mxu0 0.0
      %1700 = vmatpush.msra.mxu0 %v1615
      %1701 = vmatmul.f32.gmra.mxu0 %v1607
      %v1702 = vpop.f32.mrf.mxu0
      %v1703 = vadd.f32 0.0, %v1702
      %1704 = vdwg.mxu0
      %1705 = vmatpush.msra.mxu0 0.0
      %1706 = vmatpush.msra.mxu0 0.0
      %1707 = vmatpush.msra.mxu0 0.0
      %1708 = vmatpush.msra.mxu0 0.0
      %1709 = vmatpush.msra.mxu0 0.0
      %1710 = vmatpush.msra.mxu0 0.0
      %1711 = vmatpush.msra.mxu0 0.0
      %1712 = vmatpush.msra.mxu0 0.0
      %1713 = vmatpush.msra.mxu0 0.0
      %1714 = vmatpush.msra.mxu0 0.0
      %1715 = vmatpush.msra.mxu0 0.0
      %1716 = vmatpush.msra.mxu0 0.0
      %1717 = vmatpush.msra.mxu0 0.0
      %1718 = vmatpush.msra.mxu0 0.0
      %1719 = vmatpush.msra.mxu0 0.0
      %1720 = vmatpush.msra.mxu0 %v1617
      %1721 = vmatmul.f32.gmra.mxu0 %v1607
      %v1722 = vpop.f32.mrf.mxu0
      %v1723 = vadd.f32 0.0, %v1722
      %1724 = vdwg.mxu0
      %1725 = vmatpush.msra.mxu0 0.0
      %1726 = vmatpush.msra.mxu0 0.0
      %1727 = vmatpush.msra.mxu0 0.0
      %1728 = vmatpush.msra.mxu0 0.0
      %1729 = vmatpush.msra.mxu0 0.0
      %1730 = vmatpush.msra.mxu0 0.0
      %1731 = vmatpush.msra.mxu0 0.0
      %1732 = vmatpush.msra.mxu0 0.0
      %1733 = vmatpush.msra.mxu0 0.0
      %1734 = vmatpush.msra.mxu0 0.0
      %1735 = vmatpush.msra.mxu0 0.0
      %1736 = vmatpush.msra.mxu0 0.0
      %1737 = vmatpush.msra.mxu0 0.0
      %1738 = vmatpush.msra.mxu0 0.0
      %1739 = vmatpush.msra.mxu0 0.0
      %1740 = vmatpush.msra.mxu0 %v1619
      %1741 = vmatmul.f32.gmra.mxu0 %v1607
      %v1742 = vpop.f32.mrf.mxu0
      %v1743 = vadd.f32 0.0, %v1742
      %1744 = vdwg.mxu0
      %1745 = vmatpush.msra.mxu0 0.0
      %1746 = vmatpush.msra.mxu0 0.0
      %1747 = vmatpush.msra.mxu0 0.0
      %1748 = vmatpush.msra.mxu0 0.0
      %1749 = vmatpush.msra.mxu0 0.0
      %1750 = vmatpush.msra.mxu0 0.0
      %1751 = vmatpush.msra.mxu0 0.0
      %1752 = vmatpush.msra.mxu0 0.0
      %1753 = vmatpush.msra.mxu0 0.0
      %1754 = vmatpush.msra.mxu0 0.0
      %1755 = vmatpush.msra.mxu0 0.0
      %1756 = vmatpush.msra.mxu0 0.0
      %1757 = vmatpush.msra.mxu0 0.0
      %1758 = vmatpush.msra.mxu0 0.0
      %1759 = vmatpush.msra.mxu0 0.0
      %1760 = vmatpush.msra.mxu0 %v1621
      %1761 = vmatmul.f32.gmra.mxu0 %v1607
      %v1762 = vpop.f32.mrf.mxu0
      %v1763 = vadd.f32 0.0, %v1762
      %1764 = vdwg.mxu0
      %1765 = vmatpush.msra.mxu0 0.0
      %1766 = vmatpush.msra.mxu0 0.0
      %1767 = vmatpush.msra.mxu0 0.0
      %1768 = vmatpush.msra.mxu0 0.0
      %1769 = vmatpush.msra.mxu0 0.0
      %1770 = vmatpush.msra.mxu0 0.0
      %1771 = vmatpush.msra.mxu0 0.0
      %1772 = vmatpush.msra.mxu0 0.0
      %1773 = vmatpush.msra.mxu0 0.0
      %1774 = vmatpush.msra.mxu0 0.0
      %1775 = vmatpush.msra.mxu0 0.0
      %1776 = vmatpush.msra.mxu0 0.0
      %1777 = vmatpush.msra.mxu0 0.0
      %1778 = vmatpush.msra.mxu0 0.0
      %1779 = vmatpush.msra.mxu0 0.0
      %1780 = vmatpush.msra.mxu0 %v1623
      %1781 = vmatmul.f32.gmra.mxu0 %v1607
      %v1782 = vpop.f32.mrf.mxu0
      %v1783 = vadd.f32 0.0, %v1782
      %1784 = vdwg.mxu0
      %v1785 = vadd.f32 %v1512, %v1643
      %v1786 = vadd.f32 %v1513, %v1663
      %v1787 = vadd.f32 %v1514, %v1683
      %v1788 = vadd.f32 %v1515, %v1703
      %v1789 = vadd.f32 %v1516, %v1723
      %v1790 = vadd.f32 %v1517, %v1743
      %v1791 = vadd.f32 %v1518, %v1763
      %v1792 = vadd.f32 %v1519, %v1783
      %v1793 = vld [vmem:[%s252] sm:$0xff]
      %v1794 = vld [vmem:[%s252 + $0x8] sm:$0xff]
      %v1795 = vld [vmem:[%s252 + $0x10] sm:$0xff]
      %v1796 = vld [vmem:[%s252 + $0x18] sm:$0xff]
      %v1797 = vld [vmem:[%s252 + $0x20] sm:$0xf]
      %1798 = vrot.lane.b32.xlu0 %v271, 64
      %v1799 = vpop.permute.xlu0 %1798
      %1800 = vrot.lane.b32.xlu0 %v272, 64
      %v1801 = vpop.permute.xlu0 %1800
      %1802 = vrot.lane.b32.xlu0 %v273, 64
      %v1803 = vpop.permute.xlu0 %1802
      %1804 = vrot.lane.b32.xlu0 %v274, 64
      %v1805 = vpop.permute.xlu0 %1804
      %v1806 = vrot.slane %v1799, 4
      %v1807 = vrot.slane %v1801, 4
      %v1808 = vrot.slane %v1803, 4
      %v1809 = vrot.slane %v1805, 4
      %vm1810 = vcmask 523264
      %v1811 = vsel %vm1810, %v1806, %v1799
      %v1812 = vsel %vm270, %v1806, %v1807
      %v1813 = vsel %vm1810, %v1812, %v1801
      %v1814 = vsel %vm270, %v1807, %v1808
      %v1815 = vsel %vm1810, %v1814, %v1803
      %v1816 = vsel %vm270, %v1808, %v1809
      %v1817 = vsel %vm1810, %v1816, %v1805
      %v1823 = vmul.f32 %v1793, %v1811
      %v1824 = vmul.f32 %v1794, %v1813
      %v1825 = vmul.f32 %v1795, %v1815
      %v1826 = vmul.f32 %v1796, %v1817
      %v1827 = vmul.f32 %v1797, %v1809
      %s1828 = scalar_lea.vmem %s1, 48
      %v1829 = vld [vmem:[%s1828] sm:$0xff]
      %1835 = vst [vmem:[#allocation1] ss:$2 sm:$0xff] %v1823
      %s1836 = scalar_lea.vmem [#allocation1], 16
      %1837 = vst [vmem:[%s1836] ss:$2 sm:$0xff] %v1824
      %s1838 = scalar_lea.vmem [#allocation1], 32
      %1839 = vst [vmem:[%s1838] ss:$2 sm:$0xff] %v1825
      %s1840 = scalar_lea.vmem [#allocation1], 48
      %1841 = vst [vmem:[%s1840] ss:$2 sm:$0xff] %v1826
      %v1842 = vld.sshfl [vmem:[#allocation1] sm:$0xff pattern:$0x75316420]
      %v1843 = vld.sshfl [vmem:[#allocation1 + $0x8] sm:$0xff pattern:$0x75316420]
      %v1844 = vld.sshfl [vmem:[#allocation1 + $0x10] sm:$0xff pattern:$0x75316420]
      %v1845 = vld.sshfl [vmem:[#allocation1 + $0x18] sm:$0xff pattern:$0x75316420]
      %v1846 = vld.sshfl [vmem:[#allocation1 + $0x20] sm:$0xff pattern:$0x75316420]
      %v1847 = vld.sshfl [vmem:[#allocation1 + $0x28] sm:$0xff pattern:$0x75316420]
      %v1848 = vld.sshfl [vmem:[#allocation1 + $0x30] sm:$0xff pattern:$0x75316420]
      %v1849 = vld.sshfl [vmem:[#allocation1 + $0x38] sm:$0xff pattern:$0x75316420]
      %1850 = vst [vmem:[#allocation1] ss:$2 sm:$0xff] %v1827
      %v1851 = vld.sshfl [vmem:[#allocation1] sm:$0xff pattern:$0x75316420]
      %1852 = vrot.lane.b32.xlu0 %v1842, 64
      %v1853 = vpop.permute.xlu0 %1852
      %1854 = vrot.lane.b32.xlu0 %v1843, 64
      %v1855 = vpop.permute.xlu0 %1854
      %1856 = vrot.lane.b32.xlu0 %v1844, 64
      %v1857 = vpop.permute.xlu0 %1856
      %1858 = vrot.lane.b32.xlu0 %v1845, 64
      %v1859 = vpop.permute.xlu0 %1858
      %1860 = vrot.lane.b32.xlu0 %v1846, 64
      %v1861 = vpop.permute.xlu0 %1860
      %1862 = vrot.lane.b32.xlu0 %v1847, 64
      %v1863 = vpop.permute.xlu0 %1862
      %1864 = vrot.lane.b32.xlu0 %v1848, 64
      %v1865 = vpop.permute.xlu0 %1864
      %1866 = vrot.lane.b32.xlu0 %v1849, 64
      %v1867 = vpop.permute.xlu0 %1866
      %1868 = vrot.lane.b32.xlu0 %v1851, 64
      %v1869 = vpop.permute.xlu0 %1868
      %v1870 = vsel %vm1810, %v1853, %v1855
      %v1871 = vsel %vm1810, %v1855, %v1857
      %v1872 = vsel %vm1810, %v1857, %v1859
      %v1873 = vsel %vm1810, %v1859, %v1861
      %v1874 = vsel %vm1810, %v1861, %v1863
      %v1875 = vsel %vm1810, %v1863, %v1865
      %v1876 = vsel %vm1810, %v1865, %v1867
      %v1877 = vsel %vm1810, %v1867, %v1869
      %v1879 = vsel %vm336, %v1829, 0
      %v1881 = vsel %vm270, %v1870, 0
      %v1883 = vsel %vm270, %v1871, 0
      %v1885 = vsel %vm270, %v1872, 0
      %v1887 = vsel %vm270, %v1873, 0
      %v1889 = vsel %vm270, %v1874, 0
      %v1891 = vsel %vm270, %v1875, 0
      %v1893 = vsel %vm270, %v1876, 0
      %v1895 = vsel %vm270, %v1877, 0
      %1897 = vmatpush.msra.mxu0 0.0
      %1898 = vmatpush.msra.mxu0 0.0
      %1899 = vmatpush.msra.mxu0 0.0
      %1900 = vmatpush.msra.mxu0 0.0
      %1901 = vmatpush.msra.mxu0 0.0
      %1902 = vmatpush.msra.mxu0 0.0
      %1903 = vmatpush.msra.mxu0 0.0
      %1904 = vmatpush.msra.mxu0 0.0
      %1905 = vmatpush.msra.mxu0 0.0
      %1906 = vmatpush.msra.mxu0 0.0
      %1907 = vmatpush.msra.mxu0 0.0
      %1908 = vmatpush.msra.mxu0 0.0
      %1909 = vmatpush.msra.mxu0 0.0
      %1910 = vmatpush.msra.mxu0 0.0
      %1911 = vmatpush.msra.mxu0 0.0
      %1912 = vmatpush.msra.mxu0 %v1881
      %1913 = vmatmul.f32.gmra.mxu0 %v1879
      %v1914 = vpop.f32.mrf.mxu0
      %v1915 = vadd.f32 0.0, %v1914
      %1916 = vdwg.mxu0
      %1917 = vmatpush.msra.mxu0 0.0
      %1918 = vmatpush.msra.mxu0 0.0
      %1919 = vmatpush.msra.mxu0 0.0
      %1920 = vmatpush.msra.mxu0 0.0
      %1921 = vmatpush.msra.mxu0 0.0
      %1922 = vmatpush.msra.mxu0 0.0
      %1923 = vmatpush.msra.mxu0 0.0
      %1924 = vmatpush.msra.mxu0 0.0
      %1925 = vmatpush.msra.mxu0 0.0
      %1926 = vmatpush.msra.mxu0 0.0
      %1927 = vmatpush.msra.mxu0 0.0
      %1928 = vmatpush.msra.mxu0 0.0
      %1929 = vmatpush.msra.mxu0 0.0
      %1930 = vmatpush.msra.mxu0 0.0
      %1931 = vmatpush.msra.mxu0 0.0
      %1932 = vmatpush.msra.mxu0 %v1883
      %1933 = vmatmul.f32.gmra.mxu0 %v1879
      %v1934 = vpop.f32.mrf.mxu0
      %v1935 = vadd.f32 0.0, %v1934
      %1936 = vdwg.mxu0
      %1937 = vmatpush.msra.mxu0 0.0
      %1938 = vmatpush.msra.mxu0 0.0
      %1939 = vmatpush.msra.mxu0 0.0
      %1940 = vmatpush.msra.mxu0 0.0
      %1941 = vmatpush.msra.mxu0 0.0
      %1942 = vmatpush.msra.mxu0 0.0
      %1943 = vmatpush.msra.mxu0 0.0
      %1944 = vmatpush.msra.mxu0 0.0
      %1945 = vmatpush.msra.mxu0 0.0
      %1946 = vmatpush.msra.mxu0 0.0
      %1947 = vmatpush.msra.mxu0 0.0
      %1948 = vmatpush.msra.mxu0 0.0
      %1949 = vmatpush.msra.mxu0 0.0
      %1950 = vmatpush.msra.mxu0 0.0
      %1951 = vmatpush.msra.mxu0 0.0
      %1952 = vmatpush.msra.mxu0 %v1885
      %1953 = vmatmul.f32.gmra.mxu0 %v1879
      %v1954 = vpop.f32.mrf.mxu0
      %v1955 = vadd.f32 0.0, %v1954
      %1956 = vdwg.mxu0
      %1957 = vmatpush.msra.mxu0 0.0
      %1958 = vmatpush.msra.mxu0 0.0
      %1959 = vmatpush.msra.mxu0 0.0
      %1960 = vmatpush.msra.mxu0 0.0
      %1961 = vmatpush.msra.mxu0 0.0
      %1962 = vmatpush.msra.mxu0 0.0
      %1963 = vmatpush.msra.mxu0 0.0
      %1964 = vmatpush.msra.mxu0 0.0
      %1965 = vmatpush.msra.mxu0 0.0
      %1966 = vmatpush.msra.mxu0 0.0
      %1967 = vmatpush.msra.mxu0 0.0
      %1968 = vmatpush.msra.mxu0 0.0
      %1969 = vmatpush.msra.mxu0 0.0
      %1970 = vmatpush.msra.mxu0 0.0
      %1971 = vmatpush.msra.mxu0 0.0
      %1972 = vmatpush.msra.mxu0 %v1887
      %1973 = vmatmul.f32.gmra.mxu0 %v1879
      %v1974 = vpop.f32.mrf.mxu0
      %v1975 = vadd.f32 0.0, %v1974
      %1976 = vdwg.mxu0
      %1977 = vmatpush.msra.mxu0 0.0
      %1978 = vmatpush.msra.mxu0 0.0
      %1979 = vmatpush.msra.mxu0 0.0
      %1980 = vmatpush.msra.mxu0 0.0
      %1981 = vmatpush.msra.mxu0 0.0
      %1982 = vmatpush.msra.mxu0 0.0
      %1983 = vmatpush.msra.mxu0 0.0
      %1984 = vmatpush.msra.mxu0 0.0
      %1985 = vmatpush.msra.mxu0 0.0
      %1986 = vmatpush.msra.mxu0 0.0
      %1987 = vmatpush.msra.mxu0 0.0
      %1988 = vmatpush.msra.mxu0 0.0
      %1989 = vmatpush.msra.mxu0 0.0
      %1990 = vmatpush.msra.mxu0 0.0
      %1991 = vmatpush.msra.mxu0 0.0
      %1992 = vmatpush.msra.mxu0 %v1889
      %1993 = vmatmul.f32.gmra.mxu0 %v1879
      %v1994 = vpop.f32.mrf.mxu0
      %v1995 = vadd.f32 0.0, %v1994
      %1996 = vdwg.mxu0
      %1997 = vmatpush.msra.mxu0 0.0
      %1998 = vmatpush.msra.mxu0 0.0
      %1999 = vmatpush.msra.mxu0 0.0
      %2000 = vmatpush.msra.mxu0 0.0
      %2001 = vmatpush.msra.mxu0 0.0
      %2002 = vmatpush.msra.mxu0 0.0
      %2003 = vmatpush.msra.mxu0 0.0
      %2004 = vmatpush.msra.mxu0 0.0
      %2005 = vmatpush.msra.mxu0 0.0
      %2006 = vmatpush.msra.mxu0 0.0
      %2007 = vmatpush.msra.mxu0 0.0
      %2008 = vmatpush.msra.mxu0 0.0
      %2009 = vmatpush.msra.mxu0 0.0
      %2010 = vmatpush.msra.mxu0 0.0
      %2011 = vmatpush.msra.mxu0 0.0
      %2012 = vmatpush.msra.mxu0 %v1891
      %2013 = vmatmul.f32.gmra.mxu0 %v1879
      %v2014 = vpop.f32.mrf.mxu0
      %v2015 = vadd.f32 0.0, %v2014
      %2016 = vdwg.mxu0
      %2017 = vmatpush.msra.mxu0 0.0
      %2018 = vmatpush.msra.mxu0 0.0
      %2019 = vmatpush.msra.mxu0 0.0
      %2020 = vmatpush.msra.mxu0 0.0
      %2021 = vmatpush.msra.mxu0 0.0
      %2022 = vmatpush.msra.mxu0 0.0
      %2023 = vmatpush.msra.mxu0 0.0
      %2024 = vmatpush.msra.mxu0 0.0
      %2025 = vmatpush.msra.mxu0 0.0
      %2026 = vmatpush.msra.mxu0 0.0
      %2027 = vmatpush.msra.mxu0 0.0
      %2028 = vmatpush.msra.mxu0 0.0
      %2029 = vmatpush.msra.mxu0 0.0
      %2030 = vmatpush.msra.mxu0 0.0
      %2031 = vmatpush.msra.mxu0 0.0
      %2032 = vmatpush.msra.mxu0 %v1893
      %2033 = vmatmul.f32.gmra.mxu0 %v1879
      %v2034 = vpop.f32.mrf.mxu0
      %v2035 = vadd.f32 0.0, %v2034
      %2036 = vdwg.mxu0
      %2037 = vmatpush.msra.mxu0 0.0
      %2038 = vmatpush.msra.mxu0 0.0
      %2039 = vmatpush.msra.mxu0 0.0
      %2040 = vmatpush.msra.mxu0 0.0
      %2041 = vmatpush.msra.mxu0 0.0
      %2042 = vmatpush.msra.mxu0 0.0
      %2043 = vmatpush.msra.mxu0 0.0
      %2044 = vmatpush.msra.mxu0 0.0
      %2045 = vmatpush.msra.mxu0 0.0
      %2046 = vmatpush.msra.mxu0 0.0
      %2047 = vmatpush.msra.mxu0 0.0
      %2048 = vmatpush.msra.mxu0 0.0
      %2049 = vmatpush.msra.mxu0 0.0
      %2050 = vmatpush.msra.mxu0 0.0
      %2051 = vmatpush.msra.mxu0 0.0
      %2052 = vmatpush.msra.mxu0 %v1895
      %2053 = vmatmul.f32.gmra.mxu0 %v1879
      %v2054 = vpop.f32.mrf.mxu0
      %v2055 = vadd.f32 0.0, %v2054
      %2056 = vdwg.mxu0
      %v2057 = vadd.f32 %v1785, %v1915
      %v2058 = vadd.f32 %v1786, %v1935
      %v2059 = vadd.f32 %v1787, %v1955
      %v2060 = vadd.f32 %v1788, %v1975
      %v2061 = vadd.f32 %v1789, %v1995
      %v2062 = vadd.f32 %v1790, %v2015
      %v2063 = vadd.f32 %v1791, %v2035
      %v2064 = vadd.f32 %v1792, %v2055
      %v2065 = vld [vmem:[%s252] sm:$0xff]
      %v2066 = vld [vmem:[%s252 + $0x8] sm:$0xff]
      %v2067 = vld [vmem:[%s252 + $0x10] sm:$0xff]
      %v2068 = vld [vmem:[%s252 + $0x18] sm:$0xff]
      %v2069 = vld [vmem:[%s252 + $0x20] sm:$0xf]
      %s2070 = scalar_lea.vmem %s1, 56
      %v2071 = vld [vmem:[%s2070] sm:$0xff]
      %2077 = vst [vmem:[#allocation1] ss:$2 sm:$0xff] %v2065
      %s2078 = scalar_lea.vmem [#allocation1], 16
      %2079 = vst [vmem:[%s2078] ss:$2 sm:$0xff] %v2066
      %s2080 = scalar_lea.vmem [#allocation1], 32
      %2081 = vst [vmem:[%s2080] ss:$2 sm:$0xff] %v2067
      %s2082 = scalar_lea.vmem [#allocation1], 48
      %2083 = vst [vmem:[%s2082] ss:$2 sm:$0xff] %v2068
      %v2084 = vld.sshfl [vmem:[#allocation1] sm:$0xff pattern:$0x75316420]
      %v2085 = vld.sshfl [vmem:[#allocation1 + $0x8] sm:$0xff pattern:$0x75316420]
      %v2086 = vld.sshfl [vmem:[#allocation1 + $0x10] sm:$0xff pattern:$0x75316420]
      %v2087 = vld.sshfl [vmem:[#allocation1 + $0x18] sm:$0xff pattern:$0x75316420]
      %v2088 = vld.sshfl [vmem:[#allocation1 + $0x20] sm:$0xff pattern:$0x75316420]
      %v2089 = vld.sshfl [vmem:[#allocation1 + $0x28] sm:$0xff pattern:$0x75316420]
      %v2090 = vld.sshfl [vmem:[#allocation1 + $0x30] sm:$0xff pattern:$0x75316420]
      %v2091 = vld.sshfl [vmem:[#allocation1 + $0x38] sm:$0xff pattern:$0x75316420]
      %2092 = vst [vmem:[#allocation1] ss:$2 sm:$0xff] %v2069
      %v2093 = vld.sshfl [vmem:[#allocation1] sm:$0xff pattern:$0x75316420]
      %2094 = vrot.lane.b32.xlu0 %v2084, 63
      %v2095 = vpop.permute.xlu0 %2094
      %2096 = vrot.lane.b32.xlu0 %v2085, 63
      %v2097 = vpop.permute.xlu0 %2096
      %2098 = vrot.lane.b32.xlu0 %v2086, 63
      %v2099 = vpop.permute.xlu0 %2098
      %2100 = vrot.lane.b32.xlu0 %v2087, 63
      %v2101 = vpop.permute.xlu0 %2100
      %2102 = vrot.lane.b32.xlu0 %v2088, 63
      %v2103 = vpop.permute.xlu0 %2102
      %2104 = vrot.lane.b32.xlu0 %v2089, 63
      %v2105 = vpop.permute.xlu0 %2104
      %2106 = vrot.lane.b32.xlu0 %v2090, 63
      %v2107 = vpop.permute.xlu0 %2106
      %2108 = vrot.lane.b32.xlu0 %v2091, 63
      %v2109 = vpop.permute.xlu0 %2108
      %2110 = vrot.lane.b32.xlu0 %v2093, 63
      %v2111 = vpop.permute.xlu0 %2110
      %vm2112 = vcmask 515072
      %v2113 = vsel %vm2112, %v2095, %v2097
      %v2114 = vsel %vm2112, %v2097, %v2099
      %v2115 = vsel %vm2112, %v2099, %v2101
      %v2116 = vsel %vm2112, %v2101, %v2103
      %v2117 = vsel %vm2112, %v2103, %v2105
      %v2118 = vsel %vm2112, %v2105, %v2107
      %v2119 = vsel %vm2112, %v2107, %v2109
      %v2120 = vsel %vm2112, %v2109, %v2111
      %v2122 = vsel %vm336, %v2071, 0
      %v2124 = vsel %vm270, %v2113, 0
      %v2126 = vsel %vm270, %v2114, 0
      %v2128 = vsel %vm270, %v2115, 0
      %v2130 = vsel %vm270, %v2116, 0
      %v2132 = vsel %vm270, %v2117, 0
      %v2134 = vsel %vm270, %v2118, 0
      %v2136 = vsel %vm270, %v2119, 0
      %v2138 = vsel %vm270, %v2120, 0
      %2140 = vmatpush.msra.mxu0 0.0
      %2141 = vmatpush.msra.mxu0 0.0
      %2142 = vmatpush.msra.mxu0 0.0
      %2143 = vmatpush.msra.mxu0 0.0
      %2144 = vmatpush.msra.mxu0 0.0
      %2145 = vmatpush.msra.mxu0 0.0
      %2146 = vmatpush.msra.mxu0 0.0
      %2147 = vmatpush.msra.mxu0 0.0
      %2148 = vmatpush.msra.mxu0 0.0
      %2149 = vmatpush.msra.mxu0 0.0
      %2150 = vmatpush.msra.mxu0 0.0
      %2151 = vmatpush.msra.mxu0 0.0
      %2152 = vmatpush.msra.mxu0 0.0
      %2153 = vmatpush.msra.mxu0 0.0
      %2154 = vmatpush.msra.mxu0 0.0
      %2155 = vmatpush.msra.mxu0 %v2124
      %2156 = vmatmul.f32.gmra.mxu0 %v2122
      %v2157 = vpop.f32.mrf.mxu0
      %v2158 = vadd.f32 0.0, %v2157
      %2159 = vdwg.mxu0
      %2160 = vmatpush.msra.mxu0 0.0
      %2161 = vmatpush.msra.mxu0 0.0
      %2162 = vmatpush.msra.mxu0 0.0
      %2163 = vmatpush.msra.mxu0 0.0
      %2164 = vmatpush.msra.mxu0 0.0
      %2165 = vmatpush.msra.mxu0 0.0
      %2166 = vmatpush.msra.mxu0 0.0
      %2167 = vmatpush.msra.mxu0 0.0
      %2168 = vmatpush.msra.mxu0 0.0
      %2169 = vmatpush.msra.mxu0 0.0
      %2170 = vmatpush.msra.mxu0 0.0
      %2171 = vmatpush.msra.mxu0 0.0
      %2172 = vmatpush.msra.mxu0 0.0
      %2173 = vmatpush.msra.mxu0 0.0
      %2174 = vmatpush.msra.mxu0 0.0
      %2175 = vmatpush.msra.mxu0 %v2126
      %2176 = vmatmul.f32.gmra.mxu0 %v2122
      %v2177 = vpop.f32.mrf.mxu0
      %v2178 = vadd.f32 0.0, %v2177
      %2179 = vdwg.mxu0
      %2180 = vmatpush.msra.mxu0 0.0
      %2181 = vmatpush.msra.mxu0 0.0
      %2182 = vmatpush.msra.mxu0 0.0
      %2183 = vmatpush.msra.mxu0 0.0
      %2184 = vmatpush.msra.mxu0 0.0
      %2185 = vmatpush.msra.mxu0 0.0
      %2186 = vmatpush.msra.mxu0 0.0
      %2187 = vmatpush.msra.mxu0 0.0
      %2188 = vmatpush.msra.mxu0 0.0
      %2189 = vmatpush.msra.mxu0 0.0
      %2190 = vmatpush.msra.mxu0 0.0
      %2191 = vmatpush.msra.mxu0 0.0
      %2192 = vmatpush.msra.mxu0 0.0
      %2193 = vmatpush.msra.mxu0 0.0
      %2194 = vmatpush.msra.mxu0 0.0
      %2195 = vmatpush.msra.mxu0 %v2128
      %2196 = vmatmul.f32.gmra.mxu0 %v2122
      %v2197 = vpop.f32.mrf.mxu0
      %v2198 = vadd.f32 0.0, %v2197
      %2199 = vdwg.mxu0
      %2200 = vmatpush.msra.mxu0 0.0
      %2201 = vmatpush.msra.mxu0 0.0
      %2202 = vmatpush.msra.mxu0 0.0
      %2203 = vmatpush.msra.mxu0 0.0
      %2204 = vmatpush.msra.mxu0 0.0
      %2205 = vmatpush.msra.mxu0 0.0
      %2206 = vmatpush.msra.mxu0 0.0
      %2207 = vmatpush.msra.mxu0 0.0
      %2208 = vmatpush.msra.mxu0 0.0
      %2209 = vmatpush.msra.mxu0 0.0
      %2210 = vmatpush.msra.mxu0 0.0
      %2211 = vmatpush.msra.mxu0 0.0
      %2212 = vmatpush.msra.mxu0 0.0
      %2213 = vmatpush.msra.mxu0 0.0
      %2214 = vmatpush.msra.mxu0 0.0
      %2215 = vmatpush.msra.mxu0 %v2130
      %2216 = vmatmul.f32.gmra.mxu0 %v2122
      %v2217 = vpop.f32.mrf.mxu0
      %v2218 = vadd.f32 0.0, %v2217
      %2219 = vdwg.mxu0
      %2220 = vmatpush.msra.mxu0 0.0
      %2221 = vmatpush.msra.mxu0 0.0
      %2222 = vmatpush.msra.mxu0 0.0
      %2223 = vmatpush.msra.mxu0 0.0
      %2224 = vmatpush.msra.mxu0 0.0
      %2225 = vmatpush.msra.mxu0 0.0
      %2226 = vmatpush.msra.mxu0 0.0
      %2227 = vmatpush.msra.mxu0 0.0
      %2228 = vmatpush.msra.mxu0 0.0
      %2229 = vmatpush.msra.mxu0 0.0
      %2230 = vmatpush.msra.mxu0 0.0
      %2231 = vmatpush.msra.mxu0 0.0
      %2232 = vmatpush.msra.mxu0 0.0
      %2233 = vmatpush.msra.mxu0 0.0
      %2234 = vmatpush.msra.mxu0 0.0
      %2235 = vmatpush.msra.mxu0 %v2132
      %2236 = vmatmul.f32.gmra.mxu0 %v2122
      %v2237 = vpop.f32.mrf.mxu0
      %v2238 = vadd.f32 0.0, %v2237
      %2239 = vdwg.mxu0
      %2240 = vmatpush.msra.mxu0 0.0
      %2241 = vmatpush.msra.mxu0 0.0
      %2242 = vmatpush.msra.mxu0 0.0
      %2243 = vmatpush.msra.mxu0 0.0
      %2244 = vmatpush.msra.mxu0 0.0
      %2245 = vmatpush.msra.mxu0 0.0
      %2246 = vmatpush.msra.mxu0 0.0
      %2247 = vmatpush.msra.mxu0 0.0
      %2248 = vmatpush.msra.mxu0 0.0
      %2249 = vmatpush.msra.mxu0 0.0
      %2250 = vmatpush.msra.mxu0 0.0
      %2251 = vmatpush.msra.mxu0 0.0
      %2252 = vmatpush.msra.mxu0 0.0
      %2253 = vmatpush.msra.mxu0 0.0
      %2254 = vmatpush.msra.mxu0 0.0
      %2255 = vmatpush.msra.mxu0 %v2134
      %2256 = vmatmul.f32.gmra.mxu0 %v2122
      %v2257 = vpop.f32.mrf.mxu0
      %v2258 = vadd.f32 0.0, %v2257
      %2259 = vdwg.mxu0
      %2260 = vmatpush.msra.mxu0 0.0
      %2261 = vmatpush.msra.mxu0 0.0
      %2262 = vmatpush.msra.mxu0 0.0
      %2263 = vmatpush.msra.mxu0 0.0
      %2264 = vmatpush.msra.mxu0 0.0
      %2265 = vmatpush.msra.mxu0 0.0
      %2266 = vmatpush.msra.mxu0 0.0
      %2267 = vmatpush.msra.mxu0 0.0
      %2268 = vmatpush.msra.mxu0 0.0
      %2269 = vmatpush.msra.mxu0 0.0
      %2270 = vmatpush.msra.mxu0 0.0
      %2271 = vmatpush.msra.mxu0 0.0
      %2272 = vmatpush.msra.mxu0 0.0
      %2273 = vmatpush.msra.mxu0 0.0
      %2274 = vmatpush.msra.mxu0 0.0
      %2275 = vmatpush.msra.mxu0 %v2136
      %2276 = vmatmul.f32.gmra.mxu0 %v2122
      %v2277 = vpop.f32.mrf.mxu0
      %v2278 = vadd.f32 0.0, %v2277
      %2279 = vdwg.mxu0
      %2280 = vmatpush.msra.mxu0 0.0
      %2281 = vmatpush.msra.mxu0 0.0
      %2282 = vmatpush.msra.mxu0 0.0
      %2283 = vmatpush.msra.mxu0 0.0
      %2284 = vmatpush.msra.mxu0 0.0
      %2285 = vmatpush.msra.mxu0 0.0
      %2286 = vmatpush.msra.mxu0 0.0
      %2287 = vmatpush.msra.mxu0 0.0
      %2288 = vmatpush.msra.mxu0 0.0
      %2289 = vmatpush.msra.mxu0 0.0
      %2290 = vmatpush.msra.mxu0 0.0
      %2291 = vmatpush.msra.mxu0 0.0
      %2292 = vmatpush.msra.mxu0 0.0
      %2293 = vmatpush.msra.mxu0 0.0
      %2294 = vmatpush.msra.mxu0 0.0
      %2295 = vmatpush.msra.mxu0 %v2138
      %2296 = vmatmul.f32.gmra.mxu0 %v2122
      %v2297 = vpop.f32.mrf.mxu0
      %v2298 = vadd.f32 0.0, %v2297
      %2299 = vdwg.mxu0
      %v2300 = vadd.f32 %v2057, %v2158
      %v2301 = vadd.f32 %v2058, %v2178
      %v2302 = vadd.f32 %v2059, %v2198
      %v2303 = vadd.f32 %v2060, %v2218
      %v2304 = vadd.f32 %v2061, %v2238
      %v2305 = vadd.f32 %v2062, %v2258
      %v2306 = vadd.f32 %v2063, %v2278
      %v2307 = vadd.f32 %v2064, %v2298
      %v2308 = vld [vmem:[%s252] sm:$0xff]
      %v2309 = vld [vmem:[%s252 + $0x8] sm:$0xff]
      %v2310 = vld [vmem:[%s252 + $0x10] sm:$0xff]
      %v2311 = vld [vmem:[%s252 + $0x18] sm:$0xff]
      %v2312 = vld [vmem:[%s252 + $0x20] sm:$0xf]
      %2313 = vrot.lane.b32.xlu0 %v732, 66
      %v2314 = vpop.permute.xlu0 %2313
      %2315 = vrot.lane.b32.xlu0 %v733, 66
      %v2316 = vpop.permute.xlu0 %2315
      %2317 = vrot.lane.b32.xlu0 %v734, 66
      %v2318 = vpop.permute.xlu0 %2317
      %2319 = vrot.lane.b32.xlu0 %v735, 66
      %v2320 = vpop.permute.xlu0 %2319
      %v2321 = vrot.slane %v2314, 4
      %v2322 = vrot.slane %v2316, 4
      %v2323 = vrot.slane %v2318, 4
      %v2324 = vrot.slane %v2320, 4
      %vm2325 = vcmask 539648
      %v2326 = vsel %vm2325, %v2321, %v2314
      %v2327 = vsel %vm270, %v2321, %v2322
      %v2328 = vsel %vm2325, %v2327, %v2316
      %v2329 = vsel %vm270, %v2322, %v2323
      %v2330 = vsel %vm2325, %v2329, %v2318
      %v2331 = vsel %vm270, %v2323, %v2324
      %v2332 = vsel %vm2325, %v2331, %v2320
      %v2338 = vmul.f32 %v2308, %v2326
      %v2339 = vmul.f32 %v2309, %v2328
      %v2340 = vmul.f32 %v2310, %v2330
      %v2341 = vmul.f32 %v2311, %v2332
      %v2342 = vmul.f32 %v2312, %v2324
      %s2343 = scalar_lea.vmem %s1, 64
      %v2344 = vld [vmem:[%s2343] sm:$0xff]
      %2350 = vst [vmem:[#allocation1] ss:$2 sm:$0xff] %v2338
      %s2351 = scalar_lea.vmem [#allocation1], 16
      %2352 = vst [vmem:[%s2351] ss:$2 sm:$0xff] %v2339
      %s2353 = scalar_lea.vmem [#allocation1], 32
      %2354 = vst [vmem:[%s2353] ss:$2 sm:$0xff] %v2340
      %s2355 = scalar_lea.vmem [#allocation1], 48
      %2356 = vst [vmem:[%s2355] ss:$2 sm:$0xff] %v2341
      %v2357 = vld.sshfl [vmem:[#allocation1] sm:$0xff pattern:$0x75316420]
      %v2358 = vld.sshfl [vmem:[#allocation1 + $0x8] sm:$0xff pattern:$0x75316420]
      %v2359 = vld.sshfl [vmem:[#allocation1 + $0x10] sm:$0xff pattern:$0x75316420]
      %v2360 = vld.sshfl [vmem:[#allocation1 + $0x18] sm:$0xff pattern:$0x75316420]
      %v2361 = vld.sshfl [vmem:[#allocation1 + $0x20] sm:$0xff pattern:$0x75316420]
      %v2362 = vld.sshfl [vmem:[#allocation1 + $0x28] sm:$0xff pattern:$0x75316420]
      %v2363 = vld.sshfl [vmem:[#allocation1 + $0x30] sm:$0xff pattern:$0x75316420]
      %v2364 = vld.sshfl [vmem:[#allocation1 + $0x38] sm:$0xff pattern:$0x75316420]
      %2365 = vst [vmem:[#allocation1] ss:$2 sm:$0xff] %v2342
      %v2366 = vld.sshfl [vmem:[#allocation1] sm:$0xff pattern:$0x75316420]
      %2367 = vrot.lane.b32.xlu0 %v2357, 62
      %v2368 = vpop.permute.xlu0 %2367
      %2369 = vrot.lane.b32.xlu0 %v2358, 62
      %v2370 = vpop.permute.xlu0 %2369
      %2371 = vrot.lane.b32.xlu0 %v2359, 62
      %v2372 = vpop.permute.xlu0 %2371
      %2373 = vrot.lane.b32.xlu0 %v2360, 62
      %v2374 = vpop.permute.xlu0 %2373
      %2375 = vrot.lane.b32.xlu0 %v2361, 62
      %v2376 = vpop.permute.xlu0 %2375
      %2377 = vrot.lane.b32.xlu0 %v2362, 62
      %v2378 = vpop.permute.xlu0 %2377
      %2379 = vrot.lane.b32.xlu0 %v2363, 62
      %v2380 = vpop.permute.xlu0 %2379
      %2381 = vrot.lane.b32.xlu0 %v2364, 62
      %v2382 = vpop.permute.xlu0 %2381
      %2383 = vrot.lane.b32.xlu0 %v2366, 62
      %v2384 = vpop.permute.xlu0 %2383
      %vm2385 = vcmask 506880
      %v2386 = vsel %vm2385, %v2368, %v2370
      %v2387 = vsel %vm2385, %v2370, %v2372
      %v2388 = vsel %vm2385, %v2372, %v2374
      %v2389 = vsel %vm2385, %v2374, %v2376
      %v2390 = vsel %vm2385, %v2376, %v2378
      %v2391 = vsel %vm2385, %v2378, %v2380
      %v2392 = vsel %vm2385, %v2380, %v2382
      %v2393 = vsel %vm2385, %v2382, %v2384
      %v2395 = vsel %vm336, %v2344, 0
      %v2397 = vsel %vm270, %v2386, 0
      %v2399 = vsel %vm270, %v2387, 0
      %v2401 = vsel %vm270, %v2388, 0
      %v2403 = vsel %vm270, %v2389, 0
      %v2405 = vsel %vm270, %v2390, 0
      %v2407 = vsel %vm270, %v2391, 0
      %v2409 = vsel %vm270, %v2392, 0
      %v2411 = vsel %vm270, %v2393, 0
      %2413 = vmatpush.msra.mxu0 0.0
      %2414 = vmatpush.msra.mxu0 0.0
      %2415 = vmatpush.msra.mxu0 0.0
      %2416 = vmatpush.msra.mxu0 0.0
      %2417 = vmatpush.msra.mxu0 0.0
      %2418 = vmatpush.msra.mxu0 0.0
      %2419 = vmatpush.msra.mxu0 0.0
      %2420 = vmatpush.msra.mxu0 0.0
      %2421 = vmatpush.msra.mxu0 0.0
      %2422 = vmatpush.msra.mxu0 0.0
      %2423 = vmatpush.msra.mxu0 0.0
      %2424 = vmatpush.msra.mxu0 0.0
      %2425 = vmatpush.msra.mxu0 0.0
      %2426 = vmatpush.msra.mxu0 0.0
      %2427 = vmatpush.msra.mxu0 0.0
      %2428 = vmatpush.msra.mxu0 %v2397
      %2429 = vmatmul.f32.gmra.mxu0 %v2395
      %v2430 = vpop.f32.mrf.mxu0
      %v2431 = vadd.f32 0.0, %v2430
      %2432 = vdwg.mxu0
      %2433 = vmatpush.msra.mxu0 0.0
      %2434 = vmatpush.msra.mxu0 0.0
      %2435 = vmatpush.msra.mxu0 0.0
      %2436 = vmatpush.msra.mxu0 0.0
      %2437 = vmatpush.msra.mxu0 0.0
      %2438 = vmatpush.msra.mxu0 0.0
      %2439 = vmatpush.msra.mxu0 0.0
      %2440 = vmatpush.msra.mxu0 0.0
      %2441 = vmatpush.msra.mxu0 0.0
      %2442 = vmatpush.msra.mxu0 0.0
      %2443 = vmatpush.msra.mxu0 0.0
      %2444 = vmatpush.msra.mxu0 0.0
      %2445 = vmatpush.msra.mxu0 0.0
      %2446 = vmatpush.msra.mxu0 0.0
      %2447 = vmatpush.msra.mxu0 0.0
      %2448 = vmatpush.msra.mxu0 %v2399
      %2449 = vmatmul.f32.gmra.mxu0 %v2395
      %v2450 = vpop.f32.mrf.mxu0
      %v2451 = vadd.f32 0.0, %v2450
      %2452 = vdwg.mxu0
      %2453 = vmatpush.msra.mxu0 0.0
      %2454 = vmatpush.msra.mxu0 0.0
      %2455 = vmatpush.msra.mxu0 0.0
      %2456 = vmatpush.msra.mxu0 0.0
      %2457 = vmatpush.msra.mxu0 0.0
      %2458 = vmatpush.msra.mxu0 0.0
      %2459 = vmatpush.msra.mxu0 0.0
      %2460 = vmatpush.msra.mxu0 0.0
      %2461 = vmatpush.msra.mxu0 0.0
      %2462 = vmatpush.msra.mxu0 0.0
      %2463 = vmatpush.msra.mxu0 0.0
      %2464 = vmatpush.msra.mxu0 0.0
      %2465 = vmatpush.msra.mxu0 0.0
      %2466 = vmatpush.msra.mxu0 0.0
      %2467 = vmatpush.msra.mxu0 0.0
      %2468 = vmatpush.msra.mxu0 %v2401
      %2469 = vmatmul.f32.gmra.mxu0 %v2395
      %v2470 = vpop.f32.mrf.mxu0
      %v2471 = vadd.f32 0.0, %v2470
      %2472 = vdwg.mxu0
      %2473 = vmatpush.msra.mxu0 0.0
      %2474 = vmatpush.msra.mxu0 0.0
      %2475 = vmatpush.msra.mxu0 0.0
      %2476 = vmatpush.msra.mxu0 0.0
      %2477 = vmatpush.msra.mxu0 0.0
      %2478 = vmatpush.msra.mxu0 0.0
      %2479 = vmatpush.msra.mxu0 0.0
      %2480 = vmatpush.msra.mxu0 0.0
      %2481 = vmatpush.msra.mxu0 0.0
      %2482 = vmatpush.msra.mxu0 0.0
      %2483 = vmatpush.msra.mxu0 0.0
      %2484 = vmatpush.msra.mxu0 0.0
      %2485 = vmatpush.msra.mxu0 0.0
      %2486 = vmatpush.msra.mxu0 0.0
      %2487 = vmatpush.msra.mxu0 0.0
      %2488 = vmatpush.msra.mxu0 %v2403
      %2489 = vmatmul.f32.gmra.mxu0 %v2395
      %v2490 = vpop.f32.mrf.mxu0
      %v2491 = vadd.f32 0.0, %v2490
      %2492 = vdwg.mxu0
      %2493 = vmatpush.msra.mxu0 0.0
      %2494 = vmatpush.msra.mxu0 0.0
      %2495 = vmatpush.msra.mxu0 0.0
      %2496 = vmatpush.msra.mxu0 0.0
      %2497 = vmatpush.msra.mxu0 0.0
      %2498 = vmatpush.msra.mxu0 0.0
      %2499 = vmatpush.msra.mxu0 0.0
      %2500 = vmatpush.msra.mxu0 0.0
      %2501 = vmatpush.msra.mxu0 0.0
      %2502 = vmatpush.msra.mxu0 0.0
      %2503 = vmatpush.msra.mxu0 0.0
      %2504 = vmatpush.msra.mxu0 0.0
      %2505 = vmatpush.msra.mxu0 0.0
      %2506 = vmatpush.msra.mxu0 0.0
      %2507 = vmatpush.msra.mxu0 0.0
      %2508 = vmatpush.msra.mxu0 %v2405
      %2509 = vmatmul.f32.gmra.mxu0 %v2395
      %v2510 = vpop.f32.mrf.mxu0
      %v2511 = vadd.f32 0.0, %v2510
      %2512 = vdwg.mxu0
      %2513 = vmatpush.msra.mxu0 0.0
      %2514 = vmatpush.msra.mxu0 0.0
      %2515 = vmatpush.msra.mxu0 0.0
      %2516 = vmatpush.msra.mxu0 0.0
      %2517 = vmatpush.msra.mxu0 0.0
      %2518 = vmatpush.msra.mxu0 0.0
      %2519 = vmatpush.msra.mxu0 0.0
      %2520 = vmatpush.msra.mxu0 0.0
      %2521 = vmatpush.msra.mxu0 0.0
      %2522 = vmatpush.msra.mxu0 0.0
      %2523 = vmatpush.msra.mxu0 0.0
      %2524 = vmatpush.msra.mxu0 0.0
      %2525 = vmatpush.msra.mxu0 0.0
      %2526 = vmatpush.msra.mxu0 0.0
      %2527 = vmatpush.msra.mxu0 0.0
      %2528 = vmatpush.msra.mxu0 %v2407
      %2529 = vmatmul.f32.gmra.mxu0 %v2395
      %v2530 = vpop.f32.mrf.mxu0
      %v2531 = vadd.f32 0.0, %v2530
      %2532 = vdwg.mxu0
      %2533 = vmatpush.msra.mxu0 0.0
      %2534 = vmatpush.msra.mxu0 0.0
      %2535 = vmatpush.msra.mxu0 0.0
      %2536 = vmatpush.msra.mxu0 0.0
      %2537 = vmatpush.msra.mxu0 0.0
      %2538 = vmatpush.msra.mxu0 0.0
      %2539 = vmatpush.msra.mxu0 0.0
      %2540 = vmatpush.msra.mxu0 0.0
      %2541 = vmatpush.msra.mxu0 0.0
      %2542 = vmatpush.msra.mxu0 0.0
      %2543 = vmatpush.msra.mxu0 0.0
      %2544 = vmatpush.msra.mxu0 0.0
      %2545 = vmatpush.msra.mxu0 0.0
      %2546 = vmatpush.msra.mxu0 0.0
      %2547 = vmatpush.msra.mxu0 0.0
      %2548 = vmatpush.msra.mxu0 %v2409
      %2549 = vmatmul.f32.gmra.mxu0 %v2395
      %v2550 = vpop.f32.mrf.mxu0
      %v2551 = vadd.f32 0.0, %v2550
      %2552 = vdwg.mxu0
      %2553 = vmatpush.msra.mxu0 0.0
      %2554 = vmatpush.msra.mxu0 0.0
      %2555 = vmatpush.msra.mxu0 0.0
      %2556 = vmatpush.msra.mxu0 0.0
      %2557 = vmatpush.msra.mxu0 0.0
      %2558 = vmatpush.msra.mxu0 0.0
      %2559 = vmatpush.msra.mxu0 0.0
      %2560 = vmatpush.msra.mxu0 0.0
      %2561 = vmatpush.msra.mxu0 0.0
      %2562 = vmatpush.msra.mxu0 0.0
      %2563 = vmatpush.msra.mxu0 0.0
      %2564 = vmatpush.msra.mxu0 0.0
      %2565 = vmatpush.msra.mxu0 0.0
      %2566 = vmatpush.msra.mxu0 0.0
      %2567 = vmatpush.msra.mxu0 0.0
      %2568 = vmatpush.msra.mxu0 %v2411
      %2569 = vmatmul.f32.gmra.mxu0 %v2395
      %v2570 = vpop.f32.mrf.mxu0
      %v2571 = vadd.f32 0.0, %v2570
      %2572 = vdwg.mxu0
      %v2573 = vadd.f32 %v2300, %v2431
      %v2574 = vadd.f32 %v2301, %v2451
      %v2575 = vadd.f32 %v2302, %v2471
      %v2576 = vadd.f32 %v2303, %v2491
      %v2577 = vadd.f32 %v2304, %v2511
      %v2578 = vadd.f32 %v2305, %v2531
      %v2579 = vadd.f32 %v2306, %v2551
      %v2580 = vadd.f32 %v2307, %v2571
      %s2581 = sadd.s32 %s21, 1
      %s2582 = smul.u32 %s2581, 9
      %s2583 = smul.addr %s2582, 4
      %s2584 = scalar_lea.vmem %s237, %s2583
      %v2585 = vld [vmem:[%s2584] sm:$0xff]
      %v2586 = vld [vmem:[%s2584 + $0x8] sm:$0xff]
      %v2587 = vld [vmem:[%s2584 + $0x10] sm:$0xff]
      %v2588 = vld [vmem:[%s2584 + $0x18] sm:$0xff]
      %v2589 = vmul.f32 %v2585, %v271
      %v2590 = vmul.f32 %v2586, %v272
      %v2591 = vmul.f32 %v2587, %v273
      %v2592 = vmul.f32 %v2588, %v274
      %s2593 = scalar_lea.vmem %s1, 72
      %v2594 = vld [vmem:[%s2593] sm:$0xff]
      %2599 = vst [vmem:[#allocation1] ss:$2 sm:$0xff] %v2589
      %s2600 = scalar_lea.vmem [#allocation1], 16
      %2601 = vst [vmem:[%s2600] ss:$2 sm:$0xff] %v2590
      %s2602 = scalar_lea.vmem [#allocation1], 32
      %2603 = vst [vmem:[%s2602] ss:$2 sm:$0xff] %v2591
      %s2604 = scalar_lea.vmem [#allocation1], 48
      %2605 = vst [vmem:[%s2604] ss:$2 sm:$0xff] %v2592
      %v2606 = vld.sshfl [vmem:[#allocation1] sm:$0xff pattern:$0x75316420]
      %v2607 = vld.sshfl [vmem:[#allocation1 + $0x8] sm:$0xff pattern:$0x75316420]
      %v2608 = vld.sshfl [vmem:[#allocation1 + $0x10] sm:$0xff pattern:$0x75316420]
      %v2609 = vld.sshfl [vmem:[#allocation1 + $0x18] sm:$0xff pattern:$0x75316420]
      %v2610 = vld.sshfl [vmem:[#allocation1 + $0x20] sm:$0xff pattern:$0x75316420]
      %v2611 = vld.sshfl [vmem:[#allocation1 + $0x28] sm:$0xff pattern:$0x75316420]
      %v2612 = vld.sshfl [vmem:[#allocation1 + $0x30] sm:$0xff pattern:$0x75316420]
      %v2613 = vld.sshfl [vmem:[#allocation1 + $0x38] sm:$0xff pattern:$0x75316420]
      %v2615 = vsel %vm336, %v2594, 0
      %v2617 = vsel %vm270, %v2606, 0
      %v2619 = vsel %vm270, %v2607, 0
      %v2621 = vsel %vm270, %v2608, 0
      %v2623 = vsel %vm270, %v2609, 0
      %v2625 = vsel %vm270, %v2610, 0
      %v2627 = vsel %vm270, %v2611, 0
      %v2629 = vsel %vm270, %v2612, 0
      %v2631 = vsel %vm270, %v2613, 0
      %2633 = vmatpush.msra.mxu0 0.0
      %2634 = vmatpush.msra.mxu0 0.0
      %2635 = vmatpush.msra.mxu0 0.0
      %2636 = vmatpush.msra.mxu0 0.0
      %2637 = vmatpush.msra.mxu0 0.0
      %2638 = vmatpush.msra.mxu0 0.0
      %2639 = vmatpush.msra.mxu0 0.0
      %2640 = vmatpush.msra.mxu0 0.0
      %2641 = vmatpush.msra.mxu0 0.0
      %2642 = vmatpush.msra.mxu0 0.0
      %2643 = vmatpush.msra.mxu0 0.0
      %2644 = vmatpush.msra.mxu0 0.0
      %2645 = vmatpush.msra.mxu0 0.0
      %2646 = vmatpush.msra.mxu0 0.0
      %2647 = vmatpush.msra.mxu0 0.0
      %2648 = vmatpush.msra.mxu0 %v2617
      %2649 = vmatmul.f32.gmra.mxu0 %v2615
      %v2650 = vpop.f32.mrf.mxu0
      %v2651 = vadd.f32 0.0, %v2650
      %2652 = vdwg.mxu0
      %2653 = vmatpush.msra.mxu0 0.0
      %2654 = vmatpush.msra.mxu0 0.0
      %2655 = vmatpush.msra.mxu0 0.0
      %2656 = vmatpush.msra.mxu0 0.0
      %2657 = vmatpush.msra.mxu0 0.0
      %2658 = vmatpush.msra.mxu0 0.0
      %2659 = vmatpush.msra.mxu0 0.0
      %2660 = vmatpush.msra.mxu0 0.0
      %2661 = vmatpush.msra.mxu0 0.0
      %2662 = vmatpush.msra.mxu0 0.0
      %2663 = vmatpush.msra.mxu0 0.0
      %2664 = vmatpush.msra.mxu0 0.0
      %2665 = vmatpush.msra.mxu0 0.0
      %2666 = vmatpush.msra.mxu0 0.0
      %2667 = vmatpush.msra.mxu0 0.0
      %2668 = vmatpush.msra.mxu0 %v2619
      %2669 = vmatmul.f32.gmra.mxu0 %v2615
      %v2670 = vpop.f32.mrf.mxu0
      %v2671 = vadd.f32 0.0, %v2670
      %2672 = vdwg.mxu0
      %2673 = vmatpush.msra.mxu0 0.0
      %2674 = vmatpush.msra.mxu0 0.0
      %2675 = vmatpush.msra.mxu0 0.0
      %2676 = vmatpush.msra.mxu0 0.0
      %2677 = vmatpush.msra.mxu0 0.0
      %2678 = vmatpush.msra.mxu0 0.0
      %2679 = vmatpush.msra.mxu0 0.0
      %2680 = vmatpush.msra.mxu0 0.0
      %2681 = vmatpush.msra.mxu0 0.0
      %2682 = vmatpush.msra.mxu0 0.0
      %2683 = vmatpush.msra.mxu0 0.0
      %2684 = vmatpush.msra.mxu0 0.0
      %2685 = vmatpush.msra.mxu0 0.0
      %2686 = vmatpush.msra.mxu0 0.0
      %2687 = vmatpush.msra.mxu0 0.0
      %2688 = vmatpush.msra.mxu0 %v2621
      %2689 = vmatmul.f32.gmra.mxu0 %v2615
      %v2690 = vpop.f32.mrf.mxu0
      %v2691 = vadd.f32 0.0, %v2690
      %2692 = vdwg.mxu0
      %2693 = vmatpush.msra.mxu0 0.0
      %2694 = vmatpush.msra.mxu0 0.0
      %2695 = vmatpush.msra.mxu0 0.0
      %2696 = vmatpush.msra.mxu0 0.0
      %2697 = vmatpush.msra.mxu0 0.0
      %2698 = vmatpush.msra.mxu0 0.0
      %2699 = vmatpush.msra.mxu0 0.0
      %2700 = vmatpush.msra.mxu0 0.0
      %2701 = vmatpush.msra.mxu0 0.0
      %2702 = vmatpush.msra.mxu0 0.0
      %2703 = vmatpush.msra.mxu0 0.0
      %2704 = vmatpush.msra.mxu0 0.0
      %2705 = vmatpush.msra.mxu0 0.0
      %2706 = vmatpush.msra.mxu0 0.0
      %2707 = vmatpush.msra.mxu0 0.0
      %2708 = vmatpush.msra.mxu0 %v2623
      %2709 = vmatmul.f32.gmra.mxu0 %v2615
      %v2710 = vpop.f32.mrf.mxu0
      %v2711 = vadd.f32 0.0, %v2710
      %2712 = vdwg.mxu0
      %2713 = vmatpush.msra.mxu0 0.0
      %2714 = vmatpush.msra.mxu0 0.0
      %2715 = vmatpush.msra.mxu0 0.0
      %2716 = vmatpush.msra.mxu0 0.0
      %2717 = vmatpush.msra.mxu0 0.0
      %2718 = vmatpush.msra.mxu0 0.0
      %2719 = vmatpush.msra.mxu0 0.0
      %2720 = vmatpush.msra.mxu0 0.0
      %2721 = vmatpush.msra.mxu0 0.0
      %2722 = vmatpush.msra.mxu0 0.0
      %2723 = vmatpush.msra.mxu0 0.0
      %2724 = vmatpush.msra.mxu0 0.0
      %2725 = vmatpush.msra.mxu0 0.0
      %2726 = vmatpush.msra.mxu0 0.0
      %2727 = vmatpush.msra.mxu0 0.0
      %2728 = vmatpush.msra.mxu0 %v2625
      %2729 = vmatmul.f32.gmra.mxu0 %v2615
      %v2730 = vpop.f32.mrf.mxu0
      %v2731 = vadd.f32 0.0, %v2730
      %2732 = vdwg.mxu0
      %2733 = vmatpush.msra.mxu0 0.0
      %2734 = vmatpush.msra.mxu0 0.0
      %2735 = vmatpush.msra.mxu0 0.0
      %2736 = vmatpush.msra.mxu0 0.0
      %2737 = vmatpush.msra.mxu0 0.0
      %2738 = vmatpush.msra.mxu0 0.0
      %2739 = vmatpush.msra.mxu0 0.0
      %2740 = vmatpush.msra.mxu0 0.0
      %2741 = vmatpush.msra.mxu0 0.0
      %2742 = vmatpush.msra.mxu0 0.0
      %2743 = vmatpush.msra.mxu0 0.0
      %2744 = vmatpush.msra.mxu0 0.0
      %2745 = vmatpush.msra.mxu0 0.0
      %2746 = vmatpush.msra.mxu0 0.0
      %2747 = vmatpush.msra.mxu0 0.0
      %2748 = vmatpush.msra.mxu0 %v2627
      %2749 = vmatmul.f32.gmra.mxu0 %v2615
      %v2750 = vpop.f32.mrf.mxu0
      %v2751 = vadd.f32 0.0, %v2750
      %2752 = vdwg.mxu0
      %2753 = vmatpush.msra.mxu0 0.0
      %2754 = vmatpush.msra.mxu0 0.0
      %2755 = vmatpush.msra.mxu0 0.0
      %2756 = vmatpush.msra.mxu0 0.0
      %2757 = vmatpush.msra.mxu0 0.0
      %2758 = vmatpush.msra.mxu0 0.0
      %2759 = vmatpush.msra.mxu0 0.0
      %2760 = vmatpush.msra.mxu0 0.0
      %2761 = vmatpush.msra.mxu0 0.0
      %2762 = vmatpush.msra.mxu0 0.0
      %2763 = vmatpush.msra.mxu0 0.0
      %2764 = vmatpush.msra.mxu0 0.0
      %2765 = vmatpush.msra.mxu0 0.0
      %2766 = vmatpush.msra.mxu0 0.0
      %2767 = vmatpush.msra.mxu0 0.0
      %2768 = vmatpush.msra.mxu0 %v2629
      %2769 = vmatmul.f32.gmra.mxu0 %v2615
      %v2770 = vpop.f32.mrf.mxu0
      %v2771 = vadd.f32 0.0, %v2770
      %2772 = vdwg.mxu0
      %2773 = vmatpush.msra.mxu0 0.0
      %2774 = vmatpush.msra.mxu0 0.0
      %2775 = vmatpush.msra.mxu0 0.0
      %2776 = vmatpush.msra.mxu0 0.0
      %2777 = vmatpush.msra.mxu0 0.0
      %2778 = vmatpush.msra.mxu0 0.0
      %2779 = vmatpush.msra.mxu0 0.0
      %2780 = vmatpush.msra.mxu0 0.0
      %2781 = vmatpush.msra.mxu0 0.0
      %2782 = vmatpush.msra.mxu0 0.0
      %2783 = vmatpush.msra.mxu0 0.0
      %2784 = vmatpush.msra.mxu0 0.0
      %2785 = vmatpush.msra.mxu0 0.0
      %2786 = vmatpush.msra.mxu0 0.0
      %2787 = vmatpush.msra.mxu0 0.0
      %2788 = vmatpush.msra.mxu0 %v2631
      %2789 = vmatmul.f32.gmra.mxu0 %v2615
      %v2790 = vpop.f32.mrf.mxu0
      %v2791 = vadd.f32 0.0, %v2790
      %2792 = vdwg.mxu0
      %v2793 = vadd.f32 %v2573, %v2651
      %v2794 = vadd.f32 %v2574, %v2671
      %v2795 = vadd.f32 %v2575, %v2691
      %v2796 = vadd.f32 %v2576, %v2711
      %v2797 = vadd.f32 %v2577, %v2731
      %v2798 = vadd.f32 %v2578, %v2751
      %v2799 = vadd.f32 %v2579, %v2771
      %v2800 = vadd.f32 %v2580, %v2791
      %v2801 = vld [vmem:[%s2584] sm:$0xff]
      %v2802 = vld [vmem:[%s2584 + $0x8] sm:$0xff]
      %v2803 = vld [vmem:[%s2584 + $0x10] sm:$0xff]
      %v2804 = vld [vmem:[%s2584 + $0x18] sm:$0xff]
      %v2805 = vld [vmem:[%s2584 + $0x20] sm:$0xf]
      %s2806 = scalar_lea.vmem %s1, 80
      %v2807 = vld [vmem:[%s2806] sm:$0xff]
      %2813 = vst [vmem:[#allocation1] ss:$2 sm:$0xff] %v2801
      %s2814 = scalar_lea.vmem [#allocation1], 16
      %2815 = vst [vmem:[%s2814] ss:$2 sm:$0xff] %v2802
      %s2816 = scalar_lea.vmem [#allocation1], 32
      %2817 = vst [vmem:[%s2816] ss:$2 sm:$0xff] %v2803
      %s2818 = scalar_lea.vmem [#allocation1], 48
      %2819 = vst [vmem:[%s2818] ss:$2 sm:$0xff] %v2804
      %v2820 = vld.sshfl [vmem:[#allocation1] sm:$0xff pattern:$0x75316420]
      %v2821 = vld.sshfl [vmem:[#allocation1 + $0x8] sm:$0xff pattern:$0x75316420]
      %v2822 = vld.sshfl [vmem:[#allocation1 + $0x10] sm:$0xff pattern:$0x75316420]
      %v2823 = vld.sshfl [vmem:[#allocation1 + $0x18] sm:$0xff pattern:$0x75316420]
      %v2824 = vld.sshfl [vmem:[#allocation1 + $0x20] sm:$0xff pattern:$0x75316420]
      %v2825 = vld.sshfl [vmem:[#allocation1 + $0x28] sm:$0xff pattern:$0x75316420]
      %v2826 = vld.sshfl [vmem:[#allocation1 + $0x30] sm:$0xff pattern:$0x75316420]
      %v2827 = vld.sshfl [vmem:[#allocation1 + $0x38] sm:$0xff pattern:$0x75316420]
      %2828 = vst [vmem:[#allocation1] ss:$2 sm:$0xff] %v2805
      %v2829 = vld.sshfl [vmem:[#allocation1] sm:$0xff pattern:$0x75316420]
      %2830 = vrot.lane.b32.xlu0 %v2820, 127
      %v2831 = vpop.permute.xlu0 %2830
      %2832 = vrot.lane.b32.xlu0 %v2821, 127
      %v2833 = vpop.permute.xlu0 %2832
      %2834 = vrot.lane.b32.xlu0 %v2822, 127
      %v2835 = vpop.permute.xlu0 %2834
      %2836 = vrot.lane.b32.xlu0 %v2823, 127
      %v2837 = vpop.permute.xlu0 %2836
      %2838 = vrot.lane.b32.xlu0 %v2824, 127
      %v2839 = vpop.permute.xlu0 %2838
      %2840 = vrot.lane.b32.xlu0 %v2825, 127
      %v2841 = vpop.permute.xlu0 %2840
      %2842 = vrot.lane.b32.xlu0 %v2826, 127
      %v2843 = vpop.permute.xlu0 %2842
      %2844 = vrot.lane.b32.xlu0 %v2827, 127
      %v2845 = vpop.permute.xlu0 %2844
      %2846 = vrot.lane.b32.xlu0 %v2829, 127
      %v2847 = vpop.permute.xlu0 %2846
      %v2848 = vsel %vm327, %v2831, %v2833
      %v2849 = vsel %vm327, %v2833, %v2835
      %v2850 = vsel %vm327, %v2835, %v2837
      %v2851 = vsel %vm327, %v2837, %v2839
      %v2852 = vsel %vm327, %v2839, %v2841
      %v2853 = vsel %vm327, %v2841, %v2843
      %v2854 = vsel %vm327, %v2843, %v2845
      %v2855 = vsel %vm327, %v2845, %v2847
      %v2857 = vsel %vm336, %v2807, 0
      %v2859 = vsel %vm270, %v2848, 0
      %v2861 = vsel %vm270, %v2849, 0
      %v2863 = vsel %vm270, %v2850, 0
      %v2865 = vsel %vm270, %v2851, 0
      %v2867 = vsel %vm270, %v2852, 0
      %v2869 = vsel %vm270, %v2853, 0
      %v2871 = vsel %vm270, %v2854, 0
      %v2873 = vsel %vm270, %v2855, 0
      %2875 = vmatpush.msra.mxu0 0.0
      %2876 = vmatpush.msra.mxu0 0.0
      %2877 = vmatpush.msra.mxu0 0.0
      %2878 = vmatpush.msra.mxu0 0.0
      %2879 = vmatpush.msra.mxu0 0.0
      %2880 = vmatpush.msra.mxu0 0.0
      %2881 = vmatpush.msra.mxu0 0.0
      %2882 = vmatpush.msra.mxu0 0.0
      %2883 = vmatpush.msra.mxu0 0.0
      %2884 = vmatpush.msra.mxu0 0.0
      %2885 = vmatpush.msra.mxu0 0.0
      %2886 = vmatpush.msra.mxu0 0.0
      %2887 = vmatpush.msra.mxu0 0.0
      %2888 = vmatpush.msra.mxu0 0.0
      %2889 = vmatpush.msra.mxu0 0.0
      %2890 = vmatpush.msra.mxu0 %v2859
      %2891 = vmatmul.f32.gmra.mxu0 %v2857
      %v2892 = vpop.f32.mrf.mxu0
      %v2893 = vadd.f32 0.0, %v2892
      %2894 = vdwg.mxu0
      %2895 = vmatpush.msra.mxu0 0.0
      %2896 = vmatpush.msra.mxu0 0.0
      %2897 = vmatpush.msra.mxu0 0.0
      %2898 = vmatpush.msra.mxu0 0.0
      %2899 = vmatpush.msra.mxu0 0.0
      %2900 = vmatpush.msra.mxu0 0.0
      %2901 = vmatpush.msra.mxu0 0.0
      %2902 = vmatpush.msra.mxu0 0.0
      %2903 = vmatpush.msra.mxu0 0.0
      %2904 = vmatpush.msra.mxu0 0.0
      %2905 = vmatpush.msra.mxu0 0.0
      %2906 = vmatpush.msra.mxu0 0.0
      %2907 = vmatpush.msra.mxu0 0.0
      %2908 = vmatpush.msra.mxu0 0.0
      %2909 = vmatpush.msra.mxu0 0.0
      %2910 = vmatpush.msra.mxu0 %v2861
      %2911 = vmatmul.f32.gmra.mxu0 %v2857
      %v2912 = vpop.f32.mrf.mxu0
      %v2913 = vadd.f32 0.0, %v2912
      %2914 = vdwg.mxu0
      %2915 = vmatpush.msra.mxu0 0.0
      %2916 = vmatpush.msra.mxu0 0.0
      %2917 = vmatpush.msra.mxu0 0.0
      %2918 = vmatpush.msra.mxu0 0.0
      %2919 = vmatpush.msra.mxu0 0.0
      %2920 = vmatpush.msra.mxu0 0.0
      %2921 = vmatpush.msra.mxu0 0.0
      %2922 = vmatpush.msra.mxu0 0.0
      %2923 = vmatpush.msra.mxu0 0.0
      %2924 = vmatpush.msra.mxu0 0.0
      %2925 = vmatpush.msra.mxu0 0.0
      %2926 = vmatpush.msra.mxu0 0.0
      %2927 = vmatpush.msra.mxu0 0.0
      %2928 = vmatpush.msra.mxu0 0.0
      %2929 = vmatpush.msra.mxu0 0.0
      %2930 = vmatpush.msra.mxu0 %v2863
      %2931 = vmatmul.f32.gmra.mxu0 %v2857
      %v2932 = vpop.f32.mrf.mxu0
      %v2933 = vadd.f32 0.0, %v2932
      %2934 = vdwg.mxu0
      %2935 = vmatpush.msra.mxu0 0.0
      %2936 = vmatpush.msra.mxu0 0.0
      %2937 = vmatpush.msra.mxu0 0.0
      %2938 = vmatpush.msra.mxu0 0.0
      %2939 = vmatpush.msra.mxu0 0.0
      %2940 = vmatpush.msra.mxu0 0.0
      %2941 = vmatpush.msra.mxu0 0.0
      %2942 = vmatpush.msra.mxu0 0.0
      %2943 = vmatpush.msra.mxu0 0.0
      %2944 = vmatpush.msra.mxu0 0.0
      %2945 = vmatpush.msra.mxu0 0.0
      %2946 = vmatpush.msra.mxu0 0.0
      %2947 = vmatpush.msra.mxu0 0.0
      %2948 = vmatpush.msra.mxu0 0.0
      %2949 = vmatpush.msra.mxu0 0.0
      %2950 = vmatpush.msra.mxu0 %v2865
      %2951 = vmatmul.f32.gmra.mxu0 %v2857
      %v2952 = vpop.f32.mrf.mxu0
      %v2953 = vadd.f32 0.0, %v2952
      %2954 = vdwg.mxu0
      %2955 = vmatpush.msra.mxu0 0.0
      %2956 = vmatpush.msra.mxu0 0.0
      %2957 = vmatpush.msra.mxu0 0.0
      %2958 = vmatpush.msra.mxu0 0.0
      %2959 = vmatpush.msra.mxu0 0.0
      %2960 = vmatpush.msra.mxu0 0.0
      %2961 = vmatpush.msra.mxu0 0.0
      %2962 = vmatpush.msra.mxu0 0.0
      %2963 = vmatpush.msra.mxu0 0.0
      %2964 = vmatpush.msra.mxu0 0.0
      %2965 = vmatpush.msra.mxu0 0.0
      %2966 = vmatpush.msra.mxu0 0.0
      %2967 = vmatpush.msra.mxu0 0.0
      %2968 = vmatpush.msra.mxu0 0.0
      %2969 = vmatpush.msra.mxu0 0.0
      %2970 = vmatpush.msra.mxu0 %v2867
      %2971 = vmatmul.f32.gmra.mxu0 %v2857
      %v2972 = vpop.f32.mrf.mxu0
      %v2973 = vadd.f32 0.0, %v2972
      %2974 = vdwg.mxu0
      %2975 = vmatpush.msra.mxu0 0.0
      %2976 = vmatpush.msra.mxu0 0.0
      %2977 = vmatpush.msra.mxu0 0.0
      %2978 = vmatpush.msra.mxu0 0.0
      %2979 = vmatpush.msra.mxu0 0.0
      %2980 = vmatpush.msra.mxu0 0.0
      %2981 = vmatpush.msra.mxu0 0.0
      %2982 = vmatpush.msra.mxu0 0.0
      %2983 = vmatpush.msra.mxu0 0.0
      %2984 = vmatpush.msra.mxu0 0.0
      %2985 = vmatpush.msra.mxu0 0.0
      %2986 = vmatpush.msra.mxu0 0.0
      %2987 = vmatpush.msra.mxu0 0.0
      %2988 = vmatpush.msra.mxu0 0.0
      %2989 = vmatpush.msra.mxu0 0.0
      %2990 = vmatpush.msra.mxu0 %v2869
      %2991 = vmatmul.f32.gmra.mxu0 %v2857
      %v2992 = vpop.f32.mrf.mxu0
      %v2993 = vadd.f32 0.0, %v2992
      %2994 = vdwg.mxu0
      %2995 = vmatpush.msra.mxu0 0.0
      %2996 = vmatpush.msra.mxu0 0.0
      %2997 = vmatpush.msra.mxu0 0.0
      %2998 = vmatpush.msra.mxu0 0.0
      %2999 = vmatpush.msra.mxu0 0.0
      %3000 = vmatpush.msra.mxu0 0.0
      %3001 = vmatpush.msra.mxu0 0.0
      %3002 = vmatpush.msra.mxu0 0.0
      %3003 = vmatpush.msra.mxu0 0.0
      %3004 = vmatpush.msra.mxu0 0.0
      %3005 = vmatpush.msra.mxu0 0.0
      %3006 = vmatpush.msra.mxu0 0.0
      %3007 = vmatpush.msra.mxu0 0.0
      %3008 = vmatpush.msra.mxu0 0.0
      %3009 = vmatpush.msra.mxu0 0.0
      %3010 = vmatpush.msra.mxu0 %v2871
      %3011 = vmatmul.f32.gmra.mxu0 %v2857
      %v3012 = vpop.f32.mrf.mxu0
      %v3013 = vadd.f32 0.0, %v3012
      %3014 = vdwg.mxu0
      %3015 = vmatpush.msra.mxu0 0.0
      %3016 = vmatpush.msra.mxu0 0.0
      %3017 = vmatpush.msra.mxu0 0.0
      %3018 = vmatpush.msra.mxu0 0.0
      %3019 = vmatpush.msra.mxu0 0.0
      %3020 = vmatpush.msra.mxu0 0.0
      %3021 = vmatpush.msra.mxu0 0.0
      %3022 = vmatpush.msra.mxu0 0.0
      %3023 = vmatpush.msra.mxu0 0.0
      %3024 = vmatpush.msra.mxu0 0.0
      %3025 = vmatpush.msra.mxu0 0.0
      %3026 = vmatpush.msra.mxu0 0.0
      %3027 = vmatpush.msra.mxu0 0.0
      %3028 = vmatpush.msra.mxu0 0.0
      %3029 = vmatpush.msra.mxu0 0.0
      %3030 = vmatpush.msra.mxu0 %v2873
      %3031 = vmatmul.f32.gmra.mxu0 %v2857
      %v3032 = vpop.f32.mrf.mxu0
      %v3033 = vadd.f32 0.0, %v3032
      %3034 = vdwg.mxu0
      %v3035 = vadd.f32 %v2793, %v2893
      %v3036 = vadd.f32 %v2794, %v2913
      %v3037 = vadd.f32 %v2795, %v2933
      %v3038 = vadd.f32 %v2796, %v2953
      %v3039 = vadd.f32 %v2797, %v2973
      %v3040 = vadd.f32 %v2798, %v2993
      %v3041 = vadd.f32 %v2799, %v3013
      %v3042 = vadd.f32 %v2800, %v3033
      %v3043 = vld [vmem:[%s2584] sm:$0xff]
      %v3044 = vld [vmem:[%s2584 + $0x8] sm:$0xff]
      %v3045 = vld [vmem:[%s2584 + $0x10] sm:$0xff]
      %v3046 = vld [vmem:[%s2584 + $0x18] sm:$0xff]
      %v3047 = vld [vmem:[%s2584 + $0x20] sm:$0xf]
      %v3048 = vmul.f32 %v3043, %v749
      %v3049 = vmul.f32 %v3044, %v751
      %v3050 = vmul.f32 %v3045, %v753
      %v3051 = vmul.f32 %v3046, %v755
      %v3052 = vmul.f32 %v3047, %v747
      %s3053 = scalar_lea.vmem %s1, 88
      %v3054 = vld [vmem:[%s3053] sm:$0xff]
      %3060 = vst [vmem:[#allocation1] ss:$2 sm:$0xff] %v3048
      %s3061 = scalar_lea.vmem [#allocation1], 16
      %3062 = vst [vmem:[%s3061] ss:$2 sm:$0xff] %v3049
      %s3063 = scalar_lea.vmem [#allocation1], 32
      %3064 = vst [vmem:[%s3063] ss:$2 sm:$0xff] %v3050
      %s3065 = scalar_lea.vmem [#allocation1], 48
      %3066 = vst [vmem:[%s3065] ss:$2 sm:$0xff] %v3051
      %v3067 = vld.sshfl [vmem:[#allocation1] sm:$0xff pattern:$0x75316420]
      %v3068 = vld.sshfl [vmem:[#allocation1 + $0x8] sm:$0xff pattern:$0x75316420]
      %v3069 = vld.sshfl [vmem:[#allocation1 + $0x10] sm:$0xff pattern:$0x75316420]
      %v3070 = vld.sshfl [vmem:[#allocation1 + $0x18] sm:$0xff pattern:$0x75316420]
      %v3071 = vld.sshfl [vmem:[#allocation1 + $0x20] sm:$0xff pattern:$0x75316420]
      %v3072 = vld.sshfl [vmem:[#allocation1 + $0x28] sm:$0xff pattern:$0x75316420]
      %v3073 = vld.sshfl [vmem:[#allocation1 + $0x30] sm:$0xff pattern:$0x75316420]
      %v3074 = vld.sshfl [vmem:[#allocation1 + $0x38] sm:$0xff pattern:$0x75316420]
      %3075 = vst [vmem:[#allocation1] ss:$2 sm:$0xff] %v3052
      %v3076 = vld.sshfl [vmem:[#allocation1] sm:$0xff pattern:$0x75316420]
      %3077 = vrot.lane.b32.xlu0 %v3067, 126
      %v3078 = vpop.permute.xlu0 %3077
      %3079 = vrot.lane.b32.xlu0 %v3068, 126
      %v3080 = vpop.permute.xlu0 %3079
      %3081 = vrot.lane.b32.xlu0 %v3069, 126
      %v3082 = vpop.permute.xlu0 %3081
      %3083 = vrot.lane.b32.xlu0 %v3070, 126
      %v3084 = vpop.permute.xlu0 %3083
      %3085 = vrot.lane.b32.xlu0 %v3071, 126
      %v3086 = vpop.permute.xlu0 %3085
      %3087 = vrot.lane.b32.xlu0 %v3072, 126
      %v3088 = vpop.permute.xlu0 %3087
      %3089 = vrot.lane.b32.xlu0 %v3073, 126
      %v3090 = vpop.permute.xlu0 %3089
      %3091 = vrot.lane.b32.xlu0 %v3074, 126
      %v3092 = vpop.permute.xlu0 %3091
      %3093 = vrot.lane.b32.xlu0 %v3076, 126
      %v3094 = vpop.permute.xlu0 %3093
      %v3095 = vsel %vm808, %v3078, %v3080
      %v3096 = vsel %vm808, %v3080, %v3082
      %v3097 = vsel %vm808, %v3082, %v3084
      %v3098 = vsel %vm808, %v3084, %v3086
      %v3099 = vsel %vm808, %v3086, %v3088
      %v3100 = vsel %vm808, %v3088, %v3090
      %v3101 = vsel %vm808, %v3090, %v3092
      %v3102 = vsel %vm808, %v3092, %v3094
      %v3104 = vsel %vm336, %v3054, 0
      %v3106 = vsel %vm270, %v3095, 0
      %v3108 = vsel %vm270, %v3096, 0
      %v3110 = vsel %vm270, %v3097, 0
      %v3112 = vsel %vm270, %v3098, 0
      %v3114 = vsel %vm270, %v3099, 0
      %v3116 = vsel %vm270, %v3100, 0
      %v3118 = vsel %vm270, %v3101, 0
      %v3120 = vsel %vm270, %v3102, 0
      %3122 = vmatpush.msra.mxu0 0.0
      %3123 = vmatpush.msra.mxu0 0.0
      %3124 = vmatpush.msra.mxu0 0.0
      %3125 = vmatpush.msra.mxu0 0.0
      %3126 = vmatpush.msra.mxu0 0.0
      %3127 = vmatpush.msra.mxu0 0.0
      %3128 = vmatpush.msra.mxu0 0.0
      %3129 = vmatpush.msra.mxu0 0.0
      %3130 = vmatpush.msra.mxu0 0.0
      %3131 = vmatpush.msra.mxu0 0.0
      %3132 = vmatpush.msra.mxu0 0.0
      %3133 = vmatpush.msra.mxu0 0.0
      %3134 = vmatpush.msra.mxu0 0.0
      %3135 = vmatpush.msra.mxu0 0.0
      %3136 = vmatpush.msra.mxu0 0.0
      %3137 = vmatpush.msra.mxu0 %v3106
      %3138 = vmatmul.f32.gmra.mxu0 %v3104
      %v3139 = vpop.f32.mrf.mxu0
      %v3140 = vadd.f32 0.0, %v3139
      %3141 = vdwg.mxu0
      %3142 = vmatpush.msra.mxu0 0.0
      %3143 = vmatpush.msra.mxu0 0.0
      %3144 = vmatpush.msra.mxu0 0.0
      %3145 = vmatpush.msra.mxu0 0.0
      %3146 = vmatpush.msra.mxu0 0.0
      %3147 = vmatpush.msra.mxu0 0.0
      %3148 = vmatpush.msra.mxu0 0.0
      %3149 = vmatpush.msra.mxu0 0.0
      %3150 = vmatpush.msra.mxu0 0.0
      %3151 = vmatpush.msra.mxu0 0.0
      %3152 = vmatpush.msra.mxu0 0.0
      %3153 = vmatpush.msra.mxu0 0.0
      %3154 = vmatpush.msra.mxu0 0.0
      %3155 = vmatpush.msra.mxu0 0.0
      %3156 = vmatpush.msra.mxu0 0.0
      %3157 = vmatpush.msra.mxu0 %v3108
      %3158 = vmatmul.f32.gmra.mxu0 %v3104
      %v3159 = vpop.f32.mrf.mxu0
      %v3160 = vadd.f32 0.0, %v3159
      %3161 = vdwg.mxu0
      %3162 = vmatpush.msra.mxu0 0.0
      %3163 = vmatpush.msra.mxu0 0.0
      %3164 = vmatpush.msra.mxu0 0.0
      %3165 = vmatpush.msra.mxu0 0.0
      %3166 = vmatpush.msra.mxu0 0.0
      %3167 = vmatpush.msra.mxu0 0.0
      %3168 = vmatpush.msra.mxu0 0.0
      %3169 = vmatpush.msra.mxu0 0.0
      %3170 = vmatpush.msra.mxu0 0.0
      %3171 = vmatpush.msra.mxu0 0.0
      %3172 = vmatpush.msra.mxu0 0.0
      %3173 = vmatpush.msra.mxu0 0.0
      %3174 = vmatpush.msra.mxu0 0.0
      %3175 = vmatpush.msra.mxu0 0.0
      %3176 = vmatpush.msra.mxu0 0.0
      %3177 = vmatpush.msra.mxu0 %v3110
      %3178 = vmatmul.f32.gmra.mxu0 %v3104
      %v3179 = vpop.f32.mrf.mxu0
      %v3180 = vadd.f32 0.0, %v3179
      %3181 = vdwg.mxu0
      %3182 = vmatpush.msra.mxu0 0.0
      %3183 = vmatpush.msra.mxu0 0.0
      %3184 = vmatpush.msra.mxu0 0.0
      %3185 = vmatpush.msra.mxu0 0.0
      %3186 = vmatpush.msra.mxu0 0.0
      %3187 = vmatpush.msra.mxu0 0.0
      %3188 = vmatpush.msra.mxu0 0.0
      %3189 = vmatpush.msra.mxu0 0.0
      %3190 = vmatpush.msra.mxu0 0.0
      %3191 = vmatpush.msra.mxu0 0.0
      %3192 = vmatpush.msra.mxu0 0.0
      %3193 = vmatpush.msra.mxu0 0.0
      %3194 = vmatpush.msra.mxu0 0.0
      %3195 = vmatpush.msra.mxu0 0.0
      %3196 = vmatpush.msra.mxu0 0.0
      %3197 = vmatpush.msra.mxu0 %v3112
      %3198 = vmatmul.f32.gmra.mxu0 %v3104
      %v3199 = vpop.f32.mrf.mxu0
      %v3200 = vadd.f32 0.0, %v3199
      %3201 = vdwg.mxu0
      %3202 = vmatpush.msra.mxu0 0.0
      %3203 = vmatpush.msra.mxu0 0.0
      %3204 = vmatpush.msra.mxu0 0.0
      %3205 = vmatpush.msra.mxu0 0.0
      %3206 = vmatpush.msra.mxu0 0.0
      %3207 = vmatpush.msra.mxu0 0.0
      %3208 = vmatpush.msra.mxu0 0.0
      %3209 = vmatpush.msra.mxu0 0.0
      %3210 = vmatpush.msra.mxu0 0.0
      %3211 = vmatpush.msra.mxu0 0.0
      %3212 = vmatpush.msra.mxu0 0.0
      %3213 = vmatpush.msra.mxu0 0.0
      %3214 = vmatpush.msra.mxu0 0.0
      %3215 = vmatpush.msra.mxu0 0.0
      %3216 = vmatpush.msra.mxu0 0.0
      %3217 = vmatpush.msra.mxu0 %v3114
      %3218 = vmatmul.f32.gmra.mxu0 %v3104
      %v3219 = vpop.f32.mrf.mxu0
      %v3220 = vadd.f32 0.0, %v3219
      %3221 = vdwg.mxu0
      %3222 = vmatpush.msra.mxu0 0.0
      %3223 = vmatpush.msra.mxu0 0.0
      %3224 = vmatpush.msra.mxu0 0.0
      %3225 = vmatpush.msra.mxu0 0.0
      %3226 = vmatpush.msra.mxu0 0.0
      %3227 = vmatpush.msra.mxu0 0.0
      %3228 = vmatpush.msra.mxu0 0.0
      %3229 = vmatpush.msra.mxu0 0.0
      %3230 = vmatpush.msra.mxu0 0.0
      %3231 = vmatpush.msra.mxu0 0.0
      %3232 = vmatpush.msra.mxu0 0.0
      %3233 = vmatpush.msra.mxu0 0.0
      %3234 = vmatpush.msra.mxu0 0.0
      %3235 = vmatpush.msra.mxu0 0.0
      %3236 = vmatpush.msra.mxu0 0.0
      %3237 = vmatpush.msra.mxu0 %v3116
      %3238 = vmatmul.f32.gmra.mxu0 %v3104
      %v3239 = vpop.f32.mrf.mxu0
      %v3240 = vadd.f32 0.0, %v3239
      %3241 = vdwg.mxu0
      %3242 = vmatpush.msra.mxu0 0.0
      %3243 = vmatpush.msra.mxu0 0.0
      %3244 = vmatpush.msra.mxu0 0.0
      %3245 = vmatpush.msra.mxu0 0.0
      %3246 = vmatpush.msra.mxu0 0.0
      %3247 = vmatpush.msra.mxu0 0.0
      %3248 = vmatpush.msra.mxu0 0.0
      %3249 = vmatpush.msra.mxu0 0.0
      %3250 = vmatpush.msra.mxu0 0.0
      %3251 = vmatpush.msra.mxu0 0.0
      %3252 = vmatpush.msra.mxu0 0.0
      %3253 = vmatpush.msra.mxu0 0.0
      %3254 = vmatpush.msra.mxu0 0.0
      %3255 = vmatpush.msra.mxu0 0.0
      %3256 = vmatpush.msra.mxu0 0.0
      %3257 = vmatpush.msra.mxu0 %v3118
      %3258 = vmatmul.f32.gmra.mxu0 %v3104
      %v3259 = vpop.f32.mrf.mxu0
      %v3260 = vadd.f32 0.0, %v3259
      %3261 = vdwg.mxu0
      %3262 = vmatpush.msra.mxu0 0.0
      %3263 = vmatpush.msra.mxu0 0.0
      %3264 = vmatpush.msra.mxu0 0.0
      %3265 = vmatpush.msra.mxu0 0.0
      %3266 = vmatpush.msra.mxu0 0.0
      %3267 = vmatpush.msra.mxu0 0.0
      %3268 = vmatpush.msra.mxu0 0.0
      %3269 = vmatpush.msra.mxu0 0.0
      %3270 = vmatpush.msra.mxu0 0.0
      %3271 = vmatpush.msra.mxu0 0.0
      %3272 = vmatpush.msra.mxu0 0.0
      %3273 = vmatpush.msra.mxu0 0.0
      %3274 = vmatpush.msra.mxu0 0.0
      %3275 = vmatpush.msra.mxu0 0.0
      %3276 = vmatpush.msra.mxu0 0.0
      %3277 = vmatpush.msra.mxu0 %v3120
      %3278 = vmatmul.f32.gmra.mxu0 %v3104
      %v3279 = vpop.f32.mrf.mxu0
      %v3280 = vadd.f32 0.0, %v3279
      %3281 = vdwg.mxu0
      %v3282 = vadd.f32 %v3035, %v3140
      %v3283 = vadd.f32 %v3036, %v3160
      %v3284 = vadd.f32 %v3037, %v3180
      %v3285 = vadd.f32 %v3038, %v3200
      %v3286 = vadd.f32 %v3039, %v3220
      %v3287 = vadd.f32 %v3040, %v3240
      %v3288 = vadd.f32 %v3041, %v3260
      %v3289 = vadd.f32 %v3042, %v3280
      %v3290 = vld [vmem:[%s2584] sm:$0xff]
      %v3291 = vld [vmem:[%s2584 + $0x8] sm:$0xff]
      %v3292 = vld [vmem:[%s2584 + $0x10] sm:$0xff]
      %v3293 = vld [vmem:[%s2584 + $0x18] sm:$0xff]
      %v3294 = vld [vmem:[%s2584 + $0x20] sm:$0xf]
      %v3295 = vmul.f32 %v3290, %v1022
      %v3296 = vmul.f32 %v3291, %v1024
      %v3297 = vmul.f32 %v3292, %v1026
      %v3298 = vmul.f32 %v3293, %v1028
      %v3299 = vmul.f32 %v3294, %v1020
      %s3300 = scalar_lea.vmem %s1, 96
      %v3301 = vld [vmem:[%s3300] sm:$0xff]
      %3307 = vst [vmem:[#allocation1] ss:$2 sm:$0xff] %v3295
      %s3308 = scalar_lea.vmem [#allocation1], 16
      %3309 = vst [vmem:[%s3308] ss:$2 sm:$0xff] %v3296
      %s3310 = scalar_lea.vmem [#allocation1], 32
      %3311 = vst [vmem:[%s3310] ss:$2 sm:$0xff] %v3297
      %s3312 = scalar_lea.vmem [#allocation1], 48
      %3313 = vst [vmem:[%s3312] ss:$2 sm:$0xff] %v3298
      %v3314 = vld.sshfl [vmem:[#allocation1] sm:$0xff pattern:$0x75316420]
      %v3315 = vld.sshfl [vmem:[#allocation1 + $0x8] sm:$0xff pattern:$0x75316420]
      %v3316 = vld.sshfl [vmem:[#allocation1 + $0x10] sm:$0xff pattern:$0x75316420]
      %v3317 = vld.sshfl [vmem:[#allocation1 + $0x18] sm:$0xff pattern:$0x75316420]
      %v3318 = vld.sshfl [vmem:[#allocation1 + $0x20] sm:$0xff pattern:$0x75316420]
      %v3319 = vld.sshfl [vmem:[#allocation1 + $0x28] sm:$0xff pattern:$0x75316420]
      %v3320 = vld.sshfl [vmem:[#allocation1 + $0x30] sm:$0xff pattern:$0x75316420]
      %v3321 = vld.sshfl [vmem:[#allocation1 + $0x38] sm:$0xff pattern:$0x75316420]
      %3322 = vst [vmem:[#allocation1] ss:$2 sm:$0xff] %v3299
      %v3323 = vld.sshfl [vmem:[#allocation1] sm:$0xff pattern:$0x75316420]
      %3324 = vrot.lane.b32.xlu0 %v3314, 96
      %v3325 = vpop.permute.xlu0 %3324
      %3326 = vrot.lane.b32.xlu0 %v3315, 96
      %v3327 = vpop.permute.xlu0 %3326
      %3328 = vrot.lane.b32.xlu0 %v3316, 96
      %v3329 = vpop.permute.xlu0 %3328
      %3330 = vrot.lane.b32.xlu0 %v3317, 96
      %v3331 = vpop.permute.xlu0 %3330
      %3332 = vrot.lane.b32.xlu0 %v3318, 96
      %v3333 = vpop.permute.xlu0 %3332
      %3334 = vrot.lane.b32.xlu0 %v3319, 96
      %v3335 = vpop.permute.xlu0 %3334
      %3336 = vrot.lane.b32.xlu0 %v3320, 96
      %v3337 = vpop.permute.xlu0 %3336
      %3338 = vrot.lane.b32.xlu0 %v3321, 96
      %v3339 = vpop.permute.xlu0 %3338
      %3340 = vrot.lane.b32.xlu0 %v3323, 96
      %v3341 = vpop.permute.xlu0 %3340
      %v3342 = vsel %vm1081, %v3325, %v3327
      %v3343 = vsel %vm1081, %v3327, %v3329
      %v3344 = vsel %vm1081, %v3329, %v3331
      %v3345 = vsel %vm1081, %v3331, %v3333
      %v3346 = vsel %vm1081, %v3333, %v3335
      %v3347 = vsel %vm1081, %v3335, %v3337
      %v3348 = vsel %vm1081, %v3337, %v3339
      %v3349 = vsel %vm1081, %v3339, %v3341
      %v3351 = vsel %vm336, %v3301, 0
      %v3353 = vsel %vm270, %v3342, 0
      %v3355 = vsel %vm270, %v3343, 0
      %v3357 = vsel %vm270, %v3344, 0
      %v3359 = vsel %vm270, %v3345, 0
      %v3361 = vsel %vm270, %v3346, 0
      %v3363 = vsel %vm270, %v3347, 0
      %v3365 = vsel %vm270, %v3348, 0
      %v3367 = vsel %vm270, %v3349, 0
      %3369 = vmatpush.msra.mxu0 0.0
      %3370 = vmatpush.msra.mxu0 0.0
      %3371 = vmatpush.msra.mxu0 0.0
      %3372 = vmatpush.msra.mxu0 0.0
      %3373 = vmatpush.msra.mxu0 0.0
      %3374 = vmatpush.msra.mxu0 0.0
      %3375 = vmatpush.msra.mxu0 0.0
      %3376 = vmatpush.msra.mxu0 0.0
      %3377 = vmatpush.msra.mxu0 0.0
      %3378 = vmatpush.msra.mxu0 0.0
      %3379 = vmatpush.msra.mxu0 0.0
      %3380 = vmatpush.msra.mxu0 0.0
      %3381 = vmatpush.msra.mxu0 0.0
      %3382 = vmatpush.msra.mxu0 0.0
      %3383 = vmatpush.msra.mxu0 0.0
      %3384 = vmatpush.msra.mxu0 %v3353
      %3385 = vmatmul.f32.gmra.mxu0 %v3351
      %v3386 = vpop.f32.mrf.mxu0
      %v3387 = vadd.f32 0.0, %v3386
      %3388 = vdwg.mxu0
      %3389 = vmatpush.msra.mxu0 0.0
      %3390 = vmatpush.msra.mxu0 0.0
      %3391 = vmatpush.msra.mxu0 0.0
      %3392 = vmatpush.msra.mxu0 0.0
      %3393 = vmatpush.msra.mxu0 0.0
      %3394 = vmatpush.msra.mxu0 0.0
      %3395 = vmatpush.msra.mxu0 0.0
      %3396 = vmatpush.msra.mxu0 0.0
      %3397 = vmatpush.msra.mxu0 0.0
      %3398 = vmatpush.msra.mxu0 0.0
      %3399 = vmatpush.msra.mxu0 0.0
      %3400 = vmatpush.msra.mxu0 0.0
      %3401 = vmatpush.msra.mxu0 0.0
      %3402 = vmatpush.msra.mxu0 0.0
      %3403 = vmatpush.msra.mxu0 0.0
      %3404 = vmatpush.msra.mxu0 %v3355
      %3405 = vmatmul.f32.gmra.mxu0 %v3351
      %v3406 = vpop.f32.mrf.mxu0
      %v3407 = vadd.f32 0.0, %v3406
      %3408 = vdwg.mxu0
      %3409 = vmatpush.msra.mxu0 0.0
      %3410 = vmatpush.msra.mxu0 0.0
      %3411 = vmatpush.msra.mxu0 0.0
      %3412 = vmatpush.msra.mxu0 0.0
      %3413 = vmatpush.msra.mxu0 0.0
      %3414 = vmatpush.msra.mxu0 0.0
      %3415 = vmatpush.msra.mxu0 0.0
      %3416 = vmatpush.msra.mxu0 0.0
      %3417 = vmatpush.msra.mxu0 0.0
      %3418 = vmatpush.msra.mxu0 0.0
      %3419 = vmatpush.msra.mxu0 0.0
      %3420 = vmatpush.msra.mxu0 0.0
      %3421 = vmatpush.msra.mxu0 0.0
      %3422 = vmatpush.msra.mxu0 0.0
      %3423 = vmatpush.msra.mxu0 0.0
      %3424 = vmatpush.msra.mxu0 %v3357
      %3425 = vmatmul.f32.gmra.mxu0 %v3351
      %v3426 = vpop.f32.mrf.mxu0
      %v3427 = vadd.f32 0.0, %v3426
      %3428 = vdwg.mxu0
      %3429 = vmatpush.msra.mxu0 0.0
      %3430 = vmatpush.msra.mxu0 0.0
      %3431 = vmatpush.msra.mxu0 0.0
      %3432 = vmatpush.msra.mxu0 0.0
      %3433 = vmatpush.msra.mxu0 0.0
      %3434 = vmatpush.msra.mxu0 0.0
      %3435 = vmatpush.msra.mxu0 0.0
      %3436 = vmatpush.msra.mxu0 0.0
      %3437 = vmatpush.msra.mxu0 0.0
      %3438 = vmatpush.msra.mxu0 0.0
      %3439 = vmatpush.msra.mxu0 0.0
      %3440 = vmatpush.msra.mxu0 0.0
      %3441 = vmatpush.msra.mxu0 0.0
      %3442 = vmatpush.msra.mxu0 0.0
      %3443 = vmatpush.msra.mxu0 0.0
      %3444 = vmatpush.msra.mxu0 %v3359
      %3445 = vmatmul.f32.gmra.mxu0 %v3351
      %v3446 = vpop.f32.mrf.mxu0
      %v3447 = vadd.f32 0.0, %v3446
      %3448 = vdwg.mxu0
      %3449 = vmatpush.msra.mxu0 0.0
      %3450 = vmatpush.msra.mxu0 0.0
      %3451 = vmatpush.msra.mxu0 0.0
      %3452 = vmatpush.msra.mxu0 0.0
      %3453 = vmatpush.msra.mxu0 0.0
      %3454 = vmatpush.msra.mxu0 0.0
      %3455 = vmatpush.msra.mxu0 0.0
      %3456 = vmatpush.msra.mxu0 0.0
      %3457 = vmatpush.msra.mxu0 0.0
      %3458 = vmatpush.msra.mxu0 0.0
      %3459 = vmatpush.msra.mxu0 0.0
      %3460 = vmatpush.msra.mxu0 0.0
      %3461 = vmatpush.msra.mxu0 0.0
      %3462 = vmatpush.msra.mxu0 0.0
      %3463 = vmatpush.msra.mxu0 0.0
      %3464 = vmatpush.msra.mxu0 %v3361
      %3465 = vmatmul.f32.gmra.mxu0 %v3351
      %v3466 = vpop.f32.mrf.mxu0
      %v3467 = vadd.f32 0.0, %v3466
      %3468 = vdwg.mxu0
      %3469 = vmatpush.msra.mxu0 0.0
      %3470 = vmatpush.msra.mxu0 0.0
      %3471 = vmatpush.msra.mxu0 0.0
      %3472 = vmatpush.msra.mxu0 0.0
      %3473 = vmatpush.msra.mxu0 0.0
      %3474 = vmatpush.msra.mxu0 0.0
      %3475 = vmatpush.msra.mxu0 0.0
      %3476 = vmatpush.msra.mxu0 0.0
      %3477 = vmatpush.msra.mxu0 0.0
      %3478 = vmatpush.msra.mxu0 0.0
      %3479 = vmatpush.msra.mxu0 0.0
      %3480 = vmatpush.msra.mxu0 0.0
      %3481 = vmatpush.msra.mxu0 0.0
      %3482 = vmatpush.msra.mxu0 0.0
      %3483 = vmatpush.msra.mxu0 0.0
      %3484 = vmatpush.msra.mxu0 %v3363
      %3485 = vmatmul.f32.gmra.mxu0 %v3351
      %v3486 = vpop.f32.mrf.mxu0
      %v3487 = vadd.f32 0.0, %v3486
      %3488 = vdwg.mxu0
      %3489 = vmatpush.msra.mxu0 0.0
      %3490 = vmatpush.msra.mxu0 0.0
      %3491 = vmatpush.msra.mxu0 0.0
      %3492 = vmatpush.msra.mxu0 0.0
      %3493 = vmatpush.msra.mxu0 0.0
      %3494 = vmatpush.msra.mxu0 0.0
      %3495 = vmatpush.msra.mxu0 0.0
      %3496 = vmatpush.msra.mxu0 0.0
      %3497 = vmatpush.msra.mxu0 0.0
      %3498 = vmatpush.msra.mxu0 0.0
      %3499 = vmatpush.msra.mxu0 0.0
      %3500 = vmatpush.msra.mxu0 0.0
      %3501 = vmatpush.msra.mxu0 0.0
      %3502 = vmatpush.msra.mxu0 0.0
      %3503 = vmatpush.msra.mxu0 0.0
      %3504 = vmatpush.msra.mxu0 %v3365
      %3505 = vmatmul.f32.gmra.mxu0 %v3351
      %v3506 = vpop.f32.mrf.mxu0
      %v3507 = vadd.f32 0.0, %v3506
      %3508 = vdwg.mxu0
      %3509 = vmatpush.msra.mxu0 0.0
      %3510 = vmatpush.msra.mxu0 0.0
      %3511 = vmatpush.msra.mxu0 0.0
      %3512 = vmatpush.msra.mxu0 0.0
      %3513 = vmatpush.msra.mxu0 0.0
      %3514 = vmatpush.msra.mxu0 0.0
      %3515 = vmatpush.msra.mxu0 0.0
      %3516 = vmatpush.msra.mxu0 0.0
      %3517 = vmatpush.msra.mxu0 0.0
      %3518 = vmatpush.msra.mxu0 0.0
      %3519 = vmatpush.msra.mxu0 0.0
      %3520 = vmatpush.msra.mxu0 0.0
      %3521 = vmatpush.msra.mxu0 0.0
      %3522 = vmatpush.msra.mxu0 0.0
      %3523 = vmatpush.msra.mxu0 0.0
      %3524 = vmatpush.msra.mxu0 %v3367
      %3525 = vmatmul.f32.gmra.mxu0 %v3351
      %v3526 = vpop.f32.mrf.mxu0
      %v3527 = vadd.f32 0.0, %v3526
      %3528 = vdwg.mxu0
      %v3529 = vadd.f32 %v3282, %v3387
      %v3530 = vadd.f32 %v3283, %v3407
      %v3531 = vadd.f32 %v3284, %v3427
      %v3532 = vadd.f32 %v3285, %v3447
      %v3533 = vadd.f32 %v3286, %v3467
      %v3534 = vadd.f32 %v3287, %v3487
      %v3535 = vadd.f32 %v3288, %v3507
      %v3536 = vadd.f32 %v3289, %v3527
      %v3537 = vld [vmem:[%s2584] sm:$0xff]
      %v3538 = vld [vmem:[%s2584 + $0x8] sm:$0xff]
      %v3539 = vld [vmem:[%s2584 + $0x10] sm:$0xff]
      %v3540 = vld [vmem:[%s2584 + $0x18] sm:$0xff]
      %v3541 = vld [vmem:[%s2584 + $0x20] sm:$0xf]
      %s3542 = scalar_lea.vmem %s1, 104
      %v3543 = vld [vmem:[%s3542] sm:$0xff]
      %3549 = vst [vmem:[#allocation1] ss:$2 sm:$0xff] %v3537
      %s3550 = scalar_lea.vmem [#allocation1], 16
      %3551 = vst [vmem:[%s3550] ss:$2 sm:$0xff] %v3538
      %s3552 = scalar_lea.vmem [#allocation1], 32
      %3553 = vst [vmem:[%s3552] ss:$2 sm:$0xff] %v3539
      %s3554 = scalar_lea.vmem [#allocation1], 48
      %3555 = vst [vmem:[%s3554] ss:$2 sm:$0xff] %v3540
      %v3556 = vld.sshfl [vmem:[#allocation1] sm:$0xff pattern:$0x75316420]
      %v3557 = vld.sshfl [vmem:[#allocation1 + $0x8] sm:$0xff pattern:$0x75316420]
      %v3558 = vld.sshfl [vmem:[#allocation1 + $0x10] sm:$0xff pattern:$0x75316420]
      %v3559 = vld.sshfl [vmem:[#allocation1 + $0x18] sm:$0xff pattern:$0x75316420]
      %v3560 = vld.sshfl [vmem:[#allocation1 + $0x20] sm:$0xff pattern:$0x75316420]
      %v3561 = vld.sshfl [vmem:[#allocation1 + $0x28] sm:$0xff pattern:$0x75316420]
      %v3562 = vld.sshfl [vmem:[#allocation1 + $0x30] sm:$0xff pattern:$0x75316420]
      %v3563 = vld.sshfl [vmem:[#allocation1 + $0x38] sm:$0xff pattern:$0x75316420]
      %3564 = vst [vmem:[#allocation1] ss:$2 sm:$0xff] %v3541
      %v3565 = vld.sshfl [vmem:[#allocation1] sm:$0xff pattern:$0x75316420]
      %3566 = vrot.lane.b32.xlu0 %v3556, 95
      %v3567 = vpop.permute.xlu0 %3566
      %3568 = vrot.lane.b32.xlu0 %v3557, 95
      %v3569 = vpop.permute.xlu0 %3568
      %3570 = vrot.lane.b32.xlu0 %v3558, 95
      %v3571 = vpop.permute.xlu0 %3570
      %3572 = vrot.lane.b32.xlu0 %v3559, 95
      %v3573 = vpop.permute.xlu0 %3572
      %3574 = vrot.lane.b32.xlu0 %v3560, 95
      %v3575 = vpop.permute.xlu0 %3574
      %3576 = vrot.lane.b32.xlu0 %v3561, 95
      %v3577 = vpop.permute.xlu0 %3576
      %3578 = vrot.lane.b32.xlu0 %v3562, 95
      %v3579 = vpop.permute.xlu0 %3578
      %3580 = vrot.lane.b32.xlu0 %v3563, 95
      %v3581 = vpop.permute.xlu0 %3580
      %3582 = vrot.lane.b32.xlu0 %v3565, 95
      %v3583 = vpop.permute.xlu0 %3582
      %v3584 = vsel %vm1324, %v3567, %v3569
      %v3585 = vsel %vm1324, %v3569, %v3571
      %v3586 = vsel %vm1324, %v3571, %v3573
      %v3587 = vsel %vm1324, %v3573, %v3575
      %v3588 = vsel %vm1324, %v3575, %v3577
      %v3589 = vsel %vm1324, %v3577, %v3579
      %v3590 = vsel %vm1324, %v3579, %v3581
      %v3591 = vsel %vm1324, %v3581, %v3583
      %v3593 = vsel %vm336, %v3543, 0
      %v3595 = vsel %vm270, %v3584, 0
      %v3597 = vsel %vm270, %v3585, 0
      %v3599 = vsel %vm270, %v3586, 0
      %v3601 = vsel %vm270, %v3587, 0
      %v3603 = vsel %vm270, %v3588, 0
      %v3605 = vsel %vm270, %v3589, 0
      %v3607 = vsel %vm270, %v3590, 0
      %v3609 = vsel %vm270, %v3591, 0
      %3611 = vmatpush.msra.mxu0 0.0
      %3612 = vmatpush.msra.mxu0 0.0
      %3613 = vmatpush.msra.mxu0 0.0
      %3614 = vmatpush.msra.mxu0 0.0
      %3615 = vmatpush.msra.mxu0 0.0
      %3616 = vmatpush.msra.mxu0 0.0
      %3617 = vmatpush.msra.mxu0 0.0
      %3618 = vmatpush.msra.mxu0 0.0
      %3619 = vmatpush.msra.mxu0 0.0
      %3620 = vmatpush.msra.mxu0 0.0
      %3621 = vmatpush.msra.mxu0 0.0
      %3622 = vmatpush.msra.mxu0 0.0
      %3623 = vmatpush.msra.mxu0 0.0
      %3624 = vmatpush.msra.mxu0 0.0
      %3625 = vmatpush.msra.mxu0 0.0
      %3626 = vmatpush.msra.mxu0 %v3595
      %3627 = vmatmul.f32.gmra.mxu0 %v3593
      %v3628 = vpop.f32.mrf.mxu0
      %v3629 = vadd.f32 0.0, %v3628
      %3630 = vdwg.mxu0
      %3631 = vmatpush.msra.mxu0 0.0
      %3632 = vmatpush.msra.mxu0 0.0
      %3633 = vmatpush.msra.mxu0 0.0
      %3634 = vmatpush.msra.mxu0 0.0
      %3635 = vmatpush.msra.mxu0 0.0
      %3636 = vmatpush.msra.mxu0 0.0
      %3637 = vmatpush.msra.mxu0 0.0
      %3638 = vmatpush.msra.mxu0 0.0
      %3639 = vmatpush.msra.mxu0 0.0
      %3640 = vmatpush.msra.mxu0 0.0
      %3641 = vmatpush.msra.mxu0 0.0
      %3642 = vmatpush.msra.mxu0 0.0
      %3643 = vmatpush.msra.mxu0 0.0
      %3644 = vmatpush.msra.mxu0 0.0
      %3645 = vmatpush.msra.mxu0 0.0
      %3646 = vmatpush.msra.mxu0 %v3597
      %3647 = vmatmul.f32.gmra.mxu0 %v3593
      %v3648 = vpop.f32.mrf.mxu0
      %v3649 = vadd.f32 0.0, %v3648
      %3650 = vdwg.mxu0
      %3651 = vmatpush.msra.mxu0 0.0
      %3652 = vmatpush.msra.mxu0 0.0
      %3653 = vmatpush.msra.mxu0 0.0
      %3654 = vmatpush.msra.mxu0 0.0
      %3655 = vmatpush.msra.mxu0 0.0
      %3656 = vmatpush.msra.mxu0 0.0
      %3657 = vmatpush.msra.mxu0 0.0
      %3658 = vmatpush.msra.mxu0 0.0
      %3659 = vmatpush.msra.mxu0 0.0
      %3660 = vmatpush.msra.mxu0 0.0
      %3661 = vmatpush.msra.mxu0 0.0
      %3662 = vmatpush.msra.mxu0 0.0
      %3663 = vmatpush.msra.mxu0 0.0
      %3664 = vmatpush.msra.mxu0 0.0
      %3665 = vmatpush.msra.mxu0 0.0
      %3666 = vmatpush.msra.mxu0 %v3599
      %3667 = vmatmul.f32.gmra.mxu0 %v3593
      %v3668 = vpop.f32.mrf.mxu0
      %v3669 = vadd.f32 0.0, %v3668
      %3670 = vdwg.mxu0
      %3671 = vmatpush.msra.mxu0 0.0
      %3672 = vmatpush.msra.mxu0 0.0
      %3673 = vmatpush.msra.mxu0 0.0
      %3674 = vmatpush.msra.mxu0 0.0
      %3675 = vmatpush.msra.mxu0 0.0
      %3676 = vmatpush.msra.mxu0 0.0
      %3677 = vmatpush.msra.mxu0 0.0
      %3678 = vmatpush.msra.mxu0 0.0
      %3679 = vmatpush.msra.mxu0 0.0
      %3680 = vmatpush.msra.mxu0 0.0
      %3681 = vmatpush.msra.mxu0 0.0
      %3682 = vmatpush.msra.mxu0 0.0
      %3683 = vmatpush.msra.mxu0 0.0
      %3684 = vmatpush.msra.mxu0 0.0
      %3685 = vmatpush.msra.mxu0 0.0
      %3686 = vmatpush.msra.mxu0 %v3601
      %3687 = vmatmul.f32.gmra.mxu0 %v3593
      %v3688 = vpop.f32.mrf.mxu0
      %v3689 = vadd.f32 0.0, %v3688
      %3690 = vdwg.mxu0
      %3691 = vmatpush.msra.mxu0 0.0
      %3692 = vmatpush.msra.mxu0 0.0
      %3693 = vmatpush.msra.mxu0 0.0
      %3694 = vmatpush.msra.mxu0 0.0
      %3695 = vmatpush.msra.mxu0 0.0
      %3696 = vmatpush.msra.mxu0 0.0
      %3697 = vmatpush.msra.mxu0 0.0
      %3698 = vmatpush.msra.mxu0 0.0
      %3699 = vmatpush.msra.mxu0 0.0
      %3700 = vmatpush.msra.mxu0 0.0
      %3701 = vmatpush.msra.mxu0 0.0
      %3702 = vmatpush.msra.mxu0 0.0
      %3703 = vmatpush.msra.mxu0 0.0
      %3704 = vmatpush.msra.mxu0 0.0
      %3705 = vmatpush.msra.mxu0 0.0
      %3706 = vmatpush.msra.mxu0 %v3603
      %3707 = vmatmul.f32.gmra.mxu0 %v3593
      %v3708 = vpop.f32.mrf.mxu0
      %v3709 = vadd.f32 0.0, %v3708
      %3710 = vdwg.mxu0
      %3711 = vmatpush.msra.mxu0 0.0
      %3712 = vmatpush.msra.mxu0 0.0
      %3713 = vmatpush.msra.mxu0 0.0
      %3714 = vmatpush.msra.mxu0 0.0
      %3715 = vmatpush.msra.mxu0 0.0
      %3716 = vmatpush.msra.mxu0 0.0
      %3717 = vmatpush.msra.mxu0 0.0
      %3718 = vmatpush.msra.mxu0 0.0
      %3719 = vmatpush.msra.mxu0 0.0
      %3720 = vmatpush.msra.mxu0 0.0
      %3721 = vmatpush.msra.mxu0 0.0
      %3722 = vmatpush.msra.mxu0 0.0
      %3723 = vmatpush.msra.mxu0 0.0
      %3724 = vmatpush.msra.mxu0 0.0
      %3725 = vmatpush.msra.mxu0 0.0
      %3726 = vmatpush.msra.mxu0 %v3605
      %3727 = vmatmul.f32.gmra.mxu0 %v3593
      %v3728 = vpop.f32.mrf.mxu0
      %v3729 = vadd.f32 0.0, %v3728
      %3730 = vdwg.mxu0
      %3731 = vmatpush.msra.mxu0 0.0
      %3732 = vmatpush.msra.mxu0 0.0
      %3733 = vmatpush.msra.mxu0 0.0
      %3734 = vmatpush.msra.mxu0 0.0
      %3735 = vmatpush.msra.mxu0 0.0
      %3736 = vmatpush.msra.mxu0 0.0
      %3737 = vmatpush.msra.mxu0 0.0
      %3738 = vmatpush.msra.mxu0 0.0
      %3739 = vmatpush.msra.mxu0 0.0
      %3740 = vmatpush.msra.mxu0 0.0
      %3741 = vmatpush.msra.mxu0 0.0
      %3742 = vmatpush.msra.mxu0 0.0
      %3743 = vmatpush.msra.mxu0 0.0
      %3744 = vmatpush.msra.mxu0 0.0
      %3745 = vmatpush.msra.mxu0 0.0
      %3746 = vmatpush.msra.mxu0 %v3607
      %3747 = vmatmul.f32.gmra.mxu0 %v3593
      %v3748 = vpop.f32.mrf.mxu0
      %v3749 = vadd.f32 0.0, %v3748
      %3750 = vdwg.mxu0
      %3751 = vmatpush.msra.mxu0 0.0
      %3752 = vmatpush.msra.mxu0 0.0
      %3753 = vmatpush.msra.mxu0 0.0
      %3754 = vmatpush.msra.mxu0 0.0
      %3755 = vmatpush.msra.mxu0 0.0
      %3756 = vmatpush.msra.mxu0 0.0
      %3757 = vmatpush.msra.mxu0 0.0
      %3758 = vmatpush.msra.mxu0 0.0
      %3759 = vmatpush.msra.mxu0 0.0
      %3760 = vmatpush.msra.mxu0 0.0
      %3761 = vmatpush.msra.mxu0 0.0
      %3762 = vmatpush.msra.mxu0 0.0
      %3763 = vmatpush.msra.mxu0 0.0
      %3764 = vmatpush.msra.mxu0 0.0
      %3765 = vmatpush.msra.mxu0 0.0
      %3766 = vmatpush.msra.mxu0 %v3609
      %3767 = vmatmul.f32.gmra.mxu0 %v3593
      %v3768 = vpop.f32.mrf.mxu0
      %v3769 = vadd.f32 0.0, %v3768
      %3770 = vdwg.mxu0
      %v3771 = vadd.f32 %v3529, %v3629
      %v3772 = vadd.f32 %v3530, %v3649
      %v3773 = vadd.f32 %v3531, %v3669
      %v3774 = vadd.f32 %v3532, %v3689
      %v3775 = vadd.f32 %v3533, %v3709
      %v3776 = vadd.f32 %v3534, %v3729
      %v3777 = vadd.f32 %v3535, %v3749
      %v3778 = vadd.f32 %v3536, %v3769
      %v3779 = vld [vmem:[%s2584] sm:$0xff]
      %v3780 = vld [vmem:[%s2584 + $0x8] sm:$0xff]
      %v3781 = vld [vmem:[%s2584 + $0x10] sm:$0xff]
      %v3782 = vld [vmem:[%s2584 + $0x18] sm:$0xff]
      %v3783 = vld [vmem:[%s2584 + $0x20] sm:$0xf]
      %v3784 = vmul.f32 %v3779, %v1538
      %v3785 = vmul.f32 %v3780, %v1540
      %v3786 = vmul.f32 %v3781, %v1542
      %v3787 = vmul.f32 %v3782, %v1544
      %v3788 = vmul.f32 %v3783, %v1536
      %s3789 = scalar_lea.vmem %s1, 112
      %v3790 = vld [vmem:[%s3789] sm:$0xff]
      %3796 = vst [vmem:[#allocation1] ss:$2 sm:$0xff] %v3784
      %s3797 = scalar_lea.vmem [#allocation1], 16
      %3798 = vst [vmem:[%s3797] ss:$2 sm:$0xff] %v3785
      %s3799 = scalar_lea.vmem [#allocation1], 32
      %3800 = vst [vmem:[%s3799] ss:$2 sm:$0xff] %v3786
      %s3801 = scalar_lea.vmem [#allocation1], 48
      %3802 = vst [vmem:[%s3801] ss:$2 sm:$0xff] %v3787
      %v3803 = vld.sshfl [vmem:[#allocation1] sm:$0xff pattern:$0x75316420]
      %v3804 = vld.sshfl [vmem:[#allocation1 + $0x8] sm:$0xff pattern:$0x75316420]
      %v3805 = vld.sshfl [vmem:[#allocation1 + $0x10] sm:$0xff pattern:$0x75316420]
      %v3806 = vld.sshfl [vmem:[#allocation1 + $0x18] sm:$0xff pattern:$0x75316420]
      %v3807 = vld.sshfl [vmem:[#allocation1 + $0x20] sm:$0xff pattern:$0x75316420]
      %v3808 = vld.sshfl [vmem:[#allocation1 + $0x28] sm:$0xff pattern:$0x75316420]
      %v3809 = vld.sshfl [vmem:[#allocation1 + $0x30] sm:$0xff pattern:$0x75316420]
      %v3810 = vld.sshfl [vmem:[#allocation1 + $0x38] sm:$0xff pattern:$0x75316420]
      %3811 = vst [vmem:[#allocation1] ss:$2 sm:$0xff] %v3788
      %v3812 = vld.sshfl [vmem:[#allocation1] sm:$0xff pattern:$0x75316420]
      %3813 = vrot.lane.b32.xlu0 %v3803, 94
      %v3814 = vpop.permute.xlu0 %3813
      %3815 = vrot.lane.b32.xlu0 %v3804, 94
      %v3816 = vpop.permute.xlu0 %3815
      %3817 = vrot.lane.b32.xlu0 %v3805, 94
      %v3818 = vpop.permute.xlu0 %3817
      %3819 = vrot.lane.b32.xlu0 %v3806, 94
      %v3820 = vpop.permute.xlu0 %3819
      %3821 = vrot.lane.b32.xlu0 %v3807, 94
      %v3822 = vpop.permute.xlu0 %3821
      %3823 = vrot.lane.b32.xlu0 %v3808, 94
      %v3824 = vpop.permute.xlu0 %3823
      %3825 = vrot.lane.b32.xlu0 %v3809, 94
      %v3826 = vpop.permute.xlu0 %3825
      %3827 = vrot.lane.b32.xlu0 %v3810, 94
      %v3828 = vpop.permute.xlu0 %3827
      %3829 = vrot.lane.b32.xlu0 %v3812, 94
      %v3830 = vpop.permute.xlu0 %3829
      %v3831 = vsel %vm1597, %v3814, %v3816
      %v3832 = vsel %vm1597, %v3816, %v3818
      %v3833 = vsel %vm1597, %v3818, %v3820
      %v3834 = vsel %vm1597, %v3820, %v3822
      %v3835 = vsel %vm1597, %v3822, %v3824
      %v3836 = vsel %vm1597, %v3824, %v3826
      %v3837 = vsel %vm1597, %v3826, %v3828
      %v3838 = vsel %vm1597, %v3828, %v3830
      %v3840 = vsel %vm336, %v3790, 0
      %v3842 = vsel %vm270, %v3831, 0
      %v3844 = vsel %vm270, %v3832, 0
      %v3846 = vsel %vm270, %v3833, 0
      %v3848 = vsel %vm270, %v3834, 0
      %v3850 = vsel %vm270, %v3835, 0
      %v3852 = vsel %vm270, %v3836, 0
      %v3854 = vsel %vm270, %v3837, 0
      %v3856 = vsel %vm270, %v3838, 0
      %3858 = vmatpush.msra.mxu0 0.0
      %3859 = vmatpush.msra.mxu0 0.0
      %3860 = vmatpush.msra.mxu0 0.0
      %3861 = vmatpush.msra.mxu0 0.0
      %3862 = vmatpush.msra.mxu0 0.0
      %3863 = vmatpush.msra.mxu0 0.0
      %3864 = vmatpush.msra.mxu0 0.0
      %3865 = vmatpush.msra.mxu0 0.0
      %3866 = vmatpush.msra.mxu0 0.0
      %3867 = vmatpush.msra.mxu0 0.0
      %3868 = vmatpush.msra.mxu0 0.0
      %3869 = vmatpush.msra.mxu0 0.0
      %3870 = vmatpush.msra.mxu0 0.0
      %3871 = vmatpush.msra.mxu0 0.0
      %3872 = vmatpush.msra.mxu0 0.0
      %3873 = vmatpush.msra.mxu0 %v3842
      %3874 = vmatmul.f32.gmra.mxu0 %v3840
      %v3875 = vpop.f32.mrf.mxu0
      %v3876 = vadd.f32 0.0, %v3875
      %3877 = vdwg.mxu0
      %3878 = vmatpush.msra.mxu0 0.0
      %3879 = vmatpush.msra.mxu0 0.0
      %3880 = vmatpush.msra.mxu0 0.0
      %3881 = vmatpush.msra.mxu0 0.0
      %3882 = vmatpush.msra.mxu0 0.0
      %3883 = vmatpush.msra.mxu0 0.0
      %3884 = vmatpush.msra.mxu0 0.0
      %3885 = vmatpush.msra.mxu0 0.0
      %3886 = vmatpush.msra.mxu0 0.0
      %3887 = vmatpush.msra.mxu0 0.0
      %3888 = vmatpush.msra.mxu0 0.0
      %3889 = vmatpush.msra.mxu0 0.0
      %3890 = vmatpush.msra.mxu0 0.0
      %3891 = vmatpush.msra.mxu0 0.0
      %3892 = vmatpush.msra.mxu0 0.0
      %3893 = vmatpush.msra.mxu0 %v3844
      %3894 = vmatmul.f32.gmra.mxu0 %v3840
      %v3895 = vpop.f32.mrf.mxu0
      %v3896 = vadd.f32 0.0, %v3895
      %3897 = vdwg.mxu0
      %3898 = vmatpush.msra.mxu0 0.0
      %3899 = vmatpush.msra.mxu0 0.0
      %3900 = vmatpush.msra.mxu0 0.0
      %3901 = vmatpush.msra.mxu0 0.0
      %3902 = vmatpush.msra.mxu0 0.0
      %3903 = vmatpush.msra.mxu0 0.0
      %3904 = vmatpush.msra.mxu0 0.0
      %3905 = vmatpush.msra.mxu0 0.0
      %3906 = vmatpush.msra.mxu0 0.0
      %3907 = vmatpush.msra.mxu0 0.0
      %3908 = vmatpush.msra.mxu0 0.0
      %3909 = vmatpush.msra.mxu0 0.0
      %3910 = vmatpush.msra.mxu0 0.0
      %3911 = vmatpush.msra.mxu0 0.0
      %3912 = vmatpush.msra.mxu0 0.0
      %3913 = vmatpush.msra.mxu0 %v3846
      %3914 = vmatmul.f32.gmra.mxu0 %v3840
      %v3915 = vpop.f32.mrf.mxu0
      %v3916 = vadd.f32 0.0, %v3915
      %3917 = vdwg.mxu0
      %3918 = vmatpush.msra.mxu0 0.0
      %3919 = vmatpush.msra.mxu0 0.0
      %3920 = vmatpush.msra.mxu0 0.0
      %3921 = vmatpush.msra.mxu0 0.0
      %3922 = vmatpush.msra.mxu0 0.0
      %3923 = vmatpush.msra.mxu0 0.0
      %3924 = vmatpush.msra.mxu0 0.0
      %3925 = vmatpush.msra.mxu0 0.0
      %3926 = vmatpush.msra.mxu0 0.0
      %3927 = vmatpush.msra.mxu0 0.0
      %3928 = vmatpush.msra.mxu0 0.0
      %3929 = vmatpush.msra.mxu0 0.0
      %3930 = vmatpush.msra.mxu0 0.0
      %3931 = vmatpush.msra.mxu0 0.0
      %3932 = vmatpush.msra.mxu0 0.0
      %3933 = vmatpush.msra.mxu0 %v3848
      %3934 = vmatmul.f32.gmra.mxu0 %v3840
      %v3935 = vpop.f32.mrf.mxu0
      %v3936 = vadd.f32 0.0, %v3935
      %3937 = vdwg.mxu0
      %3938 = vmatpush.msra.mxu0 0.0
      %3939 = vmatpush.msra.mxu0 0.0
      %3940 = vmatpush.msra.mxu0 0.0
      %3941 = vmatpush.msra.mxu0 0.0
      %3942 = vmatpush.msra.mxu0 0.0
      %3943 = vmatpush.msra.mxu0 0.0
      %3944 = vmatpush.msra.mxu0 0.0
      %3945 = vmatpush.msra.mxu0 0.0
      %3946 = vmatpush.msra.mxu0 0.0
      %3947 = vmatpush.msra.mxu0 0.0
      %3948 = vmatpush.msra.mxu0 0.0
      %3949 = vmatpush.msra.mxu0 0.0
      %3950 = vmatpush.msra.mxu0 0.0
      %3951 = vmatpush.msra.mxu0 0.0
      %3952 = vmatpush.msra.mxu0 0.0
      %3953 = vmatpush.msra.mxu0 %v3850
      %3954 = vmatmul.f32.gmra.mxu0 %v3840
      %v3955 = vpop.f32.mrf.mxu0
      %v3956 = vadd.f32 0.0, %v3955
      %3957 = vdwg.mxu0
      %3958 = vmatpush.msra.mxu0 0.0
      %3959 = vmatpush.msra.mxu0 0.0
      %3960 = vmatpush.msra.mxu0 0.0
      %3961 = vmatpush.msra.mxu0 0.0
      %3962 = vmatpush.msra.mxu0 0.0
      %3963 = vmatpush.msra.mxu0 0.0
      %3964 = vmatpush.msra.mxu0 0.0
      %3965 = vmatpush.msra.mxu0 0.0
      %3966 = vmatpush.msra.mxu0 0.0
      %3967 = vmatpush.msra.mxu0 0.0
      %3968 = vmatpush.msra.mxu0 0.0
      %3969 = vmatpush.msra.mxu0 0.0
      %3970 = vmatpush.msra.mxu0 0.0
      %3971 = vmatpush.msra.mxu0 0.0
      %3972 = vmatpush.msra.mxu0 0.0
      %3973 = vmatpush.msra.mxu0 %v3852
      %3974 = vmatmul.f32.gmra.mxu0 %v3840
      %v3975 = vpop.f32.mrf.mxu0
      %v3976 = vadd.f32 0.0, %v3975
      %3977 = vdwg.mxu0
      %3978 = vmatpush.msra.mxu0 0.0
      %3979 = vmatpush.msra.mxu0 0.0
      %3980 = vmatpush.msra.mxu0 0.0
      %3981 = vmatpush.msra.mxu0 0.0
      %3982 = vmatpush.msra.mxu0 0.0
      %3983 = vmatpush.msra.mxu0 0.0
      %3984 = vmatpush.msra.mxu0 0.0
      %3985 = vmatpush.msra.mxu0 0.0
      %3986 = vmatpush.msra.mxu0 0.0
      %3987 = vmatpush.msra.mxu0 0.0
      %3988 = vmatpush.msra.mxu0 0.0
      %3989 = vmatpush.msra.mxu0 0.0
      %3990 = vmatpush.msra.mxu0 0.0
      %3991 = vmatpush.msra.mxu0 0.0
      %3992 = vmatpush.msra.mxu0 0.0
      %3993 = vmatpush.msra.mxu0 %v3854
      %3994 = vmatmul.f32.gmra.mxu0 %v3840
      %v3995 = vpop.f32.mrf.mxu0
      %v3996 = vadd.f32 0.0, %v3995
      %3997 = vdwg.mxu0
      %3998 = vmatpush.msra.mxu0 0.0
      %3999 = vmatpush.msra.mxu0 0.0
      %4000 = vmatpush.msra.mxu0 0.0
      %4001 = vmatpush.msra.mxu0 0.0
      %4002 = vmatpush.msra.mxu0 0.0
      %4003 = vmatpush.msra.mxu0 0.0
      %4004 = vmatpush.msra.mxu0 0.0
      %4005 = vmatpush.msra.mxu0 0.0
      %4006 = vmatpush.msra.mxu0 0.0
      %4007 = vmatpush.msra.mxu0 0.0
      %4008 = vmatpush.msra.mxu0 0.0
      %4009 = vmatpush.msra.mxu0 0.0
      %4010 = vmatpush.msra.mxu0 0.0
      %4011 = vmatpush.msra.mxu0 0.0
      %4012 = vmatpush.msra.mxu0 0.0
      %4013 = vmatpush.msra.mxu0 %v3856
      %4014 = vmatmul.f32.gmra.mxu0 %v3840
      %v4015 = vpop.f32.mrf.mxu0
      %v4016 = vadd.f32 0.0, %v4015
      %4017 = vdwg.mxu0
      %v4018 = vadd.f32 %v3771, %v3876
      %v4019 = vadd.f32 %v3772, %v3896
      %v4020 = vadd.f32 %v3773, %v3916
      %v4021 = vadd.f32 %v3774, %v3936
      %v4022 = vadd.f32 %v3775, %v3956
      %v4023 = vadd.f32 %v3776, %v3976
      %v4024 = vadd.f32 %v3777, %v3996
      %v4025 = vadd.f32 %v3778, %v4016
      %v4026 = vld [vmem:[%s2584] sm:$0xff]
      %v4027 = vld [vmem:[%s2584 + $0x8] sm:$0xff]
      %v4028 = vld [vmem:[%s2584 + $0x10] sm:$0xff]
      %v4029 = vld [vmem:[%s2584 + $0x18] sm:$0xff]
      %v4030 = vld [vmem:[%s2584 + $0x20] sm:$0xf]
      %v4031 = vmul.f32 %v4026, %v1811
      %v4032 = vmul.f32 %v4027, %v1813
      %v4033 = vmul.f32 %v4028, %v1815
      %v4034 = vmul.f32 %v4029, %v1817
      %v4035 = vmul.f32 %v4030, %v1809
      %s4036 = scalar_lea.vmem %s1, 120
      %v4037 = vld [vmem:[%s4036] sm:$0xff]
      %4043 = vst [vmem:[#allocation1] ss:$2 sm:$0xff] %v4031
      %s4044 = scalar_lea.vmem [#allocation1], 16
      %4045 = vst [vmem:[%s4044] ss:$2 sm:$0xff] %v4032
      %s4046 = scalar_lea.vmem [#allocation1], 32
      %4047 = vst [vmem:[%s4046] ss:$2 sm:$0xff] %v4033
      %s4048 = scalar_lea.vmem [#allocation1], 48
      %4049 = vst [vmem:[%s4048] ss:$2 sm:$0xff] %v4034
      %v4050 = vld.sshfl [vmem:[#allocation1] sm:$0xff pattern:$0x75316420]
      %v4051 = vld.sshfl [vmem:[#allocation1 + $0x8] sm:$0xff pattern:$0x75316420]
      %v4052 = vld.sshfl [vmem:[#allocation1 + $0x10] sm:$0xff pattern:$0x75316420]
      %v4053 = vld.sshfl [vmem:[#allocation1 + $0x18] sm:$0xff pattern:$0x75316420]
      %v4054 = vld.sshfl [vmem:[#allocation1 + $0x20] sm:$0xff pattern:$0x75316420]
      %v4055 = vld.sshfl [vmem:[#allocation1 + $0x28] sm:$0xff pattern:$0x75316420]
      %v4056 = vld.sshfl [vmem:[#allocation1 + $0x30] sm:$0xff pattern:$0x75316420]
      %v4057 = vld.sshfl [vmem:[#allocation1 + $0x38] sm:$0xff pattern:$0x75316420]
      %4058 = vst [vmem:[#allocation1] ss:$2 sm:$0xff] %v4035
      %v4059 = vld.sshfl [vmem:[#allocation1] sm:$0xff pattern:$0x75316420]
      %4060 = vrot.lane.b32.xlu0 %v4050, 64
      %v4061 = vpop.permute.xlu0 %4060
      %4062 = vrot.lane.b32.xlu0 %v4051, 64
      %v4063 = vpop.permute.xlu0 %4062
      %4064 = vrot.lane.b32.xlu0 %v4052, 64
      %v4065 = vpop.permute.xlu0 %4064
      %4066 = vrot.lane.b32.xlu0 %v4053, 64
      %v4067 = vpop.permute.xlu0 %4066
      %4068 = vrot.lane.b32.xlu0 %v4054, 64
      %v4069 = vpop.permute.xlu0 %4068
      %4070 = vrot.lane.b32.xlu0 %v4055, 64
      %v4071 = vpop.permute.xlu0 %4070
      %4072 = vrot.lane.b32.xlu0 %v4056, 64
      %v4073 = vpop.permute.xlu0 %4072
      %4074 = vrot.lane.b32.xlu0 %v4057, 64
      %v4075 = vpop.permute.xlu0 %4074
      %4076 = vrot.lane.b32.xlu0 %v4059, 64
      %v4077 = vpop.permute.xlu0 %4076
      %v4078 = vsel %vm1810, %v4061, %v4063
      %v4079 = vsel %vm1810, %v4063, %v4065
      %v4080 = vsel %vm1810, %v4065, %v4067
      %v4081 = vsel %vm1810, %v4067, %v4069
      %v4082 = vsel %vm1810, %v4069, %v4071
      %v4083 = vsel %vm1810, %v4071, %v4073
      %v4084 = vsel %vm1810, %v4073, %v4075
      %v4085 = vsel %vm1810, %v4075, %v4077
      %v4087 = vsel %vm336, %v4037, 0
      %v4089 = vsel %vm270, %v4078, 0
      %v4091 = vsel %vm270, %v4079, 0
      %v4093 = vsel %vm270, %v4080, 0
      %v4095 = vsel %vm270, %v4081, 0
      %v4097 = vsel %vm270, %v4082, 0
      %v4099 = vsel %vm270, %v4083, 0
      %v4101 = vsel %vm270, %v4084, 0
      %v4103 = vsel %vm270, %v4085, 0
      %4105 = vmatpush.msra.mxu0 0.0
      %4106 = vmatpush.msra.mxu0 0.0
      %4107 = vmatpush.msra.mxu0 0.0
      %4108 = vmatpush.msra.mxu0 0.0
      %4109 = vmatpush.msra.mxu0 0.0
      %4110 = vmatpush.msra.mxu0 0.0
      %4111 = vmatpush.msra.mxu0 0.0
      %4112 = vmatpush.msra.mxu0 0.0
      %4113 = vmatpush.msra.mxu0 0.0
      %4114 = vmatpush.msra.mxu0 0.0
      %4115 = vmatpush.msra.mxu0 0.0
      %4116 = vmatpush.msra.mxu0 0.0
      %4117 = vmatpush.msra.mxu0 0.0
      %4118 = vmatpush.msra.mxu0 0.0
      %4119 = vmatpush.msra.mxu0 0.0
      %4120 = vmatpush.msra.mxu0 %v4089
      %4121 = vmatmul.f32.gmra.mxu0 %v4087
      %v4122 = vpop.f32.mrf.mxu0
      %v4123 = vadd.f32 0.0, %v4122
      %4124 = vdwg.mxu0
      %4125 = vmatpush.msra.mxu0 0.0
      %4126 = vmatpush.msra.mxu0 0.0
      %4127 = vmatpush.msra.mxu0 0.0
      %4128 = vmatpush.msra.mxu0 0.0
      %4129 = vmatpush.msra.mxu0 0.0
      %4130 = vmatpush.msra.mxu0 0.0
      %4131 = vmatpush.msra.mxu0 0.0
      %4132 = vmatpush.msra.mxu0 0.0
      %4133 = vmatpush.msra.mxu0 0.0
      %4134 = vmatpush.msra.mxu0 0.0
      %4135 = vmatpush.msra.mxu0 0.0
      %4136 = vmatpush.msra.mxu0 0.0
      %4137 = vmatpush.msra.mxu0 0.0
      %4138 = vmatpush.msra.mxu0 0.0
      %4139 = vmatpush.msra.mxu0 0.0
      %4140 = vmatpush.msra.mxu0 %v4091
      %4141 = vmatmul.f32.gmra.mxu0 %v4087
      %v4142 = vpop.f32.mrf.mxu0
      %v4143 = vadd.f32 0.0, %v4142
      %4144 = vdwg.mxu0
      %4145 = vmatpush.msra.mxu0 0.0
      %4146 = vmatpush.msra.mxu0 0.0
      %4147 = vmatpush.msra.mxu0 0.0
      %4148 = vmatpush.msra.mxu0 0.0
      %4149 = vmatpush.msra.mxu0 0.0
      %4150 = vmatpush.msra.mxu0 0.0
      %4151 = vmatpush.msra.mxu0 0.0
      %4152 = vmatpush.msra.mxu0 0.0
      %4153 = vmatpush.msra.mxu0 0.0
      %4154 = vmatpush.msra.mxu0 0.0
      %4155 = vmatpush.msra.mxu0 0.0
      %4156 = vmatpush.msra.mxu0 0.0
      %4157 = vmatpush.msra.mxu0 0.0
      %4158 = vmatpush.msra.mxu0 0.0
      %4159 = vmatpush.msra.mxu0 0.0
      %4160 = vmatpush.msra.mxu0 %v4093
      %4161 = vmatmul.f32.gmra.mxu0 %v4087
      %v4162 = vpop.f32.mrf.mxu0
      %v4163 = vadd.f32 0.0, %v4162
      %4164 = vdwg.mxu0
      %4165 = vmatpush.msra.mxu0 0.0
      %4166 = vmatpush.msra.mxu0 0.0
      %4167 = vmatpush.msra.mxu0 0.0
      %4168 = vmatpush.msra.mxu0 0.0
      %4169 = vmatpush.msra.mxu0 0.0
      %4170 = vmatpush.msra.mxu0 0.0
      %4171 = vmatpush.msra.mxu0 0.0
      %4172 = vmatpush.msra.mxu0 0.0
      %4173 = vmatpush.msra.mxu0 0.0
      %4174 = vmatpush.msra.mxu0 0.0
      %4175 = vmatpush.msra.mxu0 0.0
      %4176 = vmatpush.msra.mxu0 0.0
      %4177 = vmatpush.msra.mxu0 0.0
      %4178 = vmatpush.msra.mxu0 0.0
      %4179 = vmatpush.msra.mxu0 0.0
      %4180 = vmatpush.msra.mxu0 %v4095
      %4181 = vmatmul.f32.gmra.mxu0 %v4087
      %v4182 = vpop.f32.mrf.mxu0
      %v4183 = vadd.f32 0.0, %v4182
      %4184 = vdwg.mxu0
      %4185 = vmatpush.msra.mxu0 0.0
      %4186 = vmatpush.msra.mxu0 0.0
      %4187 = vmatpush.msra.mxu0 0.0
      %4188 = vmatpush.msra.mxu0 0.0
      %4189 = vmatpush.msra.mxu0 0.0
      %4190 = vmatpush.msra.mxu0 0.0
      %4191 = vmatpush.msra.mxu0 0.0
      %4192 = vmatpush.msra.mxu0 0.0
      %4193 = vmatpush.msra.mxu0 0.0
      %4194 = vmatpush.msra.mxu0 0.0
      %4195 = vmatpush.msra.mxu0 0.0
      %4196 = vmatpush.msra.mxu0 0.0
      %4197 = vmatpush.msra.mxu0 0.0
      %4198 = vmatpush.msra.mxu0 0.0
      %4199 = vmatpush.msra.mxu0 0.0
      %4200 = vmatpush.msra.mxu0 %v4097
      %4201 = vmatmul.f32.gmra.mxu0 %v4087
      %v4202 = vpop.f32.mrf.mxu0
      %v4203 = vadd.f32 0.0, %v4202
      %4204 = vdwg.mxu0
      %4205 = vmatpush.msra.mxu0 0.0
      %4206 = vmatpush.msra.mxu0 0.0
      %4207 = vmatpush.msra.mxu0 0.0
      %4208 = vmatpush.msra.mxu0 0.0
      %4209 = vmatpush.msra.mxu0 0.0
      %4210 = vmatpush.msra.mxu0 0.0
      %4211 = vmatpush.msra.mxu0 0.0
      %4212 = vmatpush.msra.mxu0 0.0
      %4213 = vmatpush.msra.mxu0 0.0
      %4214 = vmatpush.msra.mxu0 0.0
      %4215 = vmatpush.msra.mxu0 0.0
      %4216 = vmatpush.msra.mxu0 0.0
      %4217 = vmatpush.msra.mxu0 0.0
      %4218 = vmatpush.msra.mxu0 0.0
      %4219 = vmatpush.msra.mxu0 0.0
      %4220 = vmatpush.msra.mxu0 %v4099
      %4221 = vmatmul.f32.gmra.mxu0 %v4087
      %v4222 = vpop.f32.mrf.mxu0
      %v4223 = vadd.f32 0.0, %v4222
      %4224 = vdwg.mxu0
      %4225 = vmatpush.msra.mxu0 0.0
      %4226 = vmatpush.msra.mxu0 0.0
      %4227 = vmatpush.msra.mxu0 0.0
      %4228 = vmatpush.msra.mxu0 0.0
      %4229 = vmatpush.msra.mxu0 0.0
      %4230 = vmatpush.msra.mxu0 0.0
      %4231 = vmatpush.msra.mxu0 0.0
      %4232 = vmatpush.msra.mxu0 0.0
      %4233 = vmatpush.msra.mxu0 0.0
      %4234 = vmatpush.msra.mxu0 0.0
      %4235 = vmatpush.msra.mxu0 0.0
      %4236 = vmatpush.msra.mxu0 0.0
      %4237 = vmatpush.msra.mxu0 0.0
      %4238 = vmatpush.msra.mxu0 0.0
      %4239 = vmatpush.msra.mxu0 0.0
      %4240 = vmatpush.msra.mxu0 %v4101
      %4241 = vmatmul.f32.gmra.mxu0 %v4087
      %v4242 = vpop.f32.mrf.mxu0
      %v4243 = vadd.f32 0.0, %v4242
      %4244 = vdwg.mxu0
      %4245 = vmatpush.msra.mxu0 0.0
      %4246 = vmatpush.msra.mxu0 0.0
      %4247 = vmatpush.msra.mxu0 0.0
      %4248 = vmatpush.msra.mxu0 0.0
      %4249 = vmatpush.msra.mxu0 0.0
      %4250 = vmatpush.msra.mxu0 0.0
      %4251 = vmatpush.msra.mxu0 0.0
      %4252 = vmatpush.msra.mxu0 0.0
      %4253 = vmatpush.msra.mxu0 0.0
      %4254 = vmatpush.msra.mxu0 0.0
      %4255 = vmatpush.msra.mxu0 0.0
      %4256 = vmatpush.msra.mxu0 0.0
      %4257 = vmatpush.msra.mxu0 0.0
      %4258 = vmatpush.msra.mxu0 0.0
      %4259 = vmatpush.msra.mxu0 0.0
      %4260 = vmatpush.msra.mxu0 %v4103
      %4261 = vmatmul.f32.gmra.mxu0 %v4087
      %v4262 = vpop.f32.mrf.mxu0
      %v4263 = vadd.f32 0.0, %v4262
      %4264 = vdwg.mxu0
      %v4265 = vadd.f32 %v4018, %v4123
      %v4266 = vadd.f32 %v4019, %v4143
      %v4267 = vadd.f32 %v4020, %v4163
      %v4268 = vadd.f32 %v4021, %v4183
      %v4269 = vadd.f32 %v4022, %v4203
      %v4270 = vadd.f32 %v4023, %v4223
      %v4271 = vadd.f32 %v4024, %v4243
      %v4272 = vadd.f32 %v4025, %v4263
      %v4273 = vld [vmem:[%s2584] sm:$0xff]
      %v4274 = vld [vmem:[%s2584 + $0x8] sm:$0xff]
      %v4275 = vld [vmem:[%s2584 + $0x10] sm:$0xff]
      %v4276 = vld [vmem:[%s2584 + $0x18] sm:$0xff]
      %v4277 = vld [vmem:[%s2584 + $0x20] sm:$0xf]
      %s4278 = scalar_lea.vmem %s1, 128
      %v4279 = vld [vmem:[%s4278] sm:$0xff]
      %4285 = vst [vmem:[#allocation1] ss:$2 sm:$0xff] %v4273
      %s4286 = scalar_lea.vmem [#allocation1], 16
      %4287 = vst [vmem:[%s4286] ss:$2 sm:$0xff] %v4274
      %s4288 = scalar_lea.vmem [#allocation1], 32
      %4289 = vst [vmem:[%s4288] ss:$2 sm:$0xff] %v4275
      %s4290 = scalar_lea.vmem [#allocation1], 48
      %4291 = vst [vmem:[%s4290] ss:$2 sm:$0xff] %v4276
      %v4292 = vld.sshfl [vmem:[#allocation1] sm:$0xff pattern:$0x75316420]
      %v4293 = vld.sshfl [vmem:[#allocation1 + $0x8] sm:$0xff pattern:$0x75316420]
      %v4294 = vld.sshfl [vmem:[#allocation1 + $0x10] sm:$0xff pattern:$0x75316420]
      %v4295 = vld.sshfl [vmem:[#allocation1 + $0x18] sm:$0xff pattern:$0x75316420]
      %v4296 = vld.sshfl [vmem:[#allocation1 + $0x20] sm:$0xff pattern:$0x75316420]
      %v4297 = vld.sshfl [vmem:[#allocation1 + $0x28] sm:$0xff pattern:$0x75316420]
      %v4298 = vld.sshfl [vmem:[#allocation1 + $0x30] sm:$0xff pattern:$0x75316420]
      %v4299 = vld.sshfl [vmem:[#allocation1 + $0x38] sm:$0xff pattern:$0x75316420]
      %4300 = vst [vmem:[#allocation1] ss:$2 sm:$0xff] %v4277
      %v4301 = vld.sshfl [vmem:[#allocation1] sm:$0xff pattern:$0x75316420]
      %4302 = vrot.lane.b32.xlu0 %v4292, 63
      %v4303 = vpop.permute.xlu0 %4302
      %4304 = vrot.lane.b32.xlu0 %v4293, 63
      %v4305 = vpop.permute.xlu0 %4304
      %4306 = vrot.lane.b32.xlu0 %v4294, 63
      %v4307 = vpop.permute.xlu0 %4306
      %4308 = vrot.lane.b32.xlu0 %v4295, 63
      %v4309 = vpop.permute.xlu0 %4308
      %4310 = vrot.lane.b32.xlu0 %v4296, 63
      %v4311 = vpop.permute.xlu0 %4310
      %4312 = vrot.lane.b32.xlu0 %v4297, 63
      %v4313 = vpop.permute.xlu0 %4312
      %4314 = vrot.lane.b32.xlu0 %v4298, 63
      %v4315 = vpop.permute.xlu0 %4314
      %4316 = vrot.lane.b32.xlu0 %v4299, 63
      %v4317 = vpop.permute.xlu0 %4316
      %4318 = vrot.lane.b32.xlu0 %v4301, 63
      %v4319 = vpop.permute.xlu0 %4318
      %v4320 = vsel %vm2112, %v4303, %v4305
      %v4321 = vsel %vm2112, %v4305, %v4307
      %v4322 = vsel %vm2112, %v4307, %v4309
      %v4323 = vsel %vm2112, %v4309, %v4311
      %v4324 = vsel %vm2112, %v4311, %v4313
      %v4325 = vsel %vm2112, %v4313, %v4315
      %v4326 = vsel %vm2112, %v4315, %v4317
      %v4327 = vsel %vm2112, %v4317, %v4319
      %v4329 = vsel %vm336, %v4279, 0
      %v4331 = vsel %vm270, %v4320, 0
      %v4333 = vsel %vm270, %v4321, 0
      %v4335 = vsel %vm270, %v4322, 0
      %v4337 = vsel %vm270, %v4323, 0
      %v4339 = vsel %vm270, %v4324, 0
      %v4341 = vsel %vm270, %v4325, 0
      %v4343 = vsel %vm270, %v4326, 0
      %v4345 = vsel %vm270, %v4327, 0
      %4347 = vmatpush.msra.mxu0 0.0
      %4348 = vmatpush.msra.mxu0 0.0
      %4349 = vmatpush.msra.mxu0 0.0
      %4350 = vmatpush.msra.mxu0 0.0
      %4351 = vmatpush.msra.mxu0 0.0
      %4352 = vmatpush.msra.mxu0 0.0
      %4353 = vmatpush.msra.mxu0 0.0
      %4354 = vmatpush.msra.mxu0 0.0
      %4355 = vmatpush.msra.mxu0 0.0
      %4356 = vmatpush.msra.mxu0 0.0
      %4357 = vmatpush.msra.mxu0 0.0
      %4358 = vmatpush.msra.mxu0 0.0
      %4359 = vmatpush.msra.mxu0 0.0
      %4360 = vmatpush.msra.mxu0 0.0
      %4361 = vmatpush.msra.mxu0 0.0
      %4362 = vmatpush.msra.mxu0 %v4331
      %4363 = vmatmul.f32.gmra.mxu0 %v4329
      %v4364 = vpop.f32.mrf.mxu0
      %v4365 = vadd.f32 0.0, %v4364
      %4366 = vdwg.mxu0
      %4367 = vmatpush.msra.mxu0 0.0
      %4368 = vmatpush.msra.mxu0 0.0
      %4369 = vmatpush.msra.mxu0 0.0
      %4370 = vmatpush.msra.mxu0 0.0
      %4371 = vmatpush.msra.mxu0 0.0
      %4372 = vmatpush.msra.mxu0 0.0
      %4373 = vmatpush.msra.mxu0 0.0
      %4374 = vmatpush.msra.mxu0 0.0
      %4375 = vmatpush.msra.mxu0 0.0
      %4376 = vmatpush.msra.mxu0 0.0
      %4377 = vmatpush.msra.mxu0 0.0
      %4378 = vmatpush.msra.mxu0 0.0
      %4379 = vmatpush.msra.mxu0 0.0
      %4380 = vmatpush.msra.mxu0 0.0
      %4381 = vmatpush.msra.mxu0 0.0
      %4382 = vmatpush.msra.mxu0 %v4333
      %4383 = vmatmul.f32.gmra.mxu0 %v4329
      %v4384 = vpop.f32.mrf.mxu0
      %v4385 = vadd.f32 0.0, %v4384
      %4386 = vdwg.mxu0
      %4387 = vmatpush.msra.mxu0 0.0
      %4388 = vmatpush.msra.mxu0 0.0
      %4389 = vmatpush.msra.mxu0 0.0
      %4390 = vmatpush.msra.mxu0 0.0
      %4391 = vmatpush.msra.mxu0 0.0
      %4392 = vmatpush.msra.mxu0 0.0
      %4393 = vmatpush.msra.mxu0 0.0
      %4394 = vmatpush.msra.mxu0 0.0
      %4395 = vmatpush.msra.mxu0 0.0
      %4396 = vmatpush.msra.mxu0 0.0
      %4397 = vmatpush.msra.mxu0 0.0
      %4398 = vmatpush.msra.mxu0 0.0
      %4399 = vmatpush.msra.mxu0 0.0
      %4400 = vmatpush.msra.mxu0 0.0
      %4401 = vmatpush.msra.mxu0 0.0
      %4402 = vmatpush.msra.mxu0 %v4335
      %4403 = vmatmul.f32.gmra.mxu0 %v4329
      %v4404 = vpop.f32.mrf.mxu0
      %v4405 = vadd.f32 0.0, %v4404
      %4406 = vdwg.mxu0
      %4407 = vmatpush.msra.mxu0 0.0
      %4408 = vmatpush.msra.mxu0 0.0
      %4409 = vmatpush.msra.mxu0 0.0
      %4410 = vmatpush.msra.mxu0 0.0
      %4411 = vmatpush.msra.mxu0 0.0
      %4412 = vmatpush.msra.mxu0 0.0
      %4413 = vmatpush.msra.mxu0 0.0
      %4414 = vmatpush.msra.mxu0 0.0
      %4415 = vmatpush.msra.mxu0 0.0
      %4416 = vmatpush.msra.mxu0 0.0
      %4417 = vmatpush.msra.mxu0 0.0
      %4418 = vmatpush.msra.mxu0 0.0
      %4419 = vmatpush.msra.mxu0 0.0
      %4420 = vmatpush.msra.mxu0 0.0
      %4421 = vmatpush.msra.mxu0 0.0
      %4422 = vmatpush.msra.mxu0 %v4337
      %4423 = vmatmul.f32.gmra.mxu0 %v4329
      %v4424 = vpop.f32.mrf.mxu0
      %v4425 = vadd.f32 0.0, %v4424
      %4426 = vdwg.mxu0
      %4427 = vmatpush.msra.mxu0 0.0
      %4428 = vmatpush.msra.mxu0 0.0
      %4429 = vmatpush.msra.mxu0 0.0
      %4430 = vmatpush.msra.mxu0 0.0
      %4431 = vmatpush.msra.mxu0 0.0
      %4432 = vmatpush.msra.mxu0 0.0
      %4433 = vmatpush.msra.mxu0 0.0
      %4434 = vmatpush.msra.mxu0 0.0
      %4435 = vmatpush.msra.mxu0 0.0
      %4436 = vmatpush.msra.mxu0 0.0
      %4437 = vmatpush.msra.mxu0 0.0
      %4438 = vmatpush.msra.mxu0 0.0
      %4439 = vmatpush.msra.mxu0 0.0
      %4440 = vmatpush.msra.mxu0 0.0
      %4441 = vmatpush.msra.mxu0 0.0
      %4442 = vmatpush.msra.mxu0 %v4339
      %4443 = vmatmul.f32.gmra.mxu0 %v4329
      %v4444 = vpop.f32.mrf.mxu0
      %v4445 = vadd.f32 0.0, %v4444
      %4446 = vdwg.mxu0
      %4447 = vmatpush.msra.mxu0 0.0
      %4448 = vmatpush.msra.mxu0 0.0
      %4449 = vmatpush.msra.mxu0 0.0
      %4450 = vmatpush.msra.mxu0 0.0
      %4451 = vmatpush.msra.mxu0 0.0
      %4452 = vmatpush.msra.mxu0 0.0
      %4453 = vmatpush.msra.mxu0 0.0
      %4454 = vmatpush.msra.mxu0 0.0
      %4455 = vmatpush.msra.mxu0 0.0
      %4456 = vmatpush.msra.mxu0 0.0
      %4457 = vmatpush.msra.mxu0 0.0
      %4458 = vmatpush.msra.mxu0 0.0
      %4459 = vmatpush.msra.mxu0 0.0
      %4460 = vmatpush.msra.mxu0 0.0
      %4461 = vmatpush.msra.mxu0 0.0
      %4462 = vmatpush.msra.mxu0 %v4341
      %4463 = vmatmul.f32.gmra.mxu0 %v4329
      %v4464 = vpop.f32.mrf.mxu0
      %v4465 = vadd.f32 0.0, %v4464
      %4466 = vdwg.mxu0
      %4467 = vmatpush.msra.mxu0 0.0
      %4468 = vmatpush.msra.mxu0 0.0
      %4469 = vmatpush.msra.mxu0 0.0
      %4470 = vmatpush.msra.mxu0 0.0
      %4471 = vmatpush.msra.mxu0 0.0
      %4472 = vmatpush.msra.mxu0 0.0
      %4473 = vmatpush.msra.mxu0 0.0
      %4474 = vmatpush.msra.mxu0 0.0
      %4475 = vmatpush.msra.mxu0 0.0
      %4476 = vmatpush.msra.mxu0 0.0
      %4477 = vmatpush.msra.mxu0 0.0
      %4478 = vmatpush.msra.mxu0 0.0
      %4479 = vmatpush.msra.mxu0 0.0
      %4480 = vmatpush.msra.mxu0 0.0
      %4481 = vmatpush.msra.mxu0 0.0
      %4482 = vmatpush.msra.mxu0 %v4343
      %4483 = vmatmul.f32.gmra.mxu0 %v4329
      %v4484 = vpop.f32.mrf.mxu0
      %v4485 = vadd.f32 0.0, %v4484
      %4486 = vdwg.mxu0
      %4487 = vmatpush.msra.mxu0 0.0
      %4488 = vmatpush.msra.mxu0 0.0
      %4489 = vmatpush.msra.mxu0 0.0
      %4490 = vmatpush.msra.mxu0 0.0
      %4491 = vmatpush.msra.mxu0 0.0
      %4492 = vmatpush.msra.mxu0 0.0
      %4493 = vmatpush.msra.mxu0 0.0
      %4494 = vmatpush.msra.mxu0 0.0
      %4495 = vmatpush.msra.mxu0 0.0
      %4496 = vmatpush.msra.mxu0 0.0
      %4497 = vmatpush.msra.mxu0 0.0
      %4498 = vmatpush.msra.mxu0 0.0
      %4499 = vmatpush.msra.mxu0 0.0
      %4500 = vmatpush.msra.mxu0 0.0
      %4501 = vmatpush.msra.mxu0 0.0
      %4502 = vmatpush.msra.mxu0 %v4345
      %4503 = vmatmul.f32.gmra.mxu0 %v4329
      %v4504 = vpop.f32.mrf.mxu0
      %v4505 = vadd.f32 0.0, %v4504
      %4506 = vdwg.mxu0
      %v4507 = vadd.f32 %v4265, %v4365
      %v4508 = vadd.f32 %v4266, %v4385
      %v4509 = vadd.f32 %v4267, %v4405
      %v4510 = vadd.f32 %v4268, %v4425
      %v4511 = vadd.f32 %v4269, %v4445
      %v4512 = vadd.f32 %v4270, %v4465
      %v4513 = vadd.f32 %v4271, %v4485
      %v4514 = vadd.f32 %v4272, %v4505
      %v4515 = vld [vmem:[%s2584] sm:$0xff]
      %v4516 = vld [vmem:[%s2584 + $0x8] sm:$0xff]
      %v4517 = vld [vmem:[%s2584 + $0x10] sm:$0xff]
      %v4518 = vld [vmem:[%s2584 + $0x18] sm:$0xff]
      %v4519 = vld [vmem:[%s2584 + $0x20] sm:$0xf]
      %v4520 = vmul.f32 %v4515, %v2326
      %v4521 = vmul.f32 %v4516, %v2328
      %v4522 = vmul.f32 %v4517, %v2330
      %v4523 = vmul.f32 %v4518, %v2332
      %v4524 = vmul.f32 %v4519, %v2324
      %s4525 = scalar_lea.vmem %s1, 136
      %v4526 = vld [vmem:[%s4525] sm:$0xff]
      %4532 = vst [vmem:[#allocation1] ss:$2 sm:$0xff] %v4520
      %s4533 = scalar_lea.vmem [#allocation1], 16
      %4534 = vst [vmem:[%s4533] ss:$2 sm:$0xff] %v4521
      %s4535 = scalar_lea.vmem [#allocation1], 32
      %4536 = vst [vmem:[%s4535] ss:$2 sm:$0xff] %v4522
      %s4537 = scalar_lea.vmem [#allocation1], 48
      %4538 = vst [vmem:[%s4537] ss:$2 sm:$0xff] %v4523
      %v4539 = vld.sshfl [vmem:[#allocation1] sm:$0xff pattern:$0x75316420]
      %v4540 = vld.sshfl [vmem:[#allocation1 + $0x8] sm:$0xff pattern:$0x75316420]
      %v4541 = vld.sshfl [vmem:[#allocation1 + $0x10] sm:$0xff pattern:$0x75316420]
      %v4542 = vld.sshfl [vmem:[#allocation1 + $0x18] sm:$0xff pattern:$0x75316420]
      %v4543 = vld.sshfl [vmem:[#allocation1 + $0x20] sm:$0xff pattern:$0x75316420]
      %v4544 = vld.sshfl [vmem:[#allocation1 + $0x28] sm:$0xff pattern:$0x75316420]
      %v4545 = vld.sshfl [vmem:[#allocation1 + $0x30] sm:$0xff pattern:$0x75316420]
      %v4546 = vld.sshfl [vmem:[#allocation1 + $0x38] sm:$0xff pattern:$0x75316420]
      %4547 = vst [vmem:[#allocation1] ss:$2 sm:$0xff] %v4524
      %v4548 = vld.sshfl [vmem:[#allocation1] sm:$0xff pattern:$0x75316420]
      %4549 = vrot.lane.b32.xlu0 %v4539, 62
      %v4550 = vpop.permute.xlu0 %4549
      %4551 = vrot.lane.b32.xlu0 %v4540, 62
      %v4552 = vpop.permute.xlu0 %4551
      %4553 = vrot.lane.b32.xlu0 %v4541, 62
      %v4554 = vpop.permute.xlu0 %4553
      %4555 = vrot.lane.b32.xlu0 %v4542, 62
      %v4556 = vpop.permute.xlu0 %4555
      %4557 = vrot.lane.b32.xlu0 %v4543, 62
      %v4558 = vpop.permute.xlu0 %4557
      %4559 = vrot.lane.b32.xlu0 %v4544, 62
      %v4560 = vpop.permute.xlu0 %4559
      %4561 = vrot.lane.b32.xlu0 %v4545, 62
      %v4562 = vpop.permute.xlu0 %4561
      %4563 = vrot.lane.b32.xlu0 %v4546, 62
      %v4564 = vpop.permute.xlu0 %4563
      %4565 = vrot.lane.b32.xlu0 %v4548, 62
      %v4566 = vpop.permute.xlu0 %4565
      %v4567 = vsel %vm2385, %v4550, %v4552
      %v4568 = vsel %vm2385, %v4552, %v4554
      %v4569 = vsel %vm2385, %v4554, %v4556
      %v4570 = vsel %vm2385, %v4556, %v4558
      %v4571 = vsel %vm2385, %v4558, %v4560
      %v4572 = vsel %vm2385, %v4560, %v4562
      %v4573 = vsel %vm2385, %v4562, %v4564
      %v4574 = vsel %vm2385, %v4564, %v4566
      %v4576 = vsel %vm336, %v4526, 0
      %v4578 = vsel %vm270, %v4567, 0
      %v4580 = vsel %vm270, %v4568, 0
      %v4582 = vsel %vm270, %v4569, 0
      %v4584 = vsel %vm270, %v4570, 0
      %v4586 = vsel %vm270, %v4571, 0
      %v4588 = vsel %vm270, %v4572, 0
      %v4590 = vsel %vm270, %v4573, 0
      %v4592 = vsel %vm270, %v4574, 0
      %4594 = vmatpush.msra.mxu0 0.0
      %4595 = vmatpush.msra.mxu0 0.0
      %4596 = vmatpush.msra.mxu0 0.0
      %4597 = vmatpush.msra.mxu0 0.0
      %4598 = vmatpush.msra.mxu0 0.0
      %4599 = vmatpush.msra.mxu0 0.0
      %4600 = vmatpush.msra.mxu0 0.0
      %4601 = vmatpush.msra.mxu0 0.0
      %4602 = vmatpush.msra.mxu0 0.0
      %4603 = vmatpush.msra.mxu0 0.0
      %4604 = vmatpush.msra.mxu0 0.0
      %4605 = vmatpush.msra.mxu0 0.0
      %4606 = vmatpush.msra.mxu0 0.0
      %4607 = vmatpush.msra.mxu0 0.0
      %4608 = vmatpush.msra.mxu0 0.0
      %4609 = vmatpush.msra.mxu0 %v4578
      %4610 = vmatmul.f32.gmra.mxu0 %v4576
      %v4611 = vpop.f32.mrf.mxu0
      %v4612 = vadd.f32 0.0, %v4611
      %4613 = vdwg.mxu0
      %4614 = vmatpush.msra.mxu0 0.0
      %4615 = vmatpush.msra.mxu0 0.0
      %4616 = vmatpush.msra.mxu0 0.0
      %4617 = vmatpush.msra.mxu0 0.0
      %4618 = vmatpush.msra.mxu0 0.0
      %4619 = vmatpush.msra.mxu0 0.0
      %4620 = vmatpush.msra.mxu0 0.0
      %4621 = vmatpush.msra.mxu0 0.0
      %4622 = vmatpush.msra.mxu0 0.0
      %4623 = vmatpush.msra.mxu0 0.0
      %4624 = vmatpush.msra.mxu0 0.0
      %4625 = vmatpush.msra.mxu0 0.0
      %4626 = vmatpush.msra.mxu0 0.0
      %4627 = vmatpush.msra.mxu0 0.0
      %4628 = vmatpush.msra.mxu0 0.0
      %4629 = vmatpush.msra.mxu0 %v4580
      %4630 = vmatmul.f32.gmra.mxu0 %v4576
      %v4631 = vpop.f32.mrf.mxu0
      %v4632 = vadd.f32 0.0, %v4631
      %4633 = vdwg.mxu0
      %4634 = vmatpush.msra.mxu0 0.0
      %4635 = vmatpush.msra.mxu0 0.0
      %4636 = vmatpush.msra.mxu0 0.0
      %4637 = vmatpush.msra.mxu0 0.0
      %4638 = vmatpush.msra.mxu0 0.0
      %4639 = vmatpush.msra.mxu0 0.0
      %4640 = vmatpush.msra.mxu0 0.0
      %4641 = vmatpush.msra.mxu0 0.0
      %4642 = vmatpush.msra.mxu0 0.0
      %4643 = vmatpush.msra.mxu0 0.0
      %4644 = vmatpush.msra.mxu0 0.0
      %4645 = vmatpush.msra.mxu0 0.0
      %4646 = vmatpush.msra.mxu0 0.0
      %4647 = vmatpush.msra.mxu0 0.0
      %4648 = vmatpush.msra.mxu0 0.0
      %4649 = vmatpush.msra.mxu0 %v4582
      %4650 = vmatmul.f32.gmra.mxu0 %v4576
      %v4651 = vpop.f32.mrf.mxu0
      %v4652 = vadd.f32 0.0, %v4651
      %4653 = vdwg.mxu0
      %4654 = vmatpush.msra.mxu0 0.0
      %4655 = vmatpush.msra.mxu0 0.0
      %4656 = vmatpush.msra.mxu0 0.0
      %4657 = vmatpush.msra.mxu0 0.0
      %4658 = vmatpush.msra.mxu0 0.0
      %4659 = vmatpush.msra.mxu0 0.0
      %4660 = vmatpush.msra.mxu0 0.0
      %4661 = vmatpush.msra.mxu0 0.0
      %4662 = vmatpush.msra.mxu0 0.0
      %4663 = vmatpush.msra.mxu0 0.0
      %4664 = vmatpush.msra.mxu0 0.0
      %4665 = vmatpush.msra.mxu0 0.0
      %4666 = vmatpush.msra.mxu0 0.0
      %4667 = vmatpush.msra.mxu0 0.0
      %4668 = vmatpush.msra.mxu0 0.0
      %4669 = vmatpush.msra.mxu0 %v4584
      %4670 = vmatmul.f32.gmra.mxu0 %v4576
      %v4671 = vpop.f32.mrf.mxu0
      %v4672 = vadd.f32 0.0, %v4671
      %4673 = vdwg.mxu0
      %4674 = vmatpush.msra.mxu0 0.0
      %4675 = vmatpush.msra.mxu0 0.0
      %4676 = vmatpush.msra.mxu0 0.0
      %4677 = vmatpush.msra.mxu0 0.0
      %4678 = vmatpush.msra.mxu0 0.0
      %4679 = vmatpush.msra.mxu0 0.0
      %4680 = vmatpush.msra.mxu0 0.0
      %4681 = vmatpush.msra.mxu0 0.0
      %4682 = vmatpush.msra.mxu0 0.0
      %4683 = vmatpush.msra.mxu0 0.0
      %4684 = vmatpush.msra.mxu0 0.0
      %4685 = vmatpush.msra.mxu0 0.0
      %4686 = vmatpush.msra.mxu0 0.0
      %4687 = vmatpush.msra.mxu0 0.0
      %4688 = vmatpush.msra.mxu0 0.0
      %4689 = vmatpush.msra.mxu0 %v4586
      %4690 = vmatmul.f32.gmra.mxu0 %v4576
      %v4691 = vpop.f32.mrf.mxu0
      %v4692 = vadd.f32 0.0, %v4691
      %4693 = vdwg.mxu0
      %4694 = vmatpush.msra.mxu0 0.0
      %4695 = vmatpush.msra.mxu0 0.0
      %4696 = vmatpush.msra.mxu0 0.0
      %4697 = vmatpush.msra.mxu0 0.0
      %4698 = vmatpush.msra.mxu0 0.0
      %4699 = vmatpush.msra.mxu0 0.0
      %4700 = vmatpush.msra.mxu0 0.0
      %4701 = vmatpush.msra.mxu0 0.0
      %4702 = vmatpush.msra.mxu0 0.0
      %4703 = vmatpush.msra.mxu0 0.0
      %4704 = vmatpush.msra.mxu0 0.0
      %4705 = vmatpush.msra.mxu0 0.0
      %4706 = vmatpush.msra.mxu0 0.0
      %4707 = vmatpush.msra.mxu0 0.0
      %4708 = vmatpush.msra.mxu0 0.0
      %4709 = vmatpush.msra.mxu0 %v4588
      %4710 = vmatmul.f32.gmra.mxu0 %v4576
      %v4711 = vpop.f32.mrf.mxu0
      %v4712 = vadd.f32 0.0, %v4711
      %4713 = vdwg.mxu0
      %4714 = vmatpush.msra.mxu0 0.0
      %4715 = vmatpush.msra.mxu0 0.0
      %4716 = vmatpush.msra.mxu0 0.0
      %4717 = vmatpush.msra.mxu0 0.0
      %4718 = vmatpush.msra.mxu0 0.0
      %4719 = vmatpush.msra.mxu0 0.0
      %4720 = vmatpush.msra.mxu0 0.0
      %4721 = vmatpush.msra.mxu0 0.0
      %4722 = vmatpush.msra.mxu0 0.0
      %4723 = vmatpush.msra.mxu0 0.0
      %4724 = vmatpush.msra.mxu0 0.0
      %4725 = vmatpush.msra.mxu0 0.0
      %4726 = vmatpush.msra.mxu0 0.0
      %4727 = vmatpush.msra.mxu0 0.0
      %4728 = vmatpush.msra.mxu0 0.0
      %4729 = vmatpush.msra.mxu0 %v4590
      %4730 = vmatmul.f32.gmra.mxu0 %v4576
      %v4731 = vpop.f32.mrf.mxu0
      %v4732 = vadd.f32 0.0, %v4731
      %4733 = vdwg.mxu0
      %4734 = vmatpush.msra.mxu0 0.0
      %4735 = vmatpush.msra.mxu0 0.0
      %4736 = vmatpush.msra.mxu0 0.0
      %4737 = vmatpush.msra.mxu0 0.0
      %4738 = vmatpush.msra.mxu0 0.0
      %4739 = vmatpush.msra.mxu0 0.0
      %4740 = vmatpush.msra.mxu0 0.0
      %4741 = vmatpush.msra.mxu0 0.0
      %4742 = vmatpush.msra.mxu0 0.0
      %4743 = vmatpush.msra.mxu0 0.0
      %4744 = vmatpush.msra.mxu0 0.0
      %4745 = vmatpush.msra.mxu0 0.0
      %4746 = vmatpush.msra.mxu0 0.0
      %4747 = vmatpush.msra.mxu0 0.0
      %4748 = vmatpush.msra.mxu0 0.0
      %4749 = vmatpush.msra.mxu0 %v4592
      %4750 = vmatmul.f32.gmra.mxu0 %v4576
      %v4751 = vpop.f32.mrf.mxu0
      %v4752 = vadd.f32 0.0, %v4751
      %4753 = vdwg.mxu0
      %v4754 = vadd.f32 %v4507, %v4612
      %v4755 = vadd.f32 %v4508, %v4632
      %v4756 = vadd.f32 %v4509, %v4652
      %v4757 = vadd.f32 %v4510, %v4672
      %v4758 = vadd.f32 %v4511, %v4692
      %v4759 = vadd.f32 %v4512, %v4712
      %v4760 = vadd.f32 %v4513, %v4732
      %v4761 = vadd.f32 %v4514, %v4752
      %s4762 = sadd.s32 %s21, 2
      %s4763 = smul.u32 %s4762, 9
      %s4764 = smul.addr %s4763, 4
      %s4765 = scalar_lea.vmem %s237, %s4764
      %v4766 = vld [vmem:[%s4765] sm:$0xff]
      %v4767 = vld [vmem:[%s4765 + $0x8] sm:$0xff]
      %v4768 = vld [vmem:[%s4765 + $0x10] sm:$0xff]
      %v4769 = vld [vmem:[%s4765 + $0x18] sm:$0xff]
      %v4770 = vmul.f32 %v4766, %v271
      %v4771 = vmul.f32 %v4767, %v272
      %v4772 = vmul.f32 %v4768, %v273
      %v4773 = vmul.f32 %v4769, %v274
      %s4774 = scalar_lea.vmem %s1, 144
      %v4775 = vld [vmem:[%s4774] sm:$0xff]
      %4780 = vst [vmem:[#allocation1] ss:$2 sm:$0xff] %v4770
      %s4781 = scalar_lea.vmem [#allocation1], 16
      %4782 = vst [vmem:[%s4781] ss:$2 sm:$0xff] %v4771
      %s4783 = scalar_lea.vmem [#allocation1], 32
      %4784 = vst [vmem:[%s4783] ss:$2 sm:$0xff] %v4772
      %s4785 = scalar_lea.vmem [#allocation1], 48
      %4786 = vst [vmem:[%s4785] ss:$2 sm:$0xff] %v4773
      %v4787 = vld.sshfl [vmem:[#allocation1] sm:$0xff pattern:$0x75316420]
      %v4788 = vld.sshfl [vmem:[#allocation1 + $0x8] sm:$0xff pattern:$0x75316420]
      %v4789 = vld.sshfl [vmem:[#allocation1 + $0x10] sm:$0xff pattern:$0x75316420]
      %v4790 = vld.sshfl [vmem:[#allocation1 + $0x18] sm:$0xff pattern:$0x75316420]
      %v4791 = vld.sshfl [vmem:[#allocation1 + $0x20] sm:$0xff pattern:$0x75316420]
      %v4792 = vld.sshfl [vmem:[#allocation1 + $0x28] sm:$0xff pattern:$0x75316420]
      %v4793 = vld.sshfl [vmem:[#allocation1 + $0x30] sm:$0xff pattern:$0x75316420]
      %v4794 = vld.sshfl [vmem:[#allocation1 + $0x38] sm:$0xff pattern:$0x75316420]
      %v4796 = vsel %vm336, %v4775, 0
      %v4798 = vsel %vm270, %v4787, 0
      %v4800 = vsel %vm270, %v4788, 0
      %v4802 = vsel %vm270, %v4789, 0
      %v4804 = vsel %vm270, %v4790, 0
      %v4806 = vsel %vm270, %v4791, 0
      %v4808 = vsel %vm270, %v4792, 0
      %v4810 = vsel %vm270, %v4793, 0
      %v4812 = vsel %vm270, %v4794, 0
      %4814 = vmatpush.msra.mxu0 0.0
      %4815 = vmatpush.msra.mxu0 0.0
      %4816 = vmatpush.msra.mxu0 0.0
      %4817 = vmatpush.msra.mxu0 0.0
      %4818 = vmatpush.msra.mxu0 0.0
      %4819 = vmatpush.msra.mxu0 0.0
      %4820 = vmatpush.msra.mxu0 0.0
      %4821 = vmatpush.msra.mxu0 0.0
      %4822 = vmatpush.msra.mxu0 0.0
      %4823 = vmatpush.msra.mxu0 0.0
      %4824 = vmatpush.msra.mxu0 0.0
      %4825 = vmatpush.msra.mxu0 0.0
      %4826 = vmatpush.msra.mxu0 0.0
      %4827 = vmatpush.msra.mxu0 0.0
      %4828 = vmatpush.msra.mxu0 0.0
      %4829 = vmatpush.msra.mxu0 %v4798
      %4830 = vmatmul.f32.gmra.mxu0 %v4796
      %v4831 = vpop.f32.mrf.mxu0
      %v4832 = vadd.f32 0.0, %v4831
      %4833 = vdwg.mxu0
      %4834 = vmatpush.msra.mxu0 0.0
      %4835 = vmatpush.msra.mxu0 0.0
      %4836 = vmatpush.msra.mxu0 0.0
      %4837 = vmatpush.msra.mxu0 0.0
      %4838 = vmatpush.msra.mxu0 0.0
      %4839 = vmatpush.msra.mxu0 0.0
      %4840 = vmatpush.msra.mxu0 0.0
      %4841 = vmatpush.msra.mxu0 0.0
      %4842 = vmatpush.msra.mxu0 0.0
      %4843 = vmatpush.msra.mxu0 0.0
      %4844 = vmatpush.msra.mxu0 0.0
      %4845 = vmatpush.msra.mxu0 0.0
      %4846 = vmatpush.msra.mxu0 0.0
      %4847 = vmatpush.msra.mxu0 0.0
      %4848 = vmatpush.msra.mxu0 0.0
      %4849 = vmatpush.msra.mxu0 %v4800
      %4850 = vmatmul.f32.gmra.mxu0 %v4796
      %v4851 = vpop.f32.mrf.mxu0
      %v4852 = vadd.f32 0.0, %v4851
      %4853 = vdwg.mxu0
      %4854 = vmatpush.msra.mxu0 0.0
      %4855 = vmatpush.msra.mxu0 0.0
      %4856 = vmatpush.msra.mxu0 0.0
      %4857 = vmatpush.msra.mxu0 0.0
      %4858 = vmatpush.msra.mxu0 0.0
      %4859 = vmatpush.msra.mxu0 0.0
      %4860 = vmatpush.msra.mxu0 0.0
      %4861 = vmatpush.msra.mxu0 0.0
      %4862 = vmatpush.msra.mxu0 0.0
      %4863 = vmatpush.msra.mxu0 0.0
      %4864 = vmatpush.msra.mxu0 0.0
      %4865 = vmatpush.msra.mxu0 0.0
      %4866 = vmatpush.msra.mxu0 0.0
      %4867 = vmatpush.msra.mxu0 0.0
      %4868 = vmatpush.msra.mxu0 0.0
      %4869 = vmatpush.msra.mxu0 %v4802
      %4870 = vmatmul.f32.gmra.mxu0 %v4796
      %v4871 = vpop.f32.mrf.mxu0
      %v4872 = vadd.f32 0.0, %v4871
      %4873 = vdwg.mxu0
      %4874 = vmatpush.msra.mxu0 0.0
      %4875 = vmatpush.msra.mxu0 0.0
      %4876 = vmatpush.msra.mxu0 0.0
      %4877 = vmatpush.msra.mxu0 0.0
      %4878 = vmatpush.msra.mxu0 0.0
      %4879 = vmatpush.msra.mxu0 0.0
      %4880 = vmatpush.msra.mxu0 0.0
      %4881 = vmatpush.msra.mxu0 0.0
      %4882 = vmatpush.msra.mxu0 0.0
      %4883 = vmatpush.msra.mxu0 0.0
      %4884 = vmatpush.msra.mxu0 0.0
      %4885 = vmatpush.msra.mxu0 0.0
      %4886 = vmatpush.msra.mxu0 0.0
      %4887 = vmatpush.msra.mxu0 0.0
      %4888 = vmatpush.msra.mxu0 0.0
      %4889 = vmatpush.msra.mxu0 %v4804
      %4890 = vmatmul.f32.gmra.mxu0 %v4796
      %v4891 = vpop.f32.mrf.mxu0
      %v4892 = vadd.f32 0.0, %v4891
      %4893 = vdwg.mxu0
      %4894 = vmatpush.msra.mxu0 0.0
      %4895 = vmatpush.msra.mxu0 0.0
      %4896 = vmatpush.msra.mxu0 0.0
      %4897 = vmatpush.msra.mxu0 0.0
      %4898 = vmatpush.msra.mxu0 0.0
      %4899 = vmatpush.msra.mxu0 0.0
      %4900 = vmatpush.msra.mxu0 0.0
      %4901 = vmatpush.msra.mxu0 0.0
      %4902 = vmatpush.msra.mxu0 0.0
      %4903 = vmatpush.msra.mxu0 0.0
      %4904 = vmatpush.msra.mxu0 0.0
      %4905 = vmatpush.msra.mxu0 0.0
      %4906 = vmatpush.msra.mxu0 0.0
      %4907 = vmatpush.msra.mxu0 0.0
      %4908 = vmatpush.msra.mxu0 0.0
      %4909 = vmatpush.msra.mxu0 %v4806
      %4910 = vmatmul.f32.gmra.mxu0 %v4796
      %v4911 = vpop.f32.mrf.mxu0
      %v4912 = vadd.f32 0.0, %v4911
      %4913 = vdwg.mxu0
      %4914 = vmatpush.msra.mxu0 0.0
      %4915 = vmatpush.msra.mxu0 0.0
      %4916 = vmatpush.msra.mxu0 0.0
      %4917 = vmatpush.msra.mxu0 0.0
      %4918 = vmatpush.msra.mxu0 0.0
      %4919 = vmatpush.msra.mxu0 0.0
      %4920 = vmatpush.msra.mxu0 0.0
      %4921 = vmatpush.msra.mxu0 0.0
      %4922 = vmatpush.msra.mxu0 0.0
      %4923 = vmatpush.msra.mxu0 0.0
      %4924 = vmatpush.msra.mxu0 0.0
      %4925 = vmatpush.msra.mxu0 0.0
      %4926 = vmatpush.msra.mxu0 0.0
      %4927 = vmatpush.msra.mxu0 0.0
      %4928 = vmatpush.msra.mxu0 0.0
      %4929 = vmatpush.msra.mxu0 %v4808
      %4930 = vmatmul.f32.gmra.mxu0 %v4796
      %v4931 = vpop.f32.mrf.mxu0
      %v4932 = vadd.f32 0.0, %v4931
      %4933 = vdwg.mxu0
      %4934 = vmatpush.msra.mxu0 0.0
      %4935 = vmatpush.msra.mxu0 0.0
      %4936 = vmatpush.msra.mxu0 0.0
      %4937 = vmatpush.msra.mxu0 0.0
      %4938 = vmatpush.msra.mxu0 0.0
      %4939 = vmatpush.msra.mxu0 0.0
      %4940 = vmatpush.msra.mxu0 0.0
      %4941 = vmatpush.msra.mxu0 0.0
      %4942 = vmatpush.msra.mxu0 0.0
      %4943 = vmatpush.msra.mxu0 0.0
      %4944 = vmatpush.msra.mxu0 0.0
      %4945 = vmatpush.msra.mxu0 0.0
      %4946 = vmatpush.msra.mxu0 0.0
      %4947 = vmatpush.msra.mxu0 0.0
      %4948 = vmatpush.msra.mxu0 0.0
      %4949 = vmatpush.msra.mxu0 %v4810
      %4950 = vmatmul.f32.gmra.mxu0 %v4796
      %v4951 = vpop.f32.mrf.mxu0
      %v4952 = vadd.f32 0.0, %v4951
      %4953 = vdwg.mxu0
      %4954 = vmatpush.msra.mxu0 0.0
      %4955 = vmatpush.msra.mxu0 0.0
      %4956 = vmatpush.msra.mxu0 0.0
      %4957 = vmatpush.msra.mxu0 0.0
      %4958 = vmatpush.msra.mxu0 0.0
      %4959 = vmatpush.msra.mxu0 0.0
      %4960 = vmatpush.msra.mxu0 0.0
      %4961 = vmatpush.msra.mxu0 0.0
      %4962 = vmatpush.msra.mxu0 0.0
      %4963 = vmatpush.msra.mxu0 0.0
      %4964 = vmatpush.msra.mxu0 0.0
      %4965 = vmatpush.msra.mxu0 0.0
      %4966 = vmatpush.msra.mxu0 0.0
      %4967 = vmatpush.msra.mxu0 0.0
      %4968 = vmatpush.msra.mxu0 0.0
      %4969 = vmatpush.msra.mxu0 %v4812
      %4970 = vmatmul.f32.gmra.mxu0 %v4796
      %v4971 = vpop.f32.mrf.mxu0
      %v4972 = vadd.f32 0.0, %v4971
      %4973 = vdwg.mxu0
      %v4974 = vadd.f32 %v4754, %v4832
      %v4975 = vadd.f32 %v4755, %v4852
      %v4976 = vadd.f32 %v4756, %v4872
      %v4977 = vadd.f32 %v4757, %v4892
      %v4978 = vadd.f32 %v4758, %v4912
      %v4979 = vadd.f32 %v4759, %v4932
      %v4980 = vadd.f32 %v4760, %v4952
      %v4981 = vadd.f32 %v4761, %v4972
      %v4982 = vld [vmem:[%s4765] sm:$0xff]
      %v4983 = vld [vmem:[%s4765 + $0x8] sm:$0xff]
      %v4984 = vld [vmem:[%s4765 + $0x10] sm:$0xff]
      %v4985 = vld [vmem:[%s4765 + $0x18] sm:$0xff]
      %v4986 = vld [vmem:[%s4765 + $0x20] sm:$0xf]
      %s4987 = scalar_lea.vmem %s1, 152
      %v4988 = vld [vmem:[%s4987] sm:$0xff]
      %4994 = vst [vmem:[#allocation1] ss:$2 sm:$0xff] %v4982
      %s4995 = scalar_lea.vmem [#allocation1], 16
      %4996 = vst [vmem:[%s4995] ss:$2 sm:$0xff] %v4983
      %s4997 = scalar_lea.vmem [#allocation1], 32
      %4998 = vst [vmem:[%s4997] ss:$2 sm:$0xff] %v4984
      %s4999 = scalar_lea.vmem [#allocation1], 48
      %5000 = vst [vmem:[%s4999] ss:$2 sm:$0xff] %v4985
      %v5001 = vld.sshfl [vmem:[#allocation1] sm:$0xff pattern:$0x75316420]
      %v5002 = vld.sshfl [vmem:[#allocation1 + $0x8] sm:$0xff pattern:$0x75316420]
      %v5003 = vld.sshfl [vmem:[#allocation1 + $0x10] sm:$0xff pattern:$0x75316420]
      %v5004 = vld.sshfl [vmem:[#allocation1 + $0x18] sm:$0xff pattern:$0x75316420]
      %v5005 = vld.sshfl [vmem:[#allocation1 + $0x20] sm:$0xff pattern:$0x75316420]
      %v5006 = vld.sshfl [vmem:[#allocation1 + $0x28] sm:$0xff pattern:$0x75316420]
      %v5007 = vld.sshfl [vmem:[#allocation1 + $0x30] sm:$0xff pattern:$0x75316420]
      %v5008 = vld.sshfl [vmem:[#allocation1 + $0x38] sm:$0xff pattern:$0x75316420]
      %5009 = vst [vmem:[#allocation1] ss:$2 sm:$0xff] %v4986
      %v5010 = vld.sshfl [vmem:[#allocation1] sm:$0xff pattern:$0x75316420]
      %5011 = vrot.lane.b32.xlu0 %v5001, 127
      %v5012 = vpop.permute.xlu0 %5011
      %5013 = vrot.lane.b32.xlu0 %v5002, 127
      %v5014 = vpop.permute.xlu0 %5013
      %5015 = vrot.lane.b32.xlu0 %v5003, 127
      %v5016 = vpop.permute.xlu0 %5015
      %5017 = vrot.lane.b32.xlu0 %v5004, 127
      %v5018 = vpop.permute.xlu0 %5017
      %5019 = vrot.lane.b32.xlu0 %v5005, 127
      %v5020 = vpop.permute.xlu0 %5019
      %5021 = vrot.lane.b32.xlu0 %v5006, 127
      %v5022 = vpop.permute.xlu0 %5021
      %5023 = vrot.lane.b32.xlu0 %v5007, 127
      %v5024 = vpop.permute.xlu0 %5023
      %5025 = vrot.lane.b32.xlu0 %v5008, 127
      %v5026 = vpop.permute.xlu0 %5025
      %5027 = vrot.lane.b32.xlu0 %v5010, 127
      %v5028 = vpop.permute.xlu0 %5027
      %v5029 = vsel %vm327, %v5012, %v5014
      %v5030 = vsel %vm327, %v5014, %v5016
      %v5031 = vsel %vm327, %v5016, %v5018
      %v5032 = vsel %vm327, %v5018, %v5020
      %v5033 = vsel %vm327, %v5020, %v5022
      %v5034 = vsel %vm327, %v5022, %v5024
      %v5035 = vsel %vm327, %v5024, %v5026
      %v5036 = vsel %vm327, %v5026, %v5028
      %v5038 = vsel %vm336, %v4988, 0
      %v5040 = vsel %vm270, %v5029, 0
      %v5042 = vsel %vm270, %v5030, 0
      %v5044 = vsel %vm270, %v5031, 0
      %v5046 = vsel %vm270, %v5032, 0
      %v5048 = vsel %vm270, %v5033, 0
      %v5050 = vsel %vm270, %v5034, 0
      %v5052 = vsel %vm270, %v5035, 0
      %v5054 = vsel %vm270, %v5036, 0
      %5056 = vmatpush.msra.mxu0 0.0
      %5057 = vmatpush.msra.mxu0 0.0
      %5058 = vmatpush.msra.mxu0 0.0
      %5059 = vmatpush.msra.mxu0 0.0
      %5060 = vmatpush.msra.mxu0 0.0
      %5061 = vmatpush.msra.mxu0 0.0
      %5062 = vmatpush.msra.mxu0 0.0
      %5063 = vmatpush.msra.mxu0 0.0
      %5064 = vmatpush.msra.mxu0 0.0
      %5065 = vmatpush.msra.mxu0 0.0
      %5066 = vmatpush.msra.mxu0 0.0
      %5067 = vmatpush.msra.mxu0 0.0
      %5068 = vmatpush.msra.mxu0 0.0
      %5069 = vmatpush.msra.mxu0 0.0
      %5070 = vmatpush.msra.mxu0 0.0
      %5071 = vmatpush.msra.mxu0 %v5040
      %5072 = vmatmul.f32.gmra.mxu0 %v5038
      %v5073 = vpop.f32.mrf.mxu0
      %v5074 = vadd.f32 0.0, %v5073
      %5075 = vdwg.mxu0
      %5076 = vmatpush.msra.mxu0 0.0
      %5077 = vmatpush.msra.mxu0 0.0
      %5078 = vmatpush.msra.mxu0 0.0
      %5079 = vmatpush.msra.mxu0 0.0
      %5080 = vmatpush.msra.mxu0 0.0
      %5081 = vmatpush.msra.mxu0 0.0
      %5082 = vmatpush.msra.mxu0 0.0
      %5083 = vmatpush.msra.mxu0 0.0
      %5084 = vmatpush.msra.mxu0 0.0
      %5085 = vmatpush.msra.mxu0 0.0
      %5086 = vmatpush.msra.mxu0 0.0
      %5087 = vmatpush.msra.mxu0 0.0
      %5088 = vmatpush.msra.mxu0 0.0
      %5089 = vmatpush.msra.mxu0 0.0
      %5090 = vmatpush.msra.mxu0 0.0
      %5091 = vmatpush.msra.mxu0 %v5042
      %5092 = vmatmul.f32.gmra.mxu0 %v5038
      %v5093 = vpop.f32.mrf.mxu0
      %v5094 = vadd.f32 0.0, %v5093
      %5095 = vdwg.mxu0
      %5096 = vmatpush.msra.mxu0 0.0
      %5097 = vmatpush.msra.mxu0 0.0
      %5098 = vmatpush.msra.mxu0 0.0
      %5099 = vmatpush.msra.mxu0 0.0
      %5100 = vmatpush.msra.mxu0 0.0
      %5101 = vmatpush.msra.mxu0 0.0
      %5102 = vmatpush.msra.mxu0 0.0
      %5103 = vmatpush.msra.mxu0 0.0
      %5104 = vmatpush.msra.mxu0 0.0
      %5105 = vmatpush.msra.mxu0 0.0
      %5106 = vmatpush.msra.mxu0 0.0
      %5107 = vmatpush.msra.mxu0 0.0
      %5108 = vmatpush.msra.mxu0 0.0
      %5109 = vmatpush.msra.mxu0 0.0
      %5110 = vmatpush.msra.mxu0 0.0
      %5111 = vmatpush.msra.mxu0 %v5044
      %5112 = vmatmul.f32.gmra.mxu0 %v5038
      %v5113 = vpop.f32.mrf.mxu0
      %v5114 = vadd.f32 0.0, %v5113
      %5115 = vdwg.mxu0
      %5116 = vmatpush.msra.mxu0 0.0
      %5117 = vmatpush.msra.mxu0 0.0
      %5118 = vmatpush.msra.mxu0 0.0
      %5119 = vmatpush.msra.mxu0 0.0
      %5120 = vmatpush.msra.mxu0 0.0
      %5121 = vmatpush.msra.mxu0 0.0
      %5122 = vmatpush.msra.mxu0 0.0
      %5123 = vmatpush.msra.mxu0 0.0
      %5124 = vmatpush.msra.mxu0 0.0
      %5125 = vmatpush.msra.mxu0 0.0
      %5126 = vmatpush.msra.mxu0 0.0
      %5127 = vmatpush.msra.mxu0 0.0
      %5128 = vmatpush.msra.mxu0 0.0
      %5129 = vmatpush.msra.mxu0 0.0
      %5130 = vmatpush.msra.mxu0 0.0
      %5131 = vmatpush.msra.mxu0 %v5046
      %5132 = vmatmul.f32.gmra.mxu0 %v5038
      %v5133 = vpop.f32.mrf.mxu0
      %v5134 = vadd.f32 0.0, %v5133
      %5135 = vdwg.mxu0
      %5136 = vmatpush.msra.mxu0 0.0
      %5137 = vmatpush.msra.mxu0 0.0
      %5138 = vmatpush.msra.mxu0 0.0
      %5139 = vmatpush.msra.mxu0 0.0
      %5140 = vmatpush.msra.mxu0 0.0
      %5141 = vmatpush.msra.mxu0 0.0
      %5142 = vmatpush.msra.mxu0 0.0
      %5143 = vmatpush.msra.mxu0 0.0
      %5144 = vmatpush.msra.mxu0 0.0
      %5145 = vmatpush.msra.mxu0 0.0
      %5146 = vmatpush.msra.mxu0 0.0
      %5147 = vmatpush.msra.mxu0 0.0
      %5148 = vmatpush.msra.mxu0 0.0
      %5149 = vmatpush.msra.mxu0 0.0
      %5150 = vmatpush.msra.mxu0 0.0
      %5151 = vmatpush.msra.mxu0 %v5048
      %5152 = vmatmul.f32.gmra.mxu0 %v5038
      %v5153 = vpop.f32.mrf.mxu0
      %v5154 = vadd.f32 0.0, %v5153
      %5155 = vdwg.mxu0
      %5156 = vmatpush.msra.mxu0 0.0
      %5157 = vmatpush.msra.mxu0 0.0
      %5158 = vmatpush.msra.mxu0 0.0
      %5159 = vmatpush.msra.mxu0 0.0
      %5160 = vmatpush.msra.mxu0 0.0
      %5161 = vmatpush.msra.mxu0 0.0
      %5162 = vmatpush.msra.mxu0 0.0
      %5163 = vmatpush.msra.mxu0 0.0
      %5164 = vmatpush.msra.mxu0 0.0
      %5165 = vmatpush.msra.mxu0 0.0
      %5166 = vmatpush.msra.mxu0 0.0
      %5167 = vmatpush.msra.mxu0 0.0
      %5168 = vmatpush.msra.mxu0 0.0
      %5169 = vmatpush.msra.mxu0 0.0
      %5170 = vmatpush.msra.mxu0 0.0
      %5171 = vmatpush.msra.mxu0 %v5050
      %5172 = vmatmul.f32.gmra.mxu0 %v5038
      %v5173 = vpop.f32.mrf.mxu0
      %v5174 = vadd.f32 0.0, %v5173
      %5175 = vdwg.mxu0
      %5176 = vmatpush.msra.mxu0 0.0
      %5177 = vmatpush.msra.mxu0 0.0
      %5178 = vmatpush.msra.mxu0 0.0
      %5179 = vmatpush.msra.mxu0 0.0
      %5180 = vmatpush.msra.mxu0 0.0
      %5181 = vmatpush.msra.mxu0 0.0
      %5182 = vmatpush.msra.mxu0 0.0
      %5183 = vmatpush.msra.mxu0 0.0
      %5184 = vmatpush.msra.mxu0 0.0
      %5185 = vmatpush.msra.mxu0 0.0
      %5186 = vmatpush.msra.mxu0 0.0
      %5187 = vmatpush.msra.mxu0 0.0
      %5188 = vmatpush.msra.mxu0 0.0
      %5189 = vmatpush.msra.mxu0 0.0
      %5190 = vmatpush.msra.mxu0 0.0
      %5191 = vmatpush.msra.mxu0 %v5052
      %5192 = vmatmul.f32.gmra.mxu0 %v5038
      %v5193 = vpop.f32.mrf.mxu0
      %v5194 = vadd.f32 0.0, %v5193
      %5195 = vdwg.mxu0
      %5196 = vmatpush.msra.mxu0 0.0
      %5197 = vmatpush.msra.mxu0 0.0
      %5198 = vmatpush.msra.mxu0 0.0
      %5199 = vmatpush.msra.mxu0 0.0
      %5200 = vmatpush.msra.mxu0 0.0
      %5201 = vmatpush.msra.mxu0 0.0
      %5202 = vmatpush.msra.mxu0 0.0
      %5203 = vmatpush.msra.mxu0 0.0
      %5204 = vmatpush.msra.mxu0 0.0
      %5205 = vmatpush.msra.mxu0 0.0
      %5206 = vmatpush.msra.mxu0 0.0
      %5207 = vmatpush.msra.mxu0 0.0
      %5208 = vmatpush.msra.mxu0 0.0
      %5209 = vmatpush.msra.mxu0 0.0
      %5210 = vmatpush.msra.mxu0 0.0
      %5211 = vmatpush.msra.mxu0 %v5054
      %5212 = vmatmul.f32.gmra.mxu0 %v5038
      %v5213 = vpop.f32.mrf.mxu0
      %v5214 = vadd.f32 0.0, %v5213
      %5215 = vdwg.mxu0
      %v5216 = vadd.f32 %v4974, %v5074
      %v5217 = vadd.f32 %v4975, %v5094
      %v5218 = vadd.f32 %v4976, %v5114
      %v5219 = vadd.f32 %v4977, %v5134
      %v5220 = vadd.f32 %v4978, %v5154
      %v5221 = vadd.f32 %v4979, %v5174
      %v5222 = vadd.f32 %v4980, %v5194
      %v5223 = vadd.f32 %v4981, %v5214
      %v5224 = vld [vmem:[%s4765] sm:$0xff]
      %v5225 = vld [vmem:[%s4765 + $0x8] sm:$0xff]
      %v5226 = vld [vmem:[%s4765 + $0x10] sm:$0xff]
      %v5227 = vld [vmem:[%s4765 + $0x18] sm:$0xff]
      %v5228 = vld [vmem:[%s4765 + $0x20] sm:$0xf]
      %v5229 = vmul.f32 %v5224, %v749
      %v5230 = vmul.f32 %v5225, %v751
      %v5231 = vmul.f32 %v5226, %v753
      %v5232 = vmul.f32 %v5227, %v755
      %v5233 = vmul.f32 %v5228, %v747
      %s5234 = scalar_lea.vmem %s1, 160
      %v5235 = vld [vmem:[%s5234] sm:$0xff]
      %5241 = vst [vmem:[#allocation1] ss:$2 sm:$0xff] %v5229
      %s5242 = scalar_lea.vmem [#allocation1], 16
      %5243 = vst [vmem:[%s5242] ss:$2 sm:$0xff] %v5230
      %s5244 = scalar_lea.vmem [#allocation1], 32
      %5245 = vst [vmem:[%s5244] ss:$2 sm:$0xff] %v5231
      %s5246 = scalar_lea.vmem [#allocation1], 48
      %5247 = vst [vmem:[%s5246] ss:$2 sm:$0xff] %v5232
      %v5248 = vld.sshfl [vmem:[#allocation1] sm:$0xff pattern:$0x75316420]
      %v5249 = vld.sshfl [vmem:[#allocation1 + $0x8] sm:$0xff pattern:$0x75316420]
      %v5250 = vld.sshfl [vmem:[#allocation1 + $0x10] sm:$0xff pattern:$0x75316420]
      %v5251 = vld.sshfl [vmem:[#allocation1 + $0x18] sm:$0xff pattern:$0x75316420]
      %v5252 = vld.sshfl [vmem:[#allocation1 + $0x20] sm:$0xff pattern:$0x75316420]
      %v5253 = vld.sshfl [vmem:[#allocation1 + $0x28] sm:$0xff pattern:$0x75316420]
      %v5254 = vld.sshfl [vmem:[#allocation1 + $0x30] sm:$0xff pattern:$0x75316420]
      %v5255 = vld.sshfl [vmem:[#allocation1 + $0x38] sm:$0xff pattern:$0x75316420]
      %5256 = vst [vmem:[#allocation1] ss:$2 sm:$0xff] %v5233
      %v5257 = vld.sshfl [vmem:[#allocation1] sm:$0xff pattern:$0x75316420]
      %5258 = vrot.lane.b32.xlu0 %v5248, 126
      %v5259 = vpop.permute.xlu0 %5258
      %5260 = vrot.lane.b32.xlu0 %v5249, 126
      %v5261 = vpop.permute.xlu0 %5260
      %5262 = vrot.lane.b32.xlu0 %v5250, 126
      %v5263 = vpop.permute.xlu0 %5262
      %5264 = vrot.lane.b32.xlu0 %v5251, 126
      %v5265 = vpop.permute.xlu0 %5264
      %5266 = vrot.lane.b32.xlu0 %v5252, 126
      %v5267 = vpop.permute.xlu0 %5266
      %5268 = vrot.lane.b32.xlu0 %v5253, 126
      %v5269 = vpop.permute.xlu0 %5268
      %5270 = vrot.lane.b32.xlu0 %v5254, 126
      %v5271 = vpop.permute.xlu0 %5270
      %5272 = vrot.lane.b32.xlu0 %v5255, 126
      %v5273 = vpop.permute.xlu0 %5272
      %5274 = vrot.lane.b32.xlu0 %v5257, 126
      %v5275 = vpop.permute.xlu0 %5274
      %v5276 = vsel %vm808, %v5259, %v5261
      %v5277 = vsel %vm808, %v5261, %v5263
      %v5278 = vsel %vm808, %v5263, %v5265
      %v5279 = vsel %vm808, %v5265, %v5267
      %v5280 = vsel %vm808, %v5267, %v5269
      %v5281 = vsel %vm808, %v5269, %v5271
      %v5282 = vsel %vm808, %v5271, %v5273
      %v5283 = vsel %vm808, %v5273, %v5275
      %v5285 = vsel %vm336, %v5235, 0
      %v5287 = vsel %vm270, %v5276, 0
      %v5289 = vsel %vm270, %v5277, 0
      %v5291 = vsel %vm270, %v5278, 0
      %v5293 = vsel %vm270, %v5279, 0
      %v5295 = vsel %vm270, %v5280, 0
      %v5297 = vsel %vm270, %v5281, 0
      %v5299 = vsel %vm270, %v5282, 0
      %v5301 = vsel %vm270, %v5283, 0
      %5303 = vmatpush.msra.mxu0 0.0
      %5304 = vmatpush.msra.mxu0 0.0
      %5305 = vmatpush.msra.mxu0 0.0
      %5306 = vmatpush.msra.mxu0 0.0
      %5307 = vmatpush.msra.mxu0 0.0
      %5308 = vmatpush.msra.mxu0 0.0
      %5309 = vmatpush.msra.mxu0 0.0
      %5310 = vmatpush.msra.mxu0 0.0
      %5311 = vmatpush.msra.mxu0 0.0
      %5312 = vmatpush.msra.mxu0 0.0
      %5313 = vmatpush.msra.mxu0 0.0
      %5314 = vmatpush.msra.mxu0 0.0
      %5315 = vmatpush.msra.mxu0 0.0
      %5316 = vmatpush.msra.mxu0 0.0
      %5317 = vmatpush.msra.mxu0 0.0
      %5318 = vmatpush.msra.mxu0 %v5287
      %5319 = vmatmul.f32.gmra.mxu0 %v5285
      %v5320 = vpop.f32.mrf.mxu0
      %v5321 = vadd.f32 0.0, %v5320
      %5322 = vdwg.mxu0
      %5323 = vmatpush.msra.mxu0 0.0
      %5324 = vmatpush.msra.mxu0 0.0
      %5325 = vmatpush.msra.mxu0 0.0
      %5326 = vmatpush.msra.mxu0 0.0
      %5327 = vmatpush.msra.mxu0 0.0
      %5328 = vmatpush.msra.mxu0 0.0
      %5329 = vmatpush.msra.mxu0 0.0
      %5330 = vmatpush.msra.mxu0 0.0
      %5331 = vmatpush.msra.mxu0 0.0
      %5332 = vmatpush.msra.mxu0 0.0
      %5333 = vmatpush.msra.mxu0 0.0
      %5334 = vmatpush.msra.mxu0 0.0
      %5335 = vmatpush.msra.mxu0 0.0
      %5336 = vmatpush.msra.mxu0 0.0
      %5337 = vmatpush.msra.mxu0 0.0
      %5338 = vmatpush.msra.mxu0 %v5289
      %5339 = vmatmul.f32.gmra.mxu0 %v5285
      %v5340 = vpop.f32.mrf.mxu0
      %v5341 = vadd.f32 0.0, %v5340
      %5342 = vdwg.mxu0
      %5343 = vmatpush.msra.mxu0 0.0
      %5344 = vmatpush.msra.mxu0 0.0
      %5345 = vmatpush.msra.mxu0 0.0
      %5346 = vmatpush.msra.mxu0 0.0
      %5347 = vmatpush.msra.mxu0 0.0
      %5348 = vmatpush.msra.mxu0 0.0
      %5349 = vmatpush.msra.mxu0 0.0
      %5350 = vmatpush.msra.mxu0 0.0
      %5351 = vmatpush.msra.mxu0 0.0
      %5352 = vmatpush.msra.mxu0 0.0
      %5353 = vmatpush.msra.mxu0 0.0
      %5354 = vmatpush.msra.mxu0 0.0
      %5355 = vmatpush.msra.mxu0 0.0
      %5356 = vmatpush.msra.mxu0 0.0
      %5357 = vmatpush.msra.mxu0 0.0
      %5358 = vmatpush.msra.mxu0 %v5291
      %5359 = vmatmul.f32.gmra.mxu0 %v5285
      %v5360 = vpop.f32.mrf.mxu0
      %v5361 = vadd.f32 0.0, %v5360
      %5362 = vdwg.mxu0
      %5363 = vmatpush.msra.mxu0 0.0
      %5364 = vmatpush.msra.mxu0 0.0
      %5365 = vmatpush.msra.mxu0 0.0
      %5366 = vmatpush.msra.mxu0 0.0
      %5367 = vmatpush.msra.mxu0 0.0
      %5368 = vmatpush.msra.mxu0 0.0
      %5369 = vmatpush.msra.mxu0 0.0
      %5370 = vmatpush.msra.mxu0 0.0
      %5371 = vmatpush.msra.mxu0 0.0
      %5372 = vmatpush.msra.mxu0 0.0
      %5373 = vmatpush.msra.mxu0 0.0
      %5374 = vmatpush.msra.mxu0 0.0
      %5375 = vmatpush.msra.mxu0 0.0
      %5376 = vmatpush.msra.mxu0 0.0
      %5377 = vmatpush.msra.mxu0 0.0
      %5378 = vmatpush.msra.mxu0 %v5293
      %5379 = vmatmul.f32.gmra.mxu0 %v5285
      %v5380 = vpop.f32.mrf.mxu0
      %v5381 = vadd.f32 0.0, %v5380
      %5382 = vdwg.mxu0
      %5383 = vmatpush.msra.mxu0 0.0
      %5384 = vmatpush.msra.mxu0 0.0
      %5385 = vmatpush.msra.mxu0 0.0
      %5386 = vmatpush.msra.mxu0 0.0
      %5387 = vmatpush.msra.mxu0 0.0
      %5388 = vmatpush.msra.mxu0 0.0
      %5389 = vmatpush.msra.mxu0 0.0
      %5390 = vmatpush.msra.mxu0 0.0
      %5391 = vmatpush.msra.mxu0 0.0
      %5392 = vmatpush.msra.mxu0 0.0
      %5393 = vmatpush.msra.mxu0 0.0
      %5394 = vmatpush.msra.mxu0 0.0
      %5395 = vmatpush.msra.mxu0 0.0
      %5396 = vmatpush.msra.mxu0 0.0
      %5397 = vmatpush.msra.mxu0 0.0
      %5398 = vmatpush.msra.mxu0 %v5295
      %5399 = vmatmul.f32.gmra.mxu0 %v5285
      %v5400 = vpop.f32.mrf.mxu0
      %v5401 = vadd.f32 0.0, %v5400
      %5402 = vdwg.mxu0
      %5403 = vmatpush.msra.mxu0 0.0
      %5404 = vmatpush.msra.mxu0 0.0
      %5405 = vmatpush.msra.mxu0 0.0
      %5406 = vmatpush.msra.mxu0 0.0
      %5407 = vmatpush.msra.mxu0 0.0
      %5408 = vmatpush.msra.mxu0 0.0
      %5409 = vmatpush.msra.mxu0 0.0
      %5410 = vmatpush.msra.mxu0 0.0
      %5411 = vmatpush.msra.mxu0 0.0
      %5412 = vmatpush.msra.mxu0 0.0
      %5413 = vmatpush.msra.mxu0 0.0
      %5414 = vmatpush.msra.mxu0 0.0
      %5415 = vmatpush.msra.mxu0 0.0
      %5416 = vmatpush.msra.mxu0 0.0
      %5417 = vmatpush.msra.mxu0 0.0
      %5418 = vmatpush.msra.mxu0 %v5297
      %5419 = vmatmul.f32.gmra.mxu0 %v5285
      %v5420 = vpop.f32.mrf.mxu0
      %v5421 = vadd.f32 0.0, %v5420
      %5422 = vdwg.mxu0
      %5423 = vmatpush.msra.mxu0 0.0
      %5424 = vmatpush.msra.mxu0 0.0
      %5425 = vmatpush.msra.mxu0 0.0
      %5426 = vmatpush.msra.mxu0 0.0
      %5427 = vmatpush.msra.mxu0 0.0
      %5428 = vmatpush.msra.mxu0 0.0
      %5429 = vmatpush.msra.mxu0 0.0
      %5430 = vmatpush.msra.mxu0 0.0
      %5431 = vmatpush.msra.mxu0 0.0
      %5432 = vmatpush.msra.mxu0 0.0
      %5433 = vmatpush.msra.mxu0 0.0
      %5434 = vmatpush.msra.mxu0 0.0
      %5435 = vmatpush.msra.mxu0 0.0
      %5436 = vmatpush.msra.mxu0 0.0
      %5437 = vmatpush.msra.mxu0 0.0
      %5438 = vmatpush.msra.mxu0 %v5299
      %5439 = vmatmul.f32.gmra.mxu0 %v5285
      %v5440 = vpop.f32.mrf.mxu0
      %v5441 = vadd.f32 0.0, %v5440
      %5442 = vdwg.mxu0
      %5443 = vmatpush.msra.mxu0 0.0
      %5444 = vmatpush.msra.mxu0 0.0
      %5445 = vmatpush.msra.mxu0 0.0
      %5446 = vmatpush.msra.mxu0 0.0
      %5447 = vmatpush.msra.mxu0 0.0
      %5448 = vmatpush.msra.mxu0 0.0
      %5449 = vmatpush.msra.mxu0 0.0
      %5450 = vmatpush.msra.mxu0 0.0
      %5451 = vmatpush.msra.mxu0 0.0
      %5452 = vmatpush.msra.mxu0 0.0
      %5453 = vmatpush.msra.mxu0 0.0
      %5454 = vmatpush.msra.mxu0 0.0
      %5455 = vmatpush.msra.mxu0 0.0
      %5456 = vmatpush.msra.mxu0 0.0
      %5457 = vmatpush.msra.mxu0 0.0
      %5458 = vmatpush.msra.mxu0 %v5301
      %5459 = vmatmul.f32.gmra.mxu0 %v5285
      %v5460 = vpop.f32.mrf.mxu0
      %v5461 = vadd.f32 0.0, %v5460
      %5462 = vdwg.mxu0
      %v5463 = vadd.f32 %v5216, %v5321
      %v5464 = vadd.f32 %v5217, %v5341
      %v5465 = vadd.f32 %v5218, %v5361
      %v5466 = vadd.f32 %v5219, %v5381
      %v5467 = vadd.f32 %v5220, %v5401
      %v5468 = vadd.f32 %v5221, %v5421
      %v5469 = vadd.f32 %v5222, %v5441
      %v5470 = vadd.f32 %v5223, %v5461
      %v5471 = vld [vmem:[%s4765] sm:$0xff]
      %v5472 = vld [vmem:[%s4765 + $0x8] sm:$0xff]
      %v5473 = vld [vmem:[%s4765 + $0x10] sm:$0xff]
      %v5474 = vld [vmem:[%s4765 + $0x18] sm:$0xff]
      %v5475 = vld [vmem:[%s4765 + $0x20] sm:$0xf]
      %v5476 = vmul.f32 %v5471, %v1022
      %v5477 = vmul.f32 %v5472, %v1024
      %v5478 = vmul.f32 %v5473, %v1026
      %v5479 = vmul.f32 %v5474, %v1028
      %v5480 = vmul.f32 %v5475, %v1020
      %s5481 = scalar_lea.vmem %s1, 168
      %v5482 = vld [vmem:[%s5481] sm:$0xff]
      %5488 = vst [vmem:[#allocation1] ss:$2 sm:$0xff] %v5476
      %s5489 = scalar_lea.vmem [#allocation1], 16
      %5490 = vst [vmem:[%s5489] ss:$2 sm:$0xff] %v5477
      %s5491 = scalar_lea.vmem [#allocation1], 32
      %5492 = vst [vmem:[%s5491] ss:$2 sm:$0xff] %v5478
      %s5493 = scalar_lea.vmem [#allocation1], 48
      %5494 = vst [vmem:[%s5493] ss:$2 sm:$0xff] %v5479
      %v5495 = vld.sshfl [vmem:[#allocation1] sm:$0xff pattern:$0x75316420]
      %v5496 = vld.sshfl [vmem:[#allocation1 + $0x8] sm:$0xff pattern:$0x75316420]
      %v5497 = vld.sshfl [vmem:[#allocation1 + $0x10] sm:$0xff pattern:$0x75316420]
      %v5498 = vld.sshfl [vmem:[#allocation1 + $0x18] sm:$0xff pattern:$0x75316420]
      %v5499 = vld.sshfl [vmem:[#allocation1 + $0x20] sm:$0xff pattern:$0x75316420]
      %v5500 = vld.sshfl [vmem:[#allocation1 + $0x28] sm:$0xff pattern:$0x75316420]
      %v5501 = vld.sshfl [vmem:[#allocation1 + $0x30] sm:$0xff pattern:$0x75316420]
      %v5502 = vld.sshfl [vmem:[#allocation1 + $0x38] sm:$0xff pattern:$0x75316420]
      %5503 = vst [vmem:[#allocation1] ss:$2 sm:$0xff] %v5480
      %v5504 = vld.sshfl [vmem:[#allocation1] sm:$0xff pattern:$0x75316420]
      %5505 = vrot.lane.b32.xlu0 %v5495, 96
      %v5506 = vpop.permute.xlu0 %5505
      %5507 = vrot.lane.b32.xlu0 %v5496, 96
      %v5508 = vpop.permute.xlu0 %5507
      %5509 = vrot.lane.b32.xlu0 %v5497, 96
      %v5510 = vpop.permute.xlu0 %5509
      %5511 = vrot.lane.b32.xlu0 %v5498, 96
      %v5512 = vpop.permute.xlu0 %5511
      %5513 = vrot.lane.b32.xlu0 %v5499, 96
      %v5514 = vpop.permute.xlu0 %5513
      %5515 = vrot.lane.b32.xlu0 %v5500, 96
      %v5516 = vpop.permute.xlu0 %5515
      %5517 = vrot.lane.b32.xlu0 %v5501, 96
      %v5518 = vpop.permute.xlu0 %5517
      %5519 = vrot.lane.b32.xlu0 %v5502, 96
      %v5520 = vpop.permute.xlu0 %5519
      %5521 = vrot.lane.b32.xlu0 %v5504, 96
      %v5522 = vpop.permute.xlu0 %5521
      %v5523 = vsel %vm1081, %v5506, %v5508
      %v5524 = vsel %vm1081, %v5508, %v5510
      %v5525 = vsel %vm1081, %v5510, %v5512
      %v5526 = vsel %vm1081, %v5512, %v5514
      %v5527 = vsel %vm1081, %v5514, %v5516
      %v5528 = vsel %vm1081, %v5516, %v5518
      %v5529 = vsel %vm1081, %v5518, %v5520
      %v5530 = vsel %vm1081, %v5520, %v5522
      %v5532 = vsel %vm336, %v5482, 0
      %v5534 = vsel %vm270, %v5523, 0
      %v5536 = vsel %vm270, %v5524, 0
      %v5538 = vsel %vm270, %v5525, 0
      %v5540 = vsel %vm270, %v5526, 0
      %v5542 = vsel %vm270, %v5527, 0
      %v5544 = vsel %vm270, %v5528, 0
      %v5546 = vsel %vm270, %v5529, 0
      %v5548 = vsel %vm270, %v5530, 0
      %5550 = vmatpush.msra.mxu0 0.0
      %5551 = vmatpush.msra.mxu0 0.0
      %5552 = vmatpush.msra.mxu0 0.0
      %5553 = vmatpush.msra.mxu0 0.0
      %5554 = vmatpush.msra.mxu0 0.0
      %5555 = vmatpush.msra.mxu0 0.0
      %5556 = vmatpush.msra.mxu0 0.0
      %5557 = vmatpush.msra.mxu0 0.0
      %5558 = vmatpush.msra.mxu0 0.0
      %5559 = vmatpush.msra.mxu0 0.0
      %5560 = vmatpush.msra.mxu0 0.0
      %5561 = vmatpush.msra.mxu0 0.0
      %5562 = vmatpush.msra.mxu0 0.0
      %5563 = vmatpush.msra.mxu0 0.0
      %5564 = vmatpush.msra.mxu0 0.0
      %5565 = vmatpush.msra.mxu0 %v5534
      %5566 = vmatmul.f32.gmra.mxu0 %v5532
      %v5567 = vpop.f32.mrf.mxu0
      %v5568 = vadd.f32 0.0, %v5567
      %5569 = vdwg.mxu0
      %5570 = vmatpush.msra.mxu0 0.0
      %5571 = vmatpush.msra.mxu0 0.0
      %5572 = vmatpush.msra.mxu0 0.0
      %5573 = vmatpush.msra.mxu0 0.0
      %5574 = vmatpush.msra.mxu0 0.0
      %5575 = vmatpush.msra.mxu0 0.0
      %5576 = vmatpush.msra.mxu0 0.0
      %5577 = vmatpush.msra.mxu0 0.0
      %5578 = vmatpush.msra.mxu0 0.0
      %5579 = vmatpush.msra.mxu0 0.0
      %5580 = vmatpush.msra.mxu0 0.0
      %5581 = vmatpush.msra.mxu0 0.0
      %5582 = vmatpush.msra.mxu0 0.0
      %5583 = vmatpush.msra.mxu0 0.0
      %5584 = vmatpush.msra.mxu0 0.0
      %5585 = vmatpush.msra.mxu0 %v5536
      %5586 = vmatmul.f32.gmra.mxu0 %v5532
      %v5587 = vpop.f32.mrf.mxu0
      %v5588 = vadd.f32 0.0, %v5587
      %5589 = vdwg.mxu0
      %5590 = vmatpush.msra.mxu0 0.0
      %5591 = vmatpush.msra.mxu0 0.0
      %5592 = vmatpush.msra.mxu0 0.0
      %5593 = vmatpush.msra.mxu0 0.0
      %5594 = vmatpush.msra.mxu0 0.0
      %5595 = vmatpush.msra.mxu0 0.0
      %5596 = vmatpush.msra.mxu0 0.0
      %5597 = vmatpush.msra.mxu0 0.0
      %5598 = vmatpush.msra.mxu0 0.0
      %5599 = vmatpush.msra.mxu0 0.0
      %5600 = vmatpush.msra.mxu0 0.0
      %5601 = vmatpush.msra.mxu0 0.0
      %5602 = vmatpush.msra.mxu0 0.0
      %5603 = vmatpush.msra.mxu0 0.0
      %5604 = vmatpush.msra.mxu0 0.0
      %5605 = vmatpush.msra.mxu0 %v5538
      %5606 = vmatmul.f32.gmra.mxu0 %v5532
      %v5607 = vpop.f32.mrf.mxu0
      %v5608 = vadd.f32 0.0, %v5607
      %5609 = vdwg.mxu0
      %5610 = vmatpush.msra.mxu0 0.0
      %5611 = vmatpush.msra.mxu0 0.0
      %5612 = vmatpush.msra.mxu0 0.0
      %5613 = vmatpush.msra.mxu0 0.0
      %5614 = vmatpush.msra.mxu0 0.0
      %5615 = vmatpush.msra.mxu0 0.0
      %5616 = vmatpush.msra.mxu0 0.0
      %5617 = vmatpush.msra.mxu0 0.0
      %5618 = vmatpush.msra.mxu0 0.0
      %5619 = vmatpush.msra.mxu0 0.0
      %5620 = vmatpush.msra.mxu0 0.0
      %5621 = vmatpush.msra.mxu0 0.0
      %5622 = vmatpush.msra.mxu0 0.0
      %5623 = vmatpush.msra.mxu0 0.0
      %5624 = vmatpush.msra.mxu0 0.0
      %5625 = vmatpush.msra.mxu0 %v5540
      %5626 = vmatmul.f32.gmra.mxu0 %v5532
      %v5627 = vpop.f32.mrf.mxu0
      %v5628 = vadd.f32 0.0, %v5627
      %5629 = vdwg.mxu0
      %5630 = vmatpush.msra.mxu0 0.0
      %5631 = vmatpush.msra.mxu0 0.0
      %5632 = vmatpush.msra.mxu0 0.0
      %5633 = vmatpush.msra.mxu0 0.0
      %5634 = vmatpush.msra.mxu0 0.0
      %5635 = vmatpush.msra.mxu0 0.0
      %5636 = vmatpush.msra.mxu0 0.0
      %5637 = vmatpush.msra.mxu0 0.0
      %5638 = vmatpush.msra.mxu0 0.0
      %5639 = vmatpush.msra.mxu0 0.0
      %5640 = vmatpush.msra.mxu0 0.0
      %5641 = vmatpush.msra.mxu0 0.0
      %5642 = vmatpush.msra.mxu0 0.0
      %5643 = vmatpush.msra.mxu0 0.0
      %5644 = vmatpush.msra.mxu0 0.0
      %5645 = vmatpush.msra.mxu0 %v5542
      %5646 = vmatmul.f32.gmra.mxu0 %v5532
      %v5647 = vpop.f32.mrf.mxu0
      %v5648 = vadd.f32 0.0, %v5647
      %5649 = vdwg.mxu0
      %5650 = vmatpush.msra.mxu0 0.0
      %5651 = vmatpush.msra.mxu0 0.0
      %5652 = vmatpush.msra.mxu0 0.0
      %5653 = vmatpush.msra.mxu0 0.0
      %5654 = vmatpush.msra.mxu0 0.0
      %5655 = vmatpush.msra.mxu0 0.0
      %5656 = vmatpush.msra.mxu0 0.0
      %5657 = vmatpush.msra.mxu0 0.0
      %5658 = vmatpush.msra.mxu0 0.0
      %5659 = vmatpush.msra.mxu0 0.0
      %5660 = vmatpush.msra.mxu0 0.0
      %5661 = vmatpush.msra.mxu0 0.0
      %5662 = vmatpush.msra.mxu0 0.0
      %5663 = vmatpush.msra.mxu0 0.0
      %5664 = vmatpush.msra.mxu0 0.0
      %5665 = vmatpush.msra.mxu0 %v5544
      %5666 = vmatmul.f32.gmra.mxu0 %v5532
      %v5667 = vpop.f32.mrf.mxu0
      %v5668 = vadd.f32 0.0, %v5667
      %5669 = vdwg.mxu0
      %5670 = vmatpush.msra.mxu0 0.0
      %5671 = vmatpush.msra.mxu0 0.0
      %5672 = vmatpush.msra.mxu0 0.0
      %5673 = vmatpush.msra.mxu0 0.0
      %5674 = vmatpush.msra.mxu0 0.0
      %5675 = vmatpush.msra.mxu0 0.0
      %5676 = vmatpush.msra.mxu0 0.0
      %5677 = vmatpush.msra.mxu0 0.0
      %5678 = vmatpush.msra.mxu0 0.0
      %5679 = vmatpush.msra.mxu0 0.0
      %5680 = vmatpush.msra.mxu0 0.0
      %5681 = vmatpush.msra.mxu0 0.0
      %5682 = vmatpush.msra.mxu0 0.0
      %5683 = vmatpush.msra.mxu0 0.0
      %5684 = vmatpush.msra.mxu0 0.0
      %5685 = vmatpush.msra.mxu0 %v5546
      %5686 = vmatmul.f32.gmra.mxu0 %v5532
      %v5687 = vpop.f32.mrf.mxu0
      %v5688 = vadd.f32 0.0, %v5687
      %5689 = vdwg.mxu0
      %5690 = vmatpush.msra.mxu0 0.0
      %5691 = vmatpush.msra.mxu0 0.0
      %5692 = vmatpush.msra.mxu0 0.0
      %5693 = vmatpush.msra.mxu0 0.0
      %5694 = vmatpush.msra.mxu0 0.0
      %5695 = vmatpush.msra.mxu0 0.0
      %5696 = vmatpush.msra.mxu0 0.0
      %5697 = vmatpush.msra.mxu0 0.0
      %5698 = vmatpush.msra.mxu0 0.0
      %5699 = vmatpush.msra.mxu0 0.0
      %5700 = vmatpush.msra.mxu0 0.0
      %5701 = vmatpush.msra.mxu0 0.0
      %5702 = vmatpush.msra.mxu0 0.0
      %5703 = vmatpush.msra.mxu0 0.0
      %5704 = vmatpush.msra.mxu0 0.0
      %5705 = vmatpush.msra.mxu0 %v5548
      %5706 = vmatmul.f32.gmra.mxu0 %v5532
      %v5707 = vpop.f32.mrf.mxu0
      %v5708 = vadd.f32 0.0, %v5707
      %5709 = vdwg.mxu0
      %v5710 = vadd.f32 %v5463, %v5568
      %v5711 = vadd.f32 %v5464, %v5588
      %v5712 = vadd.f32 %v5465, %v5608
      %v5713 = vadd.f32 %v5466, %v5628
      %v5714 = vadd.f32 %v5467, %v5648
      %v5715 = vadd.f32 %v5468, %v5668
      %v5716 = vadd.f32 %v5469, %v5688
      %v5717 = vadd.f32 %v5470, %v5708
      %v5718 = vld [vmem:[%s4765] sm:$0xff]
      %v5719 = vld [vmem:[%s4765 + $0x8] sm:$0xff]
      %v5720 = vld [vmem:[%s4765 + $0x10] sm:$0xff]
      %v5721 = vld [vmem:[%s4765 + $0x18] sm:$0xff]
      %v5722 = vld [vmem:[%s4765 + $0x20] sm:$0xf]
      %s5723 = scalar_lea.vmem %s1, 176
      %v5724 = vld [vmem:[%s5723] sm:$0xff]
      %5730 = vst [vmem:[#allocation1] ss:$2 sm:$0xff] %v5718
      %s5731 = scalar_lea.vmem [#allocation1], 16
      %5732 = vst [vmem:[%s5731] ss:$2 sm:$0xff] %v5719
      %s5733 = scalar_lea.vmem [#allocation1], 32
      %5734 = vst [vmem:[%s5733] ss:$2 sm:$0xff] %v5720
      %s5735 = scalar_lea.vmem [#allocation1], 48
      %5736 = vst [vmem:[%s5735] ss:$2 sm:$0xff] %v5721
      %v5737 = vld.sshfl [vmem:[#allocation1] sm:$0xff pattern:$0x75316420]
      %v5738 = vld.sshfl [vmem:[#allocation1 + $0x8] sm:$0xff pattern:$0x75316420]
      %v5739 = vld.sshfl [vmem:[#allocation1 + $0x10] sm:$0xff pattern:$0x75316420]
      %v5740 = vld.sshfl [vmem:[#allocation1 + $0x18] sm:$0xff pattern:$0x75316420]
      %v5741 = vld.sshfl [vmem:[#allocation1 + $0x20] sm:$0xff pattern:$0x75316420]
      %v5742 = vld.sshfl [vmem:[#allocation1 + $0x28] sm:$0xff pattern:$0x75316420]
      %v5743 = vld.sshfl [vmem:[#allocation1 + $0x30] sm:$0xff pattern:$0x75316420]
      %v5744 = vld.sshfl [vmem:[#allocation1 + $0x38] sm:$0xff pattern:$0x75316420]
      %5745 = vst [vmem:[#allocation1] ss:$2 sm:$0xff] %v5722
      %v5746 = vld.sshfl [vmem:[#allocation1] sm:$0xff pattern:$0x75316420]
      %5747 = vrot.lane.b32.xlu0 %v5737, 95
      %v5748 = vpop.permute.xlu0 %5747
      %5749 = vrot.lane.b32.xlu0 %v5738, 95
      %v5750 = vpop.permute.xlu0 %5749
      %5751 = vrot.lane.b32.xlu0 %v5739, 95
      %v5752 = vpop.permute.xlu0 %5751
      %5753 = vrot.lane.b32.xlu0 %v5740, 95
      %v5754 = vpop.permute.xlu0 %5753
      %5755 = vrot.lane.b32.xlu0 %v5741, 95
      %v5756 = vpop.permute.xlu0 %5755
      %5757 = vrot.lane.b32.xlu0 %v5742, 95
      %v5758 = vpop.permute.xlu0 %5757
      %5759 = vrot.lane.b32.xlu0 %v5743, 95
      %v5760 = vpop.permute.xlu0 %5759
      %5761 = vrot.lane.b32.xlu0 %v5744, 95
      %v5762 = vpop.permute.xlu0 %5761
      %5763 = vrot.lane.b32.xlu0 %v5746, 95
      %v5764 = vpop.permute.xlu0 %5763
      %v5765 = vsel %vm1324, %v5748, %v5750
      %v5766 = vsel %vm1324, %v5750, %v5752
      %v5767 = vsel %vm1324, %v5752, %v5754
      %v5768 = vsel %vm1324, %v5754, %v5756
      %v5769 = vsel %vm1324, %v5756, %v5758
      %v5770 = vsel %vm1324, %v5758, %v5760
      %v5771 = vsel %vm1324, %v5760, %v5762
      %v5772 = vsel %vm1324, %v5762, %v5764
      %v5774 = vsel %vm336, %v5724, 0
      %v5776 = vsel %vm270, %v5765, 0
      %v5778 = vsel %vm270, %v5766, 0
      %v5780 = vsel %vm270, %v5767, 0
      %v5782 = vsel %vm270, %v5768, 0
      %v5784 = vsel %vm270, %v5769, 0
      %v5786 = vsel %vm270, %v5770, 0
      %v5788 = vsel %vm270, %v5771, 0
      %v5790 = vsel %vm270, %v5772, 0
      %5792 = vmatpush.msra.mxu0 0.0
      %5793 = vmatpush.msra.mxu0 0.0
      %5794 = vmatpush.msra.mxu0 0.0
      %5795 = vmatpush.msra.mxu0 0.0
      %5796 = vmatpush.msra.mxu0 0.0
      %5797 = vmatpush.msra.mxu0 0.0
      %5798 = vmatpush.msra.mxu0 0.0
      %5799 = vmatpush.msra.mxu0 0.0
      %5800 = vmatpush.msra.mxu0 0.0
      %5801 = vmatpush.msra.mxu0 0.0
      %5802 = vmatpush.msra.mxu0 0.0
      %5803 = vmatpush.msra.mxu0 0.0
      %5804 = vmatpush.msra.mxu0 0.0
      %5805 = vmatpush.msra.mxu0 0.0
      %5806 = vmatpush.msra.mxu0 0.0
      %5807 = vmatpush.msra.mxu0 %v5776
      %5808 = vmatmul.f32.gmra.mxu0 %v5774
      %v5809 = vpop.f32.mrf.mxu0
      %v5810 = vadd.f32 0.0, %v5809
      %5811 = vdwg.mxu0
      %5812 = vmatpush.msra.mxu0 0.0
      %5813 = vmatpush.msra.mxu0 0.0
      %5814 = vmatpush.msra.mxu0 0.0
      %5815 = vmatpush.msra.mxu0 0.0
      %5816 = vmatpush.msra.mxu0 0.0
      %5817 = vmatpush.msra.mxu0 0.0
      %5818 = vmatpush.msra.mxu0 0.0
      %5819 = vmatpush.msra.mxu0 0.0
      %5820 = vmatpush.msra.mxu0 0.0
      %5821 = vmatpush.msra.mxu0 0.0
      %5822 = vmatpush.msra.mxu0 0.0
      %5823 = vmatpush.msra.mxu0 0.0
      %5824 = vmatpush.msra.mxu0 0.0
      %5825 = vmatpush.msra.mxu0 0.0
      %5826 = vmatpush.msra.mxu0 0.0
      %5827 = vmatpush.msra.mxu0 %v5778
      %5828 = vmatmul.f32.gmra.mxu0 %v5774
      %v5829 = vpop.f32.mrf.mxu0
      %v5830 = vadd.f32 0.0, %v5829
      %5831 = vdwg.mxu0
      %5832 = vmatpush.msra.mxu0 0.0
      %5833 = vmatpush.msra.mxu0 0.0
      %5834 = vmatpush.msra.mxu0 0.0
      %5835 = vmatpush.msra.mxu0 0.0
      %5836 = vmatpush.msra.mxu0 0.0
      %5837 = vmatpush.msra.mxu0 0.0
      %5838 = vmatpush.msra.mxu0 0.0
      %5839 = vmatpush.msra.mxu0 0.0
      %5840 = vmatpush.msra.mxu0 0.0
      %5841 = vmatpush.msra.mxu0 0.0
      %5842 = vmatpush.msra.mxu0 0.0
      %5843 = vmatpush.msra.mxu0 0.0
      %5844 = vmatpush.msra.mxu0 0.0
      %5845 = vmatpush.msra.mxu0 0.0
      %5846 = vmatpush.msra.mxu0 0.0
      %5847 = vmatpush.msra.mxu0 %v5780
      %5848 = vmatmul.f32.gmra.mxu0 %v5774
      %v5849 = vpop.f32.mrf.mxu0
      %v5850 = vadd.f32 0.0, %v5849
      %5851 = vdwg.mxu0
      %5852 = vmatpush.msra.mxu0 0.0
      %5853 = vmatpush.msra.mxu0 0.0
      %5854 = vmatpush.msra.mxu0 0.0
      %5855 = vmatpush.msra.mxu0 0.0
      %5856 = vmatpush.msra.mxu0 0.0
      %5857 = vmatpush.msra.mxu0 0.0
      %5858 = vmatpush.msra.mxu0 0.0
      %5859 = vmatpush.msra.mxu0 0.0
      %5860 = vmatpush.msra.mxu0 0.0
      %5861 = vmatpush.msra.mxu0 0.0
      %5862 = vmatpush.msra.mxu0 0.0
      %5863 = vmatpush.msra.mxu0 0.0
      %5864 = vmatpush.msra.mxu0 0.0
      %5865 = vmatpush.msra.mxu0 0.0
      %5866 = vmatpush.msra.mxu0 0.0
      %5867 = vmatpush.msra.mxu0 %v5782
      %5868 = vmatmul.f32.gmra.mxu0 %v5774
      %v5869 = vpop.f32.mrf.mxu0
      %v5870 = vadd.f32 0.0, %v5869
      %5871 = vdwg.mxu0
      %5872 = vmatpush.msra.mxu0 0.0
      %5873 = vmatpush.msra.mxu0 0.0
      %5874 = vmatpush.msra.mxu0 0.0
      %5875 = vmatpush.msra.mxu0 0.0
      %5876 = vmatpush.msra.mxu0 0.0
      %5877 = vmatpush.msra.mxu0 0.0
      %5878 = vmatpush.msra.mxu0 0.0
      %5879 = vmatpush.msra.mxu0 0.0
      %5880 = vmatpush.msra.mxu0 0.0
      %5881 = vmatpush.msra.mxu0 0.0
      %5882 = vmatpush.msra.mxu0 0.0
      %5883 = vmatpush.msra.mxu0 0.0
      %5884 = vmatpush.msra.mxu0 0.0
      %5885 = vmatpush.msra.mxu0 0.0
      %5886 = vmatpush.msra.mxu0 0.0
      %5887 = vmatpush.msra.mxu0 %v5784
      %5888 = vmatmul.f32.gmra.mxu0 %v5774
      %v5889 = vpop.f32.mrf.mxu0
      %v5890 = vadd.f32 0.0, %v5889
      %5891 = vdwg.mxu0
      %5892 = vmatpush.msra.mxu0 0.0
      %5893 = vmatpush.msra.mxu0 0.0
      %5894 = vmatpush.msra.mxu0 0.0
      %5895 = vmatpush.msra.mxu0 0.0
      %5896 = vmatpush.msra.mxu0 0.0
      %5897 = vmatpush.msra.mxu0 0.0
      %5898 = vmatpush.msra.mxu0 0.0
      %5899 = vmatpush.msra.mxu0 0.0
      %5900 = vmatpush.msra.mxu0 0.0
      %5901 = vmatpush.msra.mxu0 0.0
      %5902 = vmatpush.msra.mxu0 0.0
      %5903 = vmatpush.msra.mxu0 0.0
      %5904 = vmatpush.msra.mxu0 0.0
      %5905 = vmatpush.msra.mxu0 0.0
      %5906 = vmatpush.msra.mxu0 0.0
      %5907 = vmatpush.msra.mxu0 %v5786
      %5908 = vmatmul.f32.gmra.mxu0 %v5774
      %v5909 = vpop.f32.mrf.mxu0
      %v5910 = vadd.f32 0.0, %v5909
      %5911 = vdwg.mxu0
      %5912 = vmatpush.msra.mxu0 0.0
      %5913 = vmatpush.msra.mxu0 0.0
      %5914 = vmatpush.msra.mxu0 0.0
      %5915 = vmatpush.msra.mxu0 0.0
      %5916 = vmatpush.msra.mxu0 0.0
      %5917 = vmatpush.msra.mxu0 0.0
      %5918 = vmatpush.msra.mxu0 0.0
      %5919 = vmatpush.msra.mxu0 0.0
      %5920 = vmatpush.msra.mxu0 0.0
      %5921 = vmatpush.msra.mxu0 0.0
      %5922 = vmatpush.msra.mxu0 0.0
      %5923 = vmatpush.msra.mxu0 0.0
      %5924 = vmatpush.msra.mxu0 0.0
      %5925 = vmatpush.msra.mxu0 0.0
      %5926 = vmatpush.msra.mxu0 0.0
      %5927 = vmatpush.msra.mxu0 %v5788
      %5928 = vmatmul.f32.gmra.mxu0 %v5774
      %v5929 = vpop.f32.mrf.mxu0
      %v5930 = vadd.f32 0.0, %v5929
      %5931 = vdwg.mxu0
      %5932 = vmatpush.msra.mxu0 0.0
      %5933 = vmatpush.msra.mxu0 0.0
      %5934 = vmatpush.msra.mxu0 0.0
      %5935 = vmatpush.msra.mxu0 0.0
      %5936 = vmatpush.msra.mxu0 0.0
      %5937 = vmatpush.msra.mxu0 0.0
      %5938 = vmatpush.msra.mxu0 0.0
      %5939 = vmatpush.msra.mxu0 0.0
      %5940 = vmatpush.msra.mxu0 0.0
      %5941 = vmatpush.msra.mxu0 0.0
      %5942 = vmatpush.msra.mxu0 0.0
      %5943 = vmatpush.msra.mxu0 0.0
      %5944 = vmatpush.msra.mxu0 0.0
      %5945 = vmatpush.msra.mxu0 0.0
      %5946 = vmatpush.msra.mxu0 0.0
      %5947 = vmatpush.msra.mxu0 %v5790
      %5948 = vmatmul.f32.gmra.mxu0 %v5774
      %v5949 = vpop.f32.mrf.mxu0
      %v5950 = vadd.f32 0.0, %v5949
      %5951 = vdwg.mxu0
      %v5952 = vadd.f32 %v5710, %v5810
      %v5953 = vadd.f32 %v5711, %v5830
      %v5954 = vadd.f32 %v5712, %v5850
      %v5955 = vadd.f32 %v5713, %v5870
      %v5956 = vadd.f32 %v5714, %v5890
      %v5957 = vadd.f32 %v5715, %v5910
      %v5958 = vadd.f32 %v5716, %v5930
      %v5959 = vadd.f32 %v5717, %v5950
      %v5960 = vld [vmem:[%s4765] sm:$0xff]
      %v5961 = vld [vmem:[%s4765 + $0x8] sm:$0xff]
      %v5962 = vld [vmem:[%s4765 + $0x10] sm:$0xff]
      %v5963 = vld [vmem:[%s4765 + $0x18] sm:$0xff]
      %v5964 = vld [vmem:[%s4765 + $0x20] sm:$0xf]
      %v5965 = vmul.f32 %v5960, %v1538
      %v5966 = vmul.f32 %v5961, %v1540
      %v5967 = vmul.f32 %v5962, %v1542
      %v5968 = vmul.f32 %v5963, %v1544
      %v5969 = vmul.f32 %v5964, %v1536
      %s5970 = scalar_lea.vmem %s1, 184
      %v5971 = vld [vmem:[%s5970] sm:$0xff]
      %5977 = vst [vmem:[#allocation1] ss:$2 sm:$0xff] %v5965
      %s5978 = scalar_lea.vmem [#allocation1], 16
      %5979 = vst [vmem:[%s5978] ss:$2 sm:$0xff] %v5966
      %s5980 = scalar_lea.vmem [#allocation1], 32
      %5981 = vst [vmem:[%s5980] ss:$2 sm:$0xff] %v5967
      %s5982 = scalar_lea.vmem [#allocation1], 48
      %5983 = vst [vmem:[%s5982] ss:$2 sm:$0xff] %v5968
      %v5984 = vld.sshfl [vmem:[#allocation1] sm:$0xff pattern:$0x75316420]
      %v5985 = vld.sshfl [vmem:[#allocation1 + $0x8] sm:$0xff pattern:$0x75316420]
      %v5986 = vld.sshfl [vmem:[#allocation1 + $0x10] sm:$0xff pattern:$0x75316420]
      %v5987 = vld.sshfl [vmem:[#allocation1 + $0x18] sm:$0xff pattern:$0x75316420]
      %v5988 = vld.sshfl [vmem:[#allocation1 + $0x20] sm:$0xff pattern:$0x75316420]
      %v5989 = vld.sshfl [vmem:[#allocation1 + $0x28] sm:$0xff pattern:$0x75316420]
      %v5990 = vld.sshfl [vmem:[#allocation1 + $0x30] sm:$0xff pattern:$0x75316420]
      %v5991 = vld.sshfl [vmem:[#allocation1 + $0x38] sm:$0xff pattern:$0x75316420]
      %5992 = vst [vmem:[#allocation1] ss:$2 sm:$0xff] %v5969
      %v5993 = vld.sshfl [vmem:[#allocation1] sm:$0xff pattern:$0x75316420]
      %5994 = vrot.lane.b32.xlu0 %v5984, 94
      %v5995 = vpop.permute.xlu0 %5994
      %5996 = vrot.lane.b32.xlu0 %v5985, 94
      %v5997 = vpop.permute.xlu0 %5996
      %5998 = vrot.lane.b32.xlu0 %v5986, 94
      %v5999 = vpop.permute.xlu0 %5998
      %6000 = vrot.lane.b32.xlu0 %v5987, 94
      %v6001 = vpop.permute.xlu0 %6000
      %6002 = vrot.lane.b32.xlu0 %v5988, 94
      %v6003 = vpop.permute.xlu0 %6002
      %6004 = vrot.lane.b32.xlu0 %v5989, 94
      %v6005 = vpop.permute.xlu0 %6004
      %6006 = vrot.lane.b32.xlu0 %v5990, 94
      %v6007 = vpop.permute.xlu0 %6006
      %6008 = vrot.lane.b32.xlu0 %v5991, 94
      %v6009 = vpop.permute.xlu0 %6008
      %6010 = vrot.lane.b32.xlu0 %v5993, 94
      %v6011 = vpop.permute.xlu0 %6010
      %v6012 = vsel %vm1597, %v5995, %v5997
      %v6013 = vsel %vm1597, %v5997, %v5999
      %v6014 = vsel %vm1597, %v5999, %v6001
      %v6015 = vsel %vm1597, %v6001, %v6003
      %v6016 = vsel %vm1597, %v6003, %v6005
      %v6017 = vsel %vm1597, %v6005, %v6007
      %v6018 = vsel %vm1597, %v6007, %v6009
      %v6019 = vsel %vm1597, %v6009, %v6011
      %v6021 = vsel %vm336, %v5971, 0
      %v6023 = vsel %vm270, %v6012, 0
      %v6025 = vsel %vm270, %v6013, 0
      %v6027 = vsel %vm270, %v6014, 0
      %v6029 = vsel %vm270, %v6015, 0
      %v6031 = vsel %vm270, %v6016, 0
      %v6033 = vsel %vm270, %v6017, 0
      %v6035 = vsel %vm270, %v6018, 0
      %v6037 = vsel %vm270, %v6019, 0
      %6039 = vmatpush.msra.mxu0 0.0
      %6040 = vmatpush.msra.mxu0 0.0
      %6041 = vmatpush.msra.mxu0 0.0
      %6042 = vmatpush.msra.mxu0 0.0
      %6043 = vmatpush.msra.mxu0 0.0
      %6044 = vmatpush.msra.mxu0 0.0
      %6045 = vmatpush.msra.mxu0 0.0
      %6046 = vmatpush.msra.mxu0 0.0
      %6047 = vmatpush.msra.mxu0 0.0
      %6048 = vmatpush.msra.mxu0 0.0
      %6049 = vmatpush.msra.mxu0 0.0
      %6050 = vmatpush.msra.mxu0 0.0
      %6051 = vmatpush.msra.mxu0 0.0
      %6052 = vmatpush.msra.mxu0 0.0
      %6053 = vmatpush.msra.mxu0 0.0
      %6054 = vmatpush.msra.mxu0 %v6023
      %6055 = vmatmul.f32.gmra.mxu0 %v6021
      %v6056 = vpop.f32.mrf.mxu0
      %v6057 = vadd.f32 0.0, %v6056
      %6058 = vdwg.mxu0
      %6059 = vmatpush.msra.mxu0 0.0
      %6060 = vmatpush.msra.mxu0 0.0
      %6061 = vmatpush.msra.mxu0 0.0
      %6062 = vmatpush.msra.mxu0 0.0
      %6063 = vmatpush.msra.mxu0 0.0
      %6064 = vmatpush.msra.mxu0 0.0
      %6065 = vmatpush.msra.mxu0 0.0
      %6066 = vmatpush.msra.mxu0 0.0
      %6067 = vmatpush.msra.mxu0 0.0
      %6068 = vmatpush.msra.mxu0 0.0
      %6069 = vmatpush.msra.mxu0 0.0
      %6070 = vmatpush.msra.mxu0 0.0
      %6071 = vmatpush.msra.mxu0 0.0
      %6072 = vmatpush.msra.mxu0 0.0
      %6073 = vmatpush.msra.mxu0 0.0
      %6074 = vmatpush.msra.mxu0 %v6025
      %6075 = vmatmul.f32.gmra.mxu0 %v6021
      %v6076 = vpop.f32.mrf.mxu0
      %v6077 = vadd.f32 0.0, %v6076
      %6078 = vdwg.mxu0
      %6079 = vmatpush.msra.mxu0 0.0
      %6080 = vmatpush.msra.mxu0 0.0
      %6081 = vmatpush.msra.mxu0 0.0
      %6082 = vmatpush.msra.mxu0 0.0
      %6083 = vmatpush.msra.mxu0 0.0
      %6084 = vmatpush.msra.mxu0 0.0
      %6085 = vmatpush.msra.mxu0 0.0
      %6086 = vmatpush.msra.mxu0 0.0
      %6087 = vmatpush.msra.mxu0 0.0
      %6088 = vmatpush.msra.mxu0 0.0
      %6089 = vmatpush.msra.mxu0 0.0
      %6090 = vmatpush.msra.mxu0 0.0
      %6091 = vmatpush.msra.mxu0 0.0
      %6092 = vmatpush.msra.mxu0 0.0
      %6093 = vmatpush.msra.mxu0 0.0
      %6094 = vmatpush.msra.mxu0 %v6027
      %6095 = vmatmul.f32.gmra.mxu0 %v6021
      %v6096 = vpop.f32.mrf.mxu0
      %v6097 = vadd.f32 0.0, %v6096
      %6098 = vdwg.mxu0
      %6099 = vmatpush.msra.mxu0 0.0
      %6100 = vmatpush.msra.mxu0 0.0
      %6101 = vmatpush.msra.mxu0 0.0
      %6102 = vmatpush.msra.mxu0 0.0
      %6103 = vmatpush.msra.mxu0 0.0
      %6104 = vmatpush.msra.mxu0 0.0
      %6105 = vmatpush.msra.mxu0 0.0
      %6106 = vmatpush.msra.mxu0 0.0
      %6107 = vmatpush.msra.mxu0 0.0
      %6108 = vmatpush.msra.mxu0 0.0
      %6109 = vmatpush.msra.mxu0 0.0
      %6110 = vmatpush.msra.mxu0 0.0
      %6111 = vmatpush.msra.mxu0 0.0
      %6112 = vmatpush.msra.mxu0 0.0
      %6113 = vmatpush.msra.mxu0 0.0
      %6114 = vmatpush.msra.mxu0 %v6029
      %6115 = vmatmul.f32.gmra.mxu0 %v6021
      %v6116 = vpop.f32.mrf.mxu0
      %v6117 = vadd.f32 0.0, %v6116
      %6118 = vdwg.mxu0
      %6119 = vmatpush.msra.mxu0 0.0
      %6120 = vmatpush.msra.mxu0 0.0
      %6121 = vmatpush.msra.mxu0 0.0
      %6122 = vmatpush.msra.mxu0 0.0
      %6123 = vmatpush.msra.mxu0 0.0
      %6124 = vmatpush.msra.mxu0 0.0
      %6125 = vmatpush.msra.mxu0 0.0
      %6126 = vmatpush.msra.mxu0 0.0
      %6127 = vmatpush.msra.mxu0 0.0
      %6128 = vmatpush.msra.mxu0 0.0
      %6129 = vmatpush.msra.mxu0 0.0
      %6130 = vmatpush.msra.mxu0 0.0
      %6131 = vmatpush.msra.mxu0 0.0
      %6132 = vmatpush.msra.mxu0 0.0
      %6133 = vmatpush.msra.mxu0 0.0
      %6134 = vmatpush.msra.mxu0 %v6031
      %6135 = vmatmul.f32.gmra.mxu0 %v6021
      %v6136 = vpop.f32.mrf.mxu0
      %v6137 = vadd.f32 0.0, %v6136
      %6138 = vdwg.mxu0
      %6139 = vmatpush.msra.mxu0 0.0
      %6140 = vmatpush.msra.mxu0 0.0
      %6141 = vmatpush.msra.mxu0 0.0
      %6142 = vmatpush.msra.mxu0 0.0
      %6143 = vmatpush.msra.mxu0 0.0
      %6144 = vmatpush.msra.mxu0 0.0
      %6145 = vmatpush.msra.mxu0 0.0
      %6146 = vmatpush.msra.mxu0 0.0
      %6147 = vmatpush.msra.mxu0 0.0
      %6148 = vmatpush.msra.mxu0 0.0
      %6149 = vmatpush.msra.mxu0 0.0
      %6150 = vmatpush.msra.mxu0 0.0
      %6151 = vmatpush.msra.mxu0 0.0
      %6152 = vmatpush.msra.mxu0 0.0
      %6153 = vmatpush.msra.mxu0 0.0
      %6154 = vmatpush.msra.mxu0 %v6033
      %6155 = vmatmul.f32.gmra.mxu0 %v6021
      %v6156 = vpop.f32.mrf.mxu0
      %v6157 = vadd.f32 0.0, %v6156
      %6158 = vdwg.mxu0
      %6159 = vmatpush.msra.mxu0 0.0
      %6160 = vmatpush.msra.mxu0 0.0
      %6161 = vmatpush.msra.mxu0 0.0
      %6162 = vmatpush.msra.mxu0 0.0
      %6163 = vmatpush.msra.mxu0 0.0
      %6164 = vmatpush.msra.mxu0 0.0
      %6165 = vmatpush.msra.mxu0 0.0
      %6166 = vmatpush.msra.mxu0 0.0
      %6167 = vmatpush.msra.mxu0 0.0
      %6168 = vmatpush.msra.mxu0 0.0
      %6169 = vmatpush.msra.mxu0 0.0
      %6170 = vmatpush.msra.mxu0 0.0
      %6171 = vmatpush.msra.mxu0 0.0
      %6172 = vmatpush.msra.mxu0 0.0
      %6173 = vmatpush.msra.mxu0 0.0
      %6174 = vmatpush.msra.mxu0 %v6035
      %6175 = vmatmul.f32.gmra.mxu0 %v6021
      %v6176 = vpop.f32.mrf.mxu0
      %v6177 = vadd.f32 0.0, %v6176
      %6178 = vdwg.mxu0
      %6179 = vmatpush.msra.mxu0 0.0
      %6180 = vmatpush.msra.mxu0 0.0
      %6181 = vmatpush.msra.mxu0 0.0
      %6182 = vmatpush.msra.mxu0 0.0
      %6183 = vmatpush.msra.mxu0 0.0
      %6184 = vmatpush.msra.mxu0 0.0
      %6185 = vmatpush.msra.mxu0 0.0
      %6186 = vmatpush.msra.mxu0 0.0
      %6187 = vmatpush.msra.mxu0 0.0
      %6188 = vmatpush.msra.mxu0 0.0
      %6189 = vmatpush.msra.mxu0 0.0
      %6190 = vmatpush.msra.mxu0 0.0
      %6191 = vmatpush.msra.mxu0 0.0
      %6192 = vmatpush.msra.mxu0 0.0
      %6193 = vmatpush.msra.mxu0 0.0
      %6194 = vmatpush.msra.mxu0 %v6037
      %6195 = vmatmul.f32.gmra.mxu0 %v6021
      %v6196 = vpop.f32.mrf.mxu0
      %v6197 = vadd.f32 0.0, %v6196
      %6198 = vdwg.mxu0
      %v6199 = vadd.f32 %v5952, %v6057
      %v6200 = vadd.f32 %v5953, %v6077
      %v6201 = vadd.f32 %v5954, %v6097
      %v6202 = vadd.f32 %v5955, %v6117
      %v6203 = vadd.f32 %v5956, %v6137
      %v6204 = vadd.f32 %v5957, %v6157
      %v6205 = vadd.f32 %v5958, %v6177
      %v6206 = vadd.f32 %v5959, %v6197
      %v6207 = vld [vmem:[%s4765] sm:$0xff]
      %v6208 = vld [vmem:[%s4765 + $0x8] sm:$0xff]
      %v6209 = vld [vmem:[%s4765 + $0x10] sm:$0xff]
      %v6210 = vld [vmem:[%s4765 + $0x18] sm:$0xff]
      %v6211 = vld [vmem:[%s4765 + $0x20] sm:$0xf]
      %v6212 = vmul.f32 %v6207, %v1811
      %v6213 = vmul.f32 %v6208, %v1813
      %v6214 = vmul.f32 %v6209, %v1815
      %v6215 = vmul.f32 %v6210, %v1817
      %v6216 = vmul.f32 %v6211, %v1809
      %s6217 = scalar_lea.vmem %s1, 192
      %v6218 = vld [vmem:[%s6217] sm:$0xff]
      %6224 = vst [vmem:[#allocation1] ss:$2 sm:$0xff] %v6212
      %s6225 = scalar_lea.vmem [#allocation1], 16
      %6226 = vst [vmem:[%s6225] ss:$2 sm:$0xff] %v6213
      %s6227 = scalar_lea.vmem [#allocation1], 32
      %6228 = vst [vmem:[%s6227] ss:$2 sm:$0xff] %v6214
      %s6229 = scalar_lea.vmem [#allocation1], 48
      %6230 = vst [vmem:[%s6229] ss:$2 sm:$0xff] %v6215
      %v6231 = vld.sshfl [vmem:[#allocation1] sm:$0xff pattern:$0x75316420]
      %v6232 = vld.sshfl [vmem:[#allocation1 + $0x8] sm:$0xff pattern:$0x75316420]
      %v6233 = vld.sshfl [vmem:[#allocation1 + $0x10] sm:$0xff pattern:$0x75316420]
      %v6234 = vld.sshfl [vmem:[#allocation1 + $0x18] sm:$0xff pattern:$0x75316420]
      %v6235 = vld.sshfl [vmem:[#allocation1 + $0x20] sm:$0xff pattern:$0x75316420]
      %v6236 = vld.sshfl [vmem:[#allocation1 + $0x28] sm:$0xff pattern:$0x75316420]
      %v6237 = vld.sshfl [vmem:[#allocation1 + $0x30] sm:$0xff pattern:$0x75316420]
      %v6238 = vld.sshfl [vmem:[#allocation1 + $0x38] sm:$0xff pattern:$0x75316420]
      %6239 = vst [vmem:[#allocation1] ss:$2 sm:$0xff] %v6216
      %v6240 = vld.sshfl [vmem:[#allocation1] sm:$0xff pattern:$0x75316420]
      %6241 = vrot.lane.b32.xlu0 %v6231, 64
      %v6242 = vpop.permute.xlu0 %6241
      %6243 = vrot.lane.b32.xlu0 %v6232, 64
      %v6244 = vpop.permute.xlu0 %6243
      %6245 = vrot.lane.b32.xlu0 %v6233, 64
      %v6246 = vpop.permute.xlu0 %6245
      %6247 = vrot.lane.b32.xlu0 %v6234, 64
      %v6248 = vpop.permute.xlu0 %6247
      %6249 = vrot.lane.b32.xlu0 %v6235, 64
      %v6250 = vpop.permute.xlu0 %6249
      %6251 = vrot.lane.b32.xlu0 %v6236, 64
      %v6252 = vpop.permute.xlu0 %6251
      %6253 = vrot.lane.b32.xlu0 %v6237, 64
      %v6254 = vpop.permute.xlu0 %6253
      %6255 = vrot.lane.b32.xlu0 %v6238, 64
      %v6256 = vpop.permute.xlu0 %6255
      %6257 = vrot.lane.b32.xlu0 %v6240, 64
      %v6258 = vpop.permute.xlu0 %6257
      %v6259 = vsel %vm1810, %v6242, %v6244
      %v6260 = vsel %vm1810, %v6244, %v6246
      %v6261 = vsel %vm1810, %v6246, %v6248
      %v6262 = vsel %vm1810, %v6248, %v6250
      %v6263 = vsel %vm1810, %v6250, %v6252
      %v6264 = vsel %vm1810, %v6252, %v6254
      %v6265 = vsel %vm1810, %v6254, %v6256
      %v6266 = vsel %vm1810, %v6256, %v6258
      %v6268 = vsel %vm336, %v6218, 0
      %v6270 = vsel %vm270, %v6259, 0
      %v6272 = vsel %vm270, %v6260, 0
      %v6274 = vsel %vm270, %v6261, 0
      %v6276 = vsel %vm270, %v6262, 0
      %v6278 = vsel %vm270, %v6263, 0
      %v6280 = vsel %vm270, %v6264, 0
      %v6282 = vsel %vm270, %v6265, 0
      %v6284 = vsel %vm270, %v6266, 0
      %6286 = vmatpush.msra.mxu0 0.0
      %6287 = vmatpush.msra.mxu0 0.0
      %6288 = vmatpush.msra.mxu0 0.0
      %6289 = vmatpush.msra.mxu0 0.0
      %6290 = vmatpush.msra.mxu0 0.0
      %6291 = vmatpush.msra.mxu0 0.0
      %6292 = vmatpush.msra.mxu0 0.0
      %6293 = vmatpush.msra.mxu0 0.0
      %6294 = vmatpush.msra.mxu0 0.0
      %6295 = vmatpush.msra.mxu0 0.0
      %6296 = vmatpush.msra.mxu0 0.0
      %6297 = vmatpush.msra.mxu0 0.0
      %6298 = vmatpush.msra.mxu0 0.0
      %6299 = vmatpush.msra.mxu0 0.0
      %6300 = vmatpush.msra.mxu0 0.0
      %6301 = vmatpush.msra.mxu0 %v6270
      %6302 = vmatmul.f32.gmra.mxu0 %v6268
      %v6303 = vpop.f32.mrf.mxu0
      %v6304 = vadd.f32 0.0, %v6303
      %6305 = vdwg.mxu0
      %6306 = vmatpush.msra.mxu0 0.0
      %6307 = vmatpush.msra.mxu0 0.0
      %6308 = vmatpush.msra.mxu0 0.0
      %6309 = vmatpush.msra.mxu0 0.0
      %6310 = vmatpush.msra.mxu0 0.0
      %6311 = vmatpush.msra.mxu0 0.0
      %6312 = vmatpush.msra.mxu0 0.0
      %6313 = vmatpush.msra.mxu0 0.0
      %6314 = vmatpush.msra.mxu0 0.0
      %6315 = vmatpush.msra.mxu0 0.0
      %6316 = vmatpush.msra.mxu0 0.0
      %6317 = vmatpush.msra.mxu0 0.0
      %6318 = vmatpush.msra.mxu0 0.0
      %6319 = vmatpush.msra.mxu0 0.0
      %6320 = vmatpush.msra.mxu0 0.0
      %6321 = vmatpush.msra.mxu0 %v6272
      %6322 = vmatmul.f32.gmra.mxu0 %v6268
      %v6323 = vpop.f32.mrf.mxu0
      %v6324 = vadd.f32 0.0, %v6323
      %6325 = vdwg.mxu0
      %6326 = vmatpush.msra.mxu0 0.0
      %6327 = vmatpush.msra.mxu0 0.0
      %6328 = vmatpush.msra.mxu0 0.0
      %6329 = vmatpush.msra.mxu0 0.0
      %6330 = vmatpush.msra.mxu0 0.0
      %6331 = vmatpush.msra.mxu0 0.0
      %6332 = vmatpush.msra.mxu0 0.0
      %6333 = vmatpush.msra.mxu0 0.0
      %6334 = vmatpush.msra.mxu0 0.0
      %6335 = vmatpush.msra.mxu0 0.0
      %6336 = vmatpush.msra.mxu0 0.0
      %6337 = vmatpush.msra.mxu0 0.0
      %6338 = vmatpush.msra.mxu0 0.0
      %6339 = vmatpush.msra.mxu0 0.0
      %6340 = vmatpush.msra.mxu0 0.0
      %6341 = vmatpush.msra.mxu0 %v6274
      %6342 = vmatmul.f32.gmra.mxu0 %v6268
      %v6343 = vpop.f32.mrf.mxu0
      %v6344 = vadd.f32 0.0, %v6343
      %6345 = vdwg.mxu0
      %6346 = vmatpush.msra.mxu0 0.0
      %6347 = vmatpush.msra.mxu0 0.0
      %6348 = vmatpush.msra.mxu0 0.0
      %6349 = vmatpush.msra.mxu0 0.0
      %6350 = vmatpush.msra.mxu0 0.0
      %6351 = vmatpush.msra.mxu0 0.0
      %6352 = vmatpush.msra.mxu0 0.0
      %6353 = vmatpush.msra.mxu0 0.0
      %6354 = vmatpush.msra.mxu0 0.0
      %6355 = vmatpush.msra.mxu0 0.0
      %6356 = vmatpush.msra.mxu0 0.0
      %6357 = vmatpush.msra.mxu0 0.0
      %6358 = vmatpush.msra.mxu0 0.0
      %6359 = vmatpush.msra.mxu0 0.0
      %6360 = vmatpush.msra.mxu0 0.0
      %6361 = vmatpush.msra.mxu0 %v6276
      %6362 = vmatmul.f32.gmra.mxu0 %v6268
      %v6363 = vpop.f32.mrf.mxu0
      %v6364 = vadd.f32 0.0, %v6363
      %6365 = vdwg.mxu0
      %6366 = vmatpush.msra.mxu0 0.0
      %6367 = vmatpush.msra.mxu0 0.0
      %6368 = vmatpush.msra.mxu0 0.0
      %6369 = vmatpush.msra.mxu0 0.0
      %6370 = vmatpush.msra.mxu0 0.0
      %6371 = vmatpush.msra.mxu0 0.0
      %6372 = vmatpush.msra.mxu0 0.0
      %6373 = vmatpush.msra.mxu0 0.0
      %6374 = vmatpush.msra.mxu0 0.0
      %6375 = vmatpush.msra.mxu0 0.0
      %6376 = vmatpush.msra.mxu0 0.0
      %6377 = vmatpush.msra.mxu0 0.0
      %6378 = vmatpush.msra.mxu0 0.0
      %6379 = vmatpush.msra.mxu0 0.0
      %6380 = vmatpush.msra.mxu0 0.0
      %6381 = vmatpush.msra.mxu0 %v6278
      %6382 = vmatmul.f32.gmra.mxu0 %v6268
      %v6383 = vpop.f32.mrf.mxu0
      %v6384 = vadd.f32 0.0, %v6383
      %6385 = vdwg.mxu0
      %6386 = vmatpush.msra.mxu0 0.0
      %6387 = vmatpush.msra.mxu0 0.0
      %6388 = vmatpush.msra.mxu0 0.0
      %6389 = vmatpush.msra.mxu0 0.0
      %6390 = vmatpush.msra.mxu0 0.0
      %6391 = vmatpush.msra.mxu0 0.0
      %6392 = vmatpush.msra.mxu0 0.0
      %6393 = vmatpush.msra.mxu0 0.0
      %6394 = vmatpush.msra.mxu0 0.0
      %6395 = vmatpush.msra.mxu0 0.0
      %6396 = vmatpush.msra.mxu0 0.0
      %6397 = vmatpush.msra.mxu0 0.0
      %6398 = vmatpush.msra.mxu0 0.0
      %6399 = vmatpush.msra.mxu0 0.0
      %6400 = vmatpush.msra.mxu0 0.0
      %6401 = vmatpush.msra.mxu0 %v6280
      %6402 = vmatmul.f32.gmra.mxu0 %v6268
      %v6403 = vpop.f32.mrf.mxu0
      %v6404 = vadd.f32 0.0, %v6403
      %6405 = vdwg.mxu0
      %6406 = vmatpush.msra.mxu0 0.0
      %6407 = vmatpush.msra.mxu0 0.0
      %6408 = vmatpush.msra.mxu0 0.0
      %6409 = vmatpush.msra.mxu0 0.0
      %6410 = vmatpush.msra.mxu0 0.0
      %6411 = vmatpush.msra.mxu0 0.0
      %6412 = vmatpush.msra.mxu0 0.0
      %6413 = vmatpush.msra.mxu0 0.0
      %6414 = vmatpush.msra.mxu0 0.0
      %6415 = vmatpush.msra.mxu0 0.0
      %6416 = vmatpush.msra.mxu0 0.0
      %6417 = vmatpush.msra.mxu0 0.0
      %6418 = vmatpush.msra.mxu0 0.0
      %6419 = vmatpush.msra.mxu0 0.0
      %6420 = vmatpush.msra.mxu0 0.0
      %6421 = vmatpush.msra.mxu0 %v6282
      %6422 = vmatmul.f32.gmra.mxu0 %v6268
      %v6423 = vpop.f32.mrf.mxu0
      %v6424 = vadd.f32 0.0, %v6423
      %6425 = vdwg.mxu0
      %6426 = vmatpush.msra.mxu0 0.0
      %6427 = vmatpush.msra.mxu0 0.0
      %6428 = vmatpush.msra.mxu0 0.0
      %6429 = vmatpush.msra.mxu0 0.0
      %6430 = vmatpush.msra.mxu0 0.0
      %6431 = vmatpush.msra.mxu0 0.0
      %6432 = vmatpush.msra.mxu0 0.0
      %6433 = vmatpush.msra.mxu0 0.0
      %6434 = vmatpush.msra.mxu0 0.0
      %6435 = vmatpush.msra.mxu0 0.0
      %6436 = vmatpush.msra.mxu0 0.0
      %6437 = vmatpush.msra.mxu0 0.0
      %6438 = vmatpush.msra.mxu0 0.0
      %6439 = vmatpush.msra.mxu0 0.0
      %6440 = vmatpush.msra.mxu0 0.0
      %6441 = vmatpush.msra.mxu0 %v6284
      %6442 = vmatmul.f32.gmra.mxu0 %v6268
      %v6443 = vpop.f32.mrf.mxu0
      %v6444 = vadd.f32 0.0, %v6443
      %6445 = vdwg.mxu0
      %v6446 = vadd.f32 %v6199, %v6304
      %v6447 = vadd.f32 %v6200, %v6324
      %v6448 = vadd.f32 %v6201, %v6344
      %v6449 = vadd.f32 %v6202, %v6364
      %v6450 = vadd.f32 %v6203, %v6384
      %v6451 = vadd.f32 %v6204, %v6404
      %v6452 = vadd.f32 %v6205, %v6424
      %v6453 = vadd.f32 %v6206, %v6444
      %v6454 = vld [vmem:[%s4765] sm:$0xff]
      %v6455 = vld [vmem:[%s4765 + $0x8] sm:$0xff]
      %v6456 = vld [vmem:[%s4765 + $0x10] sm:$0xff]
      %v6457 = vld [vmem:[%s4765 + $0x18] sm:$0xff]
      %v6458 = vld [vmem:[%s4765 + $0x20] sm:$0xf]
      %s6459 = scalar_lea.vmem %s1, 200
      %v6460 = vld [vmem:[%s6459] sm:$0xff]
      %6466 = vst [vmem:[#allocation1] ss:$2 sm:$0xff] %v6454
      %s6467 = scalar_lea.vmem [#allocation1], 16
      %6468 = vst [vmem:[%s6467] ss:$2 sm:$0xff] %v6455
      %s6469 = scalar_lea.vmem [#allocation1], 32
      %6470 = vst [vmem:[%s6469] ss:$2 sm:$0xff] %v6456
      %s6471 = scalar_lea.vmem [#allocation1], 48
      %6472 = vst [vmem:[%s6471] ss:$2 sm:$0xff] %v6457
      %v6473 = vld.sshfl [vmem:[#allocation1] sm:$0xff pattern:$0x75316420]
      %v6474 = vld.sshfl [vmem:[#allocation1 + $0x8] sm:$0xff pattern:$0x75316420]
      %v6475 = vld.sshfl [vmem:[#allocation1 + $0x10] sm:$0xff pattern:$0x75316420]
      %v6476 = vld.sshfl [vmem:[#allocation1 + $0x18] sm:$0xff pattern:$0x75316420]
      %v6477 = vld.sshfl [vmem:[#allocation1 + $0x20] sm:$0xff pattern:$0x75316420]
      %v6478 = vld.sshfl [vmem:[#allocation1 + $0x28] sm:$0xff pattern:$0x75316420]
      %v6479 = vld.sshfl [vmem:[#allocation1 + $0x30] sm:$0xff pattern:$0x75316420]
      %v6480 = vld.sshfl [vmem:[#allocation1 + $0x38] sm:$0xff pattern:$0x75316420]
      %6481 = vst [vmem:[#allocation1] ss:$2 sm:$0xff] %v6458
      %v6482 = vld.sshfl [vmem:[#allocation1] sm:$0xff pattern:$0x75316420]
      %6483 = vrot.lane.b32.xlu0 %v6473, 63
      %v6484 = vpop.permute.xlu0 %6483
      %6485 = vrot.lane.b32.xlu0 %v6474, 63
      %v6486 = vpop.permute.xlu0 %6485
      %6487 = vrot.lane.b32.xlu0 %v6475, 63
      %v6488 = vpop.permute.xlu0 %6487
      %6489 = vrot.lane.b32.xlu0 %v6476, 63
      %v6490 = vpop.permute.xlu0 %6489
      %6491 = vrot.lane.b32.xlu0 %v6477, 63
      %v6492 = vpop.permute.xlu0 %6491
      %6493 = vrot.lane.b32.xlu0 %v6478, 63
      %v6494 = vpop.permute.xlu0 %6493
      %6495 = vrot.lane.b32.xlu0 %v6479, 63
      %v6496 = vpop.permute.xlu0 %6495
      %6497 = vrot.lane.b32.xlu0 %v6480, 63
      %v6498 = vpop.permute.xlu0 %6497
      %6499 = vrot.lane.b32.xlu0 %v6482, 63
      %v6500 = vpop.permute.xlu0 %6499
      %v6501 = vsel %vm2112, %v6484, %v6486
      %v6502 = vsel %vm2112, %v6486, %v6488
      %v6503 = vsel %vm2112, %v6488, %v6490
      %v6504 = vsel %vm2112, %v6490, %v6492
      %v6505 = vsel %vm2112, %v6492, %v6494
      %v6506 = vsel %vm2112, %v6494, %v6496
      %v6507 = vsel %vm2112, %v6496, %v6498
      %v6508 = vsel %vm2112, %v6498, %v6500
      %v6510 = vsel %vm336, %v6460, 0
      %v6512 = vsel %vm270, %v6501, 0
      %v6514 = vsel %vm270, %v6502, 0
      %v6516 = vsel %vm270, %v6503, 0
      %v6518 = vsel %vm270, %v6504, 0
      %v6520 = vsel %vm270, %v6505, 0
      %v6522 = vsel %vm270, %v6506, 0
      %v6524 = vsel %vm270, %v6507, 0
      %v6526 = vsel %vm270, %v6508, 0
      %6528 = vmatpush.msra.mxu0 0.0
      %6529 = vmatpush.msra.mxu0 0.0
      %6530 = vmatpush.msra.mxu0 0.0
      %6531 = vmatpush.msra.mxu0 0.0
      %6532 = vmatpush.msra.mxu0 0.0
      %6533 = vmatpush.msra.mxu0 0.0
      %6534 = vmatpush.msra.mxu0 0.0
      %6535 = vmatpush.msra.mxu0 0.0
      %6536 = vmatpush.msra.mxu0 0.0
      %6537 = vmatpush.msra.mxu0 0.0
      %6538 = vmatpush.msra.mxu0 0.0
      %6539 = vmatpush.msra.mxu0 0.0
      %6540 = vmatpush.msra.mxu0 0.0
      %6541 = vmatpush.msra.mxu0 0.0
      %6542 = vmatpush.msra.mxu0 0.0
      %6543 = vmatpush.msra.mxu0 %v6512
      %6544 = vmatmul.f32.gmra.mxu0 %v6510
      %v6545 = vpop.f32.mrf.mxu0
      %v6546 = vadd.f32 0.0, %v6545
      %6547 = vdwg.mxu0
      %6548 = vmatpush.msra.mxu0 0.0
      %6549 = vmatpush.msra.mxu0 0.0
      %6550 = vmatpush.msra.mxu0 0.0
      %6551 = vmatpush.msra.mxu0 0.0
      %6552 = vmatpush.msra.mxu0 0.0
      %6553 = vmatpush.msra.mxu0 0.0
      %6554 = vmatpush.msra.mxu0 0.0
      %6555 = vmatpush.msra.mxu0 0.0
      %6556 = vmatpush.msra.mxu0 0.0
      %6557 = vmatpush.msra.mxu0 0.0
      %6558 = vmatpush.msra.mxu0 0.0
      %6559 = vmatpush.msra.mxu0 0.0
      %6560 = vmatpush.msra.mxu0 0.0
      %6561 = vmatpush.msra.mxu0 0.0
      %6562 = vmatpush.msra.mxu0 0.0
      %6563 = vmatpush.msra.mxu0 %v6514
      %6564 = vmatmul.f32.gmra.mxu0 %v6510
      %v6565 = vpop.f32.mrf.mxu0
      %v6566 = vadd.f32 0.0, %v6565
      %6567 = vdwg.mxu0
      %6568 = vmatpush.msra.mxu0 0.0
      %6569 = vmatpush.msra.mxu0 0.0
      %6570 = vmatpush.msra.mxu0 0.0
      %6571 = vmatpush.msra.mxu0 0.0
      %6572 = vmatpush.msra.mxu0 0.0
      %6573 = vmatpush.msra.mxu0 0.0
      %6574 = vmatpush.msra.mxu0 0.0
      %6575 = vmatpush.msra.mxu0 0.0
      %6576 = vmatpush.msra.mxu0 0.0
      %6577 = vmatpush.msra.mxu0 0.0
      %6578 = vmatpush.msra.mxu0 0.0
      %6579 = vmatpush.msra.mxu0 0.0
      %6580 = vmatpush.msra.mxu0 0.0
      %6581 = vmatpush.msra.mxu0 0.0
      %6582 = vmatpush.msra.mxu0 0.0
      %6583 = vmatpush.msra.mxu0 %v6516
      %6584 = vmatmul.f32.gmra.mxu0 %v6510
      %v6585 = vpop.f32.mrf.mxu0
      %v6586 = vadd.f32 0.0, %v6585
      %6587 = vdwg.mxu0
      %6588 = vmatpush.msra.mxu0 0.0
      %6589 = vmatpush.msra.mxu0 0.0
      %6590 = vmatpush.msra.mxu0 0.0
      %6591 = vmatpush.msra.mxu0 0.0
      %6592 = vmatpush.msra.mxu0 0.0
      %6593 = vmatpush.msra.mxu0 0.0
      %6594 = vmatpush.msra.mxu0 0.0
      %6595 = vmatpush.msra.mxu0 0.0
      %6596 = vmatpush.msra.mxu0 0.0
      %6597 = vmatpush.msra.mxu0 0.0
      %6598 = vmatpush.msra.mxu0 0.0
      %6599 = vmatpush.msra.mxu0 0.0
      %6600 = vmatpush.msra.mxu0 0.0
      %6601 = vmatpush.msra.mxu0 0.0
      %6602 = vmatpush.msra.mxu0 0.0
      %6603 = vmatpush.msra.mxu0 %v6518
      %6604 = vmatmul.f32.gmra.mxu0 %v6510
      %v6605 = vpop.f32.mrf.mxu0
      %v6606 = vadd.f32 0.0, %v6605
      %6607 = vdwg.mxu0
      %6608 = vmatpush.msra.mxu0 0.0
      %6609 = vmatpush.msra.mxu0 0.0
      %6610 = vmatpush.msra.mxu0 0.0
      %6611 = vmatpush.msra.mxu0 0.0
      %6612 = vmatpush.msra.mxu0 0.0
      %6613 = vmatpush.msra.mxu0 0.0
      %6614 = vmatpush.msra.mxu0 0.0
      %6615 = vmatpush.msra.mxu0 0.0
      %6616 = vmatpush.msra.mxu0 0.0
      %6617 = vmatpush.msra.mxu0 0.0
      %6618 = vmatpush.msra.mxu0 0.0
      %6619 = vmatpush.msra.mxu0 0.0
      %6620 = vmatpush.msra.mxu0 0.0
      %6621 = vmatpush.msra.mxu0 0.0
      %6622 = vmatpush.msra.mxu0 0.0
      %6623 = vmatpush.msra.mxu0 %v6520
      %6624 = vmatmul.f32.gmra.mxu0 %v6510
      %v6625 = vpop.f32.mrf.mxu0
      %v6626 = vadd.f32 0.0, %v6625
      %6627 = vdwg.mxu0
      %6628 = vmatpush.msra.mxu0 0.0
      %6629 = vmatpush.msra.mxu0 0.0
      %6630 = vmatpush.msra.mxu0 0.0
      %6631 = vmatpush.msra.mxu0 0.0
      %6632 = vmatpush.msra.mxu0 0.0
      %6633 = vmatpush.msra.mxu0 0.0
      %6634 = vmatpush.msra.mxu0 0.0
      %6635 = vmatpush.msra.mxu0 0.0
      %6636 = vmatpush.msra.mxu0 0.0
      %6637 = vmatpush.msra.mxu0 0.0
      %6638 = vmatpush.msra.mxu0 0.0
      %6639 = vmatpush.msra.mxu0 0.0
      %6640 = vmatpush.msra.mxu0 0.0
      %6641 = vmatpush.msra.mxu0 0.0
      %6642 = vmatpush.msra.mxu0 0.0
      %6643 = vmatpush.msra.mxu0 %v6522
      %6644 = vmatmul.f32.gmra.mxu0 %v6510
      %v6645 = vpop.f32.mrf.mxu0
      %v6646 = vadd.f32 0.0, %v6645
      %6647 = vdwg.mxu0
      %6648 = vmatpush.msra.mxu0 0.0
      %6649 = vmatpush.msra.mxu0 0.0
      %6650 = vmatpush.msra.mxu0 0.0
      %6651 = vmatpush.msra.mxu0 0.0
      %6652 = vmatpush.msra.mxu0 0.0
      %6653 = vmatpush.msra.mxu0 0.0
      %6654 = vmatpush.msra.mxu0 0.0
      %6655 = vmatpush.msra.mxu0 0.0
      %6656 = vmatpush.msra.mxu0 0.0
      %6657 = vmatpush.msra.mxu0 0.0
      %6658 = vmatpush.msra.mxu0 0.0
      %6659 = vmatpush.msra.mxu0 0.0
      %6660 = vmatpush.msra.mxu0 0.0
      %6661 = vmatpush.msra.mxu0 0.0
      %6662 = vmatpush.msra.mxu0 0.0
      %6663 = vmatpush.msra.mxu0 %v6524
      %6664 = vmatmul.f32.gmra.mxu0 %v6510
      %v6665 = vpop.f32.mrf.mxu0
      %v6666 = vadd.f32 0.0, %v6665
      %6667 = vdwg.mxu0
      %6668 = vmatpush.msra.mxu0 0.0
      %6669 = vmatpush.msra.mxu0 0.0
      %6670 = vmatpush.msra.mxu0 0.0
      %6671 = vmatpush.msra.mxu0 0.0
      %6672 = vmatpush.msra.mxu0 0.0
      %6673 = vmatpush.msra.mxu0 0.0
      %6674 = vmatpush.msra.mxu0 0.0
      %6675 = vmatpush.msra.mxu0 0.0
      %6676 = vmatpush.msra.mxu0 0.0
      %6677 = vmatpush.msra.mxu0 0.0
      %6678 = vmatpush.msra.mxu0 0.0
      %6679 = vmatpush.msra.mxu0 0.0
      %6680 = vmatpush.msra.mxu0 0.0
      %6681 = vmatpush.msra.mxu0 0.0
      %6682 = vmatpush.msra.mxu0 0.0
      %6683 = vmatpush.msra.mxu0 %v6526
      %6684 = vmatmul.f32.gmra.mxu0 %v6510
      %v6685 = vpop.f32.mrf.mxu0
      %v6686 = vadd.f32 0.0, %v6685
      %6687 = vdwg.mxu0
      %v6688 = vadd.f32 %v6446, %v6546
      %v6689 = vadd.f32 %v6447, %v6566
      %v6690 = vadd.f32 %v6448, %v6586
      %v6691 = vadd.f32 %v6449, %v6606
      %v6692 = vadd.f32 %v6450, %v6626
      %v6693 = vadd.f32 %v6451, %v6646
      %v6694 = vadd.f32 %v6452, %v6666
      %v6695 = vadd.f32 %v6453, %v6686
      %v6696 = vld [vmem:[%s4765] sm:$0xff]
      %v6697 = vld [vmem:[%s4765 + $0x8] sm:$0xff]
      %v6698 = vld [vmem:[%s4765 + $0x10] sm:$0xff]
      %v6699 = vld [vmem:[%s4765 + $0x18] sm:$0xff]
      %v6700 = vld [vmem:[%s4765 + $0x20] sm:$0xf]
      %v6701 = vmul.f32 %v6696, %v2326
      %v6702 = vmul.f32 %v6697, %v2328
      %v6703 = vmul.f32 %v6698, %v2330
      %v6704 = vmul.f32 %v6699, %v2332
      %v6705 = vmul.f32 %v6700, %v2324
      %s6706 = scalar_lea.vmem %s1, 208
      %v6707 = vld [vmem:[%s6706] sm:$0xff]
      %6713 = vst [vmem:[#allocation1] ss:$2 sm:$0xff] %v6701
      %s6714 = scalar_lea.vmem [#allocation1], 16
      %6715 = vst [vmem:[%s6714] ss:$2 sm:$0xff] %v6702
      %s6716 = scalar_lea.vmem [#allocation1], 32
      %6717 = vst [vmem:[%s6716] ss:$2 sm:$0xff] %v6703
      %s6718 = scalar_lea.vmem [#allocation1], 48
      %6719 = vst [vmem:[%s6718] ss:$2 sm:$0xff] %v6704
      %v6720 = vld.sshfl [vmem:[#allocation1] sm:$0xff pattern:$0x75316420]
      %v6721 = vld.sshfl [vmem:[#allocation1 + $0x8] sm:$0xff pattern:$0x75316420]
      %v6722 = vld.sshfl [vmem:[#allocation1 + $0x10] sm:$0xff pattern:$0x75316420]
      %v6723 = vld.sshfl [vmem:[#allocation1 + $0x18] sm:$0xff pattern:$0x75316420]
      %v6724 = vld.sshfl [vmem:[#allocation1 + $0x20] sm:$0xff pattern:$0x75316420]
      %v6725 = vld.sshfl [vmem:[#allocation1 + $0x28] sm:$0xff pattern:$0x75316420]
      %v6726 = vld.sshfl [vmem:[#allocation1 + $0x30] sm:$0xff pattern:$0x75316420]
      %v6727 = vld.sshfl [vmem:[#allocation1 + $0x38] sm:$0xff pattern:$0x75316420]
      %6728 = vst [vmem:[#allocation1] ss:$2 sm:$0xff] %v6705
      %v6729 = vld.sshfl [vmem:[#allocation1] sm:$0xff pattern:$0x75316420]
      %6730 = vrot.lane.b32.xlu0 %v6720, 62
      %v6731 = vpop.permute.xlu0 %6730
      %6732 = vrot.lane.b32.xlu0 %v6721, 62
      %v6733 = vpop.permute.xlu0 %6732
      %6734 = vrot.lane.b32.xlu0 %v6722, 62
      %v6735 = vpop.permute.xlu0 %6734
      %6736 = vrot.lane.b32.xlu0 %v6723, 62
      %v6737 = vpop.permute.xlu0 %6736
      %6738 = vrot.lane.b32.xlu0 %v6724, 62
      %v6739 = vpop.permute.xlu0 %6738
      %6740 = vrot.lane.b32.xlu0 %v6725, 62
      %v6741 = vpop.permute.xlu0 %6740
      %6742 = vrot.lane.b32.xlu0 %v6726, 62
      %v6743 = vpop.permute.xlu0 %6742
      %6744 = vrot.lane.b32.xlu0 %v6727, 62
      %v6745 = vpop.permute.xlu0 %6744
      %6746 = vrot.lane.b32.xlu0 %v6729, 62
      %v6747 = vpop.permute.xlu0 %6746
      %v6748 = vsel %vm2385, %v6731, %v6733
      %v6749 = vsel %vm2385, %v6733, %v6735
      %v6750 = vsel %vm2385, %v6735, %v6737
      %v6751 = vsel %vm2385, %v6737, %v6739
      %v6752 = vsel %vm2385, %v6739, %v6741
      %v6753 = vsel %vm2385, %v6741, %v6743
      %v6754 = vsel %vm2385, %v6743, %v6745
      %v6755 = vsel %vm2385, %v6745, %v6747
      %v6757 = vsel %vm336, %v6707, 0
      %v6759 = vsel %vm270, %v6748, 0
      %v6761 = vsel %vm270, %v6749, 0
      %v6763 = vsel %vm270, %v6750, 0
      %v6765 = vsel %vm270, %v6751, 0
      %v6767 = vsel %vm270, %v6752, 0
      %v6769 = vsel %vm270, %v6753, 0
      %v6771 = vsel %vm270, %v6754, 0
      %v6773 = vsel %vm270, %v6755, 0
      %6775 = vmatpush.msra.mxu0 0.0
      %6776 = vmatpush.msra.mxu0 0.0
      %6777 = vmatpush.msra.mxu0 0.0
      %6778 = vmatpush.msra.mxu0 0.0
      %6779 = vmatpush.msra.mxu0 0.0
      %6780 = vmatpush.msra.mxu0 0.0
      %6781 = vmatpush.msra.mxu0 0.0
      %6782 = vmatpush.msra.mxu0 0.0
      %6783 = vmatpush.msra.mxu0 0.0
      %6784 = vmatpush.msra.mxu0 0.0
      %6785 = vmatpush.msra.mxu0 0.0
      %6786 = vmatpush.msra.mxu0 0.0
      %6787 = vmatpush.msra.mxu0 0.0
      %6788 = vmatpush.msra.mxu0 0.0
      %6789 = vmatpush.msra.mxu0 0.0
      %6790 = vmatpush.msra.mxu0 %v6759
      %6791 = vmatmul.f32.gmra.mxu0 %v6757
      %v6792 = vpop.f32.mrf.mxu0
      %v6793 = vadd.f32 0.0, %v6792
      %6794 = vdwg.mxu0
      %6795 = vmatpush.msra.mxu0 0.0
      %6796 = vmatpush.msra.mxu0 0.0
      %6797 = vmatpush.msra.mxu0 0.0
      %6798 = vmatpush.msra.mxu0 0.0
      %6799 = vmatpush.msra.mxu0 0.0
      %6800 = vmatpush.msra.mxu0 0.0
      %6801 = vmatpush.msra.mxu0 0.0
      %6802 = vmatpush.msra.mxu0 0.0
      %6803 = vmatpush.msra.mxu0 0.0
      %6804 = vmatpush.msra.mxu0 0.0
      %6805 = vmatpush.msra.mxu0 0.0
      %6806 = vmatpush.msra.mxu0 0.0
      %6807 = vmatpush.msra.mxu0 0.0
      %6808 = vmatpush.msra.mxu0 0.0
      %6809 = vmatpush.msra.mxu0 0.0
      %6810 = vmatpush.msra.mxu0 %v6761
      %6811 = vmatmul.f32.gmra.mxu0 %v6757
      %v6812 = vpop.f32.mrf.mxu0
      %v6813 = vadd.f32 0.0, %v6812
      %6814 = vdwg.mxu0
      %6815 = vmatpush.msra.mxu0 0.0
      %6816 = vmatpush.msra.mxu0 0.0
      %6817 = vmatpush.msra.mxu0 0.0
      %6818 = vmatpush.msra.mxu0 0.0
      %6819 = vmatpush.msra.mxu0 0.0
      %6820 = vmatpush.msra.mxu0 0.0
      %6821 = vmatpush.msra.mxu0 0.0
      %6822 = vmatpush.msra.mxu0 0.0
      %6823 = vmatpush.msra.mxu0 0.0
      %6824 = vmatpush.msra.mxu0 0.0
      %6825 = vmatpush.msra.mxu0 0.0
      %6826 = vmatpush.msra.mxu0 0.0
      %6827 = vmatpush.msra.mxu0 0.0
      %6828 = vmatpush.msra.mxu0 0.0
      %6829 = vmatpush.msra.mxu0 0.0
      %6830 = vmatpush.msra.mxu0 %v6763
      %6831 = vmatmul.f32.gmra.mxu0 %v6757
      %v6832 = vpop.f32.mrf.mxu0
      %v6833 = vadd.f32 0.0, %v6832
      %6834 = vdwg.mxu0
      %6835 = vmatpush.msra.mxu0 0.0
      %6836 = vmatpush.msra.mxu0 0.0
      %6837 = vmatpush.msra.mxu0 0.0
      %6838 = vmatpush.msra.mxu0 0.0
      %6839 = vmatpush.msra.mxu0 0.0
      %6840 = vmatpush.msra.mxu0 0.0
      %6841 = vmatpush.msra.mxu0 0.0
      %6842 = vmatpush.msra.mxu0 0.0
      %6843 = vmatpush.msra.mxu0 0.0
      %6844 = vmatpush.msra.mxu0 0.0
      %6845 = vmatpush.msra.mxu0 0.0
      %6846 = vmatpush.msra.mxu0 0.0
      %6847 = vmatpush.msra.mxu0 0.0
      %6848 = vmatpush.msra.mxu0 0.0
      %6849 = vmatpush.msra.mxu0 0.0
      %6850 = vmatpush.msra.mxu0 %v6765
      %6851 = vmatmul.f32.gmra.mxu0 %v6757
      %v6852 = vpop.f32.mrf.mxu0
      %v6853 = vadd.f32 0.0, %v6852
      %6854 = vdwg.mxu0
      %6855 = vmatpush.msra.mxu0 0.0
      %6856 = vmatpush.msra.mxu0 0.0
      %6857 = vmatpush.msra.mxu0 0.0
      %6858 = vmatpush.msra.mxu0 0.0
      %6859 = vmatpush.msra.mxu0 0.0
      %6860 = vmatpush.msra.mxu0 0.0
      %6861 = vmatpush.msra.mxu0 0.0
      %6862 = vmatpush.msra.mxu0 0.0
      %6863 = vmatpush.msra.mxu0 0.0
      %6864 = vmatpush.msra.mxu0 0.0
      %6865 = vmatpush.msra.mxu0 0.0
      %6866 = vmatpush.msra.mxu0 0.0
      %6867 = vmatpush.msra.mxu0 0.0
      %6868 = vmatpush.msra.mxu0 0.0
      %6869 = vmatpush.msra.mxu0 0.0
      %6870 = vmatpush.msra.mxu0 %v6767
      %6871 = vmatmul.f32.gmra.mxu0 %v6757
      %v6872 = vpop.f32.mrf.mxu0
      %v6873 = vadd.f32 0.0, %v6872
      %6874 = vdwg.mxu0
      %6875 = vmatpush.msra.mxu0 0.0
      %6876 = vmatpush.msra.mxu0 0.0
      %6877 = vmatpush.msra.mxu0 0.0
      %6878 = vmatpush.msra.mxu0 0.0
      %6879 = vmatpush.msra.mxu0 0.0
      %6880 = vmatpush.msra.mxu0 0.0
      %6881 = vmatpush.msra.mxu0 0.0
      %6882 = vmatpush.msra.mxu0 0.0
      %6883 = vmatpush.msra.mxu0 0.0
      %6884 = vmatpush.msra.mxu0 0.0
      %6885 = vmatpush.msra.mxu0 0.0
      %6886 = vmatpush.msra.mxu0 0.0
      %6887 = vmatpush.msra.mxu0 0.0
      %6888 = vmatpush.msra.mxu0 0.0
      %6889 = vmatpush.msra.mxu0 0.0
      %6890 = vmatpush.msra.mxu0 %v6769
      %6891 = vmatmul.f32.gmra.mxu0 %v6757
      %v6892 = vpop.f32.mrf.mxu0
      %v6893 = vadd.f32 0.0, %v6892
      %6894 = vdwg.mxu0
      %6895 = vmatpush.msra.mxu0 0.0
      %6896 = vmatpush.msra.mxu0 0.0
      %6897 = vmatpush.msra.mxu0 0.0
      %6898 = vmatpush.msra.mxu0 0.0
      %6899 = vmatpush.msra.mxu0 0.0
      %6900 = vmatpush.msra.mxu0 0.0
      %6901 = vmatpush.msra.mxu0 0.0
      %6902 = vmatpush.msra.mxu0 0.0
      %6903 = vmatpush.msra.mxu0 0.0
      %6904 = vmatpush.msra.mxu0 0.0
      %6905 = vmatpush.msra.mxu0 0.0
      %6906 = vmatpush.msra.mxu0 0.0
      %6907 = vmatpush.msra.mxu0 0.0
      %6908 = vmatpush.msra.mxu0 0.0
      %6909 = vmatpush.msra.mxu0 0.0
      %6910 = vmatpush.msra.mxu0 %v6771
      %6911 = vmatmul.f32.gmra.mxu0 %v6757
      %v6912 = vpop.f32.mrf.mxu0
      %v6913 = vadd.f32 0.0, %v6912
      %6914 = vdwg.mxu0
      %6915 = vmatpush.msra.mxu0 0.0
      %6916 = vmatpush.msra.mxu0 0.0
      %6917 = vmatpush.msra.mxu0 0.0
      %6918 = vmatpush.msra.mxu0 0.0
      %6919 = vmatpush.msra.mxu0 0.0
      %6920 = vmatpush.msra.mxu0 0.0
      %6921 = vmatpush.msra.mxu0 0.0
      %6922 = vmatpush.msra.mxu0 0.0
      %6923 = vmatpush.msra.mxu0 0.0
      %6924 = vmatpush.msra.mxu0 0.0
      %6925 = vmatpush.msra.mxu0 0.0
      %6926 = vmatpush.msra.mxu0 0.0
      %6927 = vmatpush.msra.mxu0 0.0
      %6928 = vmatpush.msra.mxu0 0.0
      %6929 = vmatpush.msra.mxu0 0.0
      %6930 = vmatpush.msra.mxu0 %v6773
      %6931 = vmatmul.f32.gmra.mxu0 %v6757
      %v6932 = vpop.f32.mrf.mxu0
      %v6933 = vadd.f32 0.0, %v6932
      %6934 = vdwg.mxu0
      %v6935 = vadd.f32 %v6688, %v6793
      %v6936 = vadd.f32 %v6689, %v6813
      %v6937 = vadd.f32 %v6690, %v6833
      %v6938 = vadd.f32 %v6691, %v6853
      %v6939 = vadd.f32 %v6692, %v6873
      %v6940 = vadd.f32 %v6693, %v6893
      %v6941 = vadd.f32 %v6694, %v6913
      %v6942 = vadd.f32 %v6695, %v6933
      %v6943 = vld [vmem:[%s2] sm:$0xff]
      %6945 = vset.pattern.permute.xlu0 0
      %6946 = vperm.xlu0 %6945, %v6943
      %v6947 = vpop.permute.xlu0 %6946
      %v6949 = vadd.f32 %v6935, %v6947
      %v6950 = vadd.f32 %v6936, %v6947
      %v6951 = vadd.f32 %v6937, %v6947
      %v6952 = vadd.f32 %v6938, %v6947
      %v6953 = vadd.f32 %v6939, %v6947
      %v6954 = vadd.f32 %v6940, %v6947
      %v6955 = vadd.f32 %v6941, %v6947
      %v6956 = vadd.f32 %v6942, %v6947
      %v6957 = vmax.f32 %v6949, 0.0
      %v6958 = vmax.f32 %v6950, 0.0
      %v6959 = vmax.f32 %v6951, 0.0
      %v6960 = vmax.f32 %v6952, 0.0
      %v6961 = vmax.f32 %v6953, 0.0
      %v6962 = vmax.f32 %v6954, 0.0
      %v6963 = vmax.f32 %v6955, 0.0
      %v6964 = vmax.f32 %v6956, 0.0
      %6965 = vst [vmem:[%s246] sm:$0xff] %v6957
      %6966 = vst [vmem:[%s246 + $0x8] sm:$0xff] %v6958
      %6967 = vst [vmem:[%s246 + $0x10] sm:$0xff] %v6959
      %6968 = vst [vmem:[%s246 + $0x18] sm:$0xff] %v6960
      %6969 = vst [vmem:[%s246 + $0x20] sm:$0xff] %v6961
      %6970 = vst [vmem:[%s246 + $0x28] sm:$0xff] %v6962
      %6971 = vst [vmem:[%s246 + $0x30] sm:$0xff] %v6963
      %6972 = vst [vmem:[%s246 + $0x38] sm:$0xff] %v6964
      %s6973 = smul.u32 8, %s21
      %p6974 = scmp.lt.s32.totalorder %s20, 1
      %s6975 = scalar_select %p6974, %s20, 1
      %p6976 = scmp.lt.s32.totalorder %s6973, 255
      %s6977 = scalar_select %p6976, %s6973, 255
      %s6978 = smul.addr %s6975, 256
      %s6979 = sadd.s32 %s6977, %s6978
      %s6980 = smul.addr %s6979, 8
      %s6981 = scalar_lea.vmem %s5, %s6980
      // Predicated region
      $region41: #{upsampling_forward.1} parent=39 // pred_check
        %p6982 = pneg %p158
      $region42: #{upsampling_forward.1} parent=39 // pred_check_branch
        %6984 = sbr.rel (%p6982) target = $region44
      $region43: #{upsampling_forward.1} parent=39 // pred_region
        %s6985 = smul.u32 8, %s21
      $region44: #{upsampling_forward.1} parent=39 // pred_fallthru
        _
    $region40: #{upsampling_forward.1} parent=5 // pred_fallthru
      _
    %p6986 = scmp.le.s32.totalorder 2, %s11
    // Predicated region
    $region45: #{upsampling_forward.1} parent=5 // pred_check
      %p6987 = pneg %p6986
    $region46: #{upsampling_forward.1} parent=5 // pred_check_branch
      %6989 = sbr.rel (%p6987) target = $region48
    $region47: #{upsampling_forward.1} parent=5 // pred_region
      %s6990 = ssub.s32 %s11, 2
      // Predicated region
      $region49: #{upsampling_forward.1} parent=47 // pred_check
        %p6991 = pneg %p164
      $region50: #{upsampling_forward.1} parent=47 // pred_check_branch
        %6993 = sbr.rel (%p6991) target = $region52
      $region51: #{upsampling_forward.1} parent=47 // pred_region
        %s6994 = smul.u32 8, %s23
        %p6995 = scmp.lt.s32.totalorder %s22, 1
        %s6996 = scalar_select %p6995, %s22, 1
        %p6997 = scmp.lt.s32.totalorder %s6994, 255
        %s6998 = scalar_select %p6997, %s6994, 255
        %s6999 = smul.addr %s6996, 256
        %s7000 = sadd.s32 %s6998, %s6999
        %s7001 = smul.addr %s7000, 8
        %s7002 = scalar_lea.vmem %s5, %s7001
      $region52: #{upsampling_forward.1} parent=47 // pred_fallthru
        _
    $region48: #{upsampling_forward.1} parent=5 // pred_fallthru
      _
  $region6: #{upsampling_forward.1} parent=0 // loop_footer
    %s15 = sadd.s32 1, %s11
  $region7: #{upsampling_forward.1} parent=0 // loop_footer_branch
    %10 = sbr.rel target = $region3
  $region8: #{upsampling_forward.1} parent=0 // loop_exit
    _

</llo_original>
